<compile_context>
chip_gen: v7x
topology: tpu7x:2x2x1
jax: 0.10.0
libtpu: 0.0.40
codegen_flags: <defaults>
</compile_context>

<pallas_src>
import random as pyrandom

import numpy as np
import jax
import jax.numpy as jnp
from jax.experimental import pallas as pl
from jax.experimental.pallas import tpu as pltpu

# ----------------------- config (small, deterministic) -----------------------
NUM_LATENTS = 15            # len(biggan.config.layers) + 1 (Latents default)
Z_DIM = 128
NUM_CLASSES = 1000
IMAGE_SIZE = 128            # BigSleep asserts image_size in (128, 256, 512)
NUM_CUTOUTS = 8             # module default is 128; kept small for the demo
CUT_RES = 224               # CLIP input resolution
PATCH = 16                  # synthetic perceptor patch size
PATCHES = CUT_RES // PATCH  # 14 patches per side
PATCH_FEAT = 3 * PATCHES * PATCHES   # 588 pooled features per cutout
EMBED_DIM = 512
HIDDEN = 256
LOSS_COEF = 100.0
NPIX = 3 * IMAGE_SIZE * IMAGE_SIZE   # 49152
GEN_TILE_N = 8192           # int8 tile = 2 MiB (4 MiB double-buffered); grid=6 (even)

VMEM = pltpu.MemorySpace.VMEM
SMEM = pltpu.MemorySpace.SMEM


# ------------------------------- Pallas kernels -------------------------------
def _latents_kernel(normu_ref, cls_ref, wz_ref, wc_ref,
                    feat_ref, latloss_ref, clsloss_ref):
    # Fused: Latents.forward (sigmoid classes), synthetic BigGAN front-end
    # (project latents + classes, pool over layers), lat_loss and cls_loss.
    normu = normu_ref[...]                                   # (N, Z) f32
    classes = jax.nn.sigmoid(cls_ref[...])                   # (N, K) f32

    # wz / wc are bf16 (halved DMA); accumulate in f32 on the MXU.
    h = jnp.dot(normu.astype(jnp.bfloat16), wz_ref[...],
                preferred_element_type=jnp.float32)
    h = h + jnp.dot(classes.astype(jnp.bfloat16), wc_ref[...],
                    preferred_element_type=jnp.float32)
    feat_ref[...] = jnp.mean(h, axis=0, keepdims=True)       # (1, HIDDEN)

    # --- lat_loss (matches the torch reductions) ---
    n, d = normu.shape
    row_mean = jnp.mean(normu, axis=1, keepdims=True)        # (N, 1)
    diffs = normu - row_mean
    sq = diffs * diffs
    # torch.std(dim=1) is unbiased (ddof = 1)
    std_unb = jnp.sqrt(jnp.sum(sq, axis=1, keepdims=True) / (d - 1))
    loss = jnp.mean(jnp.abs(1.0 - std_unb)) + jnp.mean(jnp.abs(row_mean))
    loss = loss + 4.0 * jnp.maximum(jnp.mean(normu * normu), 1.0)   # thresh_lat = 1
    # per-row skew / kurtosis (population variance in the torch loop);
    # tiny epsilon only guards the degenerate zero-variance row.
    var_pop = jnp.mean(sq, axis=1, keepdims=True)
    z = diffs / jnp.sqrt(var_pop + 1e-20)
    skews = jnp.mean(z * z * z, axis=1, keepdims=True)              # (N, 1)
    kurts = jnp.mean(z * z * z * z, axis=1, keepdims=True) - 3.0    # (N, 1)
    loss = loss + (jnp.sum(jnp.abs(kurts)) + jnp.sum(jnp.abs(skews))) / n
    latloss_ref[0] = loss

    # --- cls_loss: ((50 * topk(smallest 999 of 1000, per row))^2).mean() ---
    # == (sum_all (50x)^2 - sum_rows (50*max_row)^2) / (N * 999)  (x > 0)
    c = 50.0 * classes
    nk, k = c.shape
    total = jnp.sum(c * c)
    row_max = jnp.max(c, axis=1, keepdims=True)
    clsloss_ref[0] = (total - jnp.sum(row_max * row_max)) / (nk * (k - 1))


def _gen_kernel(feat_ref, wq_ref, scale_ref, o_ref):
    # synthetic BigGAN back-end: pixels = tanh(feat @ Wg) in [-1, 1],
    # then Model.forward's (out + 1) / 2.
    # Wg is int8 with per-column scales; dequant to bf16 for the MXU
    # (i8 -> f32 -> bf16: both steps are guaranteed Mosaic-lowerable),
    # apply the per-column scale to the (1, tn) result after the dot.
    w = wq_ref[...].astype(jnp.float32).astype(jnp.bfloat16)          # (H, tn)
    y = jnp.dot(feat_ref[...].astype(jnp.bfloat16), w,
                preferred_element_type=jnp.float32)                   # (1, tn)
    y = y * scale_ref[...]
    # tanh stays in f32 (v5e EUP has no bf16); output stored as bf16
    # (image in [0,1] feeding a mean-pool -> bf16 is ample).
    o_ref[...] = ((jnp.tanh(y) + 1.0) * 0.5).astype(o_ref.dtype)


def _cutout_pool_kernel(img_ref, a_ref, bt_ref, o_ref):
    # Fused rand_cutout + F.interpolate('nearest', 224) + 16x16 mean-pool for
    # ALL cutouts in a single invocation (was a grid of 8):
    #   pooled[i, c] = A_i @ img[c] @ B_i^T
    # Stage 1 stacks the 8 A_i into one (112, 128) LHS -> 3 MXU matmuls.
    # Stage 2 does the 24 tiny (14,128)@(128,14) projections (static unroll).
    a = a_ref[...]                                                    # (112, 128) f32
    t = [jnp.dot(a, img_ref[c].astype(jnp.float32),
                 preferred_element_type=jnp.float32)                  # (112, 128)
         for c in range(3)]
    for i in range(NUM_CUTOUTS):
        bt = bt_ref[i]                                                # (128, 14)
        for c in range(3):
            o_ref[i, c * PATCHES:(c + 1) * PATCHES, :] = jnp.dot(
                t[c][i * PATCHES:(i + 1) * PATCHES, :], bt,
                preferred_element_type=jnp.float32)                   # (14, 14)


def _encode_sim_kernel(feat_ref, wp_ref, bias_ref, txt_ref, coef_ref, o_ref):
    # Synthetic perceptor projection (CLIP normalization already folded into
    # wp/bias) fused with the cosine-similarity loss.  wp is bf16.
    img = jnp.dot(feat_ref[...].astype(jnp.bfloat16), wp_ref[...],
                  preferred_element_type=jnp.float32) + bias_ref[...]        # (C, E)
    t = txt_ref[...]                                                         # (T, E)
    dots = jax.lax.dot_general(t, img, (((1,), (1,)), ((), ())),
                               preferred_element_type=jnp.float32)           # (T, C)
    # torch.cosine_similarity clamps each norm at eps separately
    tnorm = jnp.maximum(jnp.sqrt(jnp.sum(t * t, axis=1, keepdims=True)), 1e-8)   # (T, 1)
    ones = jnp.ones((1, img.shape[1]), jnp.float32)
    in_sq = jax.lax.dot_general(ones, img * img, (((1,), (1,)), ((), ())),
                                preferred_element_type=jnp.float32)          # (1, C)
    inorm = jnp.maximum(jnp.sqrt(in_sq), 1e-8)                               # (1, C)
    cos = dots / (tnorm * inorm)                                             # (T, C)
    per_txt = jnp.mean(cos, axis=1, keepdims=True)                           # (T, 1)
    # coef = sign * loss_coef (sign = -1 for text_embeds, +1 for text_min_embeds)
    o_ref[0] = jnp.sum(coef_ref[...] * per_txt)


# ------------------------------ Pallas wrappers -------------------------------
def latents_and_losses(normu, cls_param, wz_bf16, wc_bf16):
    feat, lat, cls = pl.pallas_call(
        _latents_kernel,
        out_shape=(jax.ShapeDtypeStruct((1, HIDDEN), jnp.float32),
                   jax.ShapeDtypeStruct((1,), jnp.float32),
                   jax.ShapeDtypeStruct((1,), jnp.float32)),
        in_specs=[pl.BlockSpec(memory_space=VMEM)] * 4,
        out_specs=(pl.BlockSpec(memory_space=VMEM),
                   pl.BlockSpec(memory_space=SMEM),
                   pl.BlockSpec(memory_space=SMEM)),
    )(normu, cls_param, wz_bf16, wc_bf16)
    return feat, lat[0], cls[0]


def generate_image(feat, wg_q, wg_scale, tn=GEN_TILE_N):
    hidden, npix = wg_q.shape
    # grid=6 is even so the "parallel" axis splits 3+3 across v7x's 2 TCs.
    # vmem_limit raised to 32 MiB: int8 tile DB (4 MiB) + f32/bf16 dequant
    # intermediates (~12 MiB) exceed v5e's 16 MiB scoped default.
    return pl.pallas_call(
        _gen_kernel,
        out_shape=jax.ShapeDtypeStruct((1, npix), jnp.bfloat16),
        grid=(npix // tn,),
        in_specs=[pl.BlockSpec((1, hidden), lambda j: (0, 0)),
                  pl.BlockSpec((hidden, tn), lambda j: (0, j)),
                  pl.BlockSpec((1, tn), lambda j: (0, j))],
        out_specs=pl.BlockSpec((1, tn), lambda j: (0, j)),
        compiler_params=pltpu.CompilerParams(
            dimension_semantics=("parallel",),
            vmem_limit_bytes=32 * 1024 * 1024),
    )(feat, wg_q, wg_scale)


def cutout_pool(img_chw_bf16, a_stacked, bt_all):
    # Single invocation (no grid) -- the whole image (96 KiB bf16), operators
    # (~60 KiB) and the (8, 42, 14) output fit trivially in VMEM.
    return pl.pallas_call(
        _cutout_pool_kernel,
        out_shape=jax.ShapeDtypeStruct((NUM_CUTOUTS, 3 * PATCHES, PATCHES),
                                       jnp.float32),
        in_specs=[pl.BlockSpec(memory_space=VMEM)] * 3,
        out_specs=pl.BlockSpec(memory_space=VMEM),
    )(img_chw_bf16, a_stacked, bt_all)


def encode_and_sim(feats, wp_folded_bf16, bias, txt, coefs):
    return pl.pallas_call(
        _encode_sim_kernel,
        out_shape=jax.ShapeDtypeStruct((1,), jnp.float32),
        in_specs=[pl.BlockSpec(memory_space=VMEM)] * 5,
        out_specs=pl.BlockSpec(memory_space=SMEM),
    )(feats, wp_folded_bf16, bias, txt, coefs)[0]


# --------------------------- host-side preparation ----------------------------
def quantize_int8_per_column(w_f32):
    # per-output-column symmetric int8 quantization (keeps tanh inputs accurate)
    amax = jnp.max(jnp.abs(w_f32), axis=0, keepdims=True)            # (1, N)
    scale = jnp.maximum(amax, 1e-12) / 127.0
    q = jnp.clip(jnp.round(w_f32 / scale), -127.0, 127.0).astype(jnp.int8)
    return q, scale.astype(jnp.float32)


def make_cutout_operators(seed):
    # rand_cutout + F.interpolate('nearest', 224) + 16x16 mean pool is linear:
    # pooled[c] = A @ img[c] @ B^T, with A/B built from the random offsets
    # (host RNG, like torch/random in the reference).  Built ONCE per step,
    # outside the jitted device path (hoisted per perf review).
    pyrandom.seed(seed)
    width = IMAGE_SIZE
    patch_ids = np.arange(CUT_RES) // PATCH
    a_rows, bt_list = [], []
    for _ in range(NUM_CUTOUTS):
        frac = min(max(pyrandom.gauss(0.8, 0.3), 0.5), 0.95)
        size = int(width * frac)
        max_offset = width - size
        off_x = pyrandom.randint(0, max_offset)
        off_y = pyrandom.randint(0, max_offset)
        idx = (np.arange(CUT_RES) * size) // CUT_RES            # 'nearest'
        rows, cols = off_x + idx, off_y + idx
        a = np.zeros((PATCHES, IMAGE_SIZE), np.float32)
        b = np.zeros((PATCHES, IMAGE_SIZE), np.float32)
        np.add.at(a, (patch_ids, rows), 1.0 / PATCH)
        np.add.at(b, (patch_ids, cols), 1.0 / PATCH)
        a_rows.append(a)
        bt_list.append(b.T)
    a_stacked = jnp.asarray(np.concatenate(a_rows, axis=0))     # (112, 128)
    bt_all = jnp.asarray(np.stack(bt_list))                     # (8, 128, 14)
    return a_stacked, bt_all


def prepare_bigsleep(params, text_embeds, text_min_embeds):
    # Fold CLIP per-channel normalization into the synthetic (linear) perceptor:
    # encode((x - m)/s) == pool(x) @ (wp / s) + (-m/s) @ wp.  Exact only because
    # the stand-in perceptor is avg-pool + linear (would not hold for real CLIP).
    wp = params["wp"]
    mean = np.array([0.48145466, 0.4578275, 0.40821073], np.float32)
    std = np.array([0.26862954, 0.26130258, 0.27577711], np.float32)
    chan = np.repeat(np.arange(3), PATCHES * PATCHES)           # feature order (c, p, q)
    scale = jnp.asarray((1.0 / std)[chan][:, None])             # (588, 1)
    offset = jnp.asarray((-(mean / std))[chan][None, :])        # (1, 588)
    wp_folded = (wp * scale).astype(jnp.bfloat16)
    bias = jnp.dot(offset, wp)                                  # (1, EMBED_DIM) f32
    txt_all = jnp.concatenate(list(text_embeds) + list(text_min_embeds), axis=0)
    coefs = jnp.array([[-LOSS_COEF]] * len(text_embeds)
                      + [[LOSS_COEF]] * len(text_min_embeds), jnp.float32)
    return {"wp_folded": wp_folded, "bias": bias,
            "txt_all": txt_all, "coefs": coefs}


# ------------------------------ BigSleep.forward ------------------------------
@jax.jit
def _device_forward(normu, cls_param, wz, wc, wg_q, wg_scale,
                    a_stacked, bt_all, wp_folded, bias, txt_all, coefs):
    # Latents.forward + feat projection + lat_loss + cls_loss (one pallas_call)
    # TODO(synk): EMA wrapper around Latents is a training-time utility; omitted.
    feat, lat_loss, cls_loss = latents_and_losses(normu, cls_param, wz, wc)

    # Model.forward -> (gan(out) + 1) / 2 ; int8 weights, bf16 MXU, f32 accum.
    pix = generate_image(feat, wg_q, wg_scale)                  # (1, NPIX) bf16
    out = pix.reshape(1, 3, IMAGE_SIZE, IMAGE_SIZE)             # in [0, 1]

    # all cutouts in one launch; output (8, 42, 14) flattens contiguously to
    # the (8, 588) (c, p, q)-ordered feature matrix.
    pooled = cutout_pool(pix.reshape(3, IMAGE_SIZE, IMAGE_SIZE), a_stacked, bt_all)
    feats = pooled.reshape(NUM_CUTOUTS, PATCH_FEAT)

    sim_loss = encode_and_sim(feats, wp_folded, bias, txt_all, coefs)
    return out, lat_loss, cls_loss, sim_loss


def big_sleep_forward(params, prepared, cutout_ops):
    a_stacked, bt_all = cutout_ops
    out, lat_loss, cls_loss, sim_loss = _device_forward(
        params["normu"], params["cls"], params["wz"], params["wc"],
        params["wg_q"], params["wg_scale"], a_stacked, bt_all,
        prepared["wp_folded"], prepared["bias"],
        prepared["txt_all"], prepared["coefs"])
    return out, (lat_loss, cls_loss, sim_loss)


# ------------------------------------ main ------------------------------------
if __name__ == "__main__":
    key = jax.random.PRNGKey(0)
    ks = jax.random.split(key, 9)

    # TODO(synk): pretrained BigGAN replaced by a synthetic 2-stage linear generator.
    wg_f32 = jax.random.normal(ks[4], (HIDDEN, NPIX), jnp.float32) * 0.05
    wg_q, wg_scale = quantize_int8_per_column(wg_f32)   # int8 + per-column scales

    params = {
        # Latents parameters (exact shapes from Latents.__init__)
        "normu": jax.random.normal(ks[0], (NUM_LATENTS, Z_DIM), jnp.float32),
        "cls": jax.random.normal(ks[1], (NUM_LATENTS, NUM_CLASSES), jnp.float32) * 0.3 - 3.9,
        "wz": (jax.random.normal(ks[2], (Z_DIM, HIDDEN), jnp.float32) * 0.05
               ).astype(jnp.bfloat16),
        "wc": (jax.random.normal(ks[3], (NUM_CLASSES, HIDDEN), jnp.float32) * 0.05
               ).astype(jnp.bfloat16),
        "wg_q": wg_q,            # (HIDDEN, NPIX) int8
        "wg_scale": wg_scale,    # (1, NPIX) f32
        # TODO(synk): CLIP perceptor replaced by synthetic patch-avg-pool + linear projection.
        "wp": jax.random.normal(ks[5], (PATCH_FEAT, EMBED_DIM), jnp.float32) * 0.05,
    }
    text_embeds = [jax.random.normal(ks[6], (1, EMBED_DIM), jnp.float32),
                   jax.random.normal(ks[7], (1, EMBED_DIM), jnp.float32)]
    text_min_embeds = [jax.random.normal(ks[8], (1, EMBED_DIM), jnp.float32)]

    # Host-side prep hoisted out of the hot path (perf review).
    prepared = prepare_bigsleep(params, text_embeds, text_min_embeds)
    cutout_ops = make_cutout_operators(seed=0)

    out, (lat_loss, cls_loss, sim_loss) = big_sleep_forward(params, prepared, cutout_ops)
    jax.block_until_ready((out, lat_loss, cls_loss, sim_loss))

    assert out.shape == (1, 3, IMAGE_SIZE, IMAGE_SIZE)
    assert lat_loss.shape == () and cls_loss.shape == () and sim_loss.shape == ()
    assert all(bool(jnp.isfinite(v)) for v in (lat_loss, cls_loss, sim_loss))
    print("KERNEL_OK")
</pallas_src>

<mosaic_0001>
module attributes {stable_mosaic.version = 11 : i64} {
  func.func @_gen_kernel(%arg0: i32, %arg1: memref<1x256xf32, #tpu.memory_space<vmem>>, %arg2: memref<256x8192xi8, #tpu.memory_space<vmem>>, %arg3: memref<1x8192xf32, #tpu.memory_space<vmem>>, %arg4: memref<1x8192xbf16, #tpu.memory_space<vmem>>) attributes {dimension_semantics = [#tpu.dimension_semantics<parallel>], iteration_bounds = array<i64: 6>, scalar_prefetch = 0 : i64, scratch_operands = 0 : i64, tpu.core_type = #tpu.core_type<tc>, window_params = [{pipeline_mode = #tpu.pipeline_mode<synchronous>, transform_indices = @transform_0, window_bounds = array<i64: 1, 256>}, {transform_indices = @transform_1, window_bounds = array<i64: 256, 8192>}, {transform_indices = @transform_2, window_bounds = array<i64: 1, 8192>}, {transform_indices = @transform_3, window_bounds = array<i64: 1, 8192>}]} {
    %c0 = arith.constant 0 : index
    %c0_0 = arith.constant 0 : index
    %0 = vector.load %arg2[%c0, %c0_0] : memref<256x8192xi8, #tpu.memory_space<vmem>>, vector<256x8192xi8>
    %1 = arith.sitofp %0 : vector<256x8192xi8> to vector<256x8192xf32>
    %2 = arith.truncf %1 : vector<256x8192xf32> to vector<256x8192xbf16>
    %c0_1 = arith.constant 0 : index
    %c0_2 = arith.constant 0 : index
    %3 = vector.load %arg1[%c0_1, %c0_2] : memref<1x256xf32, #tpu.memory_space<vmem>>, vector<1x256xf32>
    %4 = arith.truncf %3 : vector<1x256xf32> to vector<1x256xbf16>
    %cst = arith.constant dense<0.000000e+00> : vector<1x8192xf32>
    %5 = tpu.matmul %4, %2, %cst {dimension_numbers = #tpu.dot_dimension_numbers<[1], [0], [0], [1], [0, 0, 1, 1], [], []>} : vector<1x256xbf16>, vector<256x8192xbf16>, vector<1x8192xf32> -> vector<1x8192xf32>
    %c0_3 = arith.constant 0 : index
    %c0_4 = arith.constant 0 : index
    %6 = vector.load %arg3[%c0_3, %c0_4] : memref<1x8192xf32, #tpu.memory_space<vmem>>, vector<1x8192xf32>
    %7 = arith.mulf %5, %6 : vector<1x8192xf32>
    %8 = math.tanh %7 : vector<1x8192xf32>
    %cst_5 = arith.constant 1.000000e+00 : f32
    %9 = vector.broadcast %cst_5 : f32 to vector<1x8192xf32>
    %10 = arith.addf %8, %9 : vector<1x8192xf32>
    %cst_6 = arith.constant 5.000000e-01 : f32
    %11 = vector.broadcast %cst_6 : f32 to vector<1x8192xf32>
    %12 = arith.mulf %10, %11 : vector<1x8192xf32>
    %13 = arith.truncf %12 : vector<1x8192xf32> to vector<1x8192xbf16>
    %c0_7 = arith.constant 0 : index
    %c0_8 = arith.constant 0 : index
    %14 = vector.load %arg4[%c0_7, %c0_8] : memref<1x8192xbf16, #tpu.memory_space<vmem>>, vector<1x8192xbf16>
    tpu.vector_store %arg4[%c0_7, %c0_8], %13 {strides = array<i32>} : memref<1x8192xbf16, #tpu.memory_space<vmem>>, vector<1x8192xbf16>,
    return
  }
  func.func @transform_0(%arg0: i32) -> (i32, i32) {
    %c0_i32 = arith.constant 0 : i32
    %c0_i32_0 = arith.constant 0 : i32
    %c0_i32_1 = arith.constant 0 : i32
    return %c0_i32, %c0_i32_0 : i32, i32
  }
  func.func @transform_1(%arg0: i32) -> (i32, i32) {
    %c0_i32 = arith.constant 0 : i32
    %c0_i32_0 = arith.constant 0 : i32
    return %c0_i32, %arg0 : i32, i32
  }
  func.func @transform_2(%arg0: i32) -> (i32, i32) {
    %c0_i32 = arith.constant 0 : i32
    %c0_i32_0 = arith.constant 0 : i32
    return %c0_i32, %arg0 : i32, i32
  }
  func.func @transform_3(%arg0: i32) -> (i32, i32) {
    %c0_i32 = arith.constant 0 : i32
    %c0_i32_0 = arith.constant 0 : i32
    return %c0_i32, %arg0 : i32, i32
  }
}

module attributes {stable_mosaic.version = 11 : i64} {
  func.func @_latents_kernel(%arg0: memref<15x128xf32, #tpu.memory_space<vmem>>, %arg1: memref<15x1000xf32, #tpu.memory_space<vmem>>, %arg2: memref<128x256xbf16, #tpu.memory_space<vmem>>, %arg3: memref<1000x256xbf16, #tpu.memory_space<vmem>>, %arg4: memref<1x256xf32, #tpu.memory_space<vmem>>, %arg5: memref<1xf32, #tpu.memory_space<smem>>, %arg6: memref<1xf32, #tpu.memory_space<smem>>) attributes {dimension_semantics = [], scalar_prefetch = 0 : i64, scratch_operands = 0 : i64, tpu.core_type = #tpu.core_type<tc>} {
    %c0 = arith.constant 0 : index
    %c0_0 = arith.constant 0 : index
    %0 = vector.load %arg0[%c0, %c0_0] : memref<15x128xf32, #tpu.memory_space<vmem>>, vector<15x128xf32>
    %c0_1 = arith.constant 0 : index
    %c0_2 = arith.constant 0 : index
    %1 = vector.load %arg1[%c0_1, %c0_2] : memref<15x1000xf32, #tpu.memory_space<vmem>>, vector<15x1000xf32>
    %2 = arith.negf %1 : vector<15x1000xf32>
    %3 = math.exp %2 : vector<15x1000xf32>
    %cst = arith.constant 1.000000e+00 : f32
    %4 = vector.broadcast %cst : f32 to vector<15x1000xf32>
    %5 = arith.addf %4, %3 : vector<15x1000xf32>
    %6 = arith.divf %4, %5 : vector<15x1000xf32>
    %7 = arith.truncf %0 : vector<15x128xf32> to vector<15x128xbf16>
    %c0_3 = arith.constant 0 : index
    %c0_4 = arith.constant 0 : index
    %8 = vector.load %arg2[%c0_3, %c0_4] : memref<128x256xbf16, #tpu.memory_space<vmem>>, vector<128x256xbf16>
    %cst_5 = arith.constant dense<0.000000e+00> : vector<15x256xf32>
    %9 = tpu.matmul %7, %8, %cst_5 {dimension_numbers = #tpu.dot_dimension_numbers<[1], [0], [0], [1], [0, 0, 1, 1], [], []>} : vector<15x128xbf16>, vector<128x256xbf16>, vector<15x256xf32> -> vector<15x256xf32>
    %10 = arith.truncf %6 : vector<15x1000xf32> to vector<15x1000xbf16>
    %c0_6 = arith.constant 0 : index
    %c0_7 = arith.constant 0 : index
    %11 = vector.load %arg3[%c0_6, %c0_7] : memref<1000x256xbf16, #tpu.memory_space<vmem>>, vector<1000x256xbf16>
    %cst_8 = arith.constant dense<0.000000e+00> : vector<15x256xf32>
    %12 = tpu.matmul %10, %11, %cst_8 {dimension_numbers = #tpu.dot_dimension_numbers<[1], [0], [0], [1], [0, 0, 1, 1], [], []>} : vector<15x1000xbf16>, vector<1000x256xbf16>, vector<15x256xf32> -> vector<15x256xf32>
    %13 = arith.addf %9, %12 : vector<15x256xf32>
    %cst_9 = arith.constant dense<0.000000e+00> : vector<256xf32>
    %14 = vector.multi_reduction <add>, %13, %cst_9 [0] : vector<15x256xf32> to vector<256xf32>
    %15 = vector.shape_cast %14 : vector<256xf32> to vector<1x256xf32>
    %cst_10 = arith.constant 1.500000e+01 : f32
    %16 = vector.broadcast %cst_10 : f32 to vector<1x256xf32>
    %17 = arith.divf %15, %16 : vector<1x256xf32>
    %c0_11 = arith.constant 0 : index
    %c0_12 = arith.constant 0 : index
    %18 = vector.load %arg4[%c0_11, %c0_12] : memref<1x256xf32, #tpu.memory_space<vmem>>, vector<1x256xf32>
    tpu.vector_store %arg4[%c0_11, %c0_12], %17 {strides = array<i32>} : memref<1x256xf32, #tpu.memory_space<vmem>>, vector<1x256xf32>,
    %cst_13 = arith.constant dense<0.000000e+00> : vector<15xf32>
    %19 = vector.multi_reduction <add>, %0, %cst_13 [1] : vector<15x128xf32> to vector<15xf32>
    %20 = vector.shape_cast %19 : vector<15xf32> to vector<15x1xf32>
    %cst_14 = arith.constant 1.280000e+02 : f32
    %21 = vector.broadcast %cst_14 : f32 to vector<15x1xf32>
    %22 = arith.divf %20, %21 : vector<15x1xf32>
    %23 = vector.broadcast %22 : vector<15x1xf32> to vector<15x128xf32>
    %24 = arith.subf %0, %23 : vector<15x128xf32>
    %25 = arith.mulf %24, %24 : vector<15x128xf32>
    %cst_15 = arith.constant dense<0.000000e+00> : vector<15xf32>
    %26 = vector.multi_reduction <add>, %25, %cst_15 [1] : vector<15x128xf32> to vector<15xf32>
    %27 = vector.shape_cast %26 : vector<15xf32> to vector<15x1xf32>
    %cst_16 = arith.constant 1.270000e+02 : f32
    %28 = vector.broadcast %cst_16 : f32 to vector<15x1xf32>
    %29 = arith.divf %27, %28 : vector<15x1xf32>
    %30 = math.sqrt %29 : vector<15x1xf32>
    %cst_17 = arith.constant 1.000000e+00 : f32
    %31 = vector.broadcast %cst_17 : f32 to vector<15x1xf32>
    %32 = arith.subf %31, %30 : vector<15x1xf32>
    %33 = math.absf %32 : vector<15x1xf32>
    %34 = vector.shape_cast %33 : vector<15x1xf32> to vector<1x15x1xf32>
    %cst_18 = arith.constant dense<0.000000e+00> : vector<1xf32>
    %35 = vector.multi_reduction <add>, %34, %cst_18 [1, 2] : vector<1x15x1xf32> to vector<1xf32>
    %36 = vector.shape_cast %35 : vector<1xf32> to vector<1x1x1xf32>
    %37 = vector.extract %36[0, 0, 0] : f32 from vector<1x1x1xf32>
    %cst_19 = arith.constant 1.500000e+01 : f32
    %38 = arith.divf %37, %cst_19 : f32
    %39 = math.absf %22 : vector<15x1xf32>
    %40 = vector.shape_cast %39 : vector<15x1xf32> to vector<1x15x1xf32>
    %cst_20 = arith.constant dense<0.000000e+00> : vector<1xf32>
    %41 = vector.multi_reduction <add>, %40, %cst_20 [1, 2] : vector<1x15x1xf32> to vector<1xf32>
    %42 = vector.shape_cast %41 : vector<1xf32> to vector<1x1x1xf32>
    %43 = vector.extract %42[0, 0, 0] : f32 from vector<1x1x1xf32>
    %cst_21 = arith.constant 1.500000e+01 : f32
    %44 = arith.divf %43, %cst_21 : f32
    %45 = arith.addf %38, %44 : f32
    %46 = arith.mulf %0, %0 : vector<15x128xf32>
    %47 = vector.shape_cast %46 : vector<15x128xf32> to vector<1x15x128xf32>
    %cst_22 = arith.constant dense<0.000000e+00> : vector<1xf32>
    %48 = vector.multi_reduction <add>, %47, %cst_22 [1, 2] : vector<1x15x128xf32> to vector<1xf32>
    %49 = vector.shape_cast %48 : vector<1xf32> to vector<1x1x1xf32>
    %50 = vector.extract %49[0, 0, 0] : f32 from vector<1x1x1xf32>
    %cst_23 = arith.constant 1.920000e+03 : f32
    %51 = arith.divf %50, %cst_23 : f32
    %cst_24 = arith.constant 1.000000e+00 : f32
    %52 = arith.maximumf %51, %cst_24 : f32
    %cst_25 = arith.constant 4.000000e+00 : f32
    %53 = arith.mulf %cst_25, %52 : f32
    %54 = arith.addf %45, %53 : f32
    %cst_26 = arith.constant dense<0.000000e+00> : vector<15xf32>
    %55 = vector.multi_reduction <add>, %25, %cst_26 [1] : vector<15x128xf32> to vector<15xf32>
    %56 = vector.shape_cast %55 : vector<15xf32> to vector<15x1xf32>
    %cst_27 = arith.constant 1.280000e+02 : f32
    %57 = vector.broadcast %cst_27 : f32 to vector<15x1xf32>
    %58 = arith.divf %56, %57 : vector<15x1xf32>
    %cst_28 = arith.constant 9.99999968E-21 : f32
    %59 = vector.broadcast %cst_28 : f32 to vector<15x1xf32>
    %60 = arith.addf %58, %59 : vector<15x1xf32>
    %61 = math.sqrt %60 : vector<15x1xf32>
    %62 = vector.broadcast %61 : vector<15x1xf32> to vector<15x128xf32>
    %63 = arith.divf %24, %62 : vector<15x128xf32>
    %64 = arith.mulf %63, %63 : vector<15x128xf32>
    %65 = arith.mulf %64, %63 : vector<15x128xf32>
    %cst_29 = arith.constant dense<0.000000e+00> : vector<15xf32>
    %66 = vector.multi_reduction <add>, %65, %cst_29 [1] : vector<15x128xf32> to vector<15xf32>
    %67 = vector.shape_cast %66 : vector<15xf32> to vector<15x1xf32>
    %cst_30 = arith.constant 1.280000e+02 : f32
    %68 = vector.broadcast %cst_30 : f32 to vector<15x1xf32>
    %69 = arith.divf %67, %68 : vector<15x1xf32>
    %70 = arith.mulf %63, %63 : vector<15x128xf32>
    %71 = arith.mulf %70, %63 : vector<15x128xf32>
    %72 = arith.mulf %71, %63 : vector<15x128xf32>
    %cst_31 = arith.constant dense<0.000000e+00> : vector<15xf32>
    %73 = vector.multi_reduction <add>, %72, %cst_31 [1] : vector<15x128xf32> to vector<15xf32>
    %74 = vector.shape_cast %73 : vector<15xf32> to vector<15x1xf32>
    %cst_32 = arith.constant 1.280000e+02 : f32
    %75 = vector.broadcast %cst_32 : f32 to vector<15x1xf32>
    %76 = arith.divf %74, %75 : vector<15x1xf32>
    %cst_33 = arith.constant 3.000000e+00 : f32
    %77 = vector.broadcast %cst_33 : f32 to vector<15x1xf32>
    %78 = arith.subf %76, %77 : vector<15x1xf32>
    %79 = math.absf %78 : vector<15x1xf32>
    %80 = vector.shape_cast %79 : vector<15x1xf32> to vector<1x15x1xf32>
    %cst_34 = arith.constant dense<0.000000e+00> : vector<1xf32>
    %81 = vector.multi_reduction <add>, %80, %cst_34 [1, 2] : vector<1x15x1xf32> to vector<1xf32>
    %82 = vector.shape_cast %81 : vector<1xf32> to vector<1x1x1xf32>
    %83 = vector.extract %82[0, 0, 0] : f32 from vector<1x1x1xf32>
    %84 = math.absf %69 : vector<15x1xf32>
    %85 = vector.shape_cast %84 : vector<15x1xf32> to vector<1x15x1xf32>
    %cst_35 = arith.constant dense<0.000000e+00> : vector<1xf32>
    %86 = vector.multi_reduction <add>, %85, %cst_35 [1, 2] : vector<1x15x1xf32> to vector<1xf32>
    %87 = vector.shape_cast %86 : vector<1xf32> to vector<1x1x1xf32>
    %88 = vector.extract %87[0, 0, 0] : f32 from vector<1x1x1xf32>
    %89 = arith.addf %83, %88 : f32
    %cst_36 = arith.constant 1.500000e+01 : f32
    %90 = arith.divf %89, %cst_36 : f32
    %91 = arith.addf %54, %90 : f32
    %c0_37 = arith.constant 0 : index
    %92 = memref.load %arg5[%c0_37] : memref<1xf32, #tpu.memory_space<smem>>
    memref.store %91, %arg5[%c0_37] : memref<1xf32, #tpu.memory_space<smem>>
    %cst_38 = arith.constant 5.000000e+01 : f32
    %93 = vector.broadcast %cst_38 : f32 to vector<15x1000xf32>
    %94 = arith.mulf %93, %6 : vector<15x1000xf32>
    %95 = arith.mulf %94, %94 : vector<15x1000xf32>
    %96 = vector.shape_cast %95 : vector<15x1000xf32> to vector<1x15x1000xf32>
    %cst_39 = arith.constant dense<0.000000e+00> : vector<1xf32>
    %97 = vector.multi_reduction <add>, %96, %cst_39 [1, 2] : vector<1x15x1000xf32> to vector<1xf32>
    %98 = vector.shape_cast %97 : vector<1xf32> to vector<1x1x1xf32>
    %99 = vector.extract %98[0, 0, 0] : f32 from vector<1x1x1xf32>
    %cst_40 = arith.constant dense<0xFF800000> : vector<15xf32>
    %100 = vector.multi_reduction <maximumf>, %94, %cst_40 [1] : vector<15x1000xf32> to vector<15xf32>
    %101 = vector.shape_cast %100 : vector<15xf32> to vector<15x1xf32>
    %102 = arith.mulf %101, %101 : vector<15x1xf32>
    %103 = vector.shape_cast %102 : vector<15x1xf32> to vector<1x15x1xf32>
    %cst_41 = arith.constant dense<0.000000e+00> : vector<1xf32>
    %104 = vector.multi_reduction <add>, %103, %cst_41 [1, 2] : vector<1x15x1xf32> to vector<1xf32>
    %105 = vector.shape_cast %104 : vector<1xf32> to vector<1x1x1xf32>
    %106 = vector.extract %105[0, 0, 0] : f32 from vector<1x1x1xf32>
    %107 = arith.subf %99, %106 : f32
    %cst_42 = arith.constant 1.498500e+04 : f32
    %108 = arith.divf %107, %cst_42 : f32
    %c0_43 = arith.constant 0 : index
    %109 = memref.load %arg6[%c0_43] : memref<1xf32, #tpu.memory_space<smem>>
    memref.store %108, %arg6[%c0_43] : memref<1xf32, #tpu.memory_space<smem>>
    return
  }
}

module attributes {stable_mosaic.version = 11 : i64} {
  func.func @_cutout_pool_kernel(%arg0: memref<3x128x128xbf16, #tpu.memory_space<vmem>>, %arg1: memref<112x128xf32, #tpu.memory_space<vmem>>, %arg2: memref<8x128x14xf32, #tpu.memory_space<vmem>>, %arg3: memref<8x42x14xf32, #tpu.memory_space<vmem>>) attributes {dimension_semantics = [], scalar_prefetch = 0 : i64, scratch_operands = 0 : i64, tpu.core_type = #tpu.core_type<tc>} {
    %c0 = arith.constant 0 : index
    %c0_0 = arith.constant 0 : index
    %0 = vector.load %arg1[%c0, %c0_0] : memref<112x128xf32, #tpu.memory_space<vmem>>, vector<112x128xf32>
    %c0_1 = arith.constant 0 : index
    %c0_2 = arith.constant 0 : index
    %c0_3 = arith.constant 0 : index
    %1 = vector.load %arg0[%c0_1, %c0_2, %c0_3] : memref<3x128x128xbf16, #tpu.memory_space<vmem>>, vector<1x128x128xbf16>
    %2 = vector.shape_cast %1 : vector<1x128x128xbf16> to vector<128x128xbf16>
    %3 = arith.extf %2 : vector<128x128xbf16> to vector<128x128xf32>
    %cst = arith.constant dense<0.000000e+00> : vector<112x128xf32>
    %4 = tpu.matmul %0, %3, %cst {dimension_numbers = #tpu.dot_dimension_numbers<[1], [0], [0], [1], [0, 0, 1, 1], [], []>} : vector<112x128xf32>, vector<128x128xf32>, vector<112x128xf32> -> vector<112x128xf32>
    %c1 = arith.constant 1 : index
    %c0_4 = arith.constant 0 : index
    %c0_5 = arith.constant 0 : index
    %5 = vector.load %arg0[%c1, %c0_4, %c0_5] : memref<3x128x128xbf16, #tpu.memory_space<vmem>>, vector<1x128x128xbf16>
    %6 = vector.shape_cast %5 : vector<1x128x128xbf16> to vector<128x128xbf16>
    %7 = arith.extf %6 : vector<128x128xbf16> to vector<128x128xf32>
    %cst_6 = arith.constant dense<0.000000e+00> : vector<112x128xf32>
    %8 = tpu.matmul %0, %7, %cst_6 {dimension_numbers = #tpu.dot_dimension_numbers<[1], [0], [0], [1], [0, 0, 1, 1], [], []>} : vector<112x128xf32>, vector<128x128xf32>, vector<112x128xf32> -> vector<112x128xf32>
    %c2 = arith.constant 2 : index
    %c0_7 = arith.constant 0 : index
    %c0_8 = arith.constant 0 : index
    %9 = vector.load %arg0[%c2, %c0_7, %c0_8] : memref<3x128x128xbf16, #tpu.memory_space<vmem>>, vector<1x128x128xbf16>
    %10 = vector.shape_cast %9 : vector<1x128x128xbf16> to vector<128x128xbf16>
    %11 = arith.extf %10 : vector<128x128xbf16> to vector<128x128xf32>
    %cst_9 = arith.constant dense<0.000000e+00> : vector<112x128xf32>
    %12 = tpu.matmul %0, %11, %cst_9 {dimension_numbers = #tpu.dot_dimension_numbers<[1], [0], [0], [1], [0, 0, 1, 1], [], []>} : vector<112x128xf32>, vector<128x128xf32>, vector<112x128xf32> -> vector<112x128xf32>
    %c0_10 = arith.constant 0 : index
    %c0_11 = arith.constant 0 : index
    %c0_12 = arith.constant 0 : index
    %13 = vector.load %arg2[%c0_10, %c0_11, %c0_12] : memref<8x128x14xf32, #tpu.memory_space<vmem>>, vector<1x128x14xf32>
    %14 = vector.shape_cast %13 : vector<1x128x14xf32> to vector<128x14xf32>
    %15 = vector.extract_strided_slice %4 {offsets = [0, 0], sizes = [14, 128], strides = [1, 1]} : vector<112x128xf32> to vector<14x128xf32>
    %cst_13 = arith.constant dense<0.000000e+00> : vector<14x14xf32>
    %16 = tpu.matmul %15, %14, %cst_13 {dimension_numbers = #tpu.dot_dimension_numbers<[1], [0], [0], [1], [0, 0, 1, 1], [], []>} : vector<14x128xf32>, vector<128x14xf32>, vector<14x14xf32> -> vector<14x14xf32>
    %c0_14 = arith.constant 0 : index
    %c0_15 = arith.constant 0 : index
    %c0_16 = arith.constant 0 : index
    %17 = vector.load %arg3[%c0_14, %c0_15, %c0_16] : memref<8x42x14xf32, #tpu.memory_space<vmem>>, vector<1x14x14xf32>
    %18 = vector.shape_cast %17 : vector<1x14x14xf32> to vector<14x14xf32>
    %19 = vector.shape_cast %16 : vector<14x14xf32> to vector<1x14x14xf32>
    tpu.vector_store %arg3[%c0_14, %c0_15, %c0_16], %19 {strides = array<i32>} : memref<8x42x14xf32, #tpu.memory_space<vmem>>, vector<1x14x14xf32>,
    %20 = vector.extract_strided_slice %8 {offsets = [0, 0], sizes = [14, 128], strides = [1, 1]} : vector<112x128xf32> to vector<14x128xf32>
    %cst_17 = arith.constant dense<0.000000e+00> : vector<14x14xf32>
    %21 = tpu.matmul %20, %14, %cst_17 {dimension_numbers = #tpu.dot_dimension_numbers<[1], [0], [0], [1], [0, 0, 1, 1], [], []>} : vector<14x128xf32>, vector<128x14xf32>, vector<14x14xf32> -> vector<14x14xf32>
    %c0_18 = arith.constant 0 : index
    %c14 = arith.constant 14 : index
    %c0_19 = arith.constant 0 : index
    %22 = vector.load %arg3[%c0_18, %c14, %c0_19] : memref<8x42x14xf32, #tpu.memory_space<vmem>>, vector<1x14x14xf32>
    %23 = vector.shape_cast %22 : vector<1x14x14xf32> to vector<14x14xf32>
    %24 = vector.shape_cast %21 : vector<14x14xf32> to vector<1x14x14xf32>
    tpu.vector_store %arg3[%c0_18, %c14, %c0_19], %24 {strides = array<i32>} : memref<8x42x14xf32, #tpu.memory_space<vmem>>, vector<1x14x14xf32>,
    %25 = vector.extract_strided_slice %12 {offsets = [0, 0], sizes = [14, 128], strides = [1, 1]} : vector<112x128xf32> to vector<14x128xf32>
    %cst_20 = arith.constant dense<0.000000e+00> : vector<14x14xf32>
    %26 = tpu.matmul %25, %14, %cst_20 {dimension_numbers = #tpu.dot_dimension_numbers<[1], [0], [0], [1], [0, 0, 1, 1], [], []>} : vector<14x128xf32>, vector<128x14xf32>, vector<14x14xf32> -> vector<14x14xf32>
    %c0_21 = arith.constant 0 : index
    %c28 = arith.constant 28 : index
    %c0_22 = arith.constant 0 : index
    %27 = vector.load %arg3[%c0_21, %c28, %c0_22] : memref<8x42x14xf32, #tpu.memory_space<vmem>>, vector<1x14x14xf32>
    %28 = vector.shape_cast %27 : vector<1x14x14xf32> to vector<14x14xf32>
    %29 = vector.shape_cast %26 : vector<14x14xf32> to vector<1x14x14xf32>
    tpu.vector_store %arg3[%c0_21, %c28, %c0_22], %29 {strides = array<i32>} : memref<8x42x14xf32, #tpu.memory_space<vmem>>, vector<1x14x14xf32>,
    %c1_23 = arith.constant 1 : index
    %c0_24 = arith.constant 0 : index
    %c0_25 = arith.constant 0 : index
    %30 = vector.load %arg2[%c1_23, %c0_24, %c0_25] : memref<8x128x14xf32, #tpu.memory_space<vmem>>, vector<1x128x14xf32>
    %31 = vector.shape_cast %30 : vector<1x128x14xf32> to vector<128x14xf32>
    %32 = vector.extract_strided_slice %4 {offsets = [14, 0], sizes = [14, 128], strides = [1, 1]} : vector<112x128xf32> to vector<14x128xf32>
    %cst_26 = arith.constant dense<0.000000e+00> : vector<14x14xf32>
    %33 = tpu.matmul %32, %31, %cst_26 {dimension_numbers = #tpu.dot_dimension_numbers<[1], [0], [0], [1], [0, 0, 1, 1], [], []>} : vector<14x128xf32>, vector<128x14xf32>, vector<14x14xf32> -> vector<14x14xf32>
    %c1_27 = arith.constant 1 : index
    %c0_28 = arith.constant 0 : index
    %c0_29 = arith.constant 0 : index
    %34 = vector.load %arg3[%c1_27, %c0_28, %c0_29] : memref<8x42x14xf32, #tpu.memory_space<vmem>>, vector<1x14x14xf32>
    %35 = vector.shape_cast %34 : vector<1x14x14xf32> to vector<14x14xf32>
    %36 = vector.shape_cast %33 : vector<14x14xf32> to vector<1x14x14xf32>
    tpu.vector_store %arg3[%c1_27, %c0_28, %c0_29], %36 {strides = array<i32>} : memref<8x42x14xf32, #tpu.memory_space<vmem>>, vector<1x14x14xf32>,
    %37 = vector.extract_strided_slice %8 {offsets = [14, 0], sizes = [14, 128], strides = [1, 1]} : vector<112x128xf32> to vector<14x128xf32>
    %cst_30 = arith.constant dense<0.000000e+00> : vector<14x14xf32>
    %38 = tpu.matmul %37, %31, %cst_30 {dimension_numbers = #tpu.dot_dimension_numbers<[1], [0], [0], [1], [0, 0, 1, 1], [], []>} : vector<14x128xf32>, vector<128x14xf32>, vector<14x14xf32> -> vector<14x14xf32>
    %c1_31 = arith.constant 1 : index
    %c14_32 = arith.constant 14 : index
    %c0_33 = arith.constant 0 : index
    %39 = vector.load %arg3[%c1_31, %c14_32, %c0_33] : memref<8x42x14xf32, #tpu.memory_space<vmem>>, vector<1x14x14xf32>
    %40 = vector.shape_cast %39 : vector<1x14x14xf32> to vector<14x14xf32>
    %41 = vector.shape_cast %38 : vector<14x14xf32> to vector<1x14x14xf32>
    tpu.vector_store %arg3[%c1_31, %c14_32, %c0_33], %41 {strides = array<i32>} : memref<8x42x14xf32, #tpu.memory_space<vmem>>, vector<1x14x14xf32>,
    %42 = vector.extract_strided_slice %12 {offsets = [14, 0], sizes = [14, 128], strides = [1, 1]} : vector<112x128xf32> to vector<14x128xf32>
    %cst_34 = arith.constant dense<0.000000e+00> : vector<14x14xf32>
    %43 = tpu.matmul %42, %31, %cst_34 {dimension_numbers = #tpu.dot_dimension_numbers<[1], [0], [0], [1], [0, 0, 1, 1], [], []>} : vector<14x128xf32>, vector<128x14xf32>, vector<14x14xf32> -> vector<14x14xf32>
    %c1_35 = arith.constant 1 : index
    %c28_36 = arith.constant 28 : index
    %c0_37 = arith.constant 0 : index
    %44 = vector.load %arg3[%c1_35, %c28_36, %c0_37] : memref<8x42x14xf32, #tpu.memory_space<vmem>>, vector<1x14x14xf32>
    %45 = vector.shape_cast %44 : vector<1x14x14xf32> to vector<14x14xf32>
    %46 = vector.shape_cast %43 : vector<14x14xf32> to vector<1x14x14xf32>
    tpu.vector_store %arg3[%c1_35, %c28_36, %c0_37], %46 {strides = array<i32>} : memref<8x42x14xf32, #tpu.memory_space<vmem>>, vector<1x14x14xf32>,
    %c2_38 = arith.constant 2 : index
    %c0_39 = arith.constant 0 : index
    %c0_40 = arith.constant 0 : index
    %47 = vector.load %arg2[%c2_38, %c0_39, %c0_40] : memref<8x128x14xf32, #tpu.memory_space<vmem>>, vector<1x128x14xf32>
    %48 = vector.shape_cast %47 : vector<1x128x14xf32> to vector<128x14xf32>
    %49 = vector.extract_strided_slice %4 {offsets = [28, 0], sizes = [14, 128], strides = [1, 1]} : vector<112x128xf32> to vector<14x128xf32>
    %cst_41 = arith.constant dense<0.000000e+00> : vector<14x14xf32>
    %50 = tpu.matmul %49, %48, %cst_41 {dimension_numbers = #tpu.dot_dimension_numbers<[1], [0], [0], [1], [0, 0, 1, 1], [], []>} : vector<14x128xf32>, vector<128x14xf32>, vector<14x14xf32> -> vector<14x14xf32>
    %c2_42 = arith.constant 2 : index
    %c0_43 = arith.constant 0 : index
    %c0_44 = arith.constant 0 : index
    %51 = vector.load %arg3[%c2_42, %c0_43, %c0_44] : memref<8x42x14xf32, #tpu.memory_space<vmem>>, vector<1x14x14xf32>
    %52 = vector.shape_cast %51 : vector<1x14x14xf32> to vector<14x14xf32>
    %53 = vector.shape_cast %50 : vector<14x14xf32> to vector<1x14x14xf32>
    tpu.vector_store %arg3[%c2_42, %c0_43, %c0_44], %53 {strides = array<i32>} : memref<8x42x14xf32, #tpu.memory_space<vmem>>, vector<1x14x14xf32>,
    %54 = vector.extract_strided_slice %8 {offsets = [28, 0], sizes = [14, 128], strides = [1, 1]} : vector<112x128xf32> to vector<14x128xf32>
    %cst_45 = arith.constant dense<0.000000e+00> : vector<14x14xf32>
    %55 = tpu.matmul %54, %48, %cst_45 {dimension_numbers = #tpu.dot_dimension_numbers<[1], [0], [0], [1], [0, 0, 1, 1], [], []>} : vector<14x128xf32>, vector<128x14xf32>, vector<14x14xf32> -> vector<14x14xf32>
    %c2_46 = arith.constant 2 : index
    %c14_47 = arith.constant 14 : index
    %c0_48 = arith.constant 0 : index
    %56 = vector.load %arg3[%c2_46, %c14_47, %c0_48] : memref<8x42x14xf32, #tpu.memory_space<vmem>>, vector<1x14x14xf32>
    %57 = vector.shape_cast %56 : vector<1x14x14xf32> to vector<14x14xf32>
    %58 = vector.shape_cast %55 : vector<14x14xf32> to vector<1x14x14xf32>
    tpu.vector_store %arg3[%c2_46, %c14_47, %c0_48], %58 {strides = array<i32>} : memref<8x42x14xf32, #tpu.memory_space<vmem>>, vector<1x14x14xf32>,
    %59 = vector.extract_strided_slice %12 {offsets = [28, 0], sizes = [14, 128], strides = [1, 1]} : vector<112x128xf32> to vector<14x128xf32>
    %cst_49 = arith.constant dense<0.000000e+00> : vector<14x14xf32>
    %60 = tpu.matmul %59, %48, %cst_49 {dimension_numbers = #tpu.dot_dimension_numbers<[1], [0], [0], [1], [0, 0, 1, 1], [], []>} : vector<14x128xf32>, vector<128x14xf32>, vector<14x14xf32> -> vector<14x14xf32>
    %c2_50 = arith.constant 2 : index
    %c28_51 = arith.constant 28 : index
    %c0_52 = arith.constant 0 : index
    %61 = vector.load %arg3[%c2_50, %c28_51, %c0_52] : memref<8x42x14xf32, #tpu.memory_space<vmem>>, vector<1x14x14xf32>
    %62 = vector.shape_cast %61 : vector<1x14x14xf32> to vector<14x14xf32>
    %63 = vector.shape_cast %60 : vector<14x14xf32> to vector<1x14x14xf32>
    tpu.vector_store %arg3[%c2_50, %c28_51, %c0_52], %63 {strides = array<i32>} : memref<8x42x14xf32, #tpu.memory_space<vmem>>, vector<1x14x14xf32>,
    %c3 = arith.constant 3 : index
    %c0_53 = arith.constant 0 : index
    %c0_54 = arith.constant 0 : index
    %64 = vector.load %arg2[%c3, %c0_53, %c0_54] : memref<8x128x14xf32, #tpu.memory_space<vmem>>, vector<1x128x14xf32>
    %65 = vector.shape_cast %64 : vector<1x128x14xf32> to vector<128x14xf32>
    %66 = vector.extract_strided_slice %4 {offsets = [42, 0], sizes = [14, 128], strides = [1, 1]} : vector<112x128xf32> to vector<14x128xf32>
    %cst_55 = arith.constant dense<0.000000e+00> : vector<14x14xf32>
    %67 = tpu.matmul %66, %65, %cst_55 {dimension_numbers = #tpu.dot_dimension_numbers<[1], [0], [0], [1], [0, 0, 1, 1], [], []>} : vector<14x128xf32>, vector<128x14xf32>, vector<14x14xf32> -> vector<14x14xf32>
    %c3_56 = arith.constant 3 : index
    %c0_57 = arith.constant 0 : index
    %c0_58 = arith.constant 0 : index
    %68 = vector.load %arg3[%c3_56, %c0_57, %c0_58] : memref<8x42x14xf32, #tpu.memory_space<vmem>>, vector<1x14x14xf32>
    %69 = vector.shape_cast %68 : vector<1x14x14xf32> to vector<14x14xf32>
    %70 = vector.shape_cast %67 : vector<14x14xf32> to vector<1x14x14xf32>
    tpu.vector_store %arg3[%c3_56, %c0_57, %c0_58], %70 {strides = array<i32>} : memref<8x42x14xf32, #tpu.memory_space<vmem>>, vector<1x14x14xf32>,
    %71 = vector.extract_strided_slice %8 {offsets = [42, 0], sizes = [14, 128], strides = [1, 1]} : vector<112x128xf32> to vector<14x128xf32>
    %cst_59 = arith.constant dense<0.000000e+00> : vector<14x14xf32>
    %72 = tpu.matmul %71, %65, %cst_59 {dimension_numbers = #tpu.dot_dimension_numbers<[1], [0], [0], [1], [0, 0, 1, 1], [], []>} : vector<14x128xf32>, vector<128x14xf32>, vector<14x14xf32> -> vector<14x14xf32>
    %c3_60 = arith.constant 3 : index
    %c14_61 = arith.constant 14 : index
    %c0_62 = arith.constant 0 : index
    %73 = vector.load %arg3[%c3_60, %c14_61, %c0_62] : memref<8x42x14xf32, #tpu.memory_space<vmem>>, vector<1x14x14xf32>
    %74 = vector.shape_cast %73 : vector<1x14x14xf32> to vector<14x14xf32>
    %75 = vector.shape_cast %72 : vector<14x14xf32> to vector<1x14x14xf32>
    tpu.vector_store %arg3[%c3_60, %c14_61, %c0_62], %75 {strides = array<i32>} : memref<8x42x14xf32, #tpu.memory_space<vmem>>, vector<1x14x14xf32>,
    %76 = vector.extract_strided_slice %12 {offsets = [42, 0], sizes = [14, 128], strides = [1, 1]} : vector<112x128xf32> to vector<14x128xf32>
    %cst_63 = arith.constant dense<0.000000e+00> : vector<14x14xf32>
    %77 = tpu.matmul %76, %65, %cst_63 {dimension_numbers = #tpu.dot_dimension_numbers<[1], [0], [0], [1], [0, 0, 1, 1], [], []>} : vector<14x128xf32>, vector<128x14xf32>, vector<14x14xf32> -> vector<14x14xf32>
    %c3_64 = arith.constant 3 : index
    %c28_65 = arith.constant 28 : index
    %c0_66 = arith.constant 0 : index
    %78 = vector.load %arg3[%c3_64, %c28_65, %c0_66] : memref<8x42x14xf32, #tpu.memory_space<vmem>>, vector<1x14x14xf32>
    %79 = vector.shape_cast %78 : vector<1x14x14xf32> to vector<14x14xf32>
    %80 = vector.shape_cast %77 : vector<14x14xf32> to vector<1x14x14xf32>
    tpu.vector_store %arg3[%c3_64, %c28_65, %c0_66], %80 {strides = array<i32>} : memref<8x42x14xf32, #tpu.memory_space<vmem>>, vector<1x14x14xf32>,
    %c4 = arith.constant 4 : index
    %c0_67 = arith.constant 0 : index
    %c0_68 = arith.constant 0 : index
    %81 = vector.load %arg2[%c4, %c0_67, %c0_68] : memref<8x128x14xf32, #tpu.memory_space<vmem>>, vector<1x128x14xf32>
    %82 = vector.shape_cast %81 : vector<1x128x14xf32> to vector<128x14xf32>
    %83 = vector.extract_strided_slice %4 {offsets = [56, 0], sizes = [14, 128], strides = [1, 1]} : vector<112x128xf32> to vector<14x128xf32>
    %cst_69 = arith.constant dense<0.000000e+00> : vector<14x14xf32>
    %84 = tpu.matmul %83, %82, %cst_69 {dimension_numbers = #tpu.dot_dimension_numbers<[1], [0], [0], [1], [0, 0, 1, 1], [], []>} : vector<14x128xf32>, vector<128x14xf32>, vector<14x14xf32> -> vector<14x14xf32>
    %c4_70 = arith.constant 4 : index
    %c0_71 = arith.constant 0 : index
    %c0_72 = arith.constant 0 : index
    %85 = vector.load %arg3[%c4_70, %c0_71, %c0_72] : memref<8x42x14xf32, #tpu.memory_space<vmem>>, vector<1x14x14xf32>
    %86 = vector.shape_cast %85 : vector<1x14x14xf32> to vector<14x14xf32>
    %87 = vector.shape_cast %84 : vector<14x14xf32> to vector<1x14x14xf32>
    tpu.vector_store %arg3[%c4_70, %c0_71, %c0_72], %87 {strides = array<i32>} : memref<8x42x14xf32, #tpu.memory_space<vmem>>, vector<1x14x14xf32>,
    %88 = vector.extract_strided_slice %8 {offsets = [56, 0], sizes = [14, 128], strides = [1, 1]} : vector<112x128xf32> to vector<14x128xf32>
    %cst_73 = arith.constant dense<0.000000e+00> : vector<14x14xf32>
    %89 = tpu.matmul %88, %82, %cst_73 {dimension_numbers = #tpu.dot_dimension_numbers<[1], [0], [0], [1], [0, 0, 1, 1], [], []>} : vector<14x128xf32>, vector<128x14xf32>, vector<14x14xf32> -> vector<14x14xf32>
    %c4_74 = arith.constant 4 : index
    %c14_75 = arith.constant 14 : index
    %c0_76 = arith.constant 0 : index
    %90 = vector.load %arg3[%c4_74, %c14_75, %c0_76] : memref<8x42x14xf32, #tpu.memory_space<vmem>>, vector<1x14x14xf32>
    %91 = vector.shape_cast %90 : vector<1x14x14xf32> to vector<14x14xf32>
    %92 = vector.shape_cast %89 : vector<14x14xf32> to vector<1x14x14xf32>
    tpu.vector_store %arg3[%c4_74, %c14_75, %c0_76], %92 {strides = array<i32>} : memref<8x42x14xf32, #tpu.memory_space<vmem>>, vector<1x14x14xf32>,
    %93 = vector.extract_strided_slice %12 {offsets = [56, 0], sizes = [14, 128], strides = [1, 1]} : vector<112x128xf32> to vector<14x128xf32>
    %cst_77 = arith.constant dense<0.000000e+00> : vector<14x14xf32>
    %94 = tpu.matmul %93, %82, %cst_77 {dimension_numbers = #tpu.dot_dimension_numbers<[1], [0], [0], [1], [0, 0, 1, 1], [], []>} : vector<14x128xf32>, vector<128x14xf32>, vector<14x14xf32> -> vector<14x14xf32>
    %c4_78 = arith.constant 4 : index
    %c28_79 = arith.constant 28 : index
    %c0_80 = arith.constant 0 : index
    %95 = vector.load %arg3[%c4_78, %c28_79, %c0_80] : memref<8x42x14xf32, #tpu.memory_space<vmem>>, vector<1x14x14xf32>
    %96 = vector.shape_cast %95 : vector<1x14x14xf32> to vector<14x14xf32>
    %97 = vector.shape_cast %94 : vector<14x14xf32> to vector<1x14x14xf32>
    tpu.vector_store %arg3[%c4_78, %c28_79, %c0_80], %97 {strides = array<i32>} : memref<8x42x14xf32, #tpu.memory_space<vmem>>, vector<1x14x14xf32>,
    %c5 = arith.constant 5 : index
    %c0_81 = arith.constant 0 : index
    %c0_82 = arith.constant 0 : index
    %98 = vector.load %arg2[%c5, %c0_81, %c0_82] : memref<8x128x14xf32, #tpu.memory_space<vmem>>, vector<1x128x14xf32>
    %99 = vector.shape_cast %98 : vector<1x128x14xf32> to vector<128x14xf32>
    %100 = vector.extract_strided_slice %4 {offsets = [70, 0], sizes = [14, 128], strides = [1, 1]} : vector<112x128xf32> to vector<14x128xf32>
    %cst_83 = arith.constant dense<0.000000e+00> : vector<14x14xf32>
    %101 = tpu.matmul %100, %99, %cst_83 {dimension_numbers = #tpu.dot_dimension_numbers<[1], [0], [0], [1], [0, 0, 1, 1], [], []>} : vector<14x128xf32>, vector<128x14xf32>, vector<14x14xf32> -> vector<14x14xf32>
    %c5_84 = arith.constant 5 : index
    %c0_85 = arith.constant 0 : index
    %c0_86 = arith.constant 0 : index
    %102 = vector.load %arg3[%c5_84, %c0_85, %c0_86] : memref<8x42x14xf32, #tpu.memory_space<vmem>>, vector<1x14x14xf32>
    %103 = vector.shape_cast %102 : vector<1x14x14xf32> to vector<14x14xf32>
    %104 = vector.shape_cast %101 : vector<14x14xf32> to vector<1x14x14xf32>
    tpu.vector_store %arg3[%c5_84, %c0_85, %c0_86], %104 {strides = array<i32>} : memref<8x42x14xf32, #tpu.memory_space<vmem>>, vector<1x14x14xf32>,
    %105 = vector.extract_strided_slice %8 {offsets = [70, 0], sizes = [14, 128], strides = [1, 1]} : vector<112x128xf32> to vector<14x128xf32>
    %cst_87 = arith.constant dense<0.000000e+00> : vector<14x14xf32>
    %106 = tpu.matmul %105, %99, %cst_87 {dimension_numbers = #tpu.dot_dimension_numbers<[1], [0], [0], [1], [0, 0, 1, 1], [], []>} : vector<14x128xf32>, vector<128x14xf32>, vector<14x14xf32> -> vector<14x14xf32>
    %c5_88 = arith.constant 5 : index
    %c14_89 = arith.constant 14 : index
    %c0_90 = arith.constant 0 : index
    %107 = vector.load %arg3[%c5_88, %c14_89, %c0_90] : memref<8x42x14xf32, #tpu.memory_space<vmem>>, vector<1x14x14xf32>
    %108 = vector.shape_cast %107 : vector<1x14x14xf32> to vector<14x14xf32>
    %109 = vector.shape_cast %106 : vector<14x14xf32> to vector<1x14x14xf32>
    tpu.vector_store %arg3[%c5_88, %c14_89, %c0_90], %109 {strides = array<i32>} : memref<8x42x14xf32, #tpu.memory_space<vmem>>, vector<1x14x14xf32>,
    %110 = vector.extract_strided_slice %12 {offsets = [70, 0], sizes = [14, 128], strides = [1, 1]} : vector<112x128xf32> to vector<14x128xf32>
    %cst_91 = arith.constant dense<0.000000e+00> : vector<14x14xf32>
    %111 = tpu.matmul %110, %99, %cst_91 {dimension_numbers = #tpu.dot_dimension_numbers<[1], [0], [0], [1], [0, 0, 1, 1], [], []>} : vector<14x128xf32>, vector<128x14xf32>, vector<14x14xf32> -> vector<14x14xf32>
    %c5_92 = arith.constant 5 : index
    %c28_93 = arith.constant 28 : index
    %c0_94 = arith.constant 0 : index
    %112 = vector.load %arg3[%c5_92, %c28_93, %c0_94] : memref<8x42x14xf32, #tpu.memory_space<vmem>>, vector<1x14x14xf32>
    %113 = vector.shape_cast %112 : vector<1x14x14xf32> to vector<14x14xf32>
    %114 = vector.shape_cast %111 : vector<14x14xf32> to vector<1x14x14xf32>
    tpu.vector_store %arg3[%c5_92, %c28_93, %c0_94], %114 {strides = array<i32>} : memref<8x42x14xf32, #tpu.memory_space<vmem>>, vector<1x14x14xf32>,
    %c6 = arith.constant 6 : index
    %c0_95 = arith.constant 0 : index
    %c0_96 = arith.constant 0 : index
    %115 = vector.load %arg2[%c6, %c0_95, %c0_96] : memref<8x128x14xf32, #tpu.memory_space<vmem>>, vector<1x128x14xf32>
    %116 = vector.shape_cast %115 : vector<1x128x14xf32> to vector<128x14xf32>
    %117 = vector.extract_strided_slice %4 {offsets = [84, 0], sizes = [14, 128], strides = [1, 1]} : vector<112x128xf32> to vector<14x128xf32>
    %cst_97 = arith.constant dense<0.000000e+00> : vector<14x14xf32>
    %118 = tpu.matmul %117, %116, %cst_97 {dimension_numbers = #tpu.dot_dimension_numbers<[1], [0], [0], [1], [0, 0, 1, 1], [], []>} : vector<14x128xf32>, vector<128x14xf32>, vector<14x14xf32> -> vector<14x14xf32>
    %c6_98 = arith.constant 6 : index
    %c0_99 = arith.constant 0 : index
    %c0_100 = arith.constant 0 : index
    %119 = vector.load %arg3[%c6_98, %c0_99, %c0_100] : memref<8x42x14xf32, #tpu.memory_space<vmem>>, vector<1x14x14xf32>
    %120 = vector.shape_cast %119 : vector<1x14x14xf32> to vector<14x14xf32>
    %121 = vector.shape_cast %118 : vector<14x14xf32> to vector<1x14x14xf32>
    tpu.vector_store %arg3[%c6_98, %c0_99, %c0_100], %121 {strides = array<i32>} : memref<8x42x14xf32, #tpu.memory_space<vmem>>, vector<1x14x14xf32>,
    %122 = vector.extract_strided_slice %8 {offsets = [84, 0], sizes = [14, 128], strides = [1, 1]} : vector<112x128xf32> to vector<14x128xf32>
    %cst_101 = arith.constant dense<0.000000e+00> : vector<14x14xf32>
    %123 = tpu.matmul %122, %116, %cst_101 {dimension_numbers = #tpu.dot_dimension_numbers<[1], [0], [0], [1], [0, 0, 1, 1], [], []>} : vector<14x128xf32>, vector<128x14xf32>, vector<14x14xf32> -> vector<14x14xf32>
    %c6_102 = arith.constant 6 : index
    %c14_103 = arith.constant 14 : index
    %c0_104 = arith.constant 0 : index
    %124 = vector.load %arg3[%c6_102, %c14_103, %c0_104] : memref<8x42x14xf32, #tpu.memory_space<vmem>>, vector<1x14x14xf32>
    %125 = vector.shape_cast %124 : vector<1x14x14xf32> to vector<14x14xf32>
    %126 = vector.shape_cast %123 : vector<14x14xf32> to vector<1x14x14xf32>
    tpu.vector_store %arg3[%c6_102, %c14_103, %c0_104], %126 {strides = array<i32>} : memref<8x42x14xf32, #tpu.memory_space<vmem>>, vector<1x14x14xf32>,
    %127 = vector.extract_strided_slice %12 {offsets = [84, 0], sizes = [14, 128], strides = [1, 1]} : vector<112x128xf32> to vector<14x128xf32>
    %cst_105 = arith.constant dense<0.000000e+00> : vector<14x14xf32>
    %128 = tpu.matmul %127, %116, %cst_105 {dimension_numbers = #tpu.dot_dimension_numbers<[1], [0], [0], [1], [0, 0, 1, 1], [], []>} : vector<14x128xf32>, vector<128x14xf32>, vector<14x14xf32> -> vector<14x14xf32>
    %c6_106 = arith.constant 6 : index
    %c28_107 = arith.constant 28 : index
    %c0_108 = arith.constant 0 : index
    %129 = vector.load %arg3[%c6_106, %c28_107, %c0_108] : memref<8x42x14xf32, #tpu.memory_space<vmem>>, vector<1x14x14xf32>
    %130 = vector.shape_cast %129 : vector<1x14x14xf32> to vector<14x14xf32>
    %131 = vector.shape_cast %128 : vector<14x14xf32> to vector<1x14x14xf32>
    tpu.vector_store %arg3[%c6_106, %c28_107, %c0_108], %131 {strides = array<i32>} : memref<8x42x14xf32, #tpu.memory_space<vmem>>, vector<1x14x14xf32>,
    %c7 = arith.constant 7 : index
    %c0_109 = arith.constant 0 : index
    %c0_110 = arith.constant 0 : index
    %132 = vector.load %arg2[%c7, %c0_109, %c0_110] : memref<8x128x14xf32, #tpu.memory_space<vmem>>, vector<1x128x14xf32>
    %133 = vector.shape_cast %132 : vector<1x128x14xf32> to vector<128x14xf32>
    %134 = vector.extract_strided_slice %4 {offsets = [98, 0], sizes = [14, 128], strides = [1, 1]} : vector<112x128xf32> to vector<14x128xf32>
    %cst_111 = arith.constant dense<0.000000e+00> : vector<14x14xf32>
    %135 = tpu.matmul %134, %133, %cst_111 {dimension_numbers = #tpu.dot_dimension_numbers<[1], [0], [0], [1], [0, 0, 1, 1], [], []>} : vector<14x128xf32>, vector<128x14xf32>, vector<14x14xf32> -> vector<14x14xf32>
    %c7_112 = arith.constant 7 : index
    %c0_113 = arith.constant 0 : index
    %c0_114 = arith.constant 0 : index
    %136 = vector.load %arg3[%c7_112, %c0_113, %c0_114] : memref<8x42x14xf32, #tpu.memory_space<vmem>>, vector<1x14x14xf32>
    %137 = vector.shape_cast %136 : vector<1x14x14xf32> to vector<14x14xf32>
    %138 = vector.shape_cast %135 : vector<14x14xf32> to vector<1x14x14xf32>
    tpu.vector_store %arg3[%c7_112, %c0_113, %c0_114], %138 {strides = array<i32>} : memref<8x42x14xf32, #tpu.memory_space<vmem>>, vector<1x14x14xf32>,
    %139 = vector.extract_strided_slice %8 {offsets = [98, 0], sizes = [14, 128], strides = [1, 1]} : vector<112x128xf32> to vector<14x128xf32>
    %cst_115 = arith.constant dense<0.000000e+00> : vector<14x14xf32>
    %140 = tpu.matmul %139, %133, %cst_115 {dimension_numbers = #tpu.dot_dimension_numbers<[1], [0], [0], [1], [0, 0, 1, 1], [], []>} : vector<14x128xf32>, vector<128x14xf32>, vector<14x14xf32> -> vector<14x14xf32>
    %c7_116 = arith.constant 7 : index
    %c14_117 = arith.constant 14 : index
    %c0_118 = arith.constant 0 : index
    %141 = vector.load %arg3[%c7_116, %c14_117, %c0_118] : memref<8x42x14xf32, #tpu.memory_space<vmem>>, vector<1x14x14xf32>
    %142 = vector.shape_cast %141 : vector<1x14x14xf32> to vector<14x14xf32>
    %143 = vector.shape_cast %140 : vector<14x14xf32> to vector<1x14x14xf32>
    tpu.vector_store %arg3[%c7_116, %c14_117, %c0_118], %143 {strides = array<i32>} : memref<8x42x14xf32, #tpu.memory_space<vmem>>, vector<1x14x14xf32>,
    %144 = vector.extract_strided_slice %12 {offsets = [98, 0], sizes = [14, 128], strides = [1, 1]} : vector<112x128xf32> to vector<14x128xf32>
    %cst_119 = arith.constant dense<0.000000e+00> : vector<14x14xf32>
    %145 = tpu.matmul %144, %133, %cst_119 {dimension_numbers = #tpu.dot_dimension_numbers<[1], [0], [0], [1], [0, 0, 1, 1], [], []>} : vector<14x128xf32>, vector<128x14xf32>, vector<14x14xf32> -> vector<14x14xf32>
    %c7_120 = arith.constant 7 : index
    %c28_121 = arith.constant 28 : index
    %c0_122 = arith.constant 0 : index
    %146 = vector.load %arg3[%c7_120, %c28_121, %c0_122] : memref<8x42x14xf32, #tpu.memory_space<vmem>>, vector<1x14x14xf32>
    %147 = vector.shape_cast %146 : vector<1x14x14xf32> to vector<14x14xf32>
    %148 = vector.shape_cast %145 : vector<14x14xf32> to vector<1x14x14xf32>
    tpu.vector_store %arg3[%c7_120, %c28_121, %c0_122], %148 {strides = array<i32>} : memref<8x42x14xf32, #tpu.memory_space<vmem>>, vector<1x14x14xf32>,
    return
  }
}

module attributes {stable_mosaic.version = 11 : i64} {
  func.func @_encode_sim_kernel(%arg0: memref<8x588xf32, #tpu.memory_space<vmem>>, %arg1: memref<588x512xbf16, #tpu.memory_space<vmem>>, %arg2: memref<1x512xf32, #tpu.memory_space<vmem>>, %arg3: memref<3x512xf32, #tpu.memory_space<vmem>>, %arg4: memref<3x1xf32, #tpu.memory_space<vmem>>, %arg5: memref<1xf32, #tpu.memory_space<smem>>) attributes {dimension_semantics = [], scalar_prefetch = 0 : i64, scratch_operands = 0 : i64, tpu.core_type = #tpu.core_type<tc>} {
    %c0 = arith.constant 0 : index
    %c0_0 = arith.constant 0 : index
    %0 = vector.load %arg0[%c0, %c0_0] : memref<8x588xf32, #tpu.memory_space<vmem>>, vector<8x588xf32>
    %1 = arith.truncf %0 : vector<8x588xf32> to vector<8x588xbf16>
    %c0_1 = arith.constant 0 : index
    %c0_2 = arith.constant 0 : index
    %2 = vector.load %arg1[%c0_1, %c0_2] : memref<588x512xbf16, #tpu.memory_space<vmem>>, vector<588x512xbf16>
    %cst = arith.constant dense<0.000000e+00> : vector<8x512xf32>
    %3 = tpu.matmul %1, %2, %cst {dimension_numbers = #tpu.dot_dimension_numbers<[1], [0], [0], [1], [0, 0, 1, 1], [], []>} : vector<8x588xbf16>, vector<588x512xbf16>, vector<8x512xf32> -> vector<8x512xf32>
    %c0_3 = arith.constant 0 : index
    %c0_4 = arith.constant 0 : index
    %4 = vector.load %arg2[%c0_3, %c0_4] : memref<1x512xf32, #tpu.memory_space<vmem>>, vector<1x512xf32>
    %5 = vector.broadcast %4 : vector<1x512xf32> to vector<8x512xf32>
    %6 = arith.addf %3, %5 : vector<8x512xf32>
    %c0_5 = arith.constant 0 : index
    %c0_6 = arith.constant 0 : index
    %7 = vector.load %arg3[%c0_5, %c0_6] : memref<3x512xf32, #tpu.memory_space<vmem>>, vector<3x512xf32>
    %cst_7 = arith.constant dense<0.000000e+00> : vector<3x8xf32>
    %8 = tpu.matmul %7, %6, %cst_7 {dimension_numbers = #tpu.dot_dimension_numbers<[1], [1], [0], [0], [0, 0, 1, 0], [], []>} : vector<3x512xf32>, vector<8x512xf32>, vector<3x8xf32> -> vector<3x8xf32>
    %9 = arith.mulf %7, %7 : vector<3x512xf32>
    %cst_8 = arith.constant dense<0.000000e+00> : vector<3xf32>
    %10 = vector.multi_reduction <add>, %9, %cst_8 [1] : vector<3x512xf32> to vector<3xf32>
    %11 = vector.shape_cast %10 : vector<3xf32> to vector<3x1xf32>
    %12 = math.sqrt %11 : vector<3x1xf32>
    %cst_9 = arith.constant 9.99999993E-9 : f32
    %13 = vector.broadcast %cst_9 : f32 to vector<3x1xf32>
    %14 = arith.maximumf %12, %13 : vector<3x1xf32>
    %cst_10 = arith.constant 1.000000e+00 : f32
    %15 = vector.broadcast %cst_10 : f32 to vector<1x512xf32>
    %16 = arith.mulf %6, %6 : vector<8x512xf32>
    %cst_11 = arith.constant dense<0.000000e+00> : vector<1x8xf32>
    %17 = tpu.matmul %15, %16, %cst_11 {dimension_numbers = #tpu.dot_dimension_numbers<[1], [1], [0], [0], [0, 0, 1, 0], [], []>} : vector<1x512xf32>, vector<8x512xf32>, vector<1x8xf32> -> vector<1x8xf32>
    %18 = math.sqrt %17 : vector<1x8xf32>
    %cst_12 = arith.constant 9.99999993E-9 : f32
    %19 = vector.broadcast %cst_12 : f32 to vector<1x8xf32>
    %20 = arith.maximumf %18, %19 : vector<1x8xf32>
    %21 = vector.broadcast %14 : vector<3x1xf32> to vector<3x8xf32>
    %22 = vector.broadcast %20 : vector<1x8xf32> to vector<3x8xf32>
    %23 = arith.mulf %21, %22 : vector<3x8xf32>
    %24 = arith.divf %8, %23 : vector<3x8xf32>
    %cst_13 = arith.constant dense<0.000000e+00> : vector<3xf32>
    %25 = vector.multi_reduction <add>, %24, %cst_13 [1] : vector<3x8xf32> to vector<3xf32>
    %26 = vector.shape_cast %25 : vector<3xf32> to vector<3x1xf32>
    %cst_14 = arith.constant 8.000000e+00 : f32
    %27 = vector.broadcast %cst_14 : f32 to vector<3x1xf32>
    %28 = arith.divf %26, %27 : vector<3x1xf32>
    %c0_15 = arith.constant 0 : index
    %c0_16 = arith.constant 0 : index
    %29 = vector.load %arg4[%c0_15, %c0_16] : memref<3x1xf32, #tpu.memory_space<vmem>>, vector<3x1xf32>
    %30 = arith.mulf %29, %28 : vector<3x1xf32>
    %31 = vector.shape_cast %30 : vector<3x1xf32> to vector<1x3x1xf32>
    %cst_17 = arith.constant dense<0.000000e+00> : vector<1xf32>
    %32 = vector.multi_reduction <add>, %31, %cst_17 [1, 2] : vector<1x3x1xf32> to vector<1xf32>
    %33 = vector.shape_cast %32 : vector<1xf32> to vector<1x1x1xf32>
    %34 = vector.extract %33[0, 0, 0] : f32 from vector<1x1x1xf32>
    %c0_18 = arith.constant 0 : index
    %35 = memref.load %arg5[%c0_18] : memref<1xf32, #tpu.memory_space<smem>>
    memref.store %34, %arg5[%c0_18] : memref<1xf32, #tpu.memory_space<smem>>
    return
  }
}

</mosaic_0001>

<llo_original>
// kernel: _device_forward.4
$region0: #{_device_forward.4}
  #allocation0 [shape = 'u32[]', space=smem, size = 0x4, offset = 0x4, fixed_abs, tag = 'smem constant byte address 0x4 - core index']
  #allocation1 [shape = 'u32[144,128]{1,0:T(1,128)}', space=vmem, size = 0x12000, scoped, tag = 'internal scratch']
  %s0 = inlined_call_operand.hbm [shape: f32[15,128], index: 0, kind: input, shape index: {}]
  %s1 = inlined_call_operand.hbm [shape: f32[15,1000], index: 1, kind: input, shape index: {}]
  %s2 = inlined_call_operand.hbm [shape: bf16[128,256], index: 2, kind: input, shape index: {}]
  %s3 = inlined_call_operand.hbm [shape: bf16[1000,256], index: 3, kind: input, shape index: {}]
  %s4 = inlined_call_operand.vmem [shape: f32[1,256], index: 4, kind: output, shape index: {0}]
  %s5 = inlined_call_operand.hbm [shape: f32[1], index: 5, kind: output, shape index: {1}]
  %s6 = inlined_call_operand.hbm [shape: f32[1], index: 6, kind: output, shape index: {2}]
  %7 = xla_tuple %s4, %s5, %s6
  %s8 = sld [smem:[#allocation0]]
  $region58: #{_device_forward.4} parent=0
    _
  %s10 = ssub.s32 1, %s8
  %s11 = scalar_select 0, %s10, %s8
  $region1: #{_device_forward.4} parent=0
    #allocation2 [shape = 'u8[8192]{0}', space=vmem, size = 0x2000, scoped, tag = 'input window, operand 0, single buffered']
    #allocation3 [shape = 's32[1]{0}', space=sflag, size = 0x4, scoped, tag = 'scoped memory for _device_forward.4']
    #allocation4 [shape = 's32[1]{0}', space=sflag, size = 0x4, scoped, tag = 'scoped memory for _device_forward.4']
    #allocation5 [shape = 'u8[65536]{0}', space=vmem, size = 0x10000, scoped, tag = 'input window, operand 1, single buffered']
    #allocation6 [shape = 's32[1]{0}', space=sflag, size = 0x4, scoped, tag = 'scoped memory for _device_forward.4']
    #allocation7 [shape = 'u8[65536]{0}', space=vmem, size = 0x10000, scoped, tag = 'input window, operand 2, single buffered']
    #allocation8 [shape = 'u8[512000]{0}', space=vmem, size = 0x7d000, scoped, tag = 'input window, operand 3, single buffered']
    #allocation9 [shape = 's32[1]{0}', space=sflag, size = 0x4, scoped, tag = 'scoped memory for _device_forward.4']
    #allocation10 [shape = 'u8[512]{0}', space=smem, size = 0x200, scoped, tag = 'output window, operand 1, single buffered']
    #allocation11 [shape = 'u8[512]{0}', space=smem, size = 0x200, scoped, tag = 'output window, operand 2, single buffered']
    #allocation12 [shape = 's32[1]{0}', space=sflag, size = 0x4, scoped, tag = 'scoped memory for _device_forward.4']
    %12 = vsyncpa [#allocation3], 0
    %13 = vsyncpa [#allocation6], 0
    %14 = vsyncpa [#allocation9], 0
    %15 = vsyncpa [#allocation4], 0
    %16 = vsyncpa [#allocation12], 0
    // Predicated region
    $region2: #{_device_forward.4} parent=1 // pred_check
      _
    $region3: #{_device_forward.4} parent=1 // pred_check_branch
      %18 = sbr.rel (0) target = $region5
    $region4: #{_device_forward.4} parent=1 // pred_region
      %s20 = ssub.s32 256, 256
      %21 = vsyncadd [#allocation3], %s20
      %s22 = sshll.u32 [#allocation2], 4
      %s23 = int_to_ptr.vmem [resolvable:$true] %s22
      %28 = dma.hbm_to_vmem [thread:$0]  %s0, 256, %s23, [#allocation3], 128, 128, 8
    $region5: #{_device_forward.4} parent=1 // pred_fallthru
      _
    // Predicated region
    $region6: #{_device_forward.4} parent=1 // pred_check
      _
    $region7: #{_device_forward.4} parent=1 // pred_check_branch
      %30 = sbr.rel (0) target = $region9
    $region8: #{_device_forward.4} parent=1 // pred_region
      %s32 = ssub.s32 2048, 2048
      %33 = vsyncadd [#allocation6], %s32
      %s34 = sshll.u32 [#allocation5], 4
      %s35 = int_to_ptr.vmem [resolvable:$true] %s34
      %40 = dma.hbm_to_vmem [thread:$0]  %s1, 2048, %s35, [#allocation6], 1024, 1024, 64
    $region9: #{_device_forward.4} parent=1 // pred_fallthru
      _
    // Predicated region
    $region10: #{_device_forward.4} parent=1 // pred_check
      _
    $region11: #{_device_forward.4} parent=1 // pred_check_branch
      %42 = sbr.rel (0) target = $region13
    $region12: #{_device_forward.4} parent=1 // pred_region
      %s44 = ssub.s32 2048, 2048
      %45 = vsyncadd [#allocation6], %s44
      %s46 = sshll.u32 [#allocation7], 4
      %s47 = int_to_ptr.vmem [resolvable:$true] %s46
      %52 = dma.hbm_to_vmem [thread:$0]  %s2, 2048, %s47, [#allocation6], 128, 128, 8
    $region13: #{_device_forward.4} parent=1 // pred_fallthru
      _
    // Predicated region
    $region14: #{_device_forward.4} parent=1 // pred_check
      _
    $region15: #{_device_forward.4} parent=1 // pred_check_branch
      %54 = sbr.rel (0) target = $region17
    $region16: #{_device_forward.4} parent=1 // pred_region
      %s56 = ssub.s32 16000, 16000
      %57 = vsyncadd [#allocation9], %s56
      %s58 = sshll.u32 [#allocation8], 4
      %s59 = int_to_ptr.vmem [resolvable:$true] %s58
      %64 = dma.hbm_to_vmem [thread:$0]  %s3, 16000, %s59, [#allocation9], 128, 128, 8
    $region17: #{_device_forward.4} parent=1 // pred_fallthru
      _
    // Predicated region
    $region18: #{_device_forward.4} parent=1 // pred_check
      _
    $region19: #{_device_forward.4} parent=1 // pred_check_branch
      %66 = sbr.rel (0) target = $region21
    $region20: #{_device_forward.4} parent=1 // pred_region
      %67 = dma.done [#allocation3], 256
    $region21: #{_device_forward.4} parent=1 // pred_fallthru
      _
    // Predicated region
    $region22: #{_device_forward.4} parent=1 // pred_check
      _
    $region23: #{_device_forward.4} parent=1 // pred_check_branch
      %69 = sbr.rel (0) target = $region25
    $region24: #{_device_forward.4} parent=1 // pred_region
      %70 = dma.done [#allocation6], 2048
    $region25: #{_device_forward.4} parent=1 // pred_fallthru
      _
    // Predicated region
    $region26: #{_device_forward.4} parent=1 // pred_check
      _
    $region27: #{_device_forward.4} parent=1 // pred_check_branch
      %72 = sbr.rel (0) target = $region29
    $region28: #{_device_forward.4} parent=1 // pred_region
      %73 = dma.done [#allocation6], 2048
    $region29: #{_device_forward.4} parent=1 // pred_fallthru
      _
    // Predicated region
    $region30: #{_device_forward.4} parent=1 // pred_check
      _
    $region31: #{_device_forward.4} parent=1 // pred_check_branch
      %75 = sbr.rel (0) target = $region33
    $region32: #{_device_forward.4} parent=1 // pred_region
      %76 = dma.done [#allocation9], 16000
    $region33: #{_device_forward.4} parent=1 // pred_fallthru
      _
    %v78 = vld [vmem:[#allocation2] sm:$0xff]
    %v79 = vld [vmem:[#allocation2 + $0x8] sm:$0x7f]
    %v80 = vld [vmem:[#allocation5] sm:$0xff]
    %v81 = vld [vmem:[#allocation5 + $0x8] sm:$0xff]
    %v82 = vld [vmem:[#allocation5 + $0x10] sm:$0xff]
    %v83 = vld [vmem:[#allocation5 + $0x18] sm:$0xff]
    %v84 = vld [vmem:[#allocation5 + $0x20] sm:$0xff]
    %v85 = vld [vmem:[#allocation5 + $0x28] sm:$0xff]
    %v86 = vld [vmem:[#allocation5 + $0x30] sm:$0xff]
    %v87 = vld [vmem:[#allocation5 + $0x38] sm:$0xff]
    %v88 = vld [vmem:[#allocation5 + $0x40] sm:$0x7f]
    %v89 = vld [vmem:[#allocation5 + $0x48] sm:$0x7f]
    %v90 = vld [vmem:[#allocation5 + $0x50] sm:$0x7f]
    %v91 = vld [vmem:[#allocation5 + $0x58] sm:$0x7f]
    %v92 = vld [vmem:[#allocation5 + $0x60] sm:$0x7f]
    %v93 = vld [vmem:[#allocation5 + $0x68] sm:$0x7f]
    %v94 = vld [vmem:[#allocation5 + $0x70] sm:$0x7f]
    %v95 = vld [vmem:[#allocation5 + $0x78] sm:$0x7f]
    %v96 = vxor.u32 %v80, 2147483648
    %v97 = vxor.u32 %v81, 2147483648
    %v98 = vxor.u32 %v82, 2147483648
    %v99 = vxor.u32 %v83, 2147483648
    %v100 = vxor.u32 %v84, 2147483648
    %v101 = vxor.u32 %v85, 2147483648
    %v102 = vxor.u32 %v86, 2147483648
    %v103 = vxor.u32 %v87, 2147483648
    %v104 = vxor.u32 %v88, 2147483648
    %v105 = vxor.u32 %v89, 2147483648
    %v106 = vxor.u32 %v90, 2147483648
    %v107 = vxor.u32 %v91, 2147483648
    %v108 = vxor.u32 %v92, 2147483648
    %v109 = vxor.u32 %v93, 2147483648
    %v110 = vxor.u32 %v94, 2147483648
    %v111 = vxor.u32 %v95, 2147483648
    %v112 = vmul.f32 %v96, 1.442695
    %v113 = vpow.pop %v112
    %v114 = vmul.f32 %v97, 1.442695
    %v115 = vpow.pop %v114
    %v116 = vmul.f32 %v98, 1.442695
    %v117 = vpow.pop %v116
    %v118 = vmul.f32 %v99, 1.442695
    %v119 = vpow.pop %v118
    %v120 = vmul.f32 %v100, 1.442695
    %v121 = vpow.pop %v120
    %v122 = vmul.f32 %v101, 1.442695
    %v123 = vpow.pop %v122
    %v124 = vmul.f32 %v102, 1.442695
    %v125 = vpow.pop %v124
    %v126 = vmul.f32 %v103, 1.442695
    %v127 = vpow.pop %v126
    %v128 = vmul.f32 %v104, 1.442695
    %v129 = vpow.pop %v128
    %v130 = vmul.f32 %v105, 1.442695
    %v131 = vpow.pop %v130
    %v132 = vmul.f32 %v106, 1.442695
    %v133 = vpow.pop %v132
    %v134 = vmul.f32 %v107, 1.442695
    %v135 = vpow.pop %v134
    %v136 = vmul.f32 %v108, 1.442695
    %v137 = vpow.pop %v136
    %v138 = vmul.f32 %v109, 1.442695
    %v139 = vpow.pop %v138
    %v140 = vmul.f32 %v110, 1.442695
    %v141 = vpow.pop %v140
    %v142 = vmul.f32 %v111, 1.442695
    %v143 = vpow.pop %v142
    %v144 = vadd.f32 %v113, 1.0
    %v145 = vadd.f32 %v115, 1.0
    %v146 = vadd.f32 %v117, 1.0
    %v147 = vadd.f32 %v119, 1.0
    %v148 = vadd.f32 %v121, 1.0
    %v149 = vadd.f32 %v123, 1.0
    %v150 = vadd.f32 %v125, 1.0
    %v151 = vadd.f32 %v127, 1.0
    %v152 = vadd.f32 %v129, 1.0
    %v153 = vadd.f32 %v131, 1.0
    %v154 = vadd.f32 %v133, 1.0
    %v155 = vadd.f32 %v135, 1.0
    %v156 = vadd.f32 %v137, 1.0
    %v157 = vadd.f32 %v139, 1.0
    %v158 = vadd.f32 %v141, 1.0
    %v159 = vadd.f32 %v143, 1.0
    %v160 = vrcp.pop %v144
    %v161 = vmul.f32 1.0, %v160
    %v162 = vrcp.pop %v145
    %v163 = vmul.f32 1.0, %v162
    %v164 = vrcp.pop %v146
    %v165 = vmul.f32 1.0, %v164
    %v166 = vrcp.pop %v147
    %v167 = vmul.f32 1.0, %v166
    %v168 = vrcp.pop %v148
    %v169 = vmul.f32 1.0, %v168
    %v170 = vrcp.pop %v149
    %v171 = vmul.f32 1.0, %v170
    %v172 = vrcp.pop %v150
    %v173 = vmul.f32 1.0, %v172
    %v174 = vrcp.pop %v151
    %v175 = vmul.f32 1.0, %v174
    %v176 = vrcp.pop %v152
    %v177 = vmul.f32 1.0, %v176
    %v178 = vrcp.pop %v153
    %v179 = vmul.f32 1.0, %v178
    %v180 = vrcp.pop %v154
    %v181 = vmul.f32 1.0, %v180
    %v182 = vrcp.pop %v155
    %v183 = vmul.f32 1.0, %v182
    %v184 = vrcp.pop %v156
    %v185 = vmul.f32 1.0, %v184
    %v186 = vrcp.pop %v157
    %v187 = vmul.f32 1.0, %v186
    %v188 = vrcp.pop %v158
    %v189 = vmul.f32 1.0, %v188
    %v190 = vrcp.pop %v159
    %v191 = vmul.f32 1.0, %v190
    %v192 = vpack.c.bf16 %v79, %v78
    %v193 = vld [vmem:[#allocation7] sm:$0xff]
    %v194 = vld [vmem:[#allocation7 + $0x8] sm:$0xff]
    %v195 = vld [vmem:[#allocation7 + $0x10] sm:$0xff]
    %v196 = vld [vmem:[#allocation7 + $0x18] sm:$0xff]
    %v197 = vld [vmem:[#allocation7 + $0x20] sm:$0xff]
    %v198 = vld [vmem:[#allocation7 + $0x28] sm:$0xff]
    %v199 = vld [vmem:[#allocation7 + $0x30] sm:$0xff]
    %v200 = vld [vmem:[#allocation7 + $0x38] sm:$0xff]
    %v201 = vld [vmem:[#allocation7 + $0x40] sm:$0xff]
    %v202 = vld [vmem:[#allocation7 + $0x48] sm:$0xff]
    %v203 = vld [vmem:[#allocation7 + $0x50] sm:$0xff]
    %v204 = vld [vmem:[#allocation7 + $0x58] sm:$0xff]
    %v205 = vld [vmem:[#allocation7 + $0x60] sm:$0xff]
    %v206 = vld [vmem:[#allocation7 + $0x68] sm:$0xff]
    %v207 = vld [vmem:[#allocation7 + $0x70] sm:$0xff]
    %v208 = vld [vmem:[#allocation7 + $0x78] sm:$0xff]
    %v209 = vpack.c.bf16 %v177, %v161
    %v210 = vpack.c.bf16 %v179, %v163
    %v211 = vpack.c.bf16 %v181, %v165
    %v212 = vpack.c.bf16 %v183, %v167
    %v213 = vpack.c.bf16 %v185, %v169
    %v214 = vpack.c.bf16 %v187, %v171
    %v215 = vpack.c.bf16 %v189, %v173
    %v216 = vpack.c.bf16 %v191, %v175
    %v217 = vld [vmem:[#allocation8] sm:$0xff]
    %v218 = vld [vmem:[#allocation8 + $0x8] sm:$0xff]
    %v219 = vld [vmem:[#allocation8 + $0x10] sm:$0xff]
    %v220 = vld [vmem:[#allocation8 + $0x18] sm:$0xff]
    %v221 = vld [vmem:[#allocation8 + $0x20] sm:$0xff]
    %v222 = vld [vmem:[#allocation8 + $0x28] sm:$0xff]
    %v223 = vld [vmem:[#allocation8 + $0x30] sm:$0xff]
    %v224 = vld [vmem:[#allocation8 + $0x38] sm:$0xff]
    %v225 = vld [vmem:[#allocation8 + $0x40] sm:$0xff]
    %v226 = vld [vmem:[#allocation8 + $0x48] sm:$0xff]
    %v227 = vld [vmem:[#allocation8 + $0x50] sm:$0xff]
    %v228 = vld [vmem:[#allocation8 + $0x58] sm:$0xff]
    %v229 = vld [vmem:[#allocation8 + $0x60] sm:$0xff]
    %v230 = vld [vmem:[#allocation8 + $0x68] sm:$0xff]
    %v231 = vld [vmem:[#allocation8 + $0x70] sm:$0xff]
    %v232 = vld [vmem:[#allocation8 + $0x78] sm:$0xff]
    %v233 = vld [vmem:[#allocation8 + $0x80] sm:$0xff]
    %v234 = vld [vmem:[#allocation8 + $0x88] sm:$0xff]
    %v235 = vld [vmem:[#allocation8 + $0x90] sm:$0xff]
    %v236 = vld [vmem:[#allocation8 + $0x98] sm:$0xff]
    %v237 = vld [vmem:[#allocation8 + $0xa0] sm:$0xff]
    %v238 = vld [vmem:[#allocation8 + $0xa8] sm:$0xff]
    %v239 = vld [vmem:[#allocation8 + $0xb0] sm:$0xff]
    %v240 = vld [vmem:[#allocation8 + $0xb8] sm:$0xff]
    %v241 = vld [vmem:[#allocation8 + $0xc0] sm:$0xff]
    %v242 = vld [vmem:[#allocation8 + $0xc8] sm:$0xff]
    %v243 = vld [vmem:[#allocation8 + $0xd0] sm:$0xff]
    %v244 = vld [vmem:[#allocation8 + $0xd8] sm:$0xff]
    %v245 = vld [vmem:[#allocation8 + $0xe0] sm:$0xff]
    %v246 = vld [vmem:[#allocation8 + $0xe8] sm:$0xff]
    %v247 = vld [vmem:[#allocation8 + $0xf0] sm:$0xff]
    %v248 = vld [vmem:[#allocation8 + $0xf8] sm:$0xff]
    %v249 = vld [vmem:[#allocation8 + $0x100] sm:$0xff]
    %v250 = vld [vmem:[#allocation8 + $0x108] sm:$0xff]
    %v251 = vld [vmem:[#allocation8 + $0x110] sm:$0xff]
    %v252 = vld [vmem:[#allocation8 + $0x118] sm:$0xff]
    %v253 = vld [vmem:[#allocation8 + $0x120] sm:$0xff]
    %v254 = vld [vmem:[#allocation8 + $0x128] sm:$0xff]
    %v255 = vld [vmem:[#allocation8 + $0x130] sm:$0xff]
    %v256 = vld [vmem:[#allocation8 + $0x138] sm:$0xff]
    %v257 = vld [vmem:[#allocation8 + $0x140] sm:$0xff]
    %v258 = vld [vmem:[#allocation8 + $0x148] sm:$0xff]
    %v259 = vld [vmem:[#allocation8 + $0x150] sm:$0xff]
    %v260 = vld [vmem:[#allocation8 + $0x158] sm:$0xff]
    %v261 = vld [vmem:[#allocation8 + $0x160] sm:$0xff]
    %v262 = vld [vmem:[#allocation8 + $0x168] sm:$0xff]
    %v263 = vld [vmem:[#allocation8 + $0x170] sm:$0xff]
    %v264 = vld [vmem:[#allocation8 + $0x178] sm:$0xff]
    %v265 = vld [vmem:[#allocation8 + $0x180] sm:$0xff]
    %v266 = vld [vmem:[#allocation8 + $0x188] sm:$0xff]
    %v267 = vld [vmem:[#allocation8 + $0x190] sm:$0xff]
    %v268 = vld [vmem:[#allocation8 + $0x198] sm:$0xff]
    %v269 = vld [vmem:[#allocation8 + $0x1a0] sm:$0xff]
    %v270 = vld [vmem:[#allocation8 + $0x1a8] sm:$0xff]
    %v271 = vld [vmem:[#allocation8 + $0x1b0] sm:$0xff]
    %v272 = vld [vmem:[#allocation8 + $0x1b8] sm:$0xff]
    %v273 = vld [vmem:[#allocation8 + $0x1c0] sm:$0xff]
    %v274 = vld [vmem:[#allocation8 + $0x1c8] sm:$0xff]
    %v275 = vld [vmem:[#allocation8 + $0x1d0] sm:$0xff]
    %v276 = vld [vmem:[#allocation8 + $0x1d8] sm:$0xff]
    %v277 = vld [vmem:[#allocation8 + $0x1e0] sm:$0xff]
    %v278 = vld [vmem:[#allocation8 + $0x1e8] sm:$0xff]
    %v279 = vld [vmem:[#allocation8 + $0x1f0] sm:$0xff]
    %v280 = vld [vmem:[#allocation8 + $0x1f8] sm:$0xff]
    %v281 = vld [vmem:[#allocation8 + $0x200] sm:$0xff]
    %v282 = vld [vmem:[#allocation8 + $0x208] sm:$0xff]
    %v283 = vld [vmem:[#allocation8 + $0x210] sm:$0xff]
    %v284 = vld [vmem:[#allocation8 + $0x218] sm:$0xff]
    %v285 = vld [vmem:[#allocation8 + $0x220] sm:$0xff]
    %v286 = vld [vmem:[#allocation8 + $0x228] sm:$0xff]
    %v287 = vld [vmem:[#allocation8 + $0x230] sm:$0xff]
    %v288 = vld [vmem:[#allocation8 + $0x238] sm:$0xff]
    %v289 = vld [vmem:[#allocation8 + $0x240] sm:$0xff]
    %v290 = vld [vmem:[#allocation8 + $0x248] sm:$0xff]
    %v291 = vld [vmem:[#allocation8 + $0x250] sm:$0xff]
    %v292 = vld [vmem:[#allocation8 + $0x258] sm:$0xff]
    %v293 = vld [vmem:[#allocation8 + $0x260] sm:$0xff]
    %v294 = vld [vmem:[#allocation8 + $0x268] sm:$0xff]
    %v295 = vld [vmem:[#allocation8 + $0x270] sm:$0xff]
    %v296 = vld [vmem:[#allocation8 + $0x278] sm:$0xff]
    %v297 = vld [vmem:[#allocation8 + $0x280] sm:$0xff]
    %v298 = vld [vmem:[#allocation8 + $0x288] sm:$0xff]
    %v299 = vld [vmem:[#allocation8 + $0x290] sm:$0xff]
    %v300 = vld [vmem:[#allocation8 + $0x298] sm:$0xff]
    %v301 = vld [vmem:[#allocation8 + $0x2a0] sm:$0xff]
    %v302 = vld [vmem:[#allocation8 + $0x2a8] sm:$0xff]
    %v303 = vld [vmem:[#allocation8 + $0x2b0] sm:$0xff]
    %v304 = vld [vmem:[#allocation8 + $0x2b8] sm:$0xff]
    %v305 = vld [vmem:[#allocation8 + $0x2c0] sm:$0xff]
    %v306 = vld [vmem:[#allocation8 + $0x2c8] sm:$0xff]
    %v307 = vld [vmem:[#allocation8 + $0x2d0] sm:$0xff]
    %v308 = vld [vmem:[#allocation8 + $0x2d8] sm:$0xff]
    %v309 = vld [vmem:[#allocation8 + $0x2e0] sm:$0xff]
    %v310 = vld [vmem:[#allocation8 + $0x2e8] sm:$0xff]
    %v311 = vld [vmem:[#allocation8 + $0x2f0] sm:$0xff]
    %v312 = vld [vmem:[#allocation8 + $0x2f8] sm:$0xff]
    %v313 = vld [vmem:[#allocation8 + $0x300] sm:$0xff]
    %v314 = vld [vmem:[#allocation8 + $0x308] sm:$0xff]
    %v315 = vld [vmem:[#allocation8 + $0x310] sm:$0xff]
    %v316 = vld [vmem:[#allocation8 + $0x318] sm:$0xff]
    %v317 = vld [vmem:[#allocation8 + $0x320] sm:$0xff]
    %v318 = vld [vmem:[#allocation8 + $0x328] sm:$0xff]
    %v319 = vld [vmem:[#allocation8 + $0x330] sm:$0xff]
    %v320 = vld [vmem:[#allocation8 + $0x338] sm:$0xff]
    %v321 = vld [vmem:[#allocation8 + $0x340] sm:$0xff]
    %v322 = vld [vmem:[#allocation8 + $0x348] sm:$0xff]
    %v323 = vld [vmem:[#allocation8 + $0x350] sm:$0xff]
    %v324 = vld [vmem:[#allocation8 + $0x358] sm:$0xff]
    %v325 = vld [vmem:[#allocation8 + $0x360] sm:$0xff]
    %v326 = vld [vmem:[#allocation8 + $0x368] sm:$0xff]
    %v327 = vld [vmem:[#allocation8 + $0x370] sm:$0xff]
    %v328 = vld [vmem:[#allocation8 + $0x378] sm:$0xff]
    %v329 = vld [vmem:[#allocation8 + $0x380] sm:$0xff]
    %v330 = vld [vmem:[#allocation8 + $0x388] sm:$0xff]
    %v331 = vld [vmem:[#allocation8 + $0x390] sm:$0xff]
    %v332 = vld [vmem:[#allocation8 + $0x398] sm:$0xff]
    %v333 = vld [vmem:[#allocation8 + $0x3a0] sm:$0xff]
    %v334 = vld [vmem:[#allocation8 + $0x3a8] sm:$0xff]
    %v335 = vld [vmem:[#allocation8 + $0x3b0] sm:$0xff]
    %v336 = vld [vmem:[#allocation8 + $0x3b8] sm:$0xff]
    %v337 = vld [vmem:[#allocation8 + $0x3c0] sm:$0xff]
    %v338 = vld [vmem:[#allocation8 + $0x3c8] sm:$0xff]
    %v339 = vld [vmem:[#allocation8 + $0x3d0] sm:$0xff]
    %v340 = vld [vmem:[#allocation8 + $0x3d8] sm:$0xff]
    %v341 = vld [vmem:[#allocation8 + $0x3e0] sm:$0xff]
    %v467 = vunpack.c.l.b16 %v217
    %v468 = vunpack.c.h.b16 %v217
    %v469 = vunpack.c.l.b16 %v218
    %v470 = vunpack.c.h.b16 %v218
    %v471 = vunpack.c.l.b16 %v219
    %v472 = vunpack.c.h.b16 %v219
    %v473 = vunpack.c.l.b16 %v220
    %v474 = vunpack.c.h.b16 %v220
    %v475 = vunpack.c.l.b16 %v221
    %v476 = vunpack.c.h.b16 %v221
    %v477 = vunpack.c.l.b16 %v222
    %v478 = vunpack.c.h.b16 %v222
    %v479 = vunpack.c.l.b16 %v223
    %v480 = vunpack.c.h.b16 %v223
    %v481 = vunpack.c.l.b16 %v224
    %v482 = vunpack.c.h.b16 %v224
    %v483 = vunpack.c.l.b16 %v225
    %v484 = vunpack.c.h.b16 %v225
    %v485 = vunpack.c.l.b16 %v226
    %v486 = vunpack.c.h.b16 %v226
    %v487 = vunpack.c.l.b16 %v227
    %v488 = vunpack.c.h.b16 %v227
    %v489 = vunpack.c.l.b16 %v228
    %v490 = vunpack.c.h.b16 %v228
    %v491 = vunpack.c.l.b16 %v229
    %v492 = vunpack.c.h.b16 %v229
    %v493 = vunpack.c.l.b16 %v230
    %v494 = vunpack.c.h.b16 %v230
    %v495 = vunpack.c.l.b16 %v231
    %v496 = vunpack.c.h.b16 %v231
    %v497 = vunpack.c.l.b16 %v232
    %v498 = vunpack.c.h.b16 %v232
    %v499 = vunpack.c.l.b16 %v233
    %v500 = vunpack.c.h.b16 %v233
    %v501 = vunpack.c.l.b16 %v234
    %v502 = vunpack.c.h.b16 %v234
    %v503 = vunpack.c.l.b16 %v235
    %v504 = vunpack.c.h.b16 %v235
    %v505 = vunpack.c.l.b16 %v236
    %v506 = vunpack.c.h.b16 %v236
    %v507 = vunpack.c.l.b16 %v237
    %v508 = vunpack.c.h.b16 %v237
    %v509 = vunpack.c.l.b16 %v238
    %v510 = vunpack.c.h.b16 %v238
    %v511 = vunpack.c.l.b16 %v239
    %v512 = vunpack.c.h.b16 %v239
    %v513 = vunpack.c.l.b16 %v240
    %v514 = vunpack.c.h.b16 %v240
    %v515 = vunpack.c.l.b16 %v241
    %v516 = vunpack.c.h.b16 %v241
    %v517 = vunpack.c.l.b16 %v242
    %v518 = vunpack.c.h.b16 %v242
    %v519 = vunpack.c.l.b16 %v243
    %v520 = vunpack.c.h.b16 %v243
    %v521 = vunpack.c.l.b16 %v244
    %v522 = vunpack.c.h.b16 %v244
    %v523 = vunpack.c.l.b16 %v245
    %v524 = vunpack.c.h.b16 %v245
    %v525 = vunpack.c.l.b16 %v246
    %v526 = vunpack.c.h.b16 %v246
    %v527 = vunpack.c.l.b16 %v247
    %v528 = vunpack.c.h.b16 %v247
    %v529 = vunpack.c.l.b16 %v248
    %v530 = vunpack.c.h.b16 %v248
    %v531 = vunpack.c.l.b16 %v249
    %v532 = vunpack.c.h.b16 %v249
    %v533 = vunpack.c.l.b16 %v250
    %v534 = vunpack.c.h.b16 %v250
    %v535 = vunpack.c.l.b16 %v251
    %v536 = vunpack.c.h.b16 %v251
    %v537 = vunpack.c.l.b16 %v252
    %v538 = vunpack.c.h.b16 %v252
    %v539 = vunpack.c.l.b16 %v253
    %v540 = vunpack.c.h.b16 %v253
    %v541 = vunpack.c.l.b16 %v254
    %v542 = vunpack.c.h.b16 %v254
    %v543 = vunpack.c.l.b16 %v255
    %v544 = vunpack.c.h.b16 %v255
    %v545 = vunpack.c.l.b16 %v256
    %v546 = vunpack.c.h.b16 %v256
    %v547 = vunpack.c.l.b16 %v257
    %v548 = vunpack.c.h.b16 %v257
    %v549 = vunpack.c.l.b16 %v258
    %v550 = vunpack.c.h.b16 %v258
    %v551 = vunpack.c.l.b16 %v259
    %v552 = vunpack.c.h.b16 %v259
    %v553 = vunpack.c.l.b16 %v260
    %v554 = vunpack.c.h.b16 %v260
    %v555 = vunpack.c.l.b16 %v261
    %v556 = vunpack.c.h.b16 %v261
    %v557 = vunpack.c.l.b16 %v262
    %v558 = vunpack.c.h.b16 %v262
    %v559 = vunpack.c.l.b16 %v263
    %v560 = vunpack.c.h.b16 %v263
    %v561 = vunpack.c.l.b16 %v264
    %v562 = vunpack.c.h.b16 %v264
    %v563 = vunpack.c.l.b16 %v265
    %v564 = vunpack.c.h.b16 %v265
    %v565 = vunpack.c.l.b16 %v266
    %v566 = vunpack.c.h.b16 %v266
    %v567 = vunpack.c.l.b16 %v267
    %v568 = vunpack.c.h.b16 %v267
    %v569 = vunpack.c.l.b16 %v268
    %v570 = vunpack.c.h.b16 %v268
    %v571 = vunpack.c.l.b16 %v269
    %v572 = vunpack.c.h.b16 %v269
    %v573 = vunpack.c.l.b16 %v270
    %v574 = vunpack.c.h.b16 %v270
    %v575 = vunpack.c.l.b16 %v271
    %v576 = vunpack.c.h.b16 %v271
    %v577 = vunpack.c.l.b16 %v272
    %v578 = vunpack.c.h.b16 %v272
    %v579 = vunpack.c.l.b16 %v273
    %v580 = vunpack.c.h.b16 %v273
    %v581 = vunpack.c.l.b16 %v274
    %v582 = vunpack.c.h.b16 %v274
    %v583 = vunpack.c.l.b16 %v275
    %v584 = vunpack.c.h.b16 %v275
    %v585 = vunpack.c.l.b16 %v276
    %v586 = vunpack.c.h.b16 %v276
    %v587 = vunpack.c.l.b16 %v277
    %v588 = vunpack.c.h.b16 %v277
    %v589 = vunpack.c.l.b16 %v278
    %v590 = vunpack.c.h.b16 %v278
    %v591 = vunpack.c.l.b16 %v279
    %v592 = vunpack.c.h.b16 %v279
    %v593 = vunpack.c.l.b16 %v280
    %v594 = vunpack.c.h.b16 %v280
    %v595 = vunpack.c.l.b16 %v281
    %v596 = vunpack.c.h.b16 %v281
    %v597 = vunpack.c.l.b16 %v282
    %v598 = vunpack.c.h.b16 %v282
    %v599 = vunpack.c.l.b16 %v283
    %v600 = vunpack.c.h.b16 %v283
    %v601 = vunpack.c.l.b16 %v284
    %v602 = vunpack.c.h.b16 %v284
    %v603 = vunpack.c.l.b16 %v285
    %v604 = vunpack.c.h.b16 %v285
    %v605 = vunpack.c.l.b16 %v286
    %v606 = vunpack.c.h.b16 %v286
    %v607 = vunpack.c.l.b16 %v287
    %v608 = vunpack.c.h.b16 %v287
    %v609 = vunpack.c.l.b16 %v288
    %v610 = vunpack.c.h.b16 %v288
    %v611 = vunpack.c.l.b16 %v289
    %v612 = vunpack.c.h.b16 %v289
    %v613 = vunpack.c.l.b16 %v290
    %v614 = vunpack.c.h.b16 %v290
    %v615 = vunpack.c.l.b16 %v291
    %v616 = vunpack.c.h.b16 %v291
    %v617 = vunpack.c.l.b16 %v292
    %v618 = vunpack.c.h.b16 %v292
    %v619 = vunpack.c.l.b16 %v293
    %v620 = vunpack.c.h.b16 %v293
    %v621 = vunpack.c.l.b16 %v294
    %v622 = vunpack.c.h.b16 %v294
    %v623 = vunpack.c.l.b16 %v295
    %v624 = vunpack.c.h.b16 %v295
    %v625 = vunpack.c.l.b16 %v296
    %v626 = vunpack.c.h.b16 %v296
    %v627 = vunpack.c.l.b16 %v297
    %v628 = vunpack.c.h.b16 %v297
    %v629 = vunpack.c.l.b16 %v298
    %v630 = vunpack.c.h.b16 %v298
    %v631 = vunpack.c.l.b16 %v299
    %v632 = vunpack.c.h.b16 %v299
    %v633 = vunpack.c.l.b16 %v300
    %v634 = vunpack.c.h.b16 %v300
    %v635 = vunpack.c.l.b16 %v301
    %v636 = vunpack.c.h.b16 %v301
    %v637 = vunpack.c.l.b16 %v302
    %v638 = vunpack.c.h.b16 %v302
    %v639 = vunpack.c.l.b16 %v303
    %v640 = vunpack.c.h.b16 %v303
    %v641 = vunpack.c.l.b16 %v304
    %v642 = vunpack.c.h.b16 %v304
    %v643 = vunpack.c.l.b16 %v305
    %v644 = vunpack.c.h.b16 %v305
    %v645 = vunpack.c.l.b16 %v306
    %v646 = vunpack.c.h.b16 %v306
    %v647 = vunpack.c.l.b16 %v307
    %v648 = vunpack.c.h.b16 %v307
    %v649 = vunpack.c.l.b16 %v308
    %v650 = vunpack.c.h.b16 %v308
    %v651 = vunpack.c.l.b16 %v309
    %v652 = vunpack.c.h.b16 %v309
    %v653 = vunpack.c.l.b16 %v310
    %v654 = vunpack.c.h.b16 %v310
    %v655 = vunpack.c.l.b16 %v311
    %v656 = vunpack.c.h.b16 %v311
    %v657 = vunpack.c.l.b16 %v312
    %v658 = vunpack.c.h.b16 %v312
    %v659 = vunpack.c.l.b16 %v313
    %v660 = vunpack.c.h.b16 %v313
    %v661 = vunpack.c.l.b16 %v314
    %v662 = vunpack.c.h.b16 %v314
    %v663 = vunpack.c.l.b16 %v315
    %v664 = vunpack.c.h.b16 %v315
    %v665 = vunpack.c.l.b16 %v316
    %v666 = vunpack.c.h.b16 %v316
    %v667 = vunpack.c.l.b16 %v317
    %v668 = vunpack.c.h.b16 %v317
    %v669 = vunpack.c.l.b16 %v318
    %v670 = vunpack.c.h.b16 %v318
    %v671 = vunpack.c.l.b16 %v319
    %v672 = vunpack.c.h.b16 %v319
    %v673 = vunpack.c.l.b16 %v320
    %v674 = vunpack.c.h.b16 %v320
    %v675 = vunpack.c.l.b16 %v321
    %v676 = vunpack.c.h.b16 %v321
    %v677 = vunpack.c.l.b16 %v322
    %v678 = vunpack.c.h.b16 %v322
    %v679 = vunpack.c.l.b16 %v323
    %v680 = vunpack.c.h.b16 %v323
    %v681 = vunpack.c.l.b16 %v324
    %v682 = vunpack.c.h.b16 %v324
    %v683 = vunpack.c.l.b16 %v325
    %v684 = vunpack.c.h.b16 %v325
    %v685 = vunpack.c.l.b16 %v326
    %v686 = vunpack.c.h.b16 %v326
    %v687 = vunpack.c.l.b16 %v327
    %v688 = vunpack.c.h.b16 %v327
    %v689 = vunpack.c.l.b16 %v328
    %v690 = vunpack.c.h.b16 %v328
    %v691 = vunpack.c.l.b16 %v329
    %v692 = vunpack.c.h.b16 %v329
    %v693 = vunpack.c.l.b16 %v330
    %v694 = vunpack.c.h.b16 %v330
    %v695 = vunpack.c.l.b16 %v331
    %v696 = vunpack.c.h.b16 %v331
    %v697 = vunpack.c.l.b16 %v332
    %v698 = vunpack.c.h.b16 %v332
    %v699 = vunpack.c.l.b16 %v333
    %v700 = vunpack.c.h.b16 %v333
    %v701 = vunpack.c.l.b16 %v334
    %v702 = vunpack.c.h.b16 %v334
    %v703 = vunpack.c.l.b16 %v335
    %v704 = vunpack.c.h.b16 %v335
    %v705 = vunpack.c.l.b16 %v336
    %v706 = vunpack.c.h.b16 %v336
    %v707 = vunpack.c.l.b16 %v337
    %v708 = vunpack.c.h.b16 %v337
    %v709 = vunpack.c.l.b16 %v338
    %v710 = vunpack.c.h.b16 %v338
    %v711 = vunpack.c.l.b16 %v339
    %v712 = vunpack.c.h.b16 %v339
    %v713 = vunpack.c.l.b16 %v340
    %v714 = vunpack.c.h.b16 %v340
    %v715 = vunpack.c.l.b16 %v341
    %v716 = vunpack.c.h.b16 %v341
    %v717 = vpack.c.b16 %v469, %v467
    %v718 = vpack.c.b16 %v470, %v468
    %v719 = vpack.c.b16 %v473, %v471
    %v720 = vpack.c.b16 %v474, %v472
    %v721 = vpack.c.b16 %v477, %v475
    %v722 = vpack.c.b16 %v478, %v476
    %v723 = vpack.c.b16 %v481, %v479
    %v724 = vpack.c.b16 %v482, %v480
    %v725 = vpack.c.b16 %v485, %v483
    %v726 = vpack.c.b16 %v486, %v484
    %v727 = vpack.c.b16 %v489, %v487
    %v728 = vpack.c.b16 %v490, %v488
    %v729 = vpack.c.b16 %v493, %v491
    %v730 = vpack.c.b16 %v494, %v492
    %v731 = vpack.c.b16 %v497, %v495
    %v732 = vpack.c.b16 %v498, %v496
    %v733 = vpack.c.b16 %v501, %v499
    %v734 = vpack.c.b16 %v502, %v500
    %v735 = vpack.c.b16 %v505, %v503
    %v736 = vpack.c.b16 %v506, %v504
    %v737 = vpack.c.b16 %v509, %v507
    %v738 = vpack.c.b16 %v510, %v508
    %v739 = vpack.c.b16 %v513, %v511
    %v740 = vpack.c.b16 %v514, %v512
    %v741 = vpack.c.b16 %v517, %v515
    %v742 = vpack.c.b16 %v518, %v516
    %v743 = vpack.c.b16 %v521, %v519
    %v744 = vpack.c.b16 %v522, %v520
    %v745 = vpack.c.b16 %v525, %v523
    %v746 = vpack.c.b16 %v526, %v524
    %v747 = vpack.c.b16 %v529, %v527
    %v748 = vpack.c.b16 %v530, %v528
    %v749 = vpack.c.b16 %v533, %v531
    %v750 = vpack.c.b16 %v534, %v532
    %v751 = vpack.c.b16 %v537, %v535
    %v752 = vpack.c.b16 %v538, %v536
    %v753 = vpack.c.b16 %v541, %v539
    %v754 = vpack.c.b16 %v542, %v540
    %v755 = vpack.c.b16 %v545, %v543
    %v756 = vpack.c.b16 %v546, %v544
    %v757 = vpack.c.b16 %v549, %v547
    %v758 = vpack.c.b16 %v550, %v548
    %v759 = vpack.c.b16 %v553, %v551
    %v760 = vpack.c.b16 %v554, %v552
    %v761 = vpack.c.b16 %v557, %v555
    %v762 = vpack.c.b16 %v558, %v556
    %v763 = vpack.c.b16 %v561, %v559
    %v764 = vpack.c.b16 %v562, %v560
    %v765 = vpack.c.b16 %v565, %v563
    %v766 = vpack.c.b16 %v566, %v564
    %v767 = vpack.c.b16 %v569, %v567
    %v768 = vpack.c.b16 %v570, %v568
    %v769 = vpack.c.b16 %v573, %v571
    %v770 = vpack.c.b16 %v574, %v572
    %v771 = vpack.c.b16 %v577, %v575
    %v772 = vpack.c.b16 %v578, %v576
    %v773 = vpack.c.b16 %v581, %v579
    %v774 = vpack.c.b16 %v582, %v580
    %v775 = vpack.c.b16 %v585, %v583
    %v776 = vpack.c.b16 %v586, %v584
    %v777 = vpack.c.b16 %v589, %v587
    %v778 = vpack.c.b16 %v590, %v588
    %v779 = vpack.c.b16 %v593, %v591
    %v780 = vpack.c.b16 %v594, %v592
    %v781 = vpack.c.b16 %v597, %v595
    %v782 = vpack.c.b16 %v598, %v596
    %v783 = vpack.c.b16 %v601, %v599
    %v784 = vpack.c.b16 %v602, %v600
    %v785 = vpack.c.b16 %v605, %v603
    %v786 = vpack.c.b16 %v606, %v604
    %v787 = vpack.c.b16 %v609, %v607
    %v788 = vpack.c.b16 %v610, %v608
    %v789 = vpack.c.b16 %v613, %v611
    %v790 = vpack.c.b16 %v614, %v612
    %v791 = vpack.c.b16 %v617, %v615
    %v792 = vpack.c.b16 %v618, %v616
    %v793 = vpack.c.b16 %v621, %v619
    %v794 = vpack.c.b16 %v622, %v620
    %v795 = vpack.c.b16 %v625, %v623
    %v796 = vpack.c.b16 %v626, %v624
    %v797 = vpack.c.b16 %v629, %v627
    %v798 = vpack.c.b16 %v630, %v628
    %v799 = vpack.c.b16 %v633, %v631
    %v800 = vpack.c.b16 %v634, %v632
    %v801 = vpack.c.b16 %v637, %v635
    %v802 = vpack.c.b16 %v638, %v636
    %v803 = vpack.c.b16 %v641, %v639
    %v804 = vpack.c.b16 %v642, %v640
    %v805 = vpack.c.b16 %v645, %v643
    %v806 = vpack.c.b16 %v646, %v644
    %v807 = vpack.c.b16 %v649, %v647
    %v808 = vpack.c.b16 %v650, %v648
    %v809 = vpack.c.b16 %v653, %v651
    %v810 = vpack.c.b16 %v654, %v652
    %v811 = vpack.c.b16 %v657, %v655
    %v812 = vpack.c.b16 %v658, %v656
    %v813 = vpack.c.b16 %v661, %v659
    %v814 = vpack.c.b16 %v662, %v660
    %v815 = vpack.c.b16 %v665, %v663
    %v816 = vpack.c.b16 %v666, %v664
    %v817 = vpack.c.b16 %v669, %v667
    %v818 = vpack.c.b16 %v670, %v668
    %v819 = vpack.c.b16 %v673, %v671
    %v820 = vpack.c.b16 %v674, %v672
    %v821 = vpack.c.b16 %v677, %v675
    %v822 = vpack.c.b16 %v678, %v676
    %v823 = vpack.c.b16 %v681, %v679
    %v824 = vpack.c.b16 %v682, %v680
    %v825 = vpack.c.b16 %v685, %v683
    %v826 = vpack.c.b16 %v686, %v684
    %v827 = vpack.c.b16 %v689, %v687
    %v828 = vpack.c.b16 %v690, %v688
    %v829 = vpack.c.b16 %v693, %v691
    %v830 = vpack.c.b16 %v694, %v692
    %v831 = vpack.c.b16 %v697, %v695
    %v832 = vpack.c.b16 %v698, %v696
    %v833 = vpack.c.b16 %v701, %v699
    %v834 = vpack.c.b16 %v702, %v700
    %v835 = vpack.c.b16 %v705, %v703
    %v836 = vpack.c.b16 %v706, %v704
    %v837 = vpack.c.b16 %v709, %v707
    %v838 = vpack.c.b16 %v710, %v708
    %v839 = vpack.c.b16 %v713, %v711
    %v840 = vpack.c.b16 %v714, %v712
    %v841 = vpack.c.b16 %v715, %v715
    %v842 = vpack.c.b16 %v716, %v716
    %vm967 = vcmask 850944
    %v969 = vsel %vm967, %v216, 0
    %vm971 = vcmask 1043456
    %v973 = vsel %vm971, %v841, 0
    %v976 = vsel %vm971, %v842, 0
    %978 = vmatprep.subr.bf16.mxu0 %v718
    %979 = vmatpush1.bf16.msra.mxu0 %v717
    %980 = vmatprep.subr.bf16.mxu0 %v720
    %981 = vmatpush1.bf16.msra.mxu0 %v719
    %982 = vmatprep.subr.bf16.mxu0 %v722
    %983 = vmatpush1.bf16.msra.mxu0 %v721
    %984 = vmatprep.subr.bf16.mxu0 %v724
    %985 = vmatpush1.bf16.msra.mxu0 %v723
    %986 = vmatprep.subr.bf16.mxu0 %v726
    %987 = vmatpush1.bf16.msra.mxu0 %v725
    %988 = vmatprep.subr.bf16.mxu0 %v728
    %989 = vmatpush1.bf16.msra.mxu0 %v727
    %990 = vmatprep.subr.bf16.mxu0 %v730
    %991 = vmatpush1.bf16.msra.mxu0 %v729
    %992 = vmatprep.subr.bf16.mxu0 %v732
    %993 = vmatpush1.bf16.msra.mxu0 %v731
    %994 = vmatprep.subr.bf16.mxu0 %v734
    %995 = vmatpush1.bf16.msra.mxu0 %v733
    %996 = vmatprep.subr.bf16.mxu0 %v736
    %997 = vmatpush1.bf16.msra.mxu0 %v735
    %998 = vmatprep.subr.bf16.mxu0 %v738
    %999 = vmatpush1.bf16.msra.mxu0 %v737
    %1000 = vmatprep.subr.bf16.mxu0 %v740
    %1001 = vmatpush1.bf16.msra.mxu0 %v739
    %1002 = vmatprep.subr.bf16.mxu0 %v742
    %1003 = vmatpush1.bf16.msra.mxu0 %v741
    %1004 = vmatprep.subr.bf16.mxu0 %v744
    %1005 = vmatpush1.bf16.msra.mxu0 %v743
    %1006 = vmatprep.subr.bf16.mxu0 %v746
    %1007 = vmatpush1.bf16.msra.mxu0 %v745
    %1008 = vmatprep.subr.bf16.mxu0 %v748
    %1009 = vmatpush1.bf16.msra.mxu0 %v747
    %1010 = vmatprep.mubr.bf16.mxu0 %v210
    %1011 = vmatmul.mubr.bf16.gmra.mrb[0].mxu0 %v209
    %v1012 = vpop.f32.mrb[0].mxu0
    %v1013 = vadd.f32 0.0, %v1012
    %v1014 = vpop.f32.mrb[0].mxu0
    %v1015 = vadd.f32 0.0, %v1014
    %v1016 = vpop.f32.mrb[0].mxu0
    %v1017 = vadd.f32 0.0, %v1016
    %v1018 = vpop.f32.mrb[0].mxu0
    %v1019 = vadd.f32 0.0, %v1018
    %1020 = vdwg.mxu0
    %1021 = vmatprep.subr.bf16.mxu0 %v750
    %1022 = vmatpush1.bf16.msra.mxu0 %v749
    %1023 = vmatprep.subr.bf16.mxu0 %v752
    %1024 = vmatpush1.bf16.msra.mxu0 %v751
    %1025 = vmatprep.subr.bf16.mxu0 %v754
    %1026 = vmatpush1.bf16.msra.mxu0 %v753
    %1027 = vmatprep.subr.bf16.mxu0 %v756
    %1028 = vmatpush1.bf16.msra.mxu0 %v755
    %1029 = vmatprep.subr.bf16.mxu0 %v758
    %1030 = vmatpush1.bf16.msra.mxu0 %v757
    %1031 = vmatprep.subr.bf16.mxu0 %v760
    %1032 = vmatpush1.bf16.msra.mxu0 %v759
    %1033 = vmatprep.subr.bf16.mxu0 %v762
    %1034 = vmatpush1.bf16.msra.mxu0 %v761
    %1035 = vmatprep.subr.bf16.mxu0 %v764
    %1036 = vmatpush1.bf16.msra.mxu0 %v763
    %1037 = vmatprep.subr.bf16.mxu0 %v766
    %1038 = vmatpush1.bf16.msra.mxu0 %v765
    %1039 = vmatprep.subr.bf16.mxu0 %v768
    %1040 = vmatpush1.bf16.msra.mxu0 %v767
    %1041 = vmatprep.subr.bf16.mxu0 %v770
    %1042 = vmatpush1.bf16.msra.mxu0 %v769
    %1043 = vmatprep.subr.bf16.mxu0 %v772
    %1044 = vmatpush1.bf16.msra.mxu0 %v771
    %1045 = vmatprep.subr.bf16.mxu0 %v774
    %1046 = vmatpush1.bf16.msra.mxu0 %v773
    %1047 = vmatprep.subr.bf16.mxu0 %v776
    %1048 = vmatpush1.bf16.msra.mxu0 %v775
    %1049 = vmatprep.subr.bf16.mxu0 %v778
    %1050 = vmatpush1.bf16.msra.mxu0 %v777
    %1051 = vmatprep.subr.bf16.mxu0 %v780
    %1052 = vmatpush1.bf16.msra.mxu0 %v779
    %1053 = vmatprep.mubr.bf16.mxu0 %v212
    %1054 = vmatmul.mubr.bf16.gmra.mrb[0].mxu0 %v211
    %v1055 = vpop.f32.mrb[0].mxu0
    %v1056 = vadd.f32 %v1013, %v1055
    %v1057 = vpop.f32.mrb[0].mxu0
    %v1058 = vadd.f32 %v1015, %v1057
    %v1059 = vpop.f32.mrb[0].mxu0
    %v1060 = vadd.f32 %v1017, %v1059
    %v1061 = vpop.f32.mrb[0].mxu0
    %v1062 = vadd.f32 %v1019, %v1061
    %1063 = vdwg.mxu0
    %1064 = vmatprep.subr.bf16.mxu0 %v782
    %1065 = vmatpush1.bf16.msra.mxu0 %v781
    %1066 = vmatprep.subr.bf16.mxu0 %v784
    %1067 = vmatpush1.bf16.msra.mxu0 %v783
    %1068 = vmatprep.subr.bf16.mxu0 %v786
    %1069 = vmatpush1.bf16.msra.mxu0 %v785
    %1070 = vmatprep.subr.bf16.mxu0 %v788
    %1071 = vmatpush1.bf16.msra.mxu0 %v787
    %1072 = vmatprep.subr.bf16.mxu0 %v790
    %1073 = vmatpush1.bf16.msra.mxu0 %v789
    %1074 = vmatprep.subr.bf16.mxu0 %v792
    %1075 = vmatpush1.bf16.msra.mxu0 %v791
    %1076 = vmatprep.subr.bf16.mxu0 %v794
    %1077 = vmatpush1.bf16.msra.mxu0 %v793
    %1078 = vmatprep.subr.bf16.mxu0 %v796
    %1079 = vmatpush1.bf16.msra.mxu0 %v795
    %1080 = vmatprep.subr.bf16.mxu0 %v798
    %1081 = vmatpush1.bf16.msra.mxu0 %v797
    %1082 = vmatprep.subr.bf16.mxu0 %v800
    %1083 = vmatpush1.bf16.msra.mxu0 %v799
    %1084 = vmatprep.subr.bf16.mxu0 %v802
    %1085 = vmatpush1.bf16.msra.mxu0 %v801
    %1086 = vmatprep.subr.bf16.mxu0 %v804
    %1087 = vmatpush1.bf16.msra.mxu0 %v803
    %1088 = vmatprep.subr.bf16.mxu0 %v806
    %1089 = vmatpush1.bf16.msra.mxu0 %v805
    %1090 = vmatprep.subr.bf16.mxu0 %v808
    %1091 = vmatpush1.bf16.msra.mxu0 %v807
    %1092 = vmatprep.subr.bf16.mxu0 %v810
    %1093 = vmatpush1.bf16.msra.mxu0 %v809
    %1094 = vmatprep.subr.bf16.mxu0 %v812
    %1095 = vmatpush1.bf16.msra.mxu0 %v811
    %1096 = vmatprep.mubr.bf16.mxu0 %v214
    %1097 = vmatmul.mubr.bf16.gmra.mrb[0].mxu0 %v213
    %v1098 = vpop.f32.mrb[0].mxu0
    %v1099 = vadd.f32 %v1056, %v1098
    %v1100 = vpop.f32.mrb[0].mxu0
    %v1101 = vadd.f32 %v1058, %v1100
    %v1102 = vpop.f32.mrb[0].mxu0
    %v1103 = vadd.f32 %v1060, %v1102
    %v1104 = vpop.f32.mrb[0].mxu0
    %v1105 = vadd.f32 %v1062, %v1104
    %1106 = vdwg.mxu0
    %1107 = vmatprep.subr.bf16.mxu0 %v814
    %1108 = vmatpush1.bf16.msra.mxu0 %v813
    %1109 = vmatprep.subr.bf16.mxu0 %v816
    %1110 = vmatpush1.bf16.msra.mxu0 %v815
    %1111 = vmatprep.subr.bf16.mxu0 %v818
    %1112 = vmatpush1.bf16.msra.mxu0 %v817
    %1113 = vmatprep.subr.bf16.mxu0 %v820
    %1114 = vmatpush1.bf16.msra.mxu0 %v819
    %1115 = vmatprep.subr.bf16.mxu0 %v822
    %1116 = vmatpush1.bf16.msra.mxu0 %v821
    %1117 = vmatprep.subr.bf16.mxu0 %v824
    %1118 = vmatpush1.bf16.msra.mxu0 %v823
    %1119 = vmatprep.subr.bf16.mxu0 %v826
    %1120 = vmatpush1.bf16.msra.mxu0 %v825
    %1121 = vmatprep.subr.bf16.mxu0 %v828
    %1122 = vmatpush1.bf16.msra.mxu0 %v827
    %1123 = vmatprep.subr.bf16.mxu0 %v830
    %1124 = vmatpush1.bf16.msra.mxu0 %v829
    %1125 = vmatprep.subr.bf16.mxu0 %v832
    %1126 = vmatpush1.bf16.msra.mxu0 %v831
    %1127 = vmatprep.subr.bf16.mxu0 %v834
    %1128 = vmatpush1.bf16.msra.mxu0 %v833
    %1129 = vmatprep.subr.bf16.mxu0 %v836
    %1130 = vmatpush1.bf16.msra.mxu0 %v835
    %1131 = vmatprep.subr.bf16.mxu0 %v838
    %1132 = vmatpush1.bf16.msra.mxu0 %v837
    %1133 = vmatprep.subr.bf16.mxu0 %v840
    %1134 = vmatpush1.bf16.msra.mxu0 %v839
    %1135 = vmatprep.subr.bf16.mxu0 %v976
    %1136 = vmatpush1.bf16.msra.mxu0 %v973
    %1137 = vmatprep.subr.bf16.mxu0 0
    %1138 = vmatpush1.bf16.msra.mxu0 0
    %1139 = vmatprep.mubr.bf16.mxu0 %v969
    %1140 = vmatmul.mubr.bf16.gmra.mrb[0].mxu0 %v215
    %v1141 = vpop.f32.mrb[0].mxu0
    %v1142 = vadd.f32 %v1099, %v1141
    %v1143 = vpop.f32.mrb[0].mxu0
    %v1144 = vadd.f32 %v1101, %v1143
    %v1145 = vpop.f32.mrb[0].mxu0
    %v1146 = vadd.f32 %v1103, %v1145
    %v1147 = vpop.f32.mrb[0].mxu0
    %v1148 = vadd.f32 %v1105, %v1147
    %1149 = vdwg.mxu0
    %v1166 = vunpack.c.l.b16 %v193
    %v1167 = vunpack.c.h.b16 %v193
    %v1168 = vunpack.c.l.b16 %v194
    %v1169 = vunpack.c.h.b16 %v194
    %v1170 = vunpack.c.l.b16 %v195
    %v1171 = vunpack.c.h.b16 %v195
    %v1172 = vunpack.c.l.b16 %v196
    %v1173 = vunpack.c.h.b16 %v196
    %v1174 = vunpack.c.l.b16 %v197
    %v1175 = vunpack.c.h.b16 %v197
    %v1176 = vunpack.c.l.b16 %v198
    %v1177 = vunpack.c.h.b16 %v198
    %v1178 = vunpack.c.l.b16 %v199
    %v1179 = vunpack.c.h.b16 %v199
    %v1180 = vunpack.c.l.b16 %v200
    %v1181 = vunpack.c.h.b16 %v200
    %v1182 = vunpack.c.l.b16 %v201
    %v1183 = vunpack.c.h.b16 %v201
    %v1184 = vunpack.c.l.b16 %v202
    %v1185 = vunpack.c.h.b16 %v202
    %v1186 = vunpack.c.l.b16 %v203
    %v1187 = vunpack.c.h.b16 %v203
    %v1188 = vunpack.c.l.b16 %v204
    %v1189 = vunpack.c.h.b16 %v204
    %v1190 = vunpack.c.l.b16 %v205
    %v1191 = vunpack.c.h.b16 %v205
    %v1192 = vunpack.c.l.b16 %v206
    %v1193 = vunpack.c.h.b16 %v206
    %v1194 = vunpack.c.l.b16 %v207
    %v1195 = vunpack.c.h.b16 %v207
    %v1196 = vunpack.c.l.b16 %v208
    %v1197 = vunpack.c.h.b16 %v208
    %v1198 = vpack.c.b16 %v1168, %v1166
    %v1199 = vpack.c.b16 %v1169, %v1167
    %v1200 = vpack.c.b16 %v1172, %v1170
    %v1201 = vpack.c.b16 %v1173, %v1171
    %v1202 = vpack.c.b16 %v1176, %v1174
    %v1203 = vpack.c.b16 %v1177, %v1175
    %v1204 = vpack.c.b16 %v1180, %v1178
    %v1205 = vpack.c.b16 %v1181, %v1179
    %v1206 = vpack.c.b16 %v1184, %v1182
    %v1207 = vpack.c.b16 %v1185, %v1183
    %v1208 = vpack.c.b16 %v1188, %v1186
    %v1209 = vpack.c.b16 %v1189, %v1187
    %v1210 = vpack.c.b16 %v1192, %v1190
    %v1211 = vpack.c.b16 %v1193, %v1191
    %v1212 = vpack.c.b16 %v1196, %v1194
    %v1213 = vpack.c.b16 %v1197, %v1195
    %1230 = vmatprep.subr.bf16.mxu0 %v1199
    %1231 = vmatpush1.bf16.msra.mxu0 %v1198
    %1232 = vmatprep.subr.bf16.mxu0 %v1201
    %1233 = vmatpush1.bf16.msra.mxu0 %v1200
    %1234 = vmatprep.subr.bf16.mxu0 %v1203
    %1235 = vmatpush1.bf16.msra.mxu0 %v1202
    %1236 = vmatprep.subr.bf16.mxu0 %v1205
    %1237 = vmatpush1.bf16.msra.mxu0 %v1204
    %1238 = vmatprep.subr.bf16.mxu0 %v1207
    %1239 = vmatpush1.bf16.msra.mxu0 %v1206
    %1240 = vmatprep.subr.bf16.mxu0 %v1209
    %1241 = vmatpush1.bf16.msra.mxu0 %v1208
    %1242 = vmatprep.subr.bf16.mxu0 %v1211
    %1243 = vmatpush1.bf16.msra.mxu0 %v1210
    %1244 = vmatprep.subr.bf16.mxu0 %v1213
    %1245 = vmatpush1.bf16.msra.mxu0 %v1212
    %1246 = vmatprep.subr.bf16.mxu0 0
    %1247 = vmatpush1.bf16.msra.mxu0 0
    %1248 = vmatprep.subr.bf16.mxu0 0
    %1249 = vmatpush1.bf16.msra.mxu0 0
    %1250 = vmatprep.subr.bf16.mxu0 0
    %1251 = vmatpush1.bf16.msra.mxu0 0
    %1252 = vmatprep.subr.bf16.mxu0 0
    %1253 = vmatpush1.bf16.msra.mxu0 0
    %1254 = vmatprep.subr.bf16.mxu0 0
    %1255 = vmatpush1.bf16.msra.mxu0 0
    %1256 = vmatprep.subr.bf16.mxu0 0
    %1257 = vmatpush1.bf16.msra.mxu0 0
    %1258 = vmatprep.subr.bf16.mxu0 0
    %1259 = vmatpush1.bf16.msra.mxu0 0
    %1260 = vmatprep.subr.bf16.mxu0 0
    %1261 = vmatpush1.bf16.msra.mxu0 0
    %1262 = vmatprep.mubr.bf16.mxu0 0
    %1263 = vmatmul.mubr.bf16.gmra.mrb[0].mxu0 %v192
    %v1264 = vpop.f32.mrb[0].mxu0
    %v1265 = vadd.f32 %v1142, %v1264
    %v1266 = vpop.f32.mrb[0].mxu0
    %v1267 = vadd.f32 %v1144, %v1266
    %v1268 = vpop.f32.mrb[0].mxu0
    %v1269 = vadd.f32 %v1146, %v1268
    %v1270 = vpop.f32.mrb[0].mxu0
    %v1271 = vadd.f32 %v1148, %v1270
    %1272 = vdwg.mxu0
    %vm1273 = vcmask 1046528
    %v1274 = vsel %vm1273, %v1269, 0.0
    %v1275 = vadd.f32 %v1265, %v1274
    %v1276 = vrot.slane %v1275, 4
    %v1277 = vadd.f32 %v1275, %v1276
    %v1278 = vrot.slane %v1277, 2
    %v1279 = vadd.f32 %v1277, %v1278
    %v1280 = vrot.slane %v1279, 1
    %v1281 = vadd.f32 %v1279, %v1280
    %v1282 = vsel %vm1273, %v1271, 0.0
    %v1283 = vadd.f32 %v1267, %v1282
    %v1284 = vrot.slane %v1283, 4
    %v1285 = vadd.f32 %v1283, %v1284
    %v1286 = vrot.slane %v1285, 2
    %v1287 = vadd.f32 %v1285, %v1286
    %v1288 = vrot.slane %v1287, 1
    %v1289 = vadd.f32 %v1287, %v1288
    %v1290 = vrcp.pop 15.0
    %v1291 = vmul.f32 %v1281, %v1290
    %v1292 = vmul.f32 %v1289, %v1290
    %v1295 = vcombine.low %v1291, %v1292
    %v1297 = vunpack.c.l.s4 1966171168
    %v1298 = vunpack.c.0.s8 %v1297
    %v1299 = vlaneseq
    %v1300 = vshrl.u32 %v1299, 7
    %v1301 = vsub.s32 %v1298, %v1300
    %v1302 = vrot.slane %v1295, %v1301
    %v1304 = vunpack.c.l.s4 1966171168
    %v1305 = vunpack.c.0.s8 %v1304
    %v1306 = vlaneseq
    %v1307 = vshrl.u32 %v1306, 7
    %v1308 = vsub.s32 %v1305, %v1307
    %v1309 = vrot.slane %v1302, %v1308
    %v1311 = vlaneseq
    %vm1312 = vcmp.ge.s32.totalorder %v1311, 0
    %vm1313 = vcmp.lt.s32.totalorder %v1311, 256
    %vm1314 = vmand %vm1312, %vm1313
    %1315 = vst.msk [vmem:[%s4] sm:$0x3] %vm1314, %v1309
    %1316 = vadd.xlane.f32.xlu0 %v78
    %v1317 = vpop.xlane.xlu0 %1316
    %v1318 = vsel %vm1273, %v79, 0.0
    %1319 = vadd.xlane.f32.xlu0 %v1318
    %v1320 = vpop.xlane.xlu0 %1319
    %v1321 = vrcp.pop 128.0
    %v1322 = vmul.f32 %v1317, %v1321
    %v1323 = vmul.f32 %v1320, %v1321
    %v1324 = vsub.f32 %v78, %v1322
    %v1325 = vsub.f32 %v79, %v1323
    %v1326 = vmul.f32 %v1324, %v1324
    %v1327 = vmul.f32 %v1325, %v1325
    %1328 = vadd.xlane.f32.xlu0 %v1326
    %v1329 = vpop.xlane.xlu0 %1328
    %v1330 = vsel %vm1273, %v1327, 0.0
    %1331 = vadd.xlane.f32.xlu0 %v1330
    %v1332 = vpop.xlane.xlu0 %1331
    %v1333 = vrcp.pop 127.0
    %v1334 = vmul.f32 %v1329, %v1333
    %v1335 = vmul.f32 %v1332, %v1333
    %v1336 = vrsqrt.pop %v1334
    %v1337 = vmul.f32 %v1334, %v1336
    %vm1338 = vcmp.eq.f32.partialorder %v1334, inf
    %v1339 = vsel %vm1338, %v1334, %v1337
    %vm1340 = vcmp.eq.f32.partialorder %v1334, 0.0
    %v1341 = vand.u32 %v1334, 2147483648
    %v1342 = vsel %vm1340, %v1341, %v1339
    %v1343 = vrsqrt.pop %v1335
    %v1344 = vmul.f32 %v1335, %v1343
    %vm1345 = vcmp.eq.f32.partialorder %v1335, inf
    %v1346 = vsel %vm1345, %v1335, %v1344
    %vm1347 = vcmp.eq.f32.partialorder %v1335, 0.0
    %v1348 = vand.u32 %v1335, 2147483648
    %v1349 = vsel %vm1347, %v1348, %v1346
    %v1350 = vsub.f32 1.0, %v1342
    %v1351 = vsub.f32 1.0, %v1349
    %v1352 = vand.u32 2147483647, %v1350
    %v1353 = vand.u32 2147483647, %v1351
    %vm1354 = vcmask 7168
    %v1355 = vsel %vm1354, %v1352, 0.0
    %vm1356 = vcmask 6144
    %v1357 = vsel %vm1356, %v1353, 0.0
    %v1358 = vadd.f32 %v1355, %v1357
    %1359 = vadd.xlane.f32.xlu0 %v1358
    %v1360 = vpop.xlane.xlu0 %1359
    %v1361 = vrot.slane %v1360, 4
    %v1362 = vadd.f32 %v1360, %v1361
    %v1363 = vrot.slane %v1362, 2
    %v1364 = vadd.f32 %v1362, %v1363
    %v1365 = vrot.slane %v1364, 1
    %v1366 = vadd.f32 %v1364, %v1365
    %s1367 = vtos %v1366
    %v1368 = vrcp.pop 15.0
    %s1369 = vtos %v1368
    %s1370 = smul.f32 %s1367, %s1369
    %v1371 = vand.u32 2147483647, %v1322
    %v1372 = vand.u32 2147483647, %v1323
    %v1373 = vsel %vm1354, %v1371, 0.0
    %v1374 = vsel %vm1356, %v1372, 0.0
    %v1375 = vadd.f32 %v1373, %v1374
    %1376 = vadd.xlane.f32.xlu0 %v1375
    %v1377 = vpop.xlane.xlu0 %1376
    %v1378 = vrot.slane %v1377, 4
    %v1379 = vadd.f32 %v1377, %v1378
    %v1380 = vrot.slane %v1379, 2
    %v1381 = vadd.f32 %v1379, %v1380
    %v1382 = vrot.slane %v1381, 1
    %v1383 = vadd.f32 %v1381, %v1382
    %s1384 = vtos %v1383
    %v1385 = vrcp.pop 15.0
    %s1386 = vtos %v1385
    %s1387 = smul.f32 %s1384, %s1386
    %s1388 = sadd.f32 %s1370, %s1387
    %v1389 = vmul.f32 %v78, %v78
    %v1390 = vmul.f32 %v79, %v79
    %v1391 = vsel %vm1273, %v1390, 0.0
    %v1392 = vadd.f32 %v1389, %v1391
    %1393 = vadd.xlane.f32.xlu0 %v1392
    %v1394 = vpop.xlane.xlu0 %1393
    %v1395 = vrot.slane %v1394, 4
    %v1396 = vadd.f32 %v1394, %v1395
    %v1397 = vrot.slane %v1396, 2
    %v1398 = vadd.f32 %v1396, %v1397
    %v1399 = vrot.slane %v1398, 1
    %v1400 = vadd.f32 %v1398, %v1399
    %s1401 = vtos %v1400
    %v1402 = vrcp.pop 1920.0
    %s1403 = vtos %v1402
    %s1404 = smul.f32 %s1401, %s1403
    %s1405 = smax.f32 %s1404, 1.0
    %s1406 = smul.f32 %s1405, 4.0
    %s1407 = sadd.f32 %s1388, %s1406
    %v1408 = vmul.f32 %v1329, %v1321
    %v1409 = vmul.f32 %v1332, %v1321
    %v1410 = vadd.f32 %v1408, 1e-20
    %v1411 = vadd.f32 %v1409, 1e-20
    %v1412 = vrsqrt.pop %v1410
    %v1413 = vmul.f32 %v1410, %v1412
    %vm1414 = vcmp.eq.f32.partialorder %v1410, inf
    %v1415 = vsel %vm1414, %v1410, %v1413
    %vm1416 = vcmp.eq.f32.partialorder %v1410, 0.0
    %v1417 = vand.u32 %v1410, 2147483648
    %v1418 = vsel %vm1416, %v1417, %v1415
    %v1419 = vrsqrt.pop %v1411
    %v1420 = vmul.f32 %v1411, %v1419
    %vm1421 = vcmp.eq.f32.partialorder %v1411, inf
    %v1422 = vsel %vm1421, %v1411, %v1420
    %vm1423 = vcmp.eq.f32.partialorder %v1411, 0.0
    %v1424 = vand.u32 %v1411, 2147483648
    %v1425 = vsel %vm1423, %v1424, %v1422
    %v1426 = vrcp.pop %v1418
    %v1427 = vmul.f32 %v1324, %v1426
    %v1428 = vrcp.pop %v1425
    %v1429 = vmul.f32 %v1325, %v1428
    %v1430 = vmul.f32 %v1427, %v1427
    %v1431 = vmul.f32 %v1429, %v1429
    %v1432 = vmul.f32 %v1430, %v1427
    %v1433 = vmul.f32 %v1431, %v1429
    %1434 = vadd.xlane.f32.xlu0 %v1432
    %v1435 = vpop.xlane.xlu0 %1434
    %v1436 = vsel %vm1273, %v1433, 0.0
    %1437 = vadd.xlane.f32.xlu0 %v1436
    %v1438 = vpop.xlane.xlu0 %1437
    %v1439 = vmul.f32 %v1435, %v1321
    %v1440 = vmul.f32 %v1438, %v1321
    %v1441 = vmul.f32 %v1432, %v1427
    %v1442 = vmul.f32 %v1433, %v1429
    %1443 = vadd.xlane.f32.xlu0 %v1441
    %v1444 = vpop.xlane.xlu0 %1443
    %v1445 = vsel %vm1273, %v1442, 0.0
    %1446 = vadd.xlane.f32.xlu0 %v1445
    %v1447 = vpop.xlane.xlu0 %1446
    %v1448 = vmul.f32 %v1444, %v1321
    %v1449 = vmul.f32 %v1447, %v1321
    %v1450 = vsub.f32 %v1448, 3.0
    %v1451 = vsub.f32 %v1449, 3.0
    %v1452 = vand.u32 2147483647, %v1450
    %v1453 = vand.u32 2147483647, %v1451
    %v1454 = vsel %vm1354, %v1452, 0.0
    %v1455 = vsel %vm1356, %v1453, 0.0
    %v1456 = vadd.f32 %v1454, %v1455
    %1457 = vadd.xlane.f32.xlu0 %v1456
    %v1458 = vpop.xlane.xlu0 %1457
    %v1459 = vrot.slane %v1458, 4
    %v1460 = vadd.f32 %v1458, %v1459
    %v1461 = vrot.slane %v1460, 2
    %v1462 = vadd.f32 %v1460, %v1461
    %v1463 = vrot.slane %v1462, 1
    %v1464 = vadd.f32 %v1462, %v1463
    %s1465 = vtos %v1464
    %v1466 = vand.u32 2147483647, %v1439
    %v1467 = vand.u32 2147483647, %v1440
    %v1468 = vsel %vm1354, %v1466, 0.0
    %v1469 = vsel %vm1356, %v1467, 0.0
    %v1470 = vadd.f32 %v1468, %v1469
    %1471 = vadd.xlane.f32.xlu0 %v1470
    %v1472 = vpop.xlane.xlu0 %1471
    %v1473 = vrot.slane %v1472, 4
    %v1474 = vadd.f32 %v1472, %v1473
    %v1475 = vrot.slane %v1474, 2
    %v1476 = vadd.f32 %v1474, %v1475
    %v1477 = vrot.slane %v1476, 1
    %v1478 = vadd.f32 %v1476, %v1477
    %s1479 = vtos %v1478
    %s1480 = sadd.f32 %s1465, %s1479
    %v1481 = vrcp.pop 15.0
    %s1482 = vtos %v1481
    %s1483 = smul.f32 %s1480, %s1482
    %s1484 = sadd.f32 %s1407, %s1483
    %s1485 = scalar_lea.smem [#allocation10], 0
    %1486 = sst [smem:[%s1485]] %s1484
    %v1487 = vmul.f32 %v161, 50.0
    %v1488 = vmul.f32 %v163, 50.0
    %v1489 = vmul.f32 %v165, 50.0
    %v1490 = vmul.f32 %v167, 50.0
    %v1491 = vmul.f32 %v169, 50.0
    %v1492 = vmul.f32 %v171, 50.0
    %v1493 = vmul.f32 %v173, 50.0
    %v1494 = vmul.f32 %v175, 50.0
    %v1495 = vmul.f32 %v177, 50.0
    %v1496 = vmul.f32 %v179, 50.0
    %v1497 = vmul.f32 %v181, 50.0
    %v1498 = vmul.f32 %v183, 50.0
    %v1499 = vmul.f32 %v185, 50.0
    %v1500 = vmul.f32 %v187, 50.0
    %v1501 = vmul.f32 %v189, 50.0
    %v1502 = vmul.f32 %v191, 50.0
    %v1503 = vmul.f32 %v1487, %v1487
    %v1504 = vmul.f32 %v1488, %v1488
    %v1505 = vmul.f32 %v1489, %v1489
    %v1506 = vmul.f32 %v1490, %v1490
    %v1507 = vmul.f32 %v1491, %v1491
    %v1508 = vmul.f32 %v1492, %v1492
    %v1509 = vmul.f32 %v1493, %v1493
    %v1510 = vmul.f32 %v1494, %v1494
    %v1511 = vmul.f32 %v1495, %v1495
    %v1512 = vmul.f32 %v1496, %v1496
    %v1513 = vmul.f32 %v1497, %v1497
    %v1514 = vmul.f32 %v1498, %v1498
    %v1515 = vmul.f32 %v1499, %v1499
    %v1516 = vmul.f32 %v1500, %v1500
    %v1517 = vmul.f32 %v1501, %v1501
    %v1518 = vmul.f32 %v1502, %v1502
    %v1519 = vadd.f32 %v1503, %v1504
    %v1520 = vadd.f32 %v1519, %v1505
    %v1521 = vadd.f32 %v1520, %v1506
    %v1522 = vadd.f32 %v1521, %v1507
    %v1523 = vadd.f32 %v1522, %v1508
    %v1524 = vadd.f32 %v1523, %v1509
    %v1525 = vsel %vm967, %v1510, 0.0
    %v1526 = vadd.f32 %v1524, %v1525
    %v1527 = vsel %vm1273, %v1511, 0.0
    %v1528 = vadd.f32 %v1526, %v1527
    %v1529 = vsel %vm1273, %v1512, 0.0
    %v1530 = vadd.f32 %v1528, %v1529
    %v1531 = vsel %vm1273, %v1513, 0.0
    %v1532 = vadd.f32 %v1530, %v1531
    %v1533 = vsel %vm1273, %v1514, 0.0
    %v1534 = vadd.f32 %v1532, %v1533
    %v1535 = vsel %vm1273, %v1515, 0.0
    %v1536 = vadd.f32 %v1534, %v1535
    %v1537 = vsel %vm1273, %v1516, 0.0
    %v1538 = vadd.f32 %v1536, %v1537
    %v1539 = vsel %vm1273, %v1517, 0.0
    %v1540 = vadd.f32 %v1538, %v1539
    %vm1541 = vcmask 849920
    %v1542 = vsel %vm1541, %v1518, 0.0
    %v1543 = vadd.f32 %v1540, %v1542
    %1544 = vadd.xlane.f32.xlu0 %v1543
    %v1545 = vpop.xlane.xlu0 %1544
    %v1546 = vrot.slane %v1545, 4
    %v1547 = vadd.f32 %v1545, %v1546
    %v1548 = vrot.slane %v1547, 2
    %v1549 = vadd.f32 %v1547, %v1548
    %v1550 = vrot.slane %v1549, 1
    %v1551 = vadd.f32 %v1549, %v1550
    %s1552 = vtos %v1551
    %v1553 = vmax.f32 %v1487, %v1489
    %v1554 = vmax.f32 %v1488, %v1490
    %v1555 = vmax.f32 %v1553, %v1491
    %v1556 = vmax.f32 %v1554, %v1492
    %v1557 = vmax.f32 %v1555, %v1493
    %v1558 = vsel %vm967, %v1494, -inf
    %v1559 = vmax.f32 %v1556, %v1558
    %v1560 = vmax.f32 %v1557, %v1559
    %1561 = vmax.xlane.f32.xlu0 %v1560
    %v1562 = vpop.xlane.xlu0 %1561
    %v1563 = vsel %vm1273, %v1495, -inf
    %v1564 = vsel %vm1273, %v1496, -inf
    %v1565 = vsel %vm1273, %v1497, -inf
    %v1566 = vmax.f32 %v1563, %v1565
    %v1567 = vsel %vm1273, %v1498, -inf
    %v1568 = vmax.f32 %v1564, %v1567
    %v1569 = vsel %vm1273, %v1499, -inf
    %v1570 = vmax.f32 %v1566, %v1569
    %v1571 = vsel %vm1273, %v1500, -inf
    %v1572 = vmax.f32 %v1568, %v1571
    %v1573 = vsel %vm1273, %v1501, -inf
    %v1574 = vmax.f32 %v1570, %v1573
    %v1575 = vsel %vm1541, %v1502, -inf
    %v1576 = vmax.f32 %v1572, %v1575
    %v1577 = vmax.f32 %v1574, %v1576
    %1578 = vmax.xlane.f32.xlu0 %v1577
    %v1579 = vpop.xlane.xlu0 %1578
    %v1580 = vmul.f32 %v1562, %v1562
    %v1581 = vmul.f32 %v1579, %v1579
    %v1582 = vsel %vm1354, %v1580, 0.0
    %v1583 = vsel %vm1356, %v1581, 0.0
    %v1584 = vadd.f32 %v1582, %v1583
    %1585 = vadd.xlane.f32.xlu0 %v1584
    %v1586 = vpop.xlane.xlu0 %1585
    %v1587 = vrot.slane %v1586, 4
    %v1588 = vadd.f32 %v1586, %v1587
    %v1589 = vrot.slane %v1588, 2
    %v1590 = vadd.f32 %v1588, %v1589
    %v1591 = vrot.slane %v1590, 1
    %v1592 = vadd.f32 %v1590, %v1591
    %s1593 = vtos %v1592
    %s1594 = ssub.f32 %s1552, %s1593
    %v1595 = vrcp.pop 14985.0
    %s1596 = vtos %v1595
    %s1597 = smul.f32 %s1594, %s1596
    %s1598 = scalar_lea.smem [#allocation11], 0
    %1599 = sst [smem:[%s1598]] %s1597
    // Predicated region
    $region34: #{_device_forward.4} parent=1 // pred_check
      _
    $region35: #{_device_forward.4} parent=1 // pred_check_branch
      %1601 = sbr.rel (0) target = $region37
    $region36: #{_device_forward.4} parent=1 // pred_region
      _
    $region37: #{_device_forward.4} parent=1 // pred_fallthru
      _
    // Predicated region
    $region38: #{_device_forward.4} parent=1 // pred_check
      _
    $region39: #{_device_forward.4} parent=1 // pred_check_branch
      %1603 = sbr.rel (0) target = $region41
    $region40: #{_device_forward.4} parent=1 // pred_region
      %s1605 = ssub.s32 16, 16
      %1606 = vsyncadd [#allocation4], %s1605
      %1609 = dma.smem_to_hbm [#allocation10], 16, %s5, [#allocation4]
    $region41: #{_device_forward.4} parent=1 // pred_fallthru
      _
    // Predicated region
    $region42: #{_device_forward.4} parent=1 // pred_check
      _
    $region43: #{_device_forward.4} parent=1 // pred_check_branch
      %1611 = sbr.rel (0) target = $region45
    $region44: #{_device_forward.4} parent=1 // pred_region
      %s1613 = ssub.s32 16, 16
      %1614 = vsyncadd [#allocation12], %s1613
      %1617 = dma.smem_to_hbm [#allocation11], 16, %s6, [#allocation12]
    $region45: #{_device_forward.4} parent=1 // pred_fallthru
      _
    // Predicated region
    $region46: #{_device_forward.4} parent=1 // pred_check
      _
    $region47: #{_device_forward.4} parent=1 // pred_check_branch
      %1619 = sbr.rel (0) target = $region49
    $region48: #{_device_forward.4} parent=1 // pred_region
      _
    $region49: #{_device_forward.4} parent=1 // pred_fallthru
      _
    // Predicated region
    $region50: #{_device_forward.4} parent=1 // pred_check
      _
    $region51: #{_device_forward.4} parent=1 // pred_check_branch
      %1621 = sbr.rel (0) target = $region53
    $region52: #{_device_forward.4} parent=1 // pred_region
      %1622 = dma.done [#allocation4], 16
    $region53: #{_device_forward.4} parent=1 // pred_fallthru
      _
    // Predicated region
    $region54: #{_device_forward.4} parent=1 // pred_check
      _
    $region55: #{_device_forward.4} parent=1 // pred_check_branch
      %1624 = sbr.rel (0) target = $region57
    $region56: #{_device_forward.4} parent=1 // pred_region
      %1625 = dma.done [#allocation12], 16
    $region57: #{_device_forward.4} parent=1 // pred_fallthru
      _
    %1626 = sfence
    %1627 = vsyncpa [#allocation3], 1
    %1628 = vsyncpa [#allocation6], 1
    %1629 = vsyncpa [#allocation9], 1
    %1630 = vsyncpa [#allocation4], 1
    %1631 = vsyncpa [#allocation12], 1

// kernel: _device_forward.6
$region0: #{_device_forward.6}
  #allocation0 [shape = 'u32[]', space=smem, size = 0x4, offset = 0x4, fixed_abs, tag = 'smem constant byte address 0x4 - core index']
  #allocation1 [shape = 'u32[144,128]{1,0:T(1,128)}', space=vmem, size = 0x12000, scoped, tag = 'internal scratch']
  %s0 = inlined_call_operand.vmem [shape: bf16[3,128,128], index: 0, kind: input, shape index: {}]
  %s1 = inlined_call_operand.vmem [shape: f32[112,128], index: 1, kind: input, shape index: {}]
  %s2 = inlined_call_operand.vmem [shape: f32[8,128,14], index: 2, kind: input, shape index: {}]
  %s3 = inlined_call_operand.vmem [shape: f32[8,42,14], index: 3, kind: output, shape index: {}]
  %s4 = sld [smem:[#allocation0]]
  $region22: #{_device_forward.6} parent=0
    _
  %s6 = ssub.s32 1, %s4
  %s7 = scalar_select 0, %s6, %s4
  // Predicated region
  $region2: #{_device_forward.6} parent=0 // pred_check
    _
  $region3: #{_device_forward.6} parent=0 // pred_check_branch
    %9 = sbr.rel (0) target = $region5
  $region4: #{_device_forward.6} parent=0 // pred_region
    _
  $region5: #{_device_forward.6} parent=0 // pred_fallthru
    _
  // Predicated region
  $region6: #{_device_forward.6} parent=0 // pred_check
    _
  $region7: #{_device_forward.6} parent=0 // pred_check_branch
    %11 = sbr.rel (0) target = $region9
  $region8: #{_device_forward.6} parent=0 // pred_region
    _
  $region9: #{_device_forward.6} parent=0 // pred_fallthru
    _
  // Predicated region
  $region10: #{_device_forward.6} parent=0 // pred_check
    _
  $region11: #{_device_forward.6} parent=0 // pred_check_branch
    %13 = sbr.rel (0) target = $region13
  $region12: #{_device_forward.6} parent=0 // pred_region
    _
  $region13: #{_device_forward.6} parent=0 // pred_fallthru
    _
  %v14 = vld [vmem:[%s1] sm:$0xff]
  %v15 = vld [vmem:[%s1 + $0x8] sm:$0xff]
  %v16 = vld [vmem:[%s1 + $0x10] sm:$0xff]
  %v17 = vld [vmem:[%s1 + $0x18] sm:$0xff]
  %v18 = vld [vmem:[%s1 + $0x20] sm:$0xff]
  %v19 = vld [vmem:[%s1 + $0x28] sm:$0xff]
  %v20 = vld [vmem:[%s1 + $0x30] sm:$0xff]
  %v21 = vld [vmem:[%s1 + $0x38] sm:$0xff]
  %v22 = vld [vmem:[%s1 + $0x40] sm:$0xff]
  %v23 = vld [vmem:[%s1 + $0x48] sm:$0xff]
  %v24 = vld [vmem:[%s1 + $0x50] sm:$0xff]
  %v25 = vld [vmem:[%s1 + $0x58] sm:$0xff]
  %v26 = vld [vmem:[%s1 + $0x60] sm:$0xff]
  %v27 = vld [vmem:[%s1 + $0x68] sm:$0xff]
  %v28 = vld [vmem:[%s0] sm:$0xf]
  %v29 = vld [vmem:[%s0 + $0x4] sm:$0xf]
  %v30 = vld [vmem:[%s0 + $0x8] sm:$0xf]
  %v31 = vld [vmem:[%s0 + $0xc] sm:$0xf]
  %v32 = vld [vmem:[%s0 + $0x10] sm:$0xf]
  %v33 = vld [vmem:[%s0 + $0x14] sm:$0xf]
  %v34 = vld [vmem:[%s0 + $0x18] sm:$0xf]
  %v35 = vld [vmem:[%s0 + $0x1c] sm:$0xf]
  %v36 = vld [vmem:[%s0 + $0x20] sm:$0xf]
  %v37 = vld [vmem:[%s0 + $0x24] sm:$0xf]
  %v38 = vld [vmem:[%s0 + $0x28] sm:$0xf]
  %v39 = vld [vmem:[%s0 + $0x2c] sm:$0xf]
  %v40 = vld [vmem:[%s0 + $0x30] sm:$0xf]
  %v41 = vld [vmem:[%s0 + $0x34] sm:$0xf]
  %v42 = vld [vmem:[%s0 + $0x38] sm:$0xf]
  %v43 = vld [vmem:[%s0 + $0x3c] sm:$0xf]
  %v44 = vunpack.c.l.bf16 %v28
  %v45 = vunpack.c.l.bf16 %v29
  %v46 = vunpack.c.l.bf16 %v30
  %v47 = vunpack.c.l.bf16 %v31
  %v48 = vunpack.c.l.bf16 %v32
  %v49 = vunpack.c.l.bf16 %v33
  %v50 = vunpack.c.l.bf16 %v34
  %v51 = vunpack.c.l.bf16 %v35
  %v52 = vunpack.c.l.bf16 %v36
  %v53 = vunpack.c.l.bf16 %v37
  %v54 = vunpack.c.l.bf16 %v38
  %v55 = vunpack.c.l.bf16 %v39
  %v56 = vunpack.c.l.bf16 %v40
  %v57 = vunpack.c.l.bf16 %v41
  %v58 = vunpack.c.l.bf16 %v42
  %v59 = vunpack.c.l.bf16 %v43
  %60 = vmatprep.subr.mxu0 0.0
  %61 = vmatpush1.msra.mxu0 %v44
  %62 = vmatprep.subr.mxu0 0.0
  %63 = vmatpush1.msra.mxu0 %v45
  %64 = vmatprep.subr.mxu0 0.0
  %65 = vmatpush1.msra.mxu0 %v46
  %66 = vmatprep.subr.mxu0 0.0
  %67 = vmatpush1.msra.mxu0 %v47
  %68 = vmatprep.subr.mxu0 0.0
  %69 = vmatpush1.msra.mxu0 %v48
  %70 = vmatprep.subr.mxu0 0.0
  %71 = vmatpush1.msra.mxu0 %v49
  %72 = vmatprep.subr.mxu0 0.0
  %73 = vmatpush1.msra.mxu0 %v50
  %74 = vmatprep.subr.mxu0 0.0
  %75 = vmatpush1.msra.mxu0 %v51
  %76 = vmatprep.subr.mxu0 0.0
  %77 = vmatpush1.msra.mxu0 %v52
  %78 = vmatprep.subr.mxu0 0.0
  %79 = vmatpush1.msra.mxu0 %v53
  %80 = vmatprep.subr.mxu0 0.0
  %81 = vmatpush1.msra.mxu0 %v54
  %82 = vmatprep.subr.mxu0 0.0
  %83 = vmatpush1.msra.mxu0 %v55
  %84 = vmatprep.subr.mxu0 0.0
  %85 = vmatpush1.msra.mxu0 %v56
  %86 = vmatprep.subr.mxu0 0.0
  %87 = vmatpush1.msra.mxu0 %v57
  %88 = vmatprep.subr.mxu0 0.0
  %89 = vmatpush1.msra.mxu0 %v58
  %90 = vmatprep.subr.mxu0 0.0
  %91 = vmatpush1.msra.mxu0 %v59
  %92 = vmatprep.subr.mxu0 0.0
  %93 = vmatpush1.msra.mxu0 0.0
  %94 = vmatprep.subr.mxu0 0.0
  %95 = vmatpush1.msra.mxu0 0.0
  %96 = vmatprep.subr.mxu0 0.0
  %97 = vmatpush1.msra.mxu0 0.0
  %98 = vmatprep.subr.mxu0 0.0
  %99 = vmatpush1.msra.mxu0 0.0
  %100 = vmatprep.subr.mxu0 0.0
  %101 = vmatpush1.msra.mxu0 0.0
  %102 = vmatprep.subr.mxu0 0.0
  %103 = vmatpush1.msra.mxu0 0.0
  %104 = vmatprep.subr.mxu0 0.0
  %105 = vmatpush1.msra.mxu0 0.0
  %106 = vmatprep.subr.mxu0 0.0
  %107 = vmatpush1.msra.mxu0 0.0
  %108 = vmatprep.subr.mxu0 0.0
  %109 = vmatpush1.msra.mxu0 0.0
  %110 = vmatprep.subr.mxu0 0.0
  %111 = vmatpush1.msra.mxu0 0.0
  %112 = vmatprep.subr.mxu0 0.0
  %113 = vmatpush1.msra.mxu0 0.0
  %114 = vmatprep.subr.mxu0 0.0
  %115 = vmatpush1.msra.mxu0 0.0
  %116 = vmatprep.subr.mxu0 0.0
  %117 = vmatpush1.msra.mxu0 0.0
  %118 = vmatprep.subr.mxu0 0.0
  %119 = vmatpush1.msra.mxu0 0.0
  %120 = vmatprep.subr.mxu0 0.0
  %121 = vmatpush1.msra.mxu0 0.0
  %122 = vmatprep.subr.mxu0 0.0
  %123 = vmatpush1.msra.mxu0 0.0
  %124 = vmatprep.mubr.f32.mxu0 0.0
  %125 = vmatmul.mubr.f32.gmra.mrb[0].mxu0 %v14
  %v126 = vpop.f32.mrb[0].mxu0
  %v127 = vadd.f32 0.0, %v126
  %v128 = vpop.f32.mrb[0].mxu0
  %129 = vmatprep.mubr.f32.mxu0 0.0
  %130 = vmatmul.mubr.f32.gmra.mrb[0].mxu0 %v15
  %v131 = vpop.f32.mrb[0].mxu0
  %v132 = vadd.f32 0.0, %v131
  %v133 = vpop.f32.mrb[0].mxu0
  %134 = vmatprep.mubr.f32.mxu0 0.0
  %135 = vmatmul.mubr.f32.gmra.mrb[0].mxu0 %v16
  %v136 = vpop.f32.mrb[0].mxu0
  %v137 = vadd.f32 0.0, %v136
  %v138 = vpop.f32.mrb[0].mxu0
  %139 = vmatprep.mubr.f32.mxu0 0.0
  %140 = vmatmul.mubr.f32.gmra.mrb[0].mxu0 %v17
  %v141 = vpop.f32.mrb[0].mxu0
  %v142 = vadd.f32 0.0, %v141
  %v143 = vpop.f32.mrb[0].mxu0
  %144 = vmatprep.mubr.f32.mxu0 0.0
  %145 = vmatmul.mubr.f32.gmra.mrb[0].mxu0 %v18
  %v146 = vpop.f32.mrb[0].mxu0
  %v147 = vadd.f32 0.0, %v146
  %v148 = vpop.f32.mrb[0].mxu0
  %149 = vmatprep.mubr.f32.mxu0 0.0
  %150 = vmatmul.mubr.f32.gmra.mrb[0].mxu0 %v19
  %v151 = vpop.f32.mrb[0].mxu0
  %v152 = vadd.f32 0.0, %v151
  %v153 = vpop.f32.mrb[0].mxu0
  %154 = vmatprep.mubr.f32.mxu0 0.0
  %155 = vmatmul.mubr.f32.gmra.mrb[0].mxu0 %v20
  %v156 = vpop.f32.mrb[0].mxu0
  %v157 = vadd.f32 0.0, %v156
  %v158 = vpop.f32.mrb[0].mxu0
  %159 = vmatprep.mubr.f32.mxu0 0.0
  %160 = vmatmul.mubr.f32.gmra.mrb[0].mxu0 %v21
  %v161 = vpop.f32.mrb[0].mxu0
  %v162 = vadd.f32 0.0, %v161
  %v163 = vpop.f32.mrb[0].mxu0
  %164 = vmatprep.mubr.f32.mxu0 0.0
  %165 = vmatmul.mubr.f32.gmra.mrb[0].mxu0 %v22
  %v166 = vpop.f32.mrb[0].mxu0
  %v167 = vadd.f32 0.0, %v166
  %v168 = vpop.f32.mrb[0].mxu0
  %169 = vmatprep.mubr.f32.mxu0 0.0
  %170 = vmatmul.mubr.f32.gmra.mrb[0].mxu0 %v23
  %v171 = vpop.f32.mrb[0].mxu0
  %v172 = vadd.f32 0.0, %v171
  %v173 = vpop.f32.mrb[0].mxu0
  %174 = vmatprep.mubr.f32.mxu0 0.0
  %175 = vmatmul.mubr.f32.gmra.mrb[0].mxu0 %v24
  %v176 = vpop.f32.mrb[0].mxu0
  %v177 = vadd.f32 0.0, %v176
  %v178 = vpop.f32.mrb[0].mxu0
  %179 = vmatprep.mubr.f32.mxu0 0.0
  %180 = vmatmul.mubr.f32.gmra.mrb[0].mxu0 %v25
  %v181 = vpop.f32.mrb[0].mxu0
  %v182 = vadd.f32 0.0, %v181
  %v183 = vpop.f32.mrb[0].mxu0
  %184 = vmatprep.mubr.f32.mxu0 0.0
  %185 = vmatmul.mubr.f32.gmra.mrb[0].mxu0 %v26
  %v186 = vpop.f32.mrb[0].mxu0
  %v187 = vadd.f32 0.0, %v186
  %v188 = vpop.f32.mrb[0].mxu0
  %189 = vmatprep.mubr.f32.mxu0 0.0
  %190 = vmatmul.mubr.f32.gmra.mrb[0].mxu0 %v27
  %v191 = vpop.f32.mrb[0].mxu0
  %v192 = vadd.f32 0.0, %v191
  %v193 = vpop.f32.mrb[0].mxu0
  %194 = vdwg.mxu0
  %s195 = scalar_lea.vmem %s0, 64
  %v196 = vld [vmem:[%s195] sm:$0xf]
  %v197 = vld [vmem:[%s195 + $0x4] sm:$0xf]
  %v198 = vld [vmem:[%s195 + $0x8] sm:$0xf]
  %v199 = vld [vmem:[%s195 + $0xc] sm:$0xf]
  %v200 = vld [vmem:[%s195 + $0x10] sm:$0xf]
  %v201 = vld [vmem:[%s195 + $0x14] sm:$0xf]
  %v202 = vld [vmem:[%s195 + $0x18] sm:$0xf]
  %v203 = vld [vmem:[%s195 + $0x1c] sm:$0xf]
  %v204 = vld [vmem:[%s195 + $0x20] sm:$0xf]
  %v205 = vld [vmem:[%s195 + $0x24] sm:$0xf]
  %v206 = vld [vmem:[%s195 + $0x28] sm:$0xf]
  %v207 = vld [vmem:[%s195 + $0x2c] sm:$0xf]
  %v208 = vld [vmem:[%s195 + $0x30] sm:$0xf]
  %v209 = vld [vmem:[%s195 + $0x34] sm:$0xf]
  %v210 = vld [vmem:[%s195 + $0x38] sm:$0xf]
  %v211 = vld [vmem:[%s195 + $0x3c] sm:$0xf]
  %v212 = vunpack.c.l.bf16 %v196
  %v213 = vunpack.c.l.bf16 %v197
  %v214 = vunpack.c.l.bf16 %v198
  %v215 = vunpack.c.l.bf16 %v199
  %v216 = vunpack.c.l.bf16 %v200
  %v217 = vunpack.c.l.bf16 %v201
  %v218 = vunpack.c.l.bf16 %v202
  %v219 = vunpack.c.l.bf16 %v203
  %v220 = vunpack.c.l.bf16 %v204
  %v221 = vunpack.c.l.bf16 %v205
  %v222 = vunpack.c.l.bf16 %v206
  %v223 = vunpack.c.l.bf16 %v207
  %v224 = vunpack.c.l.bf16 %v208
  %v225 = vunpack.c.l.bf16 %v209
  %v226 = vunpack.c.l.bf16 %v210
  %v227 = vunpack.c.l.bf16 %v211
  %228 = vmatprep.subr.mxu0 0.0
  %229 = vmatpush1.msra.mxu0 %v212
  %230 = vmatprep.subr.mxu0 0.0
  %231 = vmatpush1.msra.mxu0 %v213
  %232 = vmatprep.subr.mxu0 0.0
  %233 = vmatpush1.msra.mxu0 %v214
  %234 = vmatprep.subr.mxu0 0.0
  %235 = vmatpush1.msra.mxu0 %v215
  %236 = vmatprep.subr.mxu0 0.0
  %237 = vmatpush1.msra.mxu0 %v216
  %238 = vmatprep.subr.mxu0 0.0
  %239 = vmatpush1.msra.mxu0 %v217
  %240 = vmatprep.subr.mxu0 0.0
  %241 = vmatpush1.msra.mxu0 %v218
  %242 = vmatprep.subr.mxu0 0.0
  %243 = vmatpush1.msra.mxu0 %v219
  %244 = vmatprep.subr.mxu0 0.0
  %245 = vmatpush1.msra.mxu0 %v220
  %246 = vmatprep.subr.mxu0 0.0
  %247 = vmatpush1.msra.mxu0 %v221
  %248 = vmatprep.subr.mxu0 0.0
  %249 = vmatpush1.msra.mxu0 %v222
  %250 = vmatprep.subr.mxu0 0.0
  %251 = vmatpush1.msra.mxu0 %v223
  %252 = vmatprep.subr.mxu0 0.0
  %253 = vmatpush1.msra.mxu0 %v224
  %254 = vmatprep.subr.mxu0 0.0
  %255 = vmatpush1.msra.mxu0 %v225
  %256 = vmatprep.subr.mxu0 0.0
  %257 = vmatpush1.msra.mxu0 %v226
  %258 = vmatprep.subr.mxu0 0.0
  %259 = vmatpush1.msra.mxu0 %v227
  %260 = vmatprep.subr.mxu0 0.0
  %261 = vmatpush1.msra.mxu0 0.0
  %262 = vmatprep.subr.mxu0 0.0
  %263 = vmatpush1.msra.mxu0 0.0
  %264 = vmatprep.subr.mxu0 0.0
  %265 = vmatpush1.msra.mxu0 0.0
  %266 = vmatprep.subr.mxu0 0.0
  %267 = vmatpush1.msra.mxu0 0.0
  %268 = vmatprep.subr.mxu0 0.0
  %269 = vmatpush1.msra.mxu0 0.0
  %270 = vmatprep.subr.mxu0 0.0
  %271 = vmatpush1.msra.mxu0 0.0
  %272 = vmatprep.subr.mxu0 0.0
  %273 = vmatpush1.msra.mxu0 0.0
  %274 = vmatprep.subr.mxu0 0.0
  %275 = vmatpush1.msra.mxu0 0.0
  %276 = vmatprep.subr.mxu0 0.0
  %277 = vmatpush1.msra.mxu0 0.0
  %278 = vmatprep.subr.mxu0 0.0
  %279 = vmatpush1.msra.mxu0 0.0
  %280 = vmatprep.subr.mxu0 0.0
  %281 = vmatpush1.msra.mxu0 0.0
  %282 = vmatprep.subr.mxu0 0.0
  %283 = vmatpush1.msra.mxu0 0.0
  %284 = vmatprep.subr.mxu0 0.0
  %285 = vmatpush1.msra.mxu0 0.0
  %286 = vmatprep.subr.mxu0 0.0
  %287 = vmatpush1.msra.mxu0 0.0
  %288 = vmatprep.subr.mxu0 0.0
  %289 = vmatpush1.msra.mxu0 0.0
  %290 = vmatprep.subr.mxu0 0.0
  %291 = vmatpush1.msra.mxu0 0.0
  %292 = vmatprep.mubr.f32.mxu0 0.0
  %293 = vmatmul.mubr.f32.gmra.mrb[0].mxu0 %v14
  %v294 = vpop.f32.mrb[0].mxu0
  %v295 = vadd.f32 0.0, %v294
  %v296 = vpop.f32.mrb[0].mxu0
  %297 = vmatprep.mubr.f32.mxu0 0.0
  %298 = vmatmul.mubr.f32.gmra.mrb[0].mxu0 %v15
  %v299 = vpop.f32.mrb[0].mxu0
  %v300 = vadd.f32 0.0, %v299
  %v301 = vpop.f32.mrb[0].mxu0
  %302 = vmatprep.mubr.f32.mxu0 0.0
  %303 = vmatmul.mubr.f32.gmra.mrb[0].mxu0 %v16
  %v304 = vpop.f32.mrb[0].mxu0
  %v305 = vadd.f32 0.0, %v304
  %v306 = vpop.f32.mrb[0].mxu0
  %307 = vmatprep.mubr.f32.mxu0 0.0
  %308 = vmatmul.mubr.f32.gmra.mrb[0].mxu0 %v17
  %v309 = vpop.f32.mrb[0].mxu0
  %v310 = vadd.f32 0.0, %v309
  %v311 = vpop.f32.mrb[0].mxu0
  %312 = vmatprep.mubr.f32.mxu0 0.0
  %313 = vmatmul.mubr.f32.gmra.mrb[0].mxu0 %v18
  %v314 = vpop.f32.mrb[0].mxu0
  %v315 = vadd.f32 0.0, %v314
  %v316 = vpop.f32.mrb[0].mxu0
  %317 = vmatprep.mubr.f32.mxu0 0.0
  %318 = vmatmul.mubr.f32.gmra.mrb[0].mxu0 %v19
  %v319 = vpop.f32.mrb[0].mxu0
  %v320 = vadd.f32 0.0, %v319
  %v321 = vpop.f32.mrb[0].mxu0
  %322 = vmatprep.mubr.f32.mxu0 0.0
  %323 = vmatmul.mubr.f32.gmra.mrb[0].mxu0 %v20
  %v324 = vpop.f32.mrb[0].mxu0
  %v325 = vadd.f32 0.0, %v324
  %v326 = vpop.f32.mrb[0].mxu0
  %327 = vmatprep.mubr.f32.mxu0 0.0
  %328 = vmatmul.mubr.f32.gmra.mrb[0].mxu0 %v21
  %v329 = vpop.f32.mrb[0].mxu0
  %v330 = vadd.f32 0.0, %v329
  %v331 = vpop.f32.mrb[0].mxu0
  %332 = vmatprep.mubr.f32.mxu0 0.0
  %333 = vmatmul.mubr.f32.gmra.mrb[0].mxu0 %v22
  %v334 = vpop.f32.mrb[0].mxu0
  %v335 = vadd.f32 0.0, %v334
  %v336 = vpop.f32.mrb[0].mxu0
  %337 = vmatprep.mubr.f32.mxu0 0.0
  %338 = vmatmul.mubr.f32.gmra.mrb[0].mxu0 %v23
  %v339 = vpop.f32.mrb[0].mxu0
  %v340 = vadd.f32 0.0, %v339
  %v341 = vpop.f32.mrb[0].mxu0
  %342 = vmatprep.mubr.f32.mxu0 0.0
  %343 = vmatmul.mubr.f32.gmra.mrb[0].mxu0 %v24
  %v344 = vpop.f32.mrb[0].mxu0
  %v345 = vadd.f32 0.0, %v344
  %v346 = vpop.f32.mrb[0].mxu0
  %347 = vmatprep.mubr.f32.mxu0 0.0
  %348 = vmatmul.mubr.f32.gmra.mrb[0].mxu0 %v25
  %v349 = vpop.f32.mrb[0].mxu0
  %v350 = vadd.f32 0.0, %v349
  %v351 = vpop.f32.mrb[0].mxu0
  %352 = vmatprep.mubr.f32.mxu0 0.0
  %353 = vmatmul.mubr.f32.gmra.mrb[0].mxu0 %v26
  %v354 = vpop.f32.mrb[0].mxu0
  %v355 = vadd.f32 0.0, %v354
  %v356 = vpop.f32.mrb[0].mxu0
  %357 = vmatprep.mubr.f32.mxu0 0.0
  %358 = vmatmul.mubr.f32.gmra.mrb[0].mxu0 %v27
  %v359 = vpop.f32.mrb[0].mxu0
  %v360 = vadd.f32 0.0, %v359
  %v361 = vpop.f32.mrb[0].mxu0
  %362 = vdwg.mxu0
  %s363 = scalar_lea.vmem %s0, 128
  %v364 = vld [vmem:[%s363] sm:$0xf]
  %v365 = vld [vmem:[%s363 + $0x4] sm:$0xf]
  %v366 = vld [vmem:[%s363 + $0x8] sm:$0xf]
  %v367 = vld [vmem:[%s363 + $0xc] sm:$0xf]
  %v368 = vld [vmem:[%s363 + $0x10] sm:$0xf]
  %v369 = vld [vmem:[%s363 + $0x14] sm:$0xf]
  %v370 = vld [vmem:[%s363 + $0x18] sm:$0xf]
  %v371 = vld [vmem:[%s363 + $0x1c] sm:$0xf]
  %v372 = vld [vmem:[%s363 + $0x20] sm:$0xf]
  %v373 = vld [vmem:[%s363 + $0x24] sm:$0xf]
  %v374 = vld [vmem:[%s363 + $0x28] sm:$0xf]
  %v375 = vld [vmem:[%s363 + $0x2c] sm:$0xf]
  %v376 = vld [vmem:[%s363 + $0x30] sm:$0xf]
  %v377 = vld [vmem:[%s363 + $0x34] sm:$0xf]
  %v378 = vld [vmem:[%s363 + $0x38] sm:$0xf]
  %v379 = vld [vmem:[%s363 + $0x3c] sm:$0xf]
  %v380 = vunpack.c.l.bf16 %v364
  %v381 = vunpack.c.l.bf16 %v365
  %v382 = vunpack.c.l.bf16 %v366
  %v383 = vunpack.c.l.bf16 %v367
  %v384 = vunpack.c.l.bf16 %v368
  %v385 = vunpack.c.l.bf16 %v369
  %v386 = vunpack.c.l.bf16 %v370
  %v387 = vunpack.c.l.bf16 %v371
  %v388 = vunpack.c.l.bf16 %v372
  %v389 = vunpack.c.l.bf16 %v373
  %v390 = vunpack.c.l.bf16 %v374
  %v391 = vunpack.c.l.bf16 %v375
  %v392 = vunpack.c.l.bf16 %v376
  %v393 = vunpack.c.l.bf16 %v377
  %v394 = vunpack.c.l.bf16 %v378
  %v395 = vunpack.c.l.bf16 %v379
  %396 = vmatprep.subr.mxu0 0.0
  %397 = vmatpush1.msra.mxu0 %v380
  %398 = vmatprep.subr.mxu0 0.0
  %399 = vmatpush1.msra.mxu0 %v381
  %400 = vmatprep.subr.mxu0 0.0
  %401 = vmatpush1.msra.mxu0 %v382
  %402 = vmatprep.subr.mxu0 0.0
  %403 = vmatpush1.msra.mxu0 %v383
  %404 = vmatprep.subr.mxu0 0.0
  %405 = vmatpush1.msra.mxu0 %v384
  %406 = vmatprep.subr.mxu0 0.0
  %407 = vmatpush1.msra.mxu0 %v385
  %408 = vmatprep.subr.mxu0 0.0
  %409 = vmatpush1.msra.mxu0 %v386
  %410 = vmatprep.subr.mxu0 0.0
  %411 = vmatpush1.msra.mxu0 %v387
  %412 = vmatprep.subr.mxu0 0.0
  %413 = vmatpush1.msra.mxu0 %v388
  %414 = vmatprep.subr.mxu0 0.0
  %415 = vmatpush1.msra.mxu0 %v389
  %416 = vmatprep.subr.mxu0 0.0
  %417 = vmatpush1.msra.mxu0 %v390
  %418 = vmatprep.subr.mxu0 0.0
  %419 = vmatpush1.msra.mxu0 %v391
  %420 = vmatprep.subr.mxu0 0.0
  %421 = vmatpush1.msra.mxu0 %v392
  %422 = vmatprep.subr.mxu0 0.0
  %423 = vmatpush1.msra.mxu0 %v393
  %424 = vmatprep.subr.mxu0 0.0
  %425 = vmatpush1.msra.mxu0 %v394
  %426 = vmatprep.subr.mxu0 0.0
  %427 = vmatpush1.msra.mxu0 %v395
  %428 = vmatprep.subr.mxu0 0.0
  %429 = vmatpush1.msra.mxu0 0.0
  %430 = vmatprep.subr.mxu0 0.0
  %431 = vmatpush1.msra.mxu0 0.0
  %432 = vmatprep.subr.mxu0 0.0
  %433 = vmatpush1.msra.mxu0 0.0
  %434 = vmatprep.subr.mxu0 0.0
  %435 = vmatpush1.msra.mxu0 0.0
  %436 = vmatprep.subr.mxu0 0.0
  %437 = vmatpush1.msra.mxu0 0.0
  %438 = vmatprep.subr.mxu0 0.0
  %439 = vmatpush1.msra.mxu0 0.0
  %440 = vmatprep.subr.mxu0 0.0
  %441 = vmatpush1.msra.mxu0 0.0
  %442 = vmatprep.subr.mxu0 0.0
  %443 = vmatpush1.msra.mxu0 0.0
  %444 = vmatprep.subr.mxu0 0.0
  %445 = vmatpush1.msra.mxu0 0.0
  %446 = vmatprep.subr.mxu0 0.0
  %447 = vmatpush1.msra.mxu0 0.0
  %448 = vmatprep.subr.mxu0 0.0
  %449 = vmatpush1.msra.mxu0 0.0
  %450 = vmatprep.subr.mxu0 0.0
  %451 = vmatpush1.msra.mxu0 0.0
  %452 = vmatprep.subr.mxu0 0.0
  %453 = vmatpush1.msra.mxu0 0.0
  %454 = vmatprep.subr.mxu0 0.0
  %455 = vmatpush1.msra.mxu0 0.0
  %456 = vmatprep.subr.mxu0 0.0
  %457 = vmatpush1.msra.mxu0 0.0
  %458 = vmatprep.subr.mxu0 0.0
  %459 = vmatpush1.msra.mxu0 0.0
  %460 = vmatprep.mubr.f32.mxu0 0.0
  %461 = vmatmul.mubr.f32.gmra.mrb[0].mxu0 %v14
  %v462 = vpop.f32.mrb[0].mxu0
  %v463 = vadd.f32 0.0, %v462
  %v464 = vpop.f32.mrb[0].mxu0
  %465 = vmatprep.mubr.f32.mxu0 0.0
  %466 = vmatmul.mubr.f32.gmra.mrb[0].mxu0 %v15
  %v467 = vpop.f32.mrb[0].mxu0
  %v468 = vadd.f32 0.0, %v467
  %v469 = vpop.f32.mrb[0].mxu0
  %470 = vmatprep.mubr.f32.mxu0 0.0
  %471 = vmatmul.mubr.f32.gmra.mrb[0].mxu0 %v16
  %v472 = vpop.f32.mrb[0].mxu0
  %v473 = vadd.f32 0.0, %v472
  %v474 = vpop.f32.mrb[0].mxu0
  %475 = vmatprep.mubr.f32.mxu0 0.0
  %476 = vmatmul.mubr.f32.gmra.mrb[0].mxu0 %v17
  %v477 = vpop.f32.mrb[0].mxu0
  %v478 = vadd.f32 0.0, %v477
  %v479 = vpop.f32.mrb[0].mxu0
  %480 = vmatprep.mubr.f32.mxu0 0.0
  %481 = vmatmul.mubr.f32.gmra.mrb[0].mxu0 %v18
  %v482 = vpop.f32.mrb[0].mxu0
  %v483 = vadd.f32 0.0, %v482
  %v484 = vpop.f32.mrb[0].mxu0
  %485 = vmatprep.mubr.f32.mxu0 0.0
  %486 = vmatmul.mubr.f32.gmra.mrb[0].mxu0 %v19
  %v487 = vpop.f32.mrb[0].mxu0
  %v488 = vadd.f32 0.0, %v487
  %v489 = vpop.f32.mrb[0].mxu0
  %490 = vmatprep.mubr.f32.mxu0 0.0
  %491 = vmatmul.mubr.f32.gmra.mrb[0].mxu0 %v20
  %v492 = vpop.f32.mrb[0].mxu0
  %v493 = vadd.f32 0.0, %v492
  %v494 = vpop.f32.mrb[0].mxu0
  %495 = vmatprep.mubr.f32.mxu0 0.0
  %496 = vmatmul.mubr.f32.gmra.mrb[0].mxu0 %v21
  %v497 = vpop.f32.mrb[0].mxu0
  %v498 = vadd.f32 0.0, %v497
  %v499 = vpop.f32.mrb[0].mxu0
  %500 = vmatprep.mubr.f32.mxu0 0.0
  %501 = vmatmul.mubr.f32.gmra.mrb[0].mxu0 %v22
  %v502 = vpop.f32.mrb[0].mxu0
  %v503 = vadd.f32 0.0, %v502
  %v504 = vpop.f32.mrb[0].mxu0
  %505 = vmatprep.mubr.f32.mxu0 0.0
  %506 = vmatmul.mubr.f32.gmra.mrb[0].mxu0 %v23
  %v507 = vpop.f32.mrb[0].mxu0
  %v508 = vadd.f32 0.0, %v507
  %v509 = vpop.f32.mrb[0].mxu0
  %510 = vmatprep.mubr.f32.mxu0 0.0
  %511 = vmatmul.mubr.f32.gmra.mrb[0].mxu0 %v24
  %v512 = vpop.f32.mrb[0].mxu0
  %v513 = vadd.f32 0.0, %v512
  %v514 = vpop.f32.mrb[0].mxu0
  %515 = vmatprep.mubr.f32.mxu0 0.0
  %516 = vmatmul.mubr.f32.gmra.mrb[0].mxu0 %v25
  %v517 = vpop.f32.mrb[0].mxu0
  %v518 = vadd.f32 0.0, %v517
  %v519 = vpop.f32.mrb[0].mxu0
  %520 = vmatprep.mubr.f32.mxu0 0.0
  %521 = vmatmul.mubr.f32.gmra.mrb[0].mxu0 %v26
  %v522 = vpop.f32.mrb[0].mxu0
  %v523 = vadd.f32 0.0, %v522
  %v524 = vpop.f32.mrb[0].mxu0
  %525 = vmatprep.mubr.f32.mxu0 0.0
  %526 = vmatmul.mubr.f32.gmra.mrb[0].mxu0 %v27
  %v527 = vpop.f32.mrb[0].mxu0
  %v528 = vadd.f32 0.0, %v527
  %v529 = vpop.f32.mrb[0].mxu0
  %530 = vdwg.mxu0
  %v531 = vld [vmem:[%s2] sm:$0xff]
  %v532 = vld [vmem:[%s2 + $0x8] sm:$0xff]
  %v533 = vld [vmem:[%s2 + $0x10] sm:$0xff]
  %v534 = vld [vmem:[%s2 + $0x18] sm:$0xff]
  %v535 = vld [vmem:[%s2 + $0x20] sm:$0xff]
  %v536 = vld [vmem:[%s2 + $0x28] sm:$0xff]
  %v537 = vld [vmem:[%s2 + $0x30] sm:$0xff]
  %v538 = vld [vmem:[%s2 + $0x38] sm:$0xff]
  %v539 = vld [vmem:[%s2 + $0x40] sm:$0xff]
  %v540 = vld [vmem:[%s2 + $0x48] sm:$0xff]
  %v541 = vld [vmem:[%s2 + $0x50] sm:$0xff]
  %v542 = vld [vmem:[%s2 + $0x58] sm:$0xff]
  %v543 = vld [vmem:[%s2 + $0x60] sm:$0xff]
  %v544 = vld [vmem:[%s2 + $0x68] sm:$0xff]
  %v545 = vld [vmem:[%s2 + $0x70] sm:$0xff]
  %v546 = vld [vmem:[%s2 + $0x78] sm:$0xff]
  %547 = vmatprep.subr.mxu0 0.0
  %548 = vmatpush1.msra.mxu0 %v531
  %549 = vmatprep.subr.mxu0 0.0
  %550 = vmatpush1.msra.mxu0 %v532
  %551 = vmatprep.subr.mxu0 0.0
  %552 = vmatpush1.msra.mxu0 %v533
  %553 = vmatprep.subr.mxu0 0.0
  %554 = vmatpush1.msra.mxu0 %v534
  %555 = vmatprep.subr.mxu0 0.0
  %556 = vmatpush1.msra.mxu0 %v535
  %557 = vmatprep.subr.mxu0 0.0
  %558 = vmatpush1.msra.mxu0 %v536
  %559 = vmatprep.subr.mxu0 0.0
  %560 = vmatpush1.msra.mxu0 %v537
  %561 = vmatprep.subr.mxu0 0.0
  %562 = vmatpush1.msra.mxu0 %v538
  %563 = vmatprep.subr.mxu0 0.0
  %564 = vmatpush1.msra.mxu0 %v539
  %565 = vmatprep.subr.mxu0 0.0
  %566 = vmatpush1.msra.mxu0 %v540
  %567 = vmatprep.subr.mxu0 0.0
  %568 = vmatpush1.msra.mxu0 %v541
  %569 = vmatprep.subr.mxu0 0.0
  %570 = vmatpush1.msra.mxu0 %v542
  %571 = vmatprep.subr.mxu0 0.0
  %572 = vmatpush1.msra.mxu0 %v543
  %573 = vmatprep.subr.mxu0 0.0
  %574 = vmatpush1.msra.mxu0 %v544
  %575 = vmatprep.subr.mxu0 0.0
  %576 = vmatpush1.msra.mxu0 %v545
  %577 = vmatprep.subr.mxu0 0.0
  %578 = vmatpush1.msra.mxu0 %v546
  %579 = vmatprep.subr.mxu0 0.0
  %580 = vmatpush1.msra.mxu0 0.0
  %581 = vmatprep.subr.mxu0 0.0
  %582 = vmatpush1.msra.mxu0 0.0
  %583 = vmatprep.subr.mxu0 0.0
  %584 = vmatpush1.msra.mxu0 0.0
  %585 = vmatprep.subr.mxu0 0.0
  %586 = vmatpush1.msra.mxu0 0.0
  %587 = vmatprep.subr.mxu0 0.0
  %588 = vmatpush1.msra.mxu0 0.0
  %589 = vmatprep.subr.mxu0 0.0
  %590 = vmatpush1.msra.mxu0 0.0
  %591 = vmatprep.subr.mxu0 0.0
  %592 = vmatpush1.msra.mxu0 0.0
  %593 = vmatprep.subr.mxu0 0.0
  %594 = vmatpush1.msra.mxu0 0.0
  %595 = vmatprep.subr.mxu0 0.0
  %596 = vmatpush1.msra.mxu0 0.0
  %597 = vmatprep.subr.mxu0 0.0
  %598 = vmatpush1.msra.mxu0 0.0
  %599 = vmatprep.subr.mxu0 0.0
  %600 = vmatpush1.msra.mxu0 0.0
  %601 = vmatprep.subr.mxu0 0.0
  %602 = vmatpush1.msra.mxu0 0.0
  %603 = vmatprep.subr.mxu0 0.0
  %604 = vmatpush1.msra.mxu0 0.0
  %605 = vmatprep.subr.mxu0 0.0
  %606 = vmatpush1.msra.mxu0 0.0
  %607 = vmatprep.subr.mxu0 0.0
  %608 = vmatpush1.msra.mxu0 0.0
  %609 = vmatprep.subr.mxu0 0.0
  %610 = vmatpush1.msra.mxu0 0.0
  %611 = vmatprep.mubr.f32.mxu0 0.0
  %612 = vmatmul.mubr.f32.gmra.mrb[0].mxu0 %v127
  %v613 = vpop.f32.mrb[0].mxu0
  %v614 = vadd.f32 0.0, %v613
  %v615 = vpop.f32.mrb[0].mxu0
  %616 = vmatprep.mubr.f32.mxu0 0.0
  %617 = vmatmul.mubr.f32.gmra.mrb[0].mxu0 %v132
  %v618 = vpop.f32.mrb[0].mxu0
  %v619 = vadd.f32 0.0, %v618
  %v620 = vpop.f32.mrb[0].mxu0
  %621 = vdwg.mxu0
  %vm622 = vcmask 113664
  %623 = vst.msk [vmem:[%s3] sm:$0xff] %vm622, %v614
  %vm624 = vcmask 111616
  %625 = vst.msk [vmem:[%s3 + $0x8] sm:$0x3f] %vm624, %v619
  %626 = vmatprep.subr.mxu0 0.0
  %627 = vmatpush1.msra.mxu0 %v531
  %628 = vmatprep.subr.mxu0 0.0
  %629 = vmatpush1.msra.mxu0 %v532
  %630 = vmatprep.subr.mxu0 0.0
  %631 = vmatpush1.msra.mxu0 %v533
  %632 = vmatprep.subr.mxu0 0.0
  %633 = vmatpush1.msra.mxu0 %v534
  %634 = vmatprep.subr.mxu0 0.0
  %635 = vmatpush1.msra.mxu0 %v535
  %636 = vmatprep.subr.mxu0 0.0
  %637 = vmatpush1.msra.mxu0 %v536
  %638 = vmatprep.subr.mxu0 0.0
  %639 = vmatpush1.msra.mxu0 %v537
  %640 = vmatprep.subr.mxu0 0.0
  %641 = vmatpush1.msra.mxu0 %v538
  %642 = vmatprep.subr.mxu0 0.0
  %643 = vmatpush1.msra.mxu0 %v539
  %644 = vmatprep.subr.mxu0 0.0
  %645 = vmatpush1.msra.mxu0 %v540
  %646 = vmatprep.subr.mxu0 0.0
  %647 = vmatpush1.msra.mxu0 %v541
  %648 = vmatprep.subr.mxu0 0.0
  %649 = vmatpush1.msra.mxu0 %v542
  %650 = vmatprep.subr.mxu0 0.0
  %651 = vmatpush1.msra.mxu0 %v543
  %652 = vmatprep.subr.mxu0 0.0
  %653 = vmatpush1.msra.mxu0 %v544
  %654 = vmatprep.subr.mxu0 0.0
  %655 = vmatpush1.msra.mxu0 %v545
  %656 = vmatprep.subr.mxu0 0.0
  %657 = vmatpush1.msra.mxu0 %v546
  %658 = vmatprep.subr.mxu0 0.0
  %659 = vmatpush1.msra.mxu0 0.0
  %660 = vmatprep.subr.mxu0 0.0
  %661 = vmatpush1.msra.mxu0 0.0
  %662 = vmatprep.subr.mxu0 0.0
  %663 = vmatpush1.msra.mxu0 0.0
  %664 = vmatprep.subr.mxu0 0.0
  %665 = vmatpush1.msra.mxu0 0.0
  %666 = vmatprep.subr.mxu0 0.0
  %667 = vmatpush1.msra.mxu0 0.0
  %668 = vmatprep.subr.mxu0 0.0
  %669 = vmatpush1.msra.mxu0 0.0
  %670 = vmatprep.subr.mxu0 0.0
  %671 = vmatpush1.msra.mxu0 0.0
  %672 = vmatprep.subr.mxu0 0.0
  %673 = vmatpush1.msra.mxu0 0.0
  %674 = vmatprep.subr.mxu0 0.0
  %675 = vmatpush1.msra.mxu0 0.0
  %676 = vmatprep.subr.mxu0 0.0
  %677 = vmatpush1.msra.mxu0 0.0
  %678 = vmatprep.subr.mxu0 0.0
  %679 = vmatpush1.msra.mxu0 0.0
  %680 = vmatprep.subr.mxu0 0.0
  %681 = vmatpush1.msra.mxu0 0.0
  %682 = vmatprep.subr.mxu0 0.0
  %683 = vmatpush1.msra.mxu0 0.0
  %684 = vmatprep.subr.mxu0 0.0
  %685 = vmatpush1.msra.mxu0 0.0
  %686 = vmatprep.subr.mxu0 0.0
  %687 = vmatpush1.msra.mxu0 0.0
  %688 = vmatprep.subr.mxu0 0.0
  %689 = vmatpush1.msra.mxu0 0.0
  %690 = vmatprep.mubr.f32.mxu0 0.0
  %691 = vmatmul.mubr.f32.gmra.mrb[0].mxu0 %v295
  %v692 = vpop.f32.mrb[0].mxu0
  %v693 = vadd.f32 0.0, %v692
  %v694 = vpop.f32.mrb[0].mxu0
  %695 = vmatprep.mubr.f32.mxu0 0.0
  %696 = vmatmul.mubr.f32.gmra.mrb[0].mxu0 %v300
  %v697 = vpop.f32.mrb[0].mxu0
  %v698 = vadd.f32 0.0, %v697
  %v699 = vpop.f32.mrb[0].mxu0
  %700 = vdwg.mxu0
  %701 = vst.msk [vmem:[%s3 + $0xe] sm:$0xff] %vm622, %v693
  %702 = vst.msk [vmem:[%s3 + $0x16] sm:$0x3f] %vm624, %v698
  %703 = vmatprep.subr.mxu0 0.0
  %704 = vmatpush1.msra.mxu0 %v531
  %705 = vmatprep.subr.mxu0 0.0
  %706 = vmatpush1.msra.mxu0 %v532
  %707 = vmatprep.subr.mxu0 0.0
  %708 = vmatpush1.msra.mxu0 %v533
  %709 = vmatprep.subr.mxu0 0.0
  %710 = vmatpush1.msra.mxu0 %v534
  %711 = vmatprep.subr.mxu0 0.0
  %712 = vmatpush1.msra.mxu0 %v535
  %713 = vmatprep.subr.mxu0 0.0
  %714 = vmatpush1.msra.mxu0 %v536
  %715 = vmatprep.subr.mxu0 0.0
  %716 = vmatpush1.msra.mxu0 %v537
  %717 = vmatprep.subr.mxu0 0.0
  %718 = vmatpush1.msra.mxu0 %v538
  %719 = vmatprep.subr.mxu0 0.0
  %720 = vmatpush1.msra.mxu0 %v539
  %721 = vmatprep.subr.mxu0 0.0
  %722 = vmatpush1.msra.mxu0 %v540
  %723 = vmatprep.subr.mxu0 0.0
  %724 = vmatpush1.msra.mxu0 %v541
  %725 = vmatprep.subr.mxu0 0.0
  %726 = vmatpush1.msra.mxu0 %v542
  %727 = vmatprep.subr.mxu0 0.0
  %728 = vmatpush1.msra.mxu0 %v543
  %729 = vmatprep.subr.mxu0 0.0
  %730 = vmatpush1.msra.mxu0 %v544
  %731 = vmatprep.subr.mxu0 0.0
  %732 = vmatpush1.msra.mxu0 %v545
  %733 = vmatprep.subr.mxu0 0.0
  %734 = vmatpush1.msra.mxu0 %v546
  %735 = vmatprep.subr.mxu0 0.0
  %736 = vmatpush1.msra.mxu0 0.0
  %737 = vmatprep.subr.mxu0 0.0
  %738 = vmatpush1.msra.mxu0 0.0
  %739 = vmatprep.subr.mxu0 0.0
  %740 = vmatpush1.msra.mxu0 0.0
  %741 = vmatprep.subr.mxu0 0.0
  %742 = vmatpush1.msra.mxu0 0.0
  %743 = vmatprep.subr.mxu0 0.0
  %744 = vmatpush1.msra.mxu0 0.0
  %745 = vmatprep.subr.mxu0 0.0
  %746 = vmatpush1.msra.mxu0 0.0
  %747 = vmatprep.subr.mxu0 0.0
  %748 = vmatpush1.msra.mxu0 0.0
  %749 = vmatprep.subr.mxu0 0.0
  %750 = vmatpush1.msra.mxu0 0.0
  %751 = vmatprep.subr.mxu0 0.0
  %752 = vmatpush1.msra.mxu0 0.0
  %753 = vmatprep.subr.mxu0 0.0
  %754 = vmatpush1.msra.mxu0 0.0
  %755 = vmatprep.subr.mxu0 0.0
  %756 = vmatpush1.msra.mxu0 0.0
  %757 = vmatprep.subr.mxu0 0.0
  %758 = vmatpush1.msra.mxu0 0.0
  %759 = vmatprep.subr.mxu0 0.0
  %760 = vmatpush1.msra.mxu0 0.0
  %761 = vmatprep.subr.mxu0 0.0
  %762 = vmatpush1.msra.mxu0 0.0
  %763 = vmatprep.subr.mxu0 0.0
  %764 = vmatpush1.msra.mxu0 0.0
  %765 = vmatprep.subr.mxu0 0.0
  %766 = vmatpush1.msra.mxu0 0.0
  %767 = vmatprep.mubr.f32.mxu0 0.0
  %768 = vmatmul.mubr.f32.gmra.mrb[0].mxu0 %v463
  %v769 = vpop.f32.mrb[0].mxu0
  %v770 = vadd.f32 0.0, %v769
  %v771 = vpop.f32.mrb[0].mxu0
  %772 = vmatprep.mubr.f32.mxu0 0.0
  %773 = vmatmul.mubr.f32.gmra.mrb[0].mxu0 %v468
  %v774 = vpop.f32.mrb[0].mxu0
  %v775 = vadd.f32 0.0, %v774
  %v776 = vpop.f32.mrb[0].mxu0
  %777 = vdwg.mxu0
  %778 = vst.msk [vmem:[%s3 + $0x1c] sm:$0xff] %vm622, %v770
  %779 = vst.msk [vmem:[%s3 + $0x24] sm:$0x3f] %vm624, %v775
  %s780 = scalar_lea.vmem %s2, 128
  %v781 = vld [vmem:[%s780] sm:$0xff]
  %v782 = vld [vmem:[%s780 + $0x8] sm:$0xff]
  %v783 = vld [vmem:[%s780 + $0x10] sm:$0xff]
  %v784 = vld [vmem:[%s780 + $0x18] sm:$0xff]
  %v785 = vld [vmem:[%s780 + $0x20] sm:$0xff]
  %v786 = vld [vmem:[%s780 + $0x28] sm:$0xff]
  %v787 = vld [vmem:[%s780 + $0x30] sm:$0xff]
  %v788 = vld [vmem:[%s780 + $0x38] sm:$0xff]
  %v789 = vld [vmem:[%s780 + $0x40] sm:$0xff]
  %v790 = vld [vmem:[%s780 + $0x48] sm:$0xff]
  %v791 = vld [vmem:[%s780 + $0x50] sm:$0xff]
  %v792 = vld [vmem:[%s780 + $0x58] sm:$0xff]
  %v793 = vld [vmem:[%s780 + $0x60] sm:$0xff]
  %v794 = vld [vmem:[%s780 + $0x68] sm:$0xff]
  %v795 = vld [vmem:[%s780 + $0x70] sm:$0xff]
  %v796 = vld [vmem:[%s780 + $0x78] sm:$0xff]
  %vm800 = vcmask 1041408
  %v801 = vrot.slane %v132, 6
  %v802 = vrot.slane %v137, 6
  %v803 = vsel %vm800, %v801, %v802
  %v804 = vrot.slane %v142, 6
  %v805 = vsel %vm800, %v802, %v804
  %808 = vmatprep.subr.mxu0 0.0
  %809 = vmatpush1.msra.mxu0 %v781
  %810 = vmatprep.subr.mxu0 0.0
  %811 = vmatpush1.msra.mxu0 %v782
  %812 = vmatprep.subr.mxu0 0.0
  %813 = vmatpush1.msra.mxu0 %v783
  %814 = vmatprep.subr.mxu0 0.0
  %815 = vmatpush1.msra.mxu0 %v784
  %816 = vmatprep.subr.mxu0 0.0
  %817 = vmatpush1.msra.mxu0 %v785
  %818 = vmatprep.subr.mxu0 0.0
  %819 = vmatpush1.msra.mxu0 %v786
  %820 = vmatprep.subr.mxu0 0.0
  %821 = vmatpush1.msra.mxu0 %v787
  %822 = vmatprep.subr.mxu0 0.0
  %823 = vmatpush1.msra.mxu0 %v788
  %824 = vmatprep.subr.mxu0 0.0
  %825 = vmatpush1.msra.mxu0 %v789
  %826 = vmatprep.subr.mxu0 0.0
  %827 = vmatpush1.msra.mxu0 %v790
  %828 = vmatprep.subr.mxu0 0.0
  %829 = vmatpush1.msra.mxu0 %v791
  %830 = vmatprep.subr.mxu0 0.0
  %831 = vmatpush1.msra.mxu0 %v792
  %832 = vmatprep.subr.mxu0 0.0
  %833 = vmatpush1.msra.mxu0 %v793
  %834 = vmatprep.subr.mxu0 0.0
  %835 = vmatpush1.msra.mxu0 %v794
  %836 = vmatprep.subr.mxu0 0.0
  %837 = vmatpush1.msra.mxu0 %v795
  %838 = vmatprep.subr.mxu0 0.0
  %839 = vmatpush1.msra.mxu0 %v796
  %840 = vmatprep.subr.mxu0 0.0
  %841 = vmatpush1.msra.mxu0 0.0
  %842 = vmatprep.subr.mxu0 0.0
  %843 = vmatpush1.msra.mxu0 0.0
  %844 = vmatprep.subr.mxu0 0.0
  %845 = vmatpush1.msra.mxu0 0.0
  %846 = vmatprep.subr.mxu0 0.0
  %847 = vmatpush1.msra.mxu0 0.0
  %848 = vmatprep.subr.mxu0 0.0
  %849 = vmatpush1.msra.mxu0 0.0
  %850 = vmatprep.subr.mxu0 0.0
  %851 = vmatpush1.msra.mxu0 0.0
  %852 = vmatprep.subr.mxu0 0.0
  %853 = vmatpush1.msra.mxu0 0.0
  %854 = vmatprep.subr.mxu0 0.0
  %855 = vmatpush1.msra.mxu0 0.0
  %856 = vmatprep.subr.mxu0 0.0
  %857 = vmatpush1.msra.mxu0 0.0
  %858 = vmatprep.subr.mxu0 0.0
  %859 = vmatpush1.msra.mxu0 0.0
  %860 = vmatprep.subr.mxu0 0.0
  %861 = vmatpush1.msra.mxu0 0.0
  %862 = vmatprep.subr.mxu0 0.0
  %863 = vmatpush1.msra.mxu0 0.0
  %864 = vmatprep.subr.mxu0 0.0
  %865 = vmatpush1.msra.mxu0 0.0
  %866 = vmatprep.subr.mxu0 0.0
  %867 = vmatpush1.msra.mxu0 0.0
  %868 = vmatprep.subr.mxu0 0.0
  %869 = vmatpush1.msra.mxu0 0.0
  %870 = vmatprep.subr.mxu0 0.0
  %871 = vmatpush1.msra.mxu0 0.0
  %872 = vmatprep.mubr.f32.mxu0 0.0
  %873 = vmatmul.mubr.f32.gmra.mrb[0].mxu0 %v803
  %v874 = vpop.f32.mrb[0].mxu0
  %v875 = vadd.f32 0.0, %v874
  %v876 = vpop.f32.mrb[0].mxu0
  %877 = vmatprep.mubr.f32.mxu0 0.0
  %878 = vmatmul.mubr.f32.gmra.mrb[0].mxu0 %v805
  %v879 = vpop.f32.mrb[0].mxu0
  %v880 = vadd.f32 0.0, %v879
  %v881 = vpop.f32.mrb[0].mxu0
  %882 = vdwg.mxu0
  %s883 = scalar_lea.vmem %s3, 48
  %884 = vst.msk [vmem:[%s883] sm:$0xff] %vm622, %v875
  %885 = vst.msk [vmem:[%s883 + $0x8] sm:$0x3f] %vm624, %v880
  %v889 = vrot.slane %v300, 6
  %v890 = vrot.slane %v305, 6
  %v891 = vsel %vm800, %v889, %v890
  %v892 = vrot.slane %v310, 6
  %v893 = vsel %vm800, %v890, %v892
  %896 = vmatprep.subr.mxu0 0.0
  %897 = vmatpush1.msra.mxu0 %v781
  %898 = vmatprep.subr.mxu0 0.0
  %899 = vmatpush1.msra.mxu0 %v782
  %900 = vmatprep.subr.mxu0 0.0
  %901 = vmatpush1.msra.mxu0 %v783
  %902 = vmatprep.subr.mxu0 0.0
  %903 = vmatpush1.msra.mxu0 %v784
  %904 = vmatprep.subr.mxu0 0.0
  %905 = vmatpush1.msra.mxu0 %v785
  %906 = vmatprep.subr.mxu0 0.0
  %907 = vmatpush1.msra.mxu0 %v786
  %908 = vmatprep.subr.mxu0 0.0
  %909 = vmatpush1.msra.mxu0 %v787
  %910 = vmatprep.subr.mxu0 0.0
  %911 = vmatpush1.msra.mxu0 %v788
  %912 = vmatprep.subr.mxu0 0.0
  %913 = vmatpush1.msra.mxu0 %v789
  %914 = vmatprep.subr.mxu0 0.0
  %915 = vmatpush1.msra.mxu0 %v790
  %916 = vmatprep.subr.mxu0 0.0
  %917 = vmatpush1.msra.mxu0 %v791
  %918 = vmatprep.subr.mxu0 0.0
  %919 = vmatpush1.msra.mxu0 %v792
  %920 = vmatprep.subr.mxu0 0.0
  %921 = vmatpush1.msra.mxu0 %v793
  %922 = vmatprep.subr.mxu0 0.0
  %923 = vmatpush1.msra.mxu0 %v794
  %924 = vmatprep.subr.mxu0 0.0
  %925 = vmatpush1.msra.mxu0 %v795
  %926 = vmatprep.subr.mxu0 0.0
  %927 = vmatpush1.msra.mxu0 %v796
  %928 = vmatprep.subr.mxu0 0.0
  %929 = vmatpush1.msra.mxu0 0.0
  %930 = vmatprep.subr.mxu0 0.0
  %931 = vmatpush1.msra.mxu0 0.0
  %932 = vmatprep.subr.mxu0 0.0
  %933 = vmatpush1.msra.mxu0 0.0
  %934 = vmatprep.subr.mxu0 0.0
  %935 = vmatpush1.msra.mxu0 0.0
  %936 = vmatprep.subr.mxu0 0.0
  %937 = vmatpush1.msra.mxu0 0.0
  %938 = vmatprep.subr.mxu0 0.0
  %939 = vmatpush1.msra.mxu0 0.0
  %940 = vmatprep.subr.mxu0 0.0
  %941 = vmatpush1.msra.mxu0 0.0
  %942 = vmatprep.subr.mxu0 0.0
  %943 = vmatpush1.msra.mxu0 0.0
  %944 = vmatprep.subr.mxu0 0.0
  %945 = vmatpush1.msra.mxu0 0.0
  %946 = vmatprep.subr.mxu0 0.0
  %947 = vmatpush1.msra.mxu0 0.0
  %948 = vmatprep.subr.mxu0 0.0
  %949 = vmatpush1.msra.mxu0 0.0
  %950 = vmatprep.subr.mxu0 0.0
  %951 = vmatpush1.msra.mxu0 0.0
  %952 = vmatprep.subr.mxu0 0.0
  %953 = vmatpush1.msra.mxu0 0.0
  %954 = vmatprep.subr.mxu0 0.0
  %955 = vmatpush1.msra.mxu0 0.0
  %956 = vmatprep.subr.mxu0 0.0
  %957 = vmatpush1.msra.mxu0 0.0
  %958 = vmatprep.subr.mxu0 0.0
  %959 = vmatpush1.msra.mxu0 0.0
  %960 = vmatprep.mubr.f32.mxu0 0.0
  %961 = vmatmul.mubr.f32.gmra.mrb[0].mxu0 %v891
  %v962 = vpop.f32.mrb[0].mxu0
  %v963 = vadd.f32 0.0, %v962
  %v964 = vpop.f32.mrb[0].mxu0
  %965 = vmatprep.mubr.f32.mxu0 0.0
  %966 = vmatmul.mubr.f32.gmra.mrb[0].mxu0 %v893
  %v967 = vpop.f32.mrb[0].mxu0
  %v968 = vadd.f32 0.0, %v967
  %v969 = vpop.f32.mrb[0].mxu0
  %970 = vdwg.mxu0
  %971 = vst.msk [vmem:[%s883 + $0xe] sm:$0xff] %vm622, %v963
  %972 = vst.msk [vmem:[%s883 + $0x16] sm:$0x3f] %vm624, %v968
  %v976 = vrot.slane %v468, 6
  %v977 = vrot.slane %v473, 6
  %v978 = vsel %vm800, %v976, %v977
  %v979 = vrot.slane %v478, 6
  %v980 = vsel %vm800, %v977, %v979
  %983 = vmatprep.subr.mxu0 0.0
  %984 = vmatpush1.msra.mxu0 %v781
  %985 = vmatprep.subr.mxu0 0.0
  %986 = vmatpush1.msra.mxu0 %v782
  %987 = vmatprep.subr.mxu0 0.0
  %988 = vmatpush1.msra.mxu0 %v783
  %989 = vmatprep.subr.mxu0 0.0
  %990 = vmatpush1.msra.mxu0 %v784
  %991 = vmatprep.subr.mxu0 0.0
  %992 = vmatpush1.msra.mxu0 %v785
  %993 = vmatprep.subr.mxu0 0.0
  %994 = vmatpush1.msra.mxu0 %v786
  %995 = vmatprep.subr.mxu0 0.0
  %996 = vmatpush1.msra.mxu0 %v787
  %997 = vmatprep.subr.mxu0 0.0
  %998 = vmatpush1.msra.mxu0 %v788
  %999 = vmatprep.subr.mxu0 0.0
  %1000 = vmatpush1.msra.mxu0 %v789
  %1001 = vmatprep.subr.mxu0 0.0
  %1002 = vmatpush1.msra.mxu0 %v790
  %1003 = vmatprep.subr.mxu0 0.0
  %1004 = vmatpush1.msra.mxu0 %v791
  %1005 = vmatprep.subr.mxu0 0.0
  %1006 = vmatpush1.msra.mxu0 %v792
  %1007 = vmatprep.subr.mxu0 0.0
  %1008 = vmatpush1.msra.mxu0 %v793
  %1009 = vmatprep.subr.mxu0 0.0
  %1010 = vmatpush1.msra.mxu0 %v794
  %1011 = vmatprep.subr.mxu0 0.0
  %1012 = vmatpush1.msra.mxu0 %v795
  %1013 = vmatprep.subr.mxu0 0.0
  %1014 = vmatpush1.msra.mxu0 %v796
  %1015 = vmatprep.subr.mxu0 0.0
  %1016 = vmatpush1.msra.mxu0 0.0
  %1017 = vmatprep.subr.mxu0 0.0
  %1018 = vmatpush1.msra.mxu0 0.0
  %1019 = vmatprep.subr.mxu0 0.0
  %1020 = vmatpush1.msra.mxu0 0.0
  %1021 = vmatprep.subr.mxu0 0.0
  %1022 = vmatpush1.msra.mxu0 0.0
  %1023 = vmatprep.subr.mxu0 0.0
  %1024 = vmatpush1.msra.mxu0 0.0
  %1025 = vmatprep.subr.mxu0 0.0
  %1026 = vmatpush1.msra.mxu0 0.0
  %1027 = vmatprep.subr.mxu0 0.0
  %1028 = vmatpush1.msra.mxu0 0.0
  %1029 = vmatprep.subr.mxu0 0.0
  %1030 = vmatpush1.msra.mxu0 0.0
  %1031 = vmatprep.subr.mxu0 0.0
  %1032 = vmatpush1.msra.mxu0 0.0
  %1033 = vmatprep.subr.mxu0 0.0
  %1034 = vmatpush1.msra.mxu0 0.0
  %1035 = vmatprep.subr.mxu0 0.0
  %1036 = vmatpush1.msra.mxu0 0.0
  %1037 = vmatprep.subr.mxu0 0.0
  %1038 = vmatpush1.msra.mxu0 0.0
  %1039 = vmatprep.subr.mxu0 0.0
  %1040 = vmatpush1.msra.mxu0 0.0
  %1041 = vmatprep.subr.mxu0 0.0
  %1042 = vmatpush1.msra.mxu0 0.0
  %1043 = vmatprep.subr.mxu0 0.0
  %1044 = vmatpush1.msra.mxu0 0.0
  %1045 = vmatprep.subr.mxu0 0.0
  %1046 = vmatpush1.msra.mxu0 0.0
  %1047 = vmatprep.mubr.f32.mxu0 0.0
  %1048 = vmatmul.mubr.f32.gmra.mrb[0].mxu0 %v978
  %v1049 = vpop.f32.mrb[0].mxu0
  %v1050 = vadd.f32 0.0, %v1049
  %v1051 = vpop.f32.mrb[0].mxu0
  %1052 = vmatprep.mubr.f32.mxu0 0.0
  %1053 = vmatmul.mubr.f32.gmra.mrb[0].mxu0 %v980
  %v1054 = vpop.f32.mrb[0].mxu0
  %v1055 = vadd.f32 0.0, %v1054
  %v1056 = vpop.f32.mrb[0].mxu0
  %1057 = vdwg.mxu0
  %1058 = vst.msk [vmem:[%s883 + $0x1c] sm:$0xff] %vm622, %v1050
  %1059 = vst.msk [vmem:[%s883 + $0x24] sm:$0x3f] %vm624, %v1055
  %s1060 = scalar_lea.vmem %s2, 256
  %v1061 = vld [vmem:[%s1060] sm:$0xff]
  %v1062 = vld [vmem:[%s1060 + $0x8] sm:$0xff]
  %v1063 = vld [vmem:[%s1060 + $0x10] sm:$0xff]
  %v1064 = vld [vmem:[%s1060 + $0x18] sm:$0xff]
  %v1065 = vld [vmem:[%s1060 + $0x20] sm:$0xff]
  %v1066 = vld [vmem:[%s1060 + $0x28] sm:$0xff]
  %v1067 = vld [vmem:[%s1060 + $0x30] sm:$0xff]
  %v1068 = vld [vmem:[%s1060 + $0x38] sm:$0xff]
  %v1069 = vld [vmem:[%s1060 + $0x40] sm:$0xff]
  %v1070 = vld [vmem:[%s1060 + $0x48] sm:$0xff]
  %v1071 = vld [vmem:[%s1060 + $0x50] sm:$0xff]
  %v1072 = vld [vmem:[%s1060 + $0x58] sm:$0xff]
  %v1073 = vld [vmem:[%s1060 + $0x60] sm:$0xff]
  %v1074 = vld [vmem:[%s1060 + $0x68] sm:$0xff]
  %v1075 = vld [vmem:[%s1060 + $0x70] sm:$0xff]
  %v1076 = vld [vmem:[%s1060 + $0x78] sm:$0xff]
  %vm1079 = vcmask 1043456
  %v1080 = vrot.slane %v142, 4
  %v1081 = vrot.slane %v147, 4
  %v1082 = vsel %vm1079, %v1080, %v1081
  %v1083 = vrot.slane %v152, 4
  %v1084 = vsel %vm1079, %v1081, %v1083
  %1087 = vmatprep.subr.mxu0 0.0
  %1088 = vmatpush1.msra.mxu0 %v1061
  %1089 = vmatprep.subr.mxu0 0.0
  %1090 = vmatpush1.msra.mxu0 %v1062
  %1091 = vmatprep.subr.mxu0 0.0
  %1092 = vmatpush1.msra.mxu0 %v1063
  %1093 = vmatprep.subr.mxu0 0.0
  %1094 = vmatpush1.msra.mxu0 %v1064
  %1095 = vmatprep.subr.mxu0 0.0
  %1096 = vmatpush1.msra.mxu0 %v1065
  %1097 = vmatprep.subr.mxu0 0.0
  %1098 = vmatpush1.msra.mxu0 %v1066
  %1099 = vmatprep.subr.mxu0 0.0
  %1100 = vmatpush1.msra.mxu0 %v1067
  %1101 = vmatprep.subr.mxu0 0.0
  %1102 = vmatpush1.msra.mxu0 %v1068
  %1103 = vmatprep.subr.mxu0 0.0
  %1104 = vmatpush1.msra.mxu0 %v1069
  %1105 = vmatprep.subr.mxu0 0.0
  %1106 = vmatpush1.msra.mxu0 %v1070
  %1107 = vmatprep.subr.mxu0 0.0
  %1108 = vmatpush1.msra.mxu0 %v1071
  %1109 = vmatprep.subr.mxu0 0.0
  %1110 = vmatpush1.msra.mxu0 %v1072
  %1111 = vmatprep.subr.mxu0 0.0
  %1112 = vmatpush1.msra.mxu0 %v1073
  %1113 = vmatprep.subr.mxu0 0.0
  %1114 = vmatpush1.msra.mxu0 %v1074
  %1115 = vmatprep.subr.mxu0 0.0
  %1116 = vmatpush1.msra.mxu0 %v1075
  %1117 = vmatprep.subr.mxu0 0.0
  %1118 = vmatpush1.msra.mxu0 %v1076
  %1119 = vmatprep.subr.mxu0 0.0
  %1120 = vmatpush1.msra.mxu0 0.0
  %1121 = vmatprep.subr.mxu0 0.0
  %1122 = vmatpush1.msra.mxu0 0.0
  %1123 = vmatprep.subr.mxu0 0.0
  %1124 = vmatpush1.msra.mxu0 0.0
  %1125 = vmatprep.subr.mxu0 0.0
  %1126 = vmatpush1.msra.mxu0 0.0
  %1127 = vmatprep.subr.mxu0 0.0
  %1128 = vmatpush1.msra.mxu0 0.0
  %1129 = vmatprep.subr.mxu0 0.0
  %1130 = vmatpush1.msra.mxu0 0.0
  %1131 = vmatprep.subr.mxu0 0.0
  %1132 = vmatpush1.msra.mxu0 0.0
  %1133 = vmatprep.subr.mxu0 0.0
  %1134 = vmatpush1.msra.mxu0 0.0
  %1135 = vmatprep.subr.mxu0 0.0
  %1136 = vmatpush1.msra.mxu0 0.0
  %1137 = vmatprep.subr.mxu0 0.0
  %1138 = vmatpush1.msra.mxu0 0.0
  %1139 = vmatprep.subr.mxu0 0.0
  %1140 = vmatpush1.msra.mxu0 0.0
  %1141 = vmatprep.subr.mxu0 0.0
  %1142 = vmatpush1.msra.mxu0 0.0
  %1143 = vmatprep.subr.mxu0 0.0
  %1144 = vmatpush1.msra.mxu0 0.0
  %1145 = vmatprep.subr.mxu0 0.0
  %1146 = vmatpush1.msra.mxu0 0.0
  %1147 = vmatprep.subr.mxu0 0.0
  %1148 = vmatpush1.msra.mxu0 0.0
  %1149 = vmatprep.subr.mxu0 0.0
  %1150 = vmatpush1.msra.mxu0 0.0
  %1151 = vmatprep.mubr.f32.mxu0 0.0
  %1152 = vmatmul.mubr.f32.gmra.mrb[0].mxu0 %v1082
  %v1153 = vpop.f32.mrb[0].mxu0
  %v1154 = vadd.f32 0.0, %v1153
  %v1155 = vpop.f32.mrb[0].mxu0
  %1156 = vmatprep.mubr.f32.mxu0 0.0
  %1157 = vmatmul.mubr.f32.gmra.mrb[0].mxu0 %v1084
  %v1158 = vpop.f32.mrb[0].mxu0
  %v1159 = vadd.f32 0.0, %v1158
  %v1160 = vpop.f32.mrb[0].mxu0
  %1161 = vdwg.mxu0
  %s1162 = scalar_lea.vmem %s3, 96
  %1163 = vst.msk [vmem:[%s1162] sm:$0xff] %vm622, %v1154
  %1164 = vst.msk [vmem:[%s1162 + $0x8] sm:$0x3f] %vm624, %v1159
  %v1167 = vrot.slane %v310, 4
  %v1168 = vrot.slane %v315, 4
  %v1169 = vsel %vm1079, %v1167, %v1168
  %v1170 = vrot.slane %v320, 4
  %v1171 = vsel %vm1079, %v1168, %v1170
  %1174 = vmatprep.subr.mxu0 0.0
  %1175 = vmatpush1.msra.mxu0 %v1061
  %1176 = vmatprep.subr.mxu0 0.0
  %1177 = vmatpush1.msra.mxu0 %v1062
  %1178 = vmatprep.subr.mxu0 0.0
  %1179 = vmatpush1.msra.mxu0 %v1063
  %1180 = vmatprep.subr.mxu0 0.0
  %1181 = vmatpush1.msra.mxu0 %v1064
  %1182 = vmatprep.subr.mxu0 0.0
  %1183 = vmatpush1.msra.mxu0 %v1065
  %1184 = vmatprep.subr.mxu0 0.0
  %1185 = vmatpush1.msra.mxu0 %v1066
  %1186 = vmatprep.subr.mxu0 0.0
  %1187 = vmatpush1.msra.mxu0 %v1067
  %1188 = vmatprep.subr.mxu0 0.0
  %1189 = vmatpush1.msra.mxu0 %v1068
  %1190 = vmatprep.subr.mxu0 0.0
  %1191 = vmatpush1.msra.mxu0 %v1069
  %1192 = vmatprep.subr.mxu0 0.0
  %1193 = vmatpush1.msra.mxu0 %v1070
  %1194 = vmatprep.subr.mxu0 0.0
  %1195 = vmatpush1.msra.mxu0 %v1071
  %1196 = vmatprep.subr.mxu0 0.0
  %1197 = vmatpush1.msra.mxu0 %v1072
  %1198 = vmatprep.subr.mxu0 0.0
  %1199 = vmatpush1.msra.mxu0 %v1073
  %1200 = vmatprep.subr.mxu0 0.0
  %1201 = vmatpush1.msra.mxu0 %v1074
  %1202 = vmatprep.subr.mxu0 0.0
  %1203 = vmatpush1.msra.mxu0 %v1075
  %1204 = vmatprep.subr.mxu0 0.0
  %1205 = vmatpush1.msra.mxu0 %v1076
  %1206 = vmatprep.subr.mxu0 0.0
  %1207 = vmatpush1.msra.mxu0 0.0
  %1208 = vmatprep.subr.mxu0 0.0
  %1209 = vmatpush1.msra.mxu0 0.0
  %1210 = vmatprep.subr.mxu0 0.0
  %1211 = vmatpush1.msra.mxu0 0.0
  %1212 = vmatprep.subr.mxu0 0.0
  %1213 = vmatpush1.msra.mxu0 0.0
  %1214 = vmatprep.subr.mxu0 0.0
  %1215 = vmatpush1.msra.mxu0 0.0
  %1216 = vmatprep.subr.mxu0 0.0
  %1217 = vmatpush1.msra.mxu0 0.0
  %1218 = vmatprep.subr.mxu0 0.0
  %1219 = vmatpush1.msra.mxu0 0.0
  %1220 = vmatprep.subr.mxu0 0.0
  %1221 = vmatpush1.msra.mxu0 0.0
  %1222 = vmatprep.subr.mxu0 0.0
  %1223 = vmatpush1.msra.mxu0 0.0
  %1224 = vmatprep.subr.mxu0 0.0
  %1225 = vmatpush1.msra.mxu0 0.0
  %1226 = vmatprep.subr.mxu0 0.0
  %1227 = vmatpush1.msra.mxu0 0.0
  %1228 = vmatprep.subr.mxu0 0.0
  %1229 = vmatpush1.msra.mxu0 0.0
  %1230 = vmatprep.subr.mxu0 0.0
  %1231 = vmatpush1.msra.mxu0 0.0
  %1232 = vmatprep.subr.mxu0 0.0
  %1233 = vmatpush1.msra.mxu0 0.0
  %1234 = vmatprep.subr.mxu0 0.0
  %1235 = vmatpush1.msra.mxu0 0.0
  %1236 = vmatprep.subr.mxu0 0.0
  %1237 = vmatpush1.msra.mxu0 0.0
  %1238 = vmatprep.mubr.f32.mxu0 0.0
  %1239 = vmatmul.mubr.f32.gmra.mrb[0].mxu0 %v1169
  %v1240 = vpop.f32.mrb[0].mxu0
  %v1241 = vadd.f32 0.0, %v1240
  %v1242 = vpop.f32.mrb[0].mxu0
  %1243 = vmatprep.mubr.f32.mxu0 0.0
  %1244 = vmatmul.mubr.f32.gmra.mrb[0].mxu0 %v1171
  %v1245 = vpop.f32.mrb[0].mxu0
  %v1246 = vadd.f32 0.0, %v1245
  %v1247 = vpop.f32.mrb[0].mxu0
  %1248 = vdwg.mxu0
  %1249 = vst.msk [vmem:[%s1162 + $0xe] sm:$0xff] %vm622, %v1241
  %1250 = vst.msk [vmem:[%s1162 + $0x16] sm:$0x3f] %vm624, %v1246
  %v1253 = vrot.slane %v478, 4
  %v1254 = vrot.slane %v483, 4
  %v1255 = vsel %vm1079, %v1253, %v1254
  %v1256 = vrot.slane %v488, 4
  %v1257 = vsel %vm1079, %v1254, %v1256
  %1260 = vmatprep.subr.mxu0 0.0
  %1261 = vmatpush1.msra.mxu0 %v1061
  %1262 = vmatprep.subr.mxu0 0.0
  %1263 = vmatpush1.msra.mxu0 %v1062
  %1264 = vmatprep.subr.mxu0 0.0
  %1265 = vmatpush1.msra.mxu0 %v1063
  %1266 = vmatprep.subr.mxu0 0.0
  %1267 = vmatpush1.msra.mxu0 %v1064
  %1268 = vmatprep.subr.mxu0 0.0
  %1269 = vmatpush1.msra.mxu0 %v1065
  %1270 = vmatprep.subr.mxu0 0.0
  %1271 = vmatpush1.msra.mxu0 %v1066
  %1272 = vmatprep.subr.mxu0 0.0
  %1273 = vmatpush1.msra.mxu0 %v1067
  %1274 = vmatprep.subr.mxu0 0.0
  %1275 = vmatpush1.msra.mxu0 %v1068
  %1276 = vmatprep.subr.mxu0 0.0
  %1277 = vmatpush1.msra.mxu0 %v1069
  %1278 = vmatprep.subr.mxu0 0.0
  %1279 = vmatpush1.msra.mxu0 %v1070
  %1280 = vmatprep.subr.mxu0 0.0
  %1281 = vmatpush1.msra.mxu0 %v1071
  %1282 = vmatprep.subr.mxu0 0.0
  %1283 = vmatpush1.msra.mxu0 %v1072
  %1284 = vmatprep.subr.mxu0 0.0
  %1285 = vmatpush1.msra.mxu0 %v1073
  %1286 = vmatprep.subr.mxu0 0.0
  %1287 = vmatpush1.msra.mxu0 %v1074
  %1288 = vmatprep.subr.mxu0 0.0
  %1289 = vmatpush1.msra.mxu0 %v1075
  %1290 = vmatprep.subr.mxu0 0.0
  %1291 = vmatpush1.msra.mxu0 %v1076
  %1292 = vmatprep.subr.mxu0 0.0
  %1293 = vmatpush1.msra.mxu0 0.0
  %1294 = vmatprep.subr.mxu0 0.0
  %1295 = vmatpush1.msra.mxu0 0.0
  %1296 = vmatprep.subr.mxu0 0.0
  %1297 = vmatpush1.msra.mxu0 0.0
  %1298 = vmatprep.subr.mxu0 0.0
  %1299 = vmatpush1.msra.mxu0 0.0
  %1300 = vmatprep.subr.mxu0 0.0
  %1301 = vmatpush1.msra.mxu0 0.0
  %1302 = vmatprep.subr.mxu0 0.0
  %1303 = vmatpush1.msra.mxu0 0.0
  %1304 = vmatprep.subr.mxu0 0.0
  %1305 = vmatpush1.msra.mxu0 0.0
  %1306 = vmatprep.subr.mxu0 0.0
  %1307 = vmatpush1.msra.mxu0 0.0
  %1308 = vmatprep.subr.mxu0 0.0
  %1309 = vmatpush1.msra.mxu0 0.0
  %1310 = vmatprep.subr.mxu0 0.0
  %1311 = vmatpush1.msra.mxu0 0.0
  %1312 = vmatprep.subr.mxu0 0.0
  %1313 = vmatpush1.msra.mxu0 0.0
  %1314 = vmatprep.subr.mxu0 0.0
  %1315 = vmatpush1.msra.mxu0 0.0
  %1316 = vmatprep.subr.mxu0 0.0
  %1317 = vmatpush1.msra.mxu0 0.0
  %1318 = vmatprep.subr.mxu0 0.0
  %1319 = vmatpush1.msra.mxu0 0.0
  %1320 = vmatprep.subr.mxu0 0.0
  %1321 = vmatpush1.msra.mxu0 0.0
  %1322 = vmatprep.subr.mxu0 0.0
  %1323 = vmatpush1.msra.mxu0 0.0
  %1324 = vmatprep.mubr.f32.mxu0 0.0
  %1325 = vmatmul.mubr.f32.gmra.mrb[0].mxu0 %v1255
  %v1326 = vpop.f32.mrb[0].mxu0
  %v1327 = vadd.f32 0.0, %v1326
  %v1328 = vpop.f32.mrb[0].mxu0
  %1329 = vmatprep.mubr.f32.mxu0 0.0
  %1330 = vmatmul.mubr.f32.gmra.mrb[0].mxu0 %v1257
  %v1331 = vpop.f32.mrb[0].mxu0
  %v1332 = vadd.f32 0.0, %v1331
  %v1333 = vpop.f32.mrb[0].mxu0
  %1334 = vdwg.mxu0
  %1335 = vst.msk [vmem:[%s1162 + $0x1c] sm:$0xff] %vm622, %v1327
  %1336 = vst.msk [vmem:[%s1162 + $0x24] sm:$0x3f] %vm624, %v1332
  %s1337 = scalar_lea.vmem %s2, 384
  %v1338 = vld [vmem:[%s1337] sm:$0xff]
  %v1339 = vld [vmem:[%s1337 + $0x8] sm:$0xff]
  %v1340 = vld [vmem:[%s1337 + $0x10] sm:$0xff]
  %v1341 = vld [vmem:[%s1337 + $0x18] sm:$0xff]
  %v1342 = vld [vmem:[%s1337 + $0x20] sm:$0xff]
  %v1343 = vld [vmem:[%s1337 + $0x28] sm:$0xff]
  %v1344 = vld [vmem:[%s1337 + $0x30] sm:$0xff]
  %v1345 = vld [vmem:[%s1337 + $0x38] sm:$0xff]
  %v1346 = vld [vmem:[%s1337 + $0x40] sm:$0xff]
  %v1347 = vld [vmem:[%s1337 + $0x48] sm:$0xff]
  %v1348 = vld [vmem:[%s1337 + $0x50] sm:$0xff]
  %v1349 = vld [vmem:[%s1337 + $0x58] sm:$0xff]
  %v1350 = vld [vmem:[%s1337 + $0x60] sm:$0xff]
  %v1351 = vld [vmem:[%s1337 + $0x68] sm:$0xff]
  %v1352 = vld [vmem:[%s1337 + $0x70] sm:$0xff]
  %v1353 = vld [vmem:[%s1337 + $0x78] sm:$0xff]
  %vm1355 = vcmask 1045504
  %v1356 = vrot.slane %v152, 2
  %v1357 = vrot.slane %v157, 2
  %v1358 = vsel %vm1355, %v1356, %v1357
  %1361 = vmatprep.subr.mxu0 0.0
  %1362 = vmatpush1.msra.mxu0 %v1338
  %1363 = vmatprep.subr.mxu0 0.0
  %1364 = vmatpush1.msra.mxu0 %v1339
  %1365 = vmatprep.subr.mxu0 0.0
  %1366 = vmatpush1.msra.mxu0 %v1340
  %1367 = vmatprep.subr.mxu0 0.0
  %1368 = vmatpush1.msra.mxu0 %v1341
  %1369 = vmatprep.subr.mxu0 0.0
  %1370 = vmatpush1.msra.mxu0 %v1342
  %1371 = vmatprep.subr.mxu0 0.0
  %1372 = vmatpush1.msra.mxu0 %v1343
  %1373 = vmatprep.subr.mxu0 0.0
  %1374 = vmatpush1.msra.mxu0 %v1344
  %1375 = vmatprep.subr.mxu0 0.0
  %1376 = vmatpush1.msra.mxu0 %v1345
  %1377 = vmatprep.subr.mxu0 0.0
  %1378 = vmatpush1.msra.mxu0 %v1346
  %1379 = vmatprep.subr.mxu0 0.0
  %1380 = vmatpush1.msra.mxu0 %v1347
  %1381 = vmatprep.subr.mxu0 0.0
  %1382 = vmatpush1.msra.mxu0 %v1348
  %1383 = vmatprep.subr.mxu0 0.0
  %1384 = vmatpush1.msra.mxu0 %v1349
  %1385 = vmatprep.subr.mxu0 0.0
  %1386 = vmatpush1.msra.mxu0 %v1350
  %1387 = vmatprep.subr.mxu0 0.0
  %1388 = vmatpush1.msra.mxu0 %v1351
  %1389 = vmatprep.subr.mxu0 0.0
  %1390 = vmatpush1.msra.mxu0 %v1352
  %1391 = vmatprep.subr.mxu0 0.0
  %1392 = vmatpush1.msra.mxu0 %v1353
  %1393 = vmatprep.subr.mxu0 0.0
  %1394 = vmatpush1.msra.mxu0 0.0
  %1395 = vmatprep.subr.mxu0 0.0
  %1396 = vmatpush1.msra.mxu0 0.0
  %1397 = vmatprep.subr.mxu0 0.0
  %1398 = vmatpush1.msra.mxu0 0.0
  %1399 = vmatprep.subr.mxu0 0.0
  %1400 = vmatpush1.msra.mxu0 0.0
  %1401 = vmatprep.subr.mxu0 0.0
  %1402 = vmatpush1.msra.mxu0 0.0
  %1403 = vmatprep.subr.mxu0 0.0
  %1404 = vmatpush1.msra.mxu0 0.0
  %1405 = vmatprep.subr.mxu0 0.0
  %1406 = vmatpush1.msra.mxu0 0.0
  %1407 = vmatprep.subr.mxu0 0.0
  %1408 = vmatpush1.msra.mxu0 0.0
  %1409 = vmatprep.subr.mxu0 0.0
  %1410 = vmatpush1.msra.mxu0 0.0
  %1411 = vmatprep.subr.mxu0 0.0
  %1412 = vmatpush1.msra.mxu0 0.0
  %1413 = vmatprep.subr.mxu0 0.0
  %1414 = vmatpush1.msra.mxu0 0.0
  %1415 = vmatprep.subr.mxu0 0.0
  %1416 = vmatpush1.msra.mxu0 0.0
  %1417 = vmatprep.subr.mxu0 0.0
  %1418 = vmatpush1.msra.mxu0 0.0
  %1419 = vmatprep.subr.mxu0 0.0
  %1420 = vmatpush1.msra.mxu0 0.0
  %1421 = vmatprep.subr.mxu0 0.0
  %1422 = vmatpush1.msra.mxu0 0.0
  %1423 = vmatprep.subr.mxu0 0.0
  %1424 = vmatpush1.msra.mxu0 0.0
  %1425 = vmatprep.mubr.f32.mxu0 0.0
  %1426 = vmatmul.mubr.f32.gmra.mrb[0].mxu0 %v1358
  %v1427 = vpop.f32.mrb[0].mxu0
  %v1428 = vadd.f32 0.0, %v1427
  %v1429 = vpop.f32.mrb[0].mxu0
  %1430 = vmatprep.mubr.f32.mxu0 0.0
  %1431 = vmatmul.mubr.f32.gmra.mrb[0].mxu0 %v1357
  %v1432 = vpop.f32.mrb[0].mxu0
  %v1433 = vadd.f32 0.0, %v1432
  %v1434 = vpop.f32.mrb[0].mxu0
  %1435 = vdwg.mxu0
  %s1436 = scalar_lea.vmem %s3, 144
  %1437 = vst.msk [vmem:[%s1436] sm:$0xff] %vm622, %v1428
  %1438 = vst.msk [vmem:[%s1436 + $0x8] sm:$0x3f] %vm624, %v1433
  %v1440 = vrot.slane %v320, 2
  %v1441 = vrot.slane %v325, 2
  %v1442 = vsel %vm1355, %v1440, %v1441
  %1445 = vmatprep.subr.mxu0 0.0
  %1446 = vmatpush1.msra.mxu0 %v1338
  %1447 = vmatprep.subr.mxu0 0.0
  %1448 = vmatpush1.msra.mxu0 %v1339
  %1449 = vmatprep.subr.mxu0 0.0
  %1450 = vmatpush1.msra.mxu0 %v1340
  %1451 = vmatprep.subr.mxu0 0.0
  %1452 = vmatpush1.msra.mxu0 %v1341
  %1453 = vmatprep.subr.mxu0 0.0
  %1454 = vmatpush1.msra.mxu0 %v1342
  %1455 = vmatprep.subr.mxu0 0.0
  %1456 = vmatpush1.msra.mxu0 %v1343
  %1457 = vmatprep.subr.mxu0 0.0
  %1458 = vmatpush1.msra.mxu0 %v1344
  %1459 = vmatprep.subr.mxu0 0.0
  %1460 = vmatpush1.msra.mxu0 %v1345
  %1461 = vmatprep.subr.mxu0 0.0
  %1462 = vmatpush1.msra.mxu0 %v1346
  %1463 = vmatprep.subr.mxu0 0.0
  %1464 = vmatpush1.msra.mxu0 %v1347
  %1465 = vmatprep.subr.mxu0 0.0
  %1466 = vmatpush1.msra.mxu0 %v1348
  %1467 = vmatprep.subr.mxu0 0.0
  %1468 = vmatpush1.msra.mxu0 %v1349
  %1469 = vmatprep.subr.mxu0 0.0
  %1470 = vmatpush1.msra.mxu0 %v1350
  %1471 = vmatprep.subr.mxu0 0.0
  %1472 = vmatpush1.msra.mxu0 %v1351
  %1473 = vmatprep.subr.mxu0 0.0
  %1474 = vmatpush1.msra.mxu0 %v1352
  %1475 = vmatprep.subr.mxu0 0.0
  %1476 = vmatpush1.msra.mxu0 %v1353
  %1477 = vmatprep.subr.mxu0 0.0
  %1478 = vmatpush1.msra.mxu0 0.0
  %1479 = vmatprep.subr.mxu0 0.0
  %1480 = vmatpush1.msra.mxu0 0.0
  %1481 = vmatprep.subr.mxu0 0.0
  %1482 = vmatpush1.msra.mxu0 0.0
  %1483 = vmatprep.subr.mxu0 0.0
  %1484 = vmatpush1.msra.mxu0 0.0
  %1485 = vmatprep.subr.mxu0 0.0
  %1486 = vmatpush1.msra.mxu0 0.0
  %1487 = vmatprep.subr.mxu0 0.0
  %1488 = vmatpush1.msra.mxu0 0.0
  %1489 = vmatprep.subr.mxu0 0.0
  %1490 = vmatpush1.msra.mxu0 0.0
  %1491 = vmatprep.subr.mxu0 0.0
  %1492 = vmatpush1.msra.mxu0 0.0
  %1493 = vmatprep.subr.mxu0 0.0
  %1494 = vmatpush1.msra.mxu0 0.0
  %1495 = vmatprep.subr.mxu0 0.0
  %1496 = vmatpush1.msra.mxu0 0.0
  %1497 = vmatprep.subr.mxu0 0.0
  %1498 = vmatpush1.msra.mxu0 0.0
  %1499 = vmatprep.subr.mxu0 0.0
  %1500 = vmatpush1.msra.mxu0 0.0
  %1501 = vmatprep.subr.mxu0 0.0
  %1502 = vmatpush1.msra.mxu0 0.0
  %1503 = vmatprep.subr.mxu0 0.0
  %1504 = vmatpush1.msra.mxu0 0.0
  %1505 = vmatprep.subr.mxu0 0.0
  %1506 = vmatpush1.msra.mxu0 0.0
  %1507 = vmatprep.subr.mxu0 0.0
  %1508 = vmatpush1.msra.mxu0 0.0
  %1509 = vmatprep.mubr.f32.mxu0 0.0
  %1510 = vmatmul.mubr.f32.gmra.mrb[0].mxu0 %v1442
  %v1511 = vpop.f32.mrb[0].mxu0
  %v1512 = vadd.f32 0.0, %v1511
  %v1513 = vpop.f32.mrb[0].mxu0
  %1514 = vmatprep.mubr.f32.mxu0 0.0
  %1515 = vmatmul.mubr.f32.gmra.mrb[0].mxu0 %v1441
  %v1516 = vpop.f32.mrb[0].mxu0
  %v1517 = vadd.f32 0.0, %v1516
  %v1518 = vpop.f32.mrb[0].mxu0
  %1519 = vdwg.mxu0
  %1520 = vst.msk [vmem:[%s1436 + $0xe] sm:$0xff] %vm622, %v1512
  %1521 = vst.msk [vmem:[%s1436 + $0x16] sm:$0x3f] %vm624, %v1517
  %v1523 = vrot.slane %v488, 2
  %v1524 = vrot.slane %v493, 2
  %v1525 = vsel %vm1355, %v1523, %v1524
  %1528 = vmatprep.subr.mxu0 0.0
  %1529 = vmatpush1.msra.mxu0 %v1338
  %1530 = vmatprep.subr.mxu0 0.0
  %1531 = vmatpush1.msra.mxu0 %v1339
  %1532 = vmatprep.subr.mxu0 0.0
  %1533 = vmatpush1.msra.mxu0 %v1340
  %1534 = vmatprep.subr.mxu0 0.0
  %1535 = vmatpush1.msra.mxu0 %v1341
  %1536 = vmatprep.subr.mxu0 0.0
  %1537 = vmatpush1.msra.mxu0 %v1342
  %1538 = vmatprep.subr.mxu0 0.0
  %1539 = vmatpush1.msra.mxu0 %v1343
  %1540 = vmatprep.subr.mxu0 0.0
  %1541 = vmatpush1.msra.mxu0 %v1344
  %1542 = vmatprep.subr.mxu0 0.0
  %1543 = vmatpush1.msra.mxu0 %v1345
  %1544 = vmatprep.subr.mxu0 0.0
  %1545 = vmatpush1.msra.mxu0 %v1346
  %1546 = vmatprep.subr.mxu0 0.0
  %1547 = vmatpush1.msra.mxu0 %v1347
  %1548 = vmatprep.subr.mxu0 0.0
  %1549 = vmatpush1.msra.mxu0 %v1348
  %1550 = vmatprep.subr.mxu0 0.0
  %1551 = vmatpush1.msra.mxu0 %v1349
  %1552 = vmatprep.subr.mxu0 0.0
  %1553 = vmatpush1.msra.mxu0 %v1350
  %1554 = vmatprep.subr.mxu0 0.0
  %1555 = vmatpush1.msra.mxu0 %v1351
  %1556 = vmatprep.subr.mxu0 0.0
  %1557 = vmatpush1.msra.mxu0 %v1352
  %1558 = vmatprep.subr.mxu0 0.0
  %1559 = vmatpush1.msra.mxu0 %v1353
  %1560 = vmatprep.subr.mxu0 0.0
  %1561 = vmatpush1.msra.mxu0 0.0
  %1562 = vmatprep.subr.mxu0 0.0
  %1563 = vmatpush1.msra.mxu0 0.0
  %1564 = vmatprep.subr.mxu0 0.0
  %1565 = vmatpush1.msra.mxu0 0.0
  %1566 = vmatprep.subr.mxu0 0.0
  %1567 = vmatpush1.msra.mxu0 0.0
  %1568 = vmatprep.subr.mxu0 0.0
  %1569 = vmatpush1.msra.mxu0 0.0
  %1570 = vmatprep.subr.mxu0 0.0
  %1571 = vmatpush1.msra.mxu0 0.0
  %1572 = vmatprep.subr.mxu0 0.0
  %1573 = vmatpush1.msra.mxu0 0.0
  %1574 = vmatprep.subr.mxu0 0.0
  %1575 = vmatpush1.msra.mxu0 0.0
  %1576 = vmatprep.subr.mxu0 0.0
  %1577 = vmatpush1.msra.mxu0 0.0
  %1578 = vmatprep.subr.mxu0 0.0
  %1579 = vmatpush1.msra.mxu0 0.0
  %1580 = vmatprep.subr.mxu0 0.0
  %1581 = vmatpush1.msra.mxu0 0.0
  %1582 = vmatprep.subr.mxu0 0.0
  %1583 = vmatpush1.msra.mxu0 0.0
  %1584 = vmatprep.subr.mxu0 0.0
  %1585 = vmatpush1.msra.mxu0 0.0
  %1586 = vmatprep.subr.mxu0 0.0
  %1587 = vmatpush1.msra.mxu0 0.0
  %1588 = vmatprep.subr.mxu0 0.0
  %1589 = vmatpush1.msra.mxu0 0.0
  %1590 = vmatprep.subr.mxu0 0.0
  %1591 = vmatpush1.msra.mxu0 0.0
  %1592 = vmatprep.mubr.f32.mxu0 0.0
  %1593 = vmatmul.mubr.f32.gmra.mrb[0].mxu0 %v1525
  %v1594 = vpop.f32.mrb[0].mxu0
  %v1595 = vadd.f32 0.0, %v1594
  %v1596 = vpop.f32.mrb[0].mxu0
  %1597 = vmatprep.mubr.f32.mxu0 0.0
  %1598 = vmatmul.mubr.f32.gmra.mrb[0].mxu0 %v1524
  %v1599 = vpop.f32.mrb[0].mxu0
  %v1600 = vadd.f32 0.0, %v1599
  %v1601 = vpop.f32.mrb[0].mxu0
  %1602 = vdwg.mxu0
  %1603 = vst.msk [vmem:[%s1436 + $0x1c] sm:$0xff] %vm622, %v1595
  %1604 = vst.msk [vmem:[%s1436 + $0x24] sm:$0x3f] %vm624, %v1600
  %s1605 = scalar_lea.vmem %s2, 512
  %v1606 = vld [vmem:[%s1605] sm:$0xff]
  %v1607 = vld [vmem:[%s1605 + $0x8] sm:$0xff]
  %v1608 = vld [vmem:[%s1605 + $0x10] sm:$0xff]
  %v1609 = vld [vmem:[%s1605 + $0x18] sm:$0xff]
  %v1610 = vld [vmem:[%s1605 + $0x20] sm:$0xff]
  %v1611 = vld [vmem:[%s1605 + $0x28] sm:$0xff]
  %v1612 = vld [vmem:[%s1605 + $0x30] sm:$0xff]
  %v1613 = vld [vmem:[%s1605 + $0x38] sm:$0xff]
  %v1614 = vld [vmem:[%s1605 + $0x40] sm:$0xff]
  %v1615 = vld [vmem:[%s1605 + $0x48] sm:$0xff]
  %v1616 = vld [vmem:[%s1605 + $0x50] sm:$0xff]
  %v1617 = vld [vmem:[%s1605 + $0x58] sm:$0xff]
  %v1618 = vld [vmem:[%s1605 + $0x60] sm:$0xff]
  %v1619 = vld [vmem:[%s1605 + $0x68] sm:$0xff]
  %v1620 = vld [vmem:[%s1605 + $0x70] sm:$0xff]
  %v1621 = vld [vmem:[%s1605 + $0x78] sm:$0xff]
  %1622 = vmatprep.subr.mxu0 0.0
  %1623 = vmatpush1.msra.mxu0 %v1606
  %1624 = vmatprep.subr.mxu0 0.0
  %1625 = vmatpush1.msra.mxu0 %v1607
  %1626 = vmatprep.subr.mxu0 0.0
  %1627 = vmatpush1.msra.mxu0 %v1608
  %1628 = vmatprep.subr.mxu0 0.0
  %1629 = vmatpush1.msra.mxu0 %v1609
  %1630 = vmatprep.subr.mxu0 0.0
  %1631 = vmatpush1.msra.mxu0 %v1610
  %1632 = vmatprep.subr.mxu0 0.0
  %1633 = vmatpush1.msra.mxu0 %v1611
  %1634 = vmatprep.subr.mxu0 0.0
  %1635 = vmatpush1.msra.mxu0 %v1612
  %1636 = vmatprep.subr.mxu0 0.0
  %1637 = vmatpush1.msra.mxu0 %v1613
  %1638 = vmatprep.subr.mxu0 0.0
  %1639 = vmatpush1.msra.mxu0 %v1614
  %1640 = vmatprep.subr.mxu0 0.0
  %1641 = vmatpush1.msra.mxu0 %v1615
  %1642 = vmatprep.subr.mxu0 0.0
  %1643 = vmatpush1.msra.mxu0 %v1616
  %1644 = vmatprep.subr.mxu0 0.0
  %1645 = vmatpush1.msra.mxu0 %v1617
  %1646 = vmatprep.subr.mxu0 0.0
  %1647 = vmatpush1.msra.mxu0 %v1618
  %1648 = vmatprep.subr.mxu0 0.0
  %1649 = vmatpush1.msra.mxu0 %v1619
  %1650 = vmatprep.subr.mxu0 0.0
  %1651 = vmatpush1.msra.mxu0 %v1620
  %1652 = vmatprep.subr.mxu0 0.0
  %1653 = vmatpush1.msra.mxu0 %v1621
  %1654 = vmatprep.subr.mxu0 0.0
  %1655 = vmatpush1.msra.mxu0 0.0
  %1656 = vmatprep.subr.mxu0 0.0
  %1657 = vmatpush1.msra.mxu0 0.0
  %1658 = vmatprep.subr.mxu0 0.0
  %1659 = vmatpush1.msra.mxu0 0.0
  %1660 = vmatprep.subr.mxu0 0.0
  %1661 = vmatpush1.msra.mxu0 0.0
  %1662 = vmatprep.subr.mxu0 0.0
  %1663 = vmatpush1.msra.mxu0 0.0
  %1664 = vmatprep.subr.mxu0 0.0
  %1665 = vmatpush1.msra.mxu0 0.0
  %1666 = vmatprep.subr.mxu0 0.0
  %1667 = vmatpush1.msra.mxu0 0.0
  %1668 = vmatprep.subr.mxu0 0.0
  %1669 = vmatpush1.msra.mxu0 0.0
  %1670 = vmatprep.subr.mxu0 0.0
  %1671 = vmatpush1.msra.mxu0 0.0
  %1672 = vmatprep.subr.mxu0 0.0
  %1673 = vmatpush1.msra.mxu0 0.0
  %1674 = vmatprep.subr.mxu0 0.0
  %1675 = vmatpush1.msra.mxu0 0.0
  %1676 = vmatprep.subr.mxu0 0.0
  %1677 = vmatpush1.msra.mxu0 0.0
  %1678 = vmatprep.subr.mxu0 0.0
  %1679 = vmatpush1.msra.mxu0 0.0
  %1680 = vmatprep.subr.mxu0 0.0
  %1681 = vmatpush1.msra.mxu0 0.0
  %1682 = vmatprep.subr.mxu0 0.0
  %1683 = vmatpush1.msra.mxu0 0.0
  %1684 = vmatprep.subr.mxu0 0.0
  %1685 = vmatpush1.msra.mxu0 0.0
  %1686 = vmatprep.mubr.f32.mxu0 0.0
  %1687 = vmatmul.mubr.f32.gmra.mrb[0].mxu0 %v162
  %v1688 = vpop.f32.mrb[0].mxu0
  %v1689 = vadd.f32 0.0, %v1688
  %v1690 = vpop.f32.mrb[0].mxu0
  %1691 = vmatprep.mubr.f32.mxu0 0.0
  %1692 = vmatmul.mubr.f32.gmra.mrb[0].mxu0 %v167
  %v1693 = vpop.f32.mrb[0].mxu0
  %v1694 = vadd.f32 0.0, %v1693
  %v1695 = vpop.f32.mrb[0].mxu0
  %1696 = vdwg.mxu0
  %s1697 = scalar_lea.vmem %s3, 192
  %1698 = vst.msk [vmem:[%s1697] sm:$0xff] %vm622, %v1689
  %1699 = vst.msk [vmem:[%s1697 + $0x8] sm:$0x3f] %vm624, %v1694
  %1700 = vmatprep.subr.mxu0 0.0
  %1701 = vmatpush1.msra.mxu0 %v1606
  %1702 = vmatprep.subr.mxu0 0.0
  %1703 = vmatpush1.msra.mxu0 %v1607
  %1704 = vmatprep.subr.mxu0 0.0
  %1705 = vmatpush1.msra.mxu0 %v1608
  %1706 = vmatprep.subr.mxu0 0.0
  %1707 = vmatpush1.msra.mxu0 %v1609
  %1708 = vmatprep.subr.mxu0 0.0
  %1709 = vmatpush1.msra.mxu0 %v1610
  %1710 = vmatprep.subr.mxu0 0.0
  %1711 = vmatpush1.msra.mxu0 %v1611
  %1712 = vmatprep.subr.mxu0 0.0
  %1713 = vmatpush1.msra.mxu0 %v1612
  %1714 = vmatprep.subr.mxu0 0.0
  %1715 = vmatpush1.msra.mxu0 %v1613
  %1716 = vmatprep.subr.mxu0 0.0
  %1717 = vmatpush1.msra.mxu0 %v1614
  %1718 = vmatprep.subr.mxu0 0.0
  %1719 = vmatpush1.msra.mxu0 %v1615
  %1720 = vmatprep.subr.mxu0 0.0
  %1721 = vmatpush1.msra.mxu0 %v1616
  %1722 = vmatprep.subr.mxu0 0.0
  %1723 = vmatpush1.msra.mxu0 %v1617
  %1724 = vmatprep.subr.mxu0 0.0
  %1725 = vmatpush1.msra.mxu0 %v1618
  %1726 = vmatprep.subr.mxu0 0.0
  %1727 = vmatpush1.msra.mxu0 %v1619
  %1728 = vmatprep.subr.mxu0 0.0
  %1729 = vmatpush1.msra.mxu0 %v1620
  %1730 = vmatprep.subr.mxu0 0.0
  %1731 = vmatpush1.msra.mxu0 %v1621
  %1732 = vmatprep.subr.mxu0 0.0
  %1733 = vmatpush1.msra.mxu0 0.0
  %1734 = vmatprep.subr.mxu0 0.0
  %1735 = vmatpush1.msra.mxu0 0.0
  %1736 = vmatprep.subr.mxu0 0.0
  %1737 = vmatpush1.msra.mxu0 0.0
  %1738 = vmatprep.subr.mxu0 0.0
  %1739 = vmatpush1.msra.mxu0 0.0
  %1740 = vmatprep.subr.mxu0 0.0
  %1741 = vmatpush1.msra.mxu0 0.0
  %1742 = vmatprep.subr.mxu0 0.0
  %1743 = vmatpush1.msra.mxu0 0.0
  %1744 = vmatprep.subr.mxu0 0.0
  %1745 = vmatpush1.msra.mxu0 0.0
  %1746 = vmatprep.subr.mxu0 0.0
  %1747 = vmatpush1.msra.mxu0 0.0
  %1748 = vmatprep.subr.mxu0 0.0
  %1749 = vmatpush1.msra.mxu0 0.0
  %1750 = vmatprep.subr.mxu0 0.0
  %1751 = vmatpush1.msra.mxu0 0.0
  %1752 = vmatprep.subr.mxu0 0.0
  %1753 = vmatpush1.msra.mxu0 0.0
  %1754 = vmatprep.subr.mxu0 0.0
  %1755 = vmatpush1.msra.mxu0 0.0
  %1756 = vmatprep.subr.mxu0 0.0
  %1757 = vmatpush1.msra.mxu0 0.0
  %1758 = vmatprep.subr.mxu0 0.0
  %1759 = vmatpush1.msra.mxu0 0.0
  %1760 = vmatprep.subr.mxu0 0.0
  %1761 = vmatpush1.msra.mxu0 0.0
  %1762 = vmatprep.subr.mxu0 0.0
  %1763 = vmatpush1.msra.mxu0 0.0
  %1764 = vmatprep.mubr.f32.mxu0 0.0
  %1765 = vmatmul.mubr.f32.gmra.mrb[0].mxu0 %v330
  %v1766 = vpop.f32.mrb[0].mxu0
  %v1767 = vadd.f32 0.0, %v1766
  %v1768 = vpop.f32.mrb[0].mxu0
  %1769 = vmatprep.mubr.f32.mxu0 0.0
  %1770 = vmatmul.mubr.f32.gmra.mrb[0].mxu0 %v335
  %v1771 = vpop.f32.mrb[0].mxu0
  %v1772 = vadd.f32 0.0, %v1771
  %v1773 = vpop.f32.mrb[0].mxu0
  %1774 = vdwg.mxu0
  %1775 = vst.msk [vmem:[%s1697 + $0xe] sm:$0xff] %vm622, %v1767
  %1776 = vst.msk [vmem:[%s1697 + $0x16] sm:$0x3f] %vm624, %v1772
  %1777 = vmatprep.subr.mxu0 0.0
  %1778 = vmatpush1.msra.mxu0 %v1606
  %1779 = vmatprep.subr.mxu0 0.0
  %1780 = vmatpush1.msra.mxu0 %v1607
  %1781 = vmatprep.subr.mxu0 0.0
  %1782 = vmatpush1.msra.mxu0 %v1608
  %1783 = vmatprep.subr.mxu0 0.0
  %1784 = vmatpush1.msra.mxu0 %v1609
  %1785 = vmatprep.subr.mxu0 0.0
  %1786 = vmatpush1.msra.mxu0 %v1610
  %1787 = vmatprep.subr.mxu0 0.0
  %1788 = vmatpush1.msra.mxu0 %v1611
  %1789 = vmatprep.subr.mxu0 0.0
  %1790 = vmatpush1.msra.mxu0 %v1612
  %1791 = vmatprep.subr.mxu0 0.0
  %1792 = vmatpush1.msra.mxu0 %v1613
  %1793 = vmatprep.subr.mxu0 0.0
  %1794 = vmatpush1.msra.mxu0 %v1614
  %1795 = vmatprep.subr.mxu0 0.0
  %1796 = vmatpush1.msra.mxu0 %v1615
  %1797 = vmatprep.subr.mxu0 0.0
  %1798 = vmatpush1.msra.mxu0 %v1616
  %1799 = vmatprep.subr.mxu0 0.0
  %1800 = vmatpush1.msra.mxu0 %v1617
  %1801 = vmatprep.subr.mxu0 0.0
  %1802 = vmatpush1.msra.mxu0 %v1618
  %1803 = vmatprep.subr.mxu0 0.0
  %1804 = vmatpush1.msra.mxu0 %v1619
  %1805 = vmatprep.subr.mxu0 0.0
  %1806 = vmatpush1.msra.mxu0 %v1620
  %1807 = vmatprep.subr.mxu0 0.0
  %1808 = vmatpush1.msra.mxu0 %v1621
  %1809 = vmatprep.subr.mxu0 0.0
  %1810 = vmatpush1.msra.mxu0 0.0
  %1811 = vmatprep.subr.mxu0 0.0
  %1812 = vmatpush1.msra.mxu0 0.0
  %1813 = vmatprep.subr.mxu0 0.0
  %1814 = vmatpush1.msra.mxu0 0.0
  %1815 = vmatprep.subr.mxu0 0.0
  %1816 = vmatpush1.msra.mxu0 0.0
  %1817 = vmatprep.subr.mxu0 0.0
  %1818 = vmatpush1.msra.mxu0 0.0
  %1819 = vmatprep.subr.mxu0 0.0
  %1820 = vmatpush1.msra.mxu0 0.0
  %1821 = vmatprep.subr.mxu0 0.0
  %1822 = vmatpush1.msra.mxu0 0.0
  %1823 = vmatprep.subr.mxu0 0.0
  %1824 = vmatpush1.msra.mxu0 0.0
  %1825 = vmatprep.subr.mxu0 0.0
  %1826 = vmatpush1.msra.mxu0 0.0
  %1827 = vmatprep.subr.mxu0 0.0
  %1828 = vmatpush1.msra.mxu0 0.0
  %1829 = vmatprep.subr.mxu0 0.0
  %1830 = vmatpush1.msra.mxu0 0.0
  %1831 = vmatprep.subr.mxu0 0.0
  %1832 = vmatpush1.msra.mxu0 0.0
  %1833 = vmatprep.subr.mxu0 0.0
  %1834 = vmatpush1.msra.mxu0 0.0
  %1835 = vmatprep.subr.mxu0 0.0
  %1836 = vmatpush1.msra.mxu0 0.0
  %1837 = vmatprep.subr.mxu0 0.0
  %1838 = vmatpush1.msra.mxu0 0.0
  %1839 = vmatprep.subr.mxu0 0.0
  %1840 = vmatpush1.msra.mxu0 0.0
  %1841 = vmatprep.mubr.f32.mxu0 0.0
  %1842 = vmatmul.mubr.f32.gmra.mrb[0].mxu0 %v498
  %v1843 = vpop.f32.mrb[0].mxu0
  %v1844 = vadd.f32 0.0, %v1843
  %v1845 = vpop.f32.mrb[0].mxu0
  %1846 = vmatprep.mubr.f32.mxu0 0.0
  %1847 = vmatmul.mubr.f32.gmra.mrb[0].mxu0 %v503
  %v1848 = vpop.f32.mrb[0].mxu0
  %v1849 = vadd.f32 0.0, %v1848
  %v1850 = vpop.f32.mrb[0].mxu0
  %1851 = vdwg.mxu0
  %1852 = vst.msk [vmem:[%s1697 + $0x1c] sm:$0xff] %vm622, %v1844
  %1853 = vst.msk [vmem:[%s1697 + $0x24] sm:$0x3f] %vm624, %v1849
  %s1854 = scalar_lea.vmem %s2, 640
  %v1855 = vld [vmem:[%s1854] sm:$0xff]
  %v1856 = vld [vmem:[%s1854 + $0x8] sm:$0xff]
  %v1857 = vld [vmem:[%s1854 + $0x10] sm:$0xff]
  %v1858 = vld [vmem:[%s1854 + $0x18] sm:$0xff]
  %v1859 = vld [vmem:[%s1854 + $0x20] sm:$0xff]
  %v1860 = vld [vmem:[%s1854 + $0x28] sm:$0xff]
  %v1861 = vld [vmem:[%s1854 + $0x30] sm:$0xff]
  %v1862 = vld [vmem:[%s1854 + $0x38] sm:$0xff]
  %v1863 = vld [vmem:[%s1854 + $0x40] sm:$0xff]
  %v1864 = vld [vmem:[%s1854 + $0x48] sm:$0xff]
  %v1865 = vld [vmem:[%s1854 + $0x50] sm:$0xff]
  %v1866 = vld [vmem:[%s1854 + $0x58] sm:$0xff]
  %v1867 = vld [vmem:[%s1854 + $0x60] sm:$0xff]
  %v1868 = vld [vmem:[%s1854 + $0x68] sm:$0xff]
  %v1869 = vld [vmem:[%s1854 + $0x70] sm:$0xff]
  %v1870 = vld [vmem:[%s1854 + $0x78] sm:$0xff]
  %v1874 = vrot.slane %v167, 6
  %v1875 = vrot.slane %v172, 6
  %v1876 = vsel %vm800, %v1874, %v1875
  %v1877 = vrot.slane %v177, 6
  %v1878 = vsel %vm800, %v1875, %v1877
  %1881 = vmatprep.subr.mxu0 0.0
  %1882 = vmatpush1.msra.mxu0 %v1855
  %1883 = vmatprep.subr.mxu0 0.0
  %1884 = vmatpush1.msra.mxu0 %v1856
  %1885 = vmatprep.subr.mxu0 0.0
  %1886 = vmatpush1.msra.mxu0 %v1857
  %1887 = vmatprep.subr.mxu0 0.0
  %1888 = vmatpush1.msra.mxu0 %v1858
  %1889 = vmatprep.subr.mxu0 0.0
  %1890 = vmatpush1.msra.mxu0 %v1859
  %1891 = vmatprep.subr.mxu0 0.0
  %1892 = vmatpush1.msra.mxu0 %v1860
  %1893 = vmatprep.subr.mxu0 0.0
  %1894 = vmatpush1.msra.mxu0 %v1861
  %1895 = vmatprep.subr.mxu0 0.0
  %1896 = vmatpush1.msra.mxu0 %v1862
  %1897 = vmatprep.subr.mxu0 0.0
  %1898 = vmatpush1.msra.mxu0 %v1863
  %1899 = vmatprep.subr.mxu0 0.0
  %1900 = vmatpush1.msra.mxu0 %v1864
  %1901 = vmatprep.subr.mxu0 0.0
  %1902 = vmatpush1.msra.mxu0 %v1865
  %1903 = vmatprep.subr.mxu0 0.0
  %1904 = vmatpush1.msra.mxu0 %v1866
  %1905 = vmatprep.subr.mxu0 0.0
  %1906 = vmatpush1.msra.mxu0 %v1867
  %1907 = vmatprep.subr.mxu0 0.0
  %1908 = vmatpush1.msra.mxu0 %v1868
  %1909 = vmatprep.subr.mxu0 0.0
  %1910 = vmatpush1.msra.mxu0 %v1869
  %1911 = vmatprep.subr.mxu0 0.0
  %1912 = vmatpush1.msra.mxu0 %v1870
  %1913 = vmatprep.subr.mxu0 0.0
  %1914 = vmatpush1.msra.mxu0 0.0
  %1915 = vmatprep.subr.mxu0 0.0
  %1916 = vmatpush1.msra.mxu0 0.0
  %1917 = vmatprep.subr.mxu0 0.0
  %1918 = vmatpush1.msra.mxu0 0.0
  %1919 = vmatprep.subr.mxu0 0.0
  %1920 = vmatpush1.msra.mxu0 0.0
  %1921 = vmatprep.subr.mxu0 0.0
  %1922 = vmatpush1.msra.mxu0 0.0
  %1923 = vmatprep.subr.mxu0 0.0
  %1924 = vmatpush1.msra.mxu0 0.0
  %1925 = vmatprep.subr.mxu0 0.0
  %1926 = vmatpush1.msra.mxu0 0.0
  %1927 = vmatprep.subr.mxu0 0.0
  %1928 = vmatpush1.msra.mxu0 0.0
  %1929 = vmatprep.subr.mxu0 0.0
  %1930 = vmatpush1.msra.mxu0 0.0
  %1931 = vmatprep.subr.mxu0 0.0
  %1932 = vmatpush1.msra.mxu0 0.0
  %1933 = vmatprep.subr.mxu0 0.0
  %1934 = vmatpush1.msra.mxu0 0.0
  %1935 = vmatprep.subr.mxu0 0.0
  %1936 = vmatpush1.msra.mxu0 0.0
  %1937 = vmatprep.subr.mxu0 0.0
  %1938 = vmatpush1.msra.mxu0 0.0
  %1939 = vmatprep.subr.mxu0 0.0
  %1940 = vmatpush1.msra.mxu0 0.0
  %1941 = vmatprep.subr.mxu0 0.0
  %1942 = vmatpush1.msra.mxu0 0.0
  %1943 = vmatprep.subr.mxu0 0.0
  %1944 = vmatpush1.msra.mxu0 0.0
  %1945 = vmatprep.mubr.f32.mxu0 0.0
  %1946 = vmatmul.mubr.f32.gmra.mrb[0].mxu0 %v1876
  %v1947 = vpop.f32.mrb[0].mxu0
  %v1948 = vadd.f32 0.0, %v1947
  %v1949 = vpop.f32.mrb[0].mxu0
  %1950 = vmatprep.mubr.f32.mxu0 0.0
  %1951 = vmatmul.mubr.f32.gmra.mrb[0].mxu0 %v1878
  %v1952 = vpop.f32.mrb[0].mxu0
  %v1953 = vadd.f32 0.0, %v1952
  %v1954 = vpop.f32.mrb[0].mxu0
  %1955 = vdwg.mxu0
  %s1956 = scalar_lea.vmem %s3, 240
  %1957 = vst.msk [vmem:[%s1956] sm:$0xff] %vm622, %v1948
  %1958 = vst.msk [vmem:[%s1956 + $0x8] sm:$0x3f] %vm624, %v1953
  %v1962 = vrot.slane %v335, 6
  %v1963 = vrot.slane %v340, 6
  %v1964 = vsel %vm800, %v1962, %v1963
  %v1965 = vrot.slane %v345, 6
  %v1966 = vsel %vm800, %v1963, %v1965
  %1969 = vmatprep.subr.mxu0 0.0
  %1970 = vmatpush1.msra.mxu0 %v1855
  %1971 = vmatprep.subr.mxu0 0.0
  %1972 = vmatpush1.msra.mxu0 %v1856
  %1973 = vmatprep.subr.mxu0 0.0
  %1974 = vmatpush1.msra.mxu0 %v1857
  %1975 = vmatprep.subr.mxu0 0.0
  %1976 = vmatpush1.msra.mxu0 %v1858
  %1977 = vmatprep.subr.mxu0 0.0
  %1978 = vmatpush1.msra.mxu0 %v1859
  %1979 = vmatprep.subr.mxu0 0.0
  %1980 = vmatpush1.msra.mxu0 %v1860
  %1981 = vmatprep.subr.mxu0 0.0
  %1982 = vmatpush1.msra.mxu0 %v1861
  %1983 = vmatprep.subr.mxu0 0.0
  %1984 = vmatpush1.msra.mxu0 %v1862
  %1985 = vmatprep.subr.mxu0 0.0
  %1986 = vmatpush1.msra.mxu0 %v1863
  %1987 = vmatprep.subr.mxu0 0.0
  %1988 = vmatpush1.msra.mxu0 %v1864
  %1989 = vmatprep.subr.mxu0 0.0
  %1990 = vmatpush1.msra.mxu0 %v1865
  %1991 = vmatprep.subr.mxu0 0.0
  %1992 = vmatpush1.msra.mxu0 %v1866
  %1993 = vmatprep.subr.mxu0 0.0
  %1994 = vmatpush1.msra.mxu0 %v1867
  %1995 = vmatprep.subr.mxu0 0.0
  %1996 = vmatpush1.msra.mxu0 %v1868
  %1997 = vmatprep.subr.mxu0 0.0
  %1998 = vmatpush1.msra.mxu0 %v1869
  %1999 = vmatprep.subr.mxu0 0.0
  %2000 = vmatpush1.msra.mxu0 %v1870
  %2001 = vmatprep.subr.mxu0 0.0
  %2002 = vmatpush1.msra.mxu0 0.0
  %2003 = vmatprep.subr.mxu0 0.0
  %2004 = vmatpush1.msra.mxu0 0.0
  %2005 = vmatprep.subr.mxu0 0.0
  %2006 = vmatpush1.msra.mxu0 0.0
  %2007 = vmatprep.subr.mxu0 0.0
  %2008 = vmatpush1.msra.mxu0 0.0
  %2009 = vmatprep.subr.mxu0 0.0
  %2010 = vmatpush1.msra.mxu0 0.0
  %2011 = vmatprep.subr.mxu0 0.0
  %2012 = vmatpush1.msra.mxu0 0.0
  %2013 = vmatprep.subr.mxu0 0.0
  %2014 = vmatpush1.msra.mxu0 0.0
  %2015 = vmatprep.subr.mxu0 0.0
  %2016 = vmatpush1.msra.mxu0 0.0
  %2017 = vmatprep.subr.mxu0 0.0
  %2018 = vmatpush1.msra.mxu0 0.0
  %2019 = vmatprep.subr.mxu0 0.0
  %2020 = vmatpush1.msra.mxu0 0.0
  %2021 = vmatprep.subr.mxu0 0.0
  %2022 = vmatpush1.msra.mxu0 0.0
  %2023 = vmatprep.subr.mxu0 0.0
  %2024 = vmatpush1.msra.mxu0 0.0
  %2025 = vmatprep.subr.mxu0 0.0
  %2026 = vmatpush1.msra.mxu0 0.0
  %2027 = vmatprep.subr.mxu0 0.0
  %2028 = vmatpush1.msra.mxu0 0.0
  %2029 = vmatprep.subr.mxu0 0.0
  %2030 = vmatpush1.msra.mxu0 0.0
  %2031 = vmatprep.subr.mxu0 0.0
  %2032 = vmatpush1.msra.mxu0 0.0
  %2033 = vmatprep.mubr.f32.mxu0 0.0
  %2034 = vmatmul.mubr.f32.gmra.mrb[0].mxu0 %v1964
  %v2035 = vpop.f32.mrb[0].mxu0
  %v2036 = vadd.f32 0.0, %v2035
  %v2037 = vpop.f32.mrb[0].mxu0
  %2038 = vmatprep.mubr.f32.mxu0 0.0
  %2039 = vmatmul.mubr.f32.gmra.mrb[0].mxu0 %v1966
  %v2040 = vpop.f32.mrb[0].mxu0
  %v2041 = vadd.f32 0.0, %v2040
  %v2042 = vpop.f32.mrb[0].mxu0
  %2043 = vdwg.mxu0
  %2044 = vst.msk [vmem:[%s1956 + $0xe] sm:$0xff] %vm622, %v2036
  %2045 = vst.msk [vmem:[%s1956 + $0x16] sm:$0x3f] %vm624, %v2041
  %v2049 = vrot.slane %v503, 6
  %v2050 = vrot.slane %v508, 6
  %v2051 = vsel %vm800, %v2049, %v2050
  %v2052 = vrot.slane %v513, 6
  %v2053 = vsel %vm800, %v2050, %v2052
  %2056 = vmatprep.subr.mxu0 0.0
  %2057 = vmatpush1.msra.mxu0 %v1855
  %2058 = vmatprep.subr.mxu0 0.0
  %2059 = vmatpush1.msra.mxu0 %v1856
  %2060 = vmatprep.subr.mxu0 0.0
  %2061 = vmatpush1.msra.mxu0 %v1857
  %2062 = vmatprep.subr.mxu0 0.0
  %2063 = vmatpush1.msra.mxu0 %v1858
  %2064 = vmatprep.subr.mxu0 0.0
  %2065 = vmatpush1.msra.mxu0 %v1859
  %2066 = vmatprep.subr.mxu0 0.0
  %2067 = vmatpush1.msra.mxu0 %v1860
  %2068 = vmatprep.subr.mxu0 0.0
  %2069 = vmatpush1.msra.mxu0 %v1861
  %2070 = vmatprep.subr.mxu0 0.0
  %2071 = vmatpush1.msra.mxu0 %v1862
  %2072 = vmatprep.subr.mxu0 0.0
  %2073 = vmatpush1.msra.mxu0 %v1863
  %2074 = vmatprep.subr.mxu0 0.0
  %2075 = vmatpush1.msra.mxu0 %v1864
  %2076 = vmatprep.subr.mxu0 0.0
  %2077 = vmatpush1.msra.mxu0 %v1865
  %2078 = vmatprep.subr.mxu0 0.0
  %2079 = vmatpush1.msra.mxu0 %v1866
  %2080 = vmatprep.subr.mxu0 0.0
  %2081 = vmatpush1.msra.mxu0 %v1867
  %2082 = vmatprep.subr.mxu0 0.0
  %2083 = vmatpush1.msra.mxu0 %v1868
  %2084 = vmatprep.subr.mxu0 0.0
  %2085 = vmatpush1.msra.mxu0 %v1869
  %2086 = vmatprep.subr.mxu0 0.0
  %2087 = vmatpush1.msra.mxu0 %v1870
  %2088 = vmatprep.subr.mxu0 0.0
  %2089 = vmatpush1.msra.mxu0 0.0
  %2090 = vmatprep.subr.mxu0 0.0
  %2091 = vmatpush1.msra.mxu0 0.0
  %2092 = vmatprep.subr.mxu0 0.0
  %2093 = vmatpush1.msra.mxu0 0.0
  %2094 = vmatprep.subr.mxu0 0.0
  %2095 = vmatpush1.msra.mxu0 0.0
  %2096 = vmatprep.subr.mxu0 0.0
  %2097 = vmatpush1.msra.mxu0 0.0
  %2098 = vmatprep.subr.mxu0 0.0
  %2099 = vmatpush1.msra.mxu0 0.0
  %2100 = vmatprep.subr.mxu0 0.0
  %2101 = vmatpush1.msra.mxu0 0.0
  %2102 = vmatprep.subr.mxu0 0.0
  %2103 = vmatpush1.msra.mxu0 0.0
  %2104 = vmatprep.subr.mxu0 0.0
  %2105 = vmatpush1.msra.mxu0 0.0
  %2106 = vmatprep.subr.mxu0 0.0
  %2107 = vmatpush1.msra.mxu0 0.0
  %2108 = vmatprep.subr.mxu0 0.0
  %2109 = vmatpush1.msra.mxu0 0.0
  %2110 = vmatprep.subr.mxu0 0.0
  %2111 = vmatpush1.msra.mxu0 0.0
  %2112 = vmatprep.subr.mxu0 0.0
  %2113 = vmatpush1.msra.mxu0 0.0
  %2114 = vmatprep.subr.mxu0 0.0
  %2115 = vmatpush1.msra.mxu0 0.0
  %2116 = vmatprep.subr.mxu0 0.0
  %2117 = vmatpush1.msra.mxu0 0.0
  %2118 = vmatprep.subr.mxu0 0.0
  %2119 = vmatpush1.msra.mxu0 0.0
  %2120 = vmatprep.mubr.f32.mxu0 0.0
  %2121 = vmatmul.mubr.f32.gmra.mrb[0].mxu0 %v2051
  %v2122 = vpop.f32.mrb[0].mxu0
  %v2123 = vadd.f32 0.0, %v2122
  %v2124 = vpop.f32.mrb[0].mxu0
  %2125 = vmatprep.mubr.f32.mxu0 0.0
  %2126 = vmatmul.mubr.f32.gmra.mrb[0].mxu0 %v2053
  %v2127 = vpop.f32.mrb[0].mxu0
  %v2128 = vadd.f32 0.0, %v2127
  %v2129 = vpop.f32.mrb[0].mxu0
  %2130 = vdwg.mxu0
  %2131 = vst.msk [vmem:[%s1956 + $0x1c] sm:$0xff] %vm622, %v2123
  %2132 = vst.msk [vmem:[%s1956 + $0x24] sm:$0x3f] %vm624, %v2128
  %s2133 = scalar_lea.vmem %s2, 768
  %v2134 = vld [vmem:[%s2133] sm:$0xff]
  %v2135 = vld [vmem:[%s2133 + $0x8] sm:$0xff]
  %v2136 = vld [vmem:[%s2133 + $0x10] sm:$0xff]
  %v2137 = vld [vmem:[%s2133 + $0x18] sm:$0xff]
  %v2138 = vld [vmem:[%s2133 + $0x20] sm:$0xff]
  %v2139 = vld [vmem:[%s2133 + $0x28] sm:$0xff]
  %v2140 = vld [vmem:[%s2133 + $0x30] sm:$0xff]
  %v2141 = vld [vmem:[%s2133 + $0x38] sm:$0xff]
  %v2142 = vld [vmem:[%s2133 + $0x40] sm:$0xff]
  %v2143 = vld [vmem:[%s2133 + $0x48] sm:$0xff]
  %v2144 = vld [vmem:[%s2133 + $0x50] sm:$0xff]
  %v2145 = vld [vmem:[%s2133 + $0x58] sm:$0xff]
  %v2146 = vld [vmem:[%s2133 + $0x60] sm:$0xff]
  %v2147 = vld [vmem:[%s2133 + $0x68] sm:$0xff]
  %v2148 = vld [vmem:[%s2133 + $0x70] sm:$0xff]
  %v2149 = vld [vmem:[%s2133 + $0x78] sm:$0xff]
  %v2152 = vrot.slane %v177, 4
  %v2153 = vrot.slane %v182, 4
  %v2154 = vsel %vm1079, %v2152, %v2153
  %v2155 = vrot.slane %v187, 4
  %v2156 = vsel %vm1079, %v2153, %v2155
  %2159 = vmatprep.subr.mxu0 0.0
  %2160 = vmatpush1.msra.mxu0 %v2134
  %2161 = vmatprep.subr.mxu0 0.0
  %2162 = vmatpush1.msra.mxu0 %v2135
  %2163 = vmatprep.subr.mxu0 0.0
  %2164 = vmatpush1.msra.mxu0 %v2136
  %2165 = vmatprep.subr.mxu0 0.0
  %2166 = vmatpush1.msra.mxu0 %v2137
  %2167 = vmatprep.subr.mxu0 0.0
  %2168 = vmatpush1.msra.mxu0 %v2138
  %2169 = vmatprep.subr.mxu0 0.0
  %2170 = vmatpush1.msra.mxu0 %v2139
  %2171 = vmatprep.subr.mxu0 0.0
  %2172 = vmatpush1.msra.mxu0 %v2140
  %2173 = vmatprep.subr.mxu0 0.0
  %2174 = vmatpush1.msra.mxu0 %v2141
  %2175 = vmatprep.subr.mxu0 0.0
  %2176 = vmatpush1.msra.mxu0 %v2142
  %2177 = vmatprep.subr.mxu0 0.0
  %2178 = vmatpush1.msra.mxu0 %v2143
  %2179 = vmatprep.subr.mxu0 0.0
  %2180 = vmatpush1.msra.mxu0 %v2144
  %2181 = vmatprep.subr.mxu0 0.0
  %2182 = vmatpush1.msra.mxu0 %v2145
  %2183 = vmatprep.subr.mxu0 0.0
  %2184 = vmatpush1.msra.mxu0 %v2146
  %2185 = vmatprep.subr.mxu0 0.0
  %2186 = vmatpush1.msra.mxu0 %v2147
  %2187 = vmatprep.subr.mxu0 0.0
  %2188 = vmatpush1.msra.mxu0 %v2148
  %2189 = vmatprep.subr.mxu0 0.0
  %2190 = vmatpush1.msra.mxu0 %v2149
  %2191 = vmatprep.subr.mxu0 0.0
  %2192 = vmatpush1.msra.mxu0 0.0
  %2193 = vmatprep.subr.mxu0 0.0
  %2194 = vmatpush1.msra.mxu0 0.0
  %2195 = vmatprep.subr.mxu0 0.0
  %2196 = vmatpush1.msra.mxu0 0.0
  %2197 = vmatprep.subr.mxu0 0.0
  %2198 = vmatpush1.msra.mxu0 0.0
  %2199 = vmatprep.subr.mxu0 0.0
  %2200 = vmatpush1.msra.mxu0 0.0
  %2201 = vmatprep.subr.mxu0 0.0
  %2202 = vmatpush1.msra.mxu0 0.0
  %2203 = vmatprep.subr.mxu0 0.0
  %2204 = vmatpush1.msra.mxu0 0.0
  %2205 = vmatprep.subr.mxu0 0.0
  %2206 = vmatpush1.msra.mxu0 0.0
  %2207 = vmatprep.subr.mxu0 0.0
  %2208 = vmatpush1.msra.mxu0 0.0
  %2209 = vmatprep.subr.mxu0 0.0
  %2210 = vmatpush1.msra.mxu0 0.0
  %2211 = vmatprep.subr.mxu0 0.0
  %2212 = vmatpush1.msra.mxu0 0.0
  %2213 = vmatprep.subr.mxu0 0.0
  %2214 = vmatpush1.msra.mxu0 0.0
  %2215 = vmatprep.subr.mxu0 0.0
  %2216 = vmatpush1.msra.mxu0 0.0
  %2217 = vmatprep.subr.mxu0 0.0
  %2218 = vmatpush1.msra.mxu0 0.0
  %2219 = vmatprep.subr.mxu0 0.0
  %2220 = vmatpush1.msra.mxu0 0.0
  %2221 = vmatprep.subr.mxu0 0.0
  %2222 = vmatpush1.msra.mxu0 0.0
  %2223 = vmatprep.mubr.f32.mxu0 0.0
  %2224 = vmatmul.mubr.f32.gmra.mrb[0].mxu0 %v2154
  %v2225 = vpop.f32.mrb[0].mxu0
  %v2226 = vadd.f32 0.0, %v2225
  %v2227 = vpop.f32.mrb[0].mxu0
  %2228 = vmatprep.mubr.f32.mxu0 0.0
  %2229 = vmatmul.mubr.f32.gmra.mrb[0].mxu0 %v2156
  %v2230 = vpop.f32.mrb[0].mxu0
  %v2231 = vadd.f32 0.0, %v2230
  %v2232 = vpop.f32.mrb[0].mxu0
  %2233 = vdwg.mxu0
  %s2234 = scalar_lea.vmem %s3, 288
  %2235 = vst.msk [vmem:[%s2234] sm:$0xff] %vm622, %v2226
  %2236 = vst.msk [vmem:[%s2234 + $0x8] sm:$0x3f] %vm624, %v2231
  %v2239 = vrot.slane %v345, 4
  %v2240 = vrot.slane %v350, 4
  %v2241 = vsel %vm1079, %v2239, %v2240
  %v2242 = vrot.slane %v355, 4
  %v2243 = vsel %vm1079, %v2240, %v2242
  %2246 = vmatprep.subr.mxu0 0.0
  %2247 = vmatpush1.msra.mxu0 %v2134
  %2248 = vmatprep.subr.mxu0 0.0
  %2249 = vmatpush1.msra.mxu0 %v2135
  %2250 = vmatprep.subr.mxu0 0.0
  %2251 = vmatpush1.msra.mxu0 %v2136
  %2252 = vmatprep.subr.mxu0 0.0
  %2253 = vmatpush1.msra.mxu0 %v2137
  %2254 = vmatprep.subr.mxu0 0.0
  %2255 = vmatpush1.msra.mxu0 %v2138
  %2256 = vmatprep.subr.mxu0 0.0
  %2257 = vmatpush1.msra.mxu0 %v2139
  %2258 = vmatprep.subr.mxu0 0.0
  %2259 = vmatpush1.msra.mxu0 %v2140
  %2260 = vmatprep.subr.mxu0 0.0
  %2261 = vmatpush1.msra.mxu0 %v2141
  %2262 = vmatprep.subr.mxu0 0.0
  %2263 = vmatpush1.msra.mxu0 %v2142
  %2264 = vmatprep.subr.mxu0 0.0
  %2265 = vmatpush1.msra.mxu0 %v2143
  %2266 = vmatprep.subr.mxu0 0.0
  %2267 = vmatpush1.msra.mxu0 %v2144
  %2268 = vmatprep.subr.mxu0 0.0
  %2269 = vmatpush1.msra.mxu0 %v2145
  %2270 = vmatprep.subr.mxu0 0.0
  %2271 = vmatpush1.msra.mxu0 %v2146
  %2272 = vmatprep.subr.mxu0 0.0
  %2273 = vmatpush1.msra.mxu0 %v2147
  %2274 = vmatprep.subr.mxu0 0.0
  %2275 = vmatpush1.msra.mxu0 %v2148
  %2276 = vmatprep.subr.mxu0 0.0
  %2277 = vmatpush1.msra.mxu0 %v2149
  %2278 = vmatprep.subr.mxu0 0.0
  %2279 = vmatpush1.msra.mxu0 0.0
  %2280 = vmatprep.subr.mxu0 0.0
  %2281 = vmatpush1.msra.mxu0 0.0
  %2282 = vmatprep.subr.mxu0 0.0
  %2283 = vmatpush1.msra.mxu0 0.0
  %2284 = vmatprep.subr.mxu0 0.0
  %2285 = vmatpush1.msra.mxu0 0.0
  %2286 = vmatprep.subr.mxu0 0.0
  %2287 = vmatpush1.msra.mxu0 0.0
  %2288 = vmatprep.subr.mxu0 0.0
  %2289 = vmatpush1.msra.mxu0 0.0
  %2290 = vmatprep.subr.mxu0 0.0
  %2291 = vmatpush1.msra.mxu0 0.0
  %2292 = vmatprep.subr.mxu0 0.0
  %2293 = vmatpush1.msra.mxu0 0.0
  %2294 = vmatprep.subr.mxu0 0.0
  %2295 = vmatpush1.msra.mxu0 0.0
  %2296 = vmatprep.subr.mxu0 0.0
  %2297 = vmatpush1.msra.mxu0 0.0
  %2298 = vmatprep.subr.mxu0 0.0
  %2299 = vmatpush1.msra.mxu0 0.0
  %2300 = vmatprep.subr.mxu0 0.0
  %2301 = vmatpush1.msra.mxu0 0.0
  %2302 = vmatprep.subr.mxu0 0.0
  %2303 = vmatpush1.msra.mxu0 0.0
  %2304 = vmatprep.subr.mxu0 0.0
  %2305 = vmatpush1.msra.mxu0 0.0
  %2306 = vmatprep.subr.mxu0 0.0
  %2307 = vmatpush1.msra.mxu0 0.0
  %2308 = vmatprep.subr.mxu0 0.0
  %2309 = vmatpush1.msra.mxu0 0.0
  %2310 = vmatprep.mubr.f32.mxu0 0.0
  %2311 = vmatmul.mubr.f32.gmra.mrb[0].mxu0 %v2241
  %v2312 = vpop.f32.mrb[0].mxu0
  %v2313 = vadd.f32 0.0, %v2312
  %v2314 = vpop.f32.mrb[0].mxu0
  %2315 = vmatprep.mubr.f32.mxu0 0.0
  %2316 = vmatmul.mubr.f32.gmra.mrb[0].mxu0 %v2243
  %v2317 = vpop.f32.mrb[0].mxu0
  %v2318 = vadd.f32 0.0, %v2317
  %v2319 = vpop.f32.mrb[0].mxu0
  %2320 = vdwg.mxu0
  %2321 = vst.msk [vmem:[%s2234 + $0xe] sm:$0xff] %vm622, %v2313
  %2322 = vst.msk [vmem:[%s2234 + $0x16] sm:$0x3f] %vm624, %v2318
  %v2325 = vrot.slane %v513, 4
  %v2326 = vrot.slane %v518, 4
  %v2327 = vsel %vm1079, %v2325, %v2326
  %v2328 = vrot.slane %v523, 4
  %v2329 = vsel %vm1079, %v2326, %v2328
  %2332 = vmatprep.subr.mxu0 0.0
  %2333 = vmatpush1.msra.mxu0 %v2134
  %2334 = vmatprep.subr.mxu0 0.0
  %2335 = vmatpush1.msra.mxu0 %v2135
  %2336 = vmatprep.subr.mxu0 0.0
  %2337 = vmatpush1.msra.mxu0 %v2136
  %2338 = vmatprep.subr.mxu0 0.0
  %2339 = vmatpush1.msra.mxu0 %v2137
  %2340 = vmatprep.subr.mxu0 0.0
  %2341 = vmatpush1.msra.mxu0 %v2138
  %2342 = vmatprep.subr.mxu0 0.0
  %2343 = vmatpush1.msra.mxu0 %v2139
  %2344 = vmatprep.subr.mxu0 0.0
  %2345 = vmatpush1.msra.mxu0 %v2140
  %2346 = vmatprep.subr.mxu0 0.0
  %2347 = vmatpush1.msra.mxu0 %v2141
  %2348 = vmatprep.subr.mxu0 0.0
  %2349 = vmatpush1.msra.mxu0 %v2142
  %2350 = vmatprep.subr.mxu0 0.0
  %2351 = vmatpush1.msra.mxu0 %v2143
  %2352 = vmatprep.subr.mxu0 0.0
  %2353 = vmatpush1.msra.mxu0 %v2144
  %2354 = vmatprep.subr.mxu0 0.0
  %2355 = vmatpush1.msra.mxu0 %v2145
  %2356 = vmatprep.subr.mxu0 0.0
  %2357 = vmatpush1.msra.mxu0 %v2146
  %2358 = vmatprep.subr.mxu0 0.0
  %2359 = vmatpush1.msra.mxu0 %v2147
  %2360 = vmatprep.subr.mxu0 0.0
  %2361 = vmatpush1.msra.mxu0 %v2148
  %2362 = vmatprep.subr.mxu0 0.0
  %2363 = vmatpush1.msra.mxu0 %v2149
  %2364 = vmatprep.subr.mxu0 0.0
  %2365 = vmatpush1.msra.mxu0 0.0
  %2366 = vmatprep.subr.mxu0 0.0
  %2367 = vmatpush1.msra.mxu0 0.0
  %2368 = vmatprep.subr.mxu0 0.0
  %2369 = vmatpush1.msra.mxu0 0.0
  %2370 = vmatprep.subr.mxu0 0.0
  %2371 = vmatpush1.msra.mxu0 0.0
  %2372 = vmatprep.subr.mxu0 0.0
  %2373 = vmatpush1.msra.mxu0 0.0
  %2374 = vmatprep.subr.mxu0 0.0
  %2375 = vmatpush1.msra.mxu0 0.0
  %2376 = vmatprep.subr.mxu0 0.0
  %2377 = vmatpush1.msra.mxu0 0.0
  %2378 = vmatprep.subr.mxu0 0.0
  %2379 = vmatpush1.msra.mxu0 0.0
  %2380 = vmatprep.subr.mxu0 0.0
  %2381 = vmatpush1.msra.mxu0 0.0
  %2382 = vmatprep.subr.mxu0 0.0
  %2383 = vmatpush1.msra.mxu0 0.0
  %2384 = vmatprep.subr.mxu0 0.0
  %2385 = vmatpush1.msra.mxu0 0.0
  %2386 = vmatprep.subr.mxu0 0.0
  %2387 = vmatpush1.msra.mxu0 0.0
  %2388 = vmatprep.subr.mxu0 0.0
  %2389 = vmatpush1.msra.mxu0 0.0
  %2390 = vmatprep.subr.mxu0 0.0
  %2391 = vmatpush1.msra.mxu0 0.0
  %2392 = vmatprep.subr.mxu0 0.0
  %2393 = vmatpush1.msra.mxu0 0.0
  %2394 = vmatprep.subr.mxu0 0.0
  %2395 = vmatpush1.msra.mxu0 0.0
  %2396 = vmatprep.mubr.f32.mxu0 0.0
  %2397 = vmatmul.mubr.f32.gmra.mrb[0].mxu0 %v2327
  %v2398 = vpop.f32.mrb[0].mxu0
  %v2399 = vadd.f32 0.0, %v2398
  %v2400 = vpop.f32.mrb[0].mxu0
  %2401 = vmatprep.mubr.f32.mxu0 0.0
  %2402 = vmatmul.mubr.f32.gmra.mrb[0].mxu0 %v2329
  %v2403 = vpop.f32.mrb[0].mxu0
  %v2404 = vadd.f32 0.0, %v2403
  %v2405 = vpop.f32.mrb[0].mxu0
  %2406 = vdwg.mxu0
  %2407 = vst.msk [vmem:[%s2234 + $0x1c] sm:$0xff] %vm622, %v2399
  %2408 = vst.msk [vmem:[%s2234 + $0x24] sm:$0x3f] %vm624, %v2404
  %s2409 = scalar_lea.vmem %s2, 896
  %v2410 = vld [vmem:[%s2409] sm:$0xff]
  %v2411 = vld [vmem:[%s2409 + $0x8] sm:$0xff]
  %v2412 = vld [vmem:[%s2409 + $0x10] sm:$0xff]
  %v2413 = vld [vmem:[%s2409 + $0x18] sm:$0xff]
  %v2414 = vld [vmem:[%s2409 + $0x20] sm:$0xff]
  %v2415 = vld [vmem:[%s2409 + $0x28] sm:$0xff]
  %v2416 = vld [vmem:[%s2409 + $0x30] sm:$0xff]
  %v2417 = vld [vmem:[%s2409 + $0x38] sm:$0xff]
  %v2418 = vld [vmem:[%s2409 + $0x40] sm:$0xff]
  %v2419 = vld [vmem:[%s2409 + $0x48] sm:$0xff]
  %v2420 = vld [vmem:[%s2409 + $0x50] sm:$0xff]
  %v2421 = vld [vmem:[%s2409 + $0x58] sm:$0xff]
  %v2422 = vld [vmem:[%s2409 + $0x60] sm:$0xff]
  %v2423 = vld [vmem:[%s2409 + $0x68] sm:$0xff]
  %v2424 = vld [vmem:[%s2409 + $0x70] sm:$0xff]
  %v2425 = vld [vmem:[%s2409 + $0x78] sm:$0xff]
  %v2427 = vrot.slane %v187, 2
  %v2428 = vrot.slane %v192, 2
  %v2429 = vsel %vm1355, %v2427, %v2428
  %2432 = vmatprep.subr.mxu0 0.0
  %2433 = vmatpush1.msra.mxu0 %v2410
  %2434 = vmatprep.subr.mxu0 0.0
  %2435 = vmatpush1.msra.mxu0 %v2411
  %2436 = vmatprep.subr.mxu0 0.0
  %2437 = vmatpush1.msra.mxu0 %v2412
  %2438 = vmatprep.subr.mxu0 0.0
  %2439 = vmatpush1.msra.mxu0 %v2413
  %2440 = vmatprep.subr.mxu0 0.0
  %2441 = vmatpush1.msra.mxu0 %v2414
  %2442 = vmatprep.subr.mxu0 0.0
  %2443 = vmatpush1.msra.mxu0 %v2415
  %2444 = vmatprep.subr.mxu0 0.0
  %2445 = vmatpush1.msra.mxu0 %v2416
  %2446 = vmatprep.subr.mxu0 0.0
  %2447 = vmatpush1.msra.mxu0 %v2417
  %2448 = vmatprep.subr.mxu0 0.0
  %2449 = vmatpush1.msra.mxu0 %v2418
  %2450 = vmatprep.subr.mxu0 0.0
  %2451 = vmatpush1.msra.mxu0 %v2419
  %2452 = vmatprep.subr.mxu0 0.0
  %2453 = vmatpush1.msra.mxu0 %v2420
  %2454 = vmatprep.subr.mxu0 0.0
  %2455 = vmatpush1.msra.mxu0 %v2421
  %2456 = vmatprep.subr.mxu0 0.0
  %2457 = vmatpush1.msra.mxu0 %v2422
  %2458 = vmatprep.subr.mxu0 0.0
  %2459 = vmatpush1.msra.mxu0 %v2423
  %2460 = vmatprep.subr.mxu0 0.0
  %2461 = vmatpush1.msra.mxu0 %v2424
  %2462 = vmatprep.subr.mxu0 0.0
  %2463 = vmatpush1.msra.mxu0 %v2425
  %2464 = vmatprep.subr.mxu0 0.0
  %2465 = vmatpush1.msra.mxu0 0.0
  %2466 = vmatprep.subr.mxu0 0.0
  %2467 = vmatpush1.msra.mxu0 0.0
  %2468 = vmatprep.subr.mxu0 0.0
  %2469 = vmatpush1.msra.mxu0 0.0
  %2470 = vmatprep.subr.mxu0 0.0
  %2471 = vmatpush1.msra.mxu0 0.0
  %2472 = vmatprep.subr.mxu0 0.0
  %2473 = vmatpush1.msra.mxu0 0.0
  %2474 = vmatprep.subr.mxu0 0.0
  %2475 = vmatpush1.msra.mxu0 0.0
  %2476 = vmatprep.subr.mxu0 0.0
  %2477 = vmatpush1.msra.mxu0 0.0
  %2478 = vmatprep.subr.mxu0 0.0
  %2479 = vmatpush1.msra.mxu0 0.0
  %2480 = vmatprep.subr.mxu0 0.0
  %2481 = vmatpush1.msra.mxu0 0.0
  %2482 = vmatprep.subr.mxu0 0.0
  %2483 = vmatpush1.msra.mxu0 0.0
  %2484 = vmatprep.subr.mxu0 0.0
  %2485 = vmatpush1.msra.mxu0 0.0
  %2486 = vmatprep.subr.mxu0 0.0
  %2487 = vmatpush1.msra.mxu0 0.0
  %2488 = vmatprep.subr.mxu0 0.0
  %2489 = vmatpush1.msra.mxu0 0.0
  %2490 = vmatprep.subr.mxu0 0.0
  %2491 = vmatpush1.msra.mxu0 0.0
  %2492 = vmatprep.subr.mxu0 0.0
  %2493 = vmatpush1.msra.mxu0 0.0
  %2494 = vmatprep.subr.mxu0 0.0
  %2495 = vmatpush1.msra.mxu0 0.0
  %2496 = vmatprep.mubr.f32.mxu0 0.0
  %2497 = vmatmul.mubr.f32.gmra.mrb[0].mxu0 %v2429
  %v2498 = vpop.f32.mrb[0].mxu0
  %v2499 = vadd.f32 0.0, %v2498
  %v2500 = vpop.f32.mrb[0].mxu0
  %2501 = vmatprep.mubr.f32.mxu0 0.0
  %2502 = vmatmul.mubr.f32.gmra.mrb[0].mxu0 %v2428
  %v2503 = vpop.f32.mrb[0].mxu0
  %v2504 = vadd.f32 0.0, %v2503
  %v2505 = vpop.f32.mrb[0].mxu0
  %2506 = vdwg.mxu0
  %s2507 = scalar_lea.vmem %s3, 336
  %2508 = vst.msk [vmem:[%s2507] sm:$0xff] %vm622, %v2499
  %2509 = vst.msk [vmem:[%s2507 + $0x8] sm:$0x3f] %vm624, %v2504
  %v2511 = vrot.slane %v355, 2
  %v2512 = vrot.slane %v360, 2
  %v2513 = vsel %vm1355, %v2511, %v2512
  %2516 = vmatprep.subr.mxu0 0.0
  %2517 = vmatpush1.msra.mxu0 %v2410
  %2518 = vmatprep.subr.mxu0 0.0
  %2519 = vmatpush1.msra.mxu0 %v2411
  %2520 = vmatprep.subr.mxu0 0.0
  %2521 = vmatpush1.msra.mxu0 %v2412
  %2522 = vmatprep.subr.mxu0 0.0
  %2523 = vmatpush1.msra.mxu0 %v2413
  %2524 = vmatprep.subr.mxu0 0.0
  %2525 = vmatpush1.msra.mxu0 %v2414
  %2526 = vmatprep.subr.mxu0 0.0
  %2527 = vmatpush1.msra.mxu0 %v2415
  %2528 = vmatprep.subr.mxu0 0.0
  %2529 = vmatpush1.msra.mxu0 %v2416
  %2530 = vmatprep.subr.mxu0 0.0
  %2531 = vmatpush1.msra.mxu0 %v2417
  %2532 = vmatprep.subr.mxu0 0.0
  %2533 = vmatpush1.msra.mxu0 %v2418
  %2534 = vmatprep.subr.mxu0 0.0
  %2535 = vmatpush1.msra.mxu0 %v2419
  %2536 = vmatprep.subr.mxu0 0.0
  %2537 = vmatpush1.msra.mxu0 %v2420
  %2538 = vmatprep.subr.mxu0 0.0
  %2539 = vmatpush1.msra.mxu0 %v2421
  %2540 = vmatprep.subr.mxu0 0.0
  %2541 = vmatpush1.msra.mxu0 %v2422
  %2542 = vmatprep.subr.mxu0 0.0
  %2543 = vmatpush1.msra.mxu0 %v2423
  %2544 = vmatprep.subr.mxu0 0.0
  %2545 = vmatpush1.msra.mxu0 %v2424
  %2546 = vmatprep.subr.mxu0 0.0
  %2547 = vmatpush1.msra.mxu0 %v2425
  %2548 = vmatprep.subr.mxu0 0.0
  %2549 = vmatpush1.msra.mxu0 0.0
  %2550 = vmatprep.subr.mxu0 0.0
  %2551 = vmatpush1.msra.mxu0 0.0
  %2552 = vmatprep.subr.mxu0 0.0
  %2553 = vmatpush1.msra.mxu0 0.0
  %2554 = vmatprep.subr.mxu0 0.0
  %2555 = vmatpush1.msra.mxu0 0.0
  %2556 = vmatprep.subr.mxu0 0.0
  %2557 = vmatpush1.msra.mxu0 0.0
  %2558 = vmatprep.subr.mxu0 0.0
  %2559 = vmatpush1.msra.mxu0 0.0
  %2560 = vmatprep.subr.mxu0 0.0
  %2561 = vmatpush1.msra.mxu0 0.0
  %2562 = vmatprep.subr.mxu0 0.0
  %2563 = vmatpush1.msra.mxu0 0.0
  %2564 = vmatprep.subr.mxu0 0.0
  %2565 = vmatpush1.msra.mxu0 0.0
  %2566 = vmatprep.subr.mxu0 0.0
  %2567 = vmatpush1.msra.mxu0 0.0
  %2568 = vmatprep.subr.mxu0 0.0
  %2569 = vmatpush1.msra.mxu0 0.0
  %2570 = vmatprep.subr.mxu0 0.0
  %2571 = vmatpush1.msra.mxu0 0.0
  %2572 = vmatprep.subr.mxu0 0.0
  %2573 = vmatpush1.msra.mxu0 0.0
  %2574 = vmatprep.subr.mxu0 0.0
  %2575 = vmatpush1.msra.mxu0 0.0
  %2576 = vmatprep.subr.mxu0 0.0
  %2577 = vmatpush1.msra.mxu0 0.0
  %2578 = vmatprep.subr.mxu0 0.0
  %2579 = vmatpush1.msra.mxu0 0.0
  %2580 = vmatprep.mubr.f32.mxu0 0.0
  %2581 = vmatmul.mubr.f32.gmra.mrb[0].mxu0 %v2513
  %v2582 = vpop.f32.mrb[0].mxu0
  %v2583 = vadd.f32 0.0, %v2582
  %v2584 = vpop.f32.mrb[0].mxu0
  %2585 = vmatprep.mubr.f32.mxu0 0.0
  %2586 = vmatmul.mubr.f32.gmra.mrb[0].mxu0 %v2512
  %v2587 = vpop.f32.mrb[0].mxu0
  %v2588 = vadd.f32 0.0, %v2587
  %v2589 = vpop.f32.mrb[0].mxu0
  %2590 = vdwg.mxu0
  %2591 = vst.msk [vmem:[%s2507 + $0xe] sm:$0xff] %vm622, %v2583
  %2592 = vst.msk [vmem:[%s2507 + $0x16] sm:$0x3f] %vm624, %v2588
  %v2594 = vrot.slane %v523, 2
  %v2595 = vrot.slane %v528, 2
  %v2596 = vsel %vm1355, %v2594, %v2595
  %2599 = vmatprep.subr.mxu0 0.0
  %2600 = vmatpush1.msra.mxu0 %v2410
  %2601 = vmatprep.subr.mxu0 0.0
  %2602 = vmatpush1.msra.mxu0 %v2411
  %2603 = vmatprep.subr.mxu0 0.0
  %2604 = vmatpush1.msra.mxu0 %v2412
  %2605 = vmatprep.subr.mxu0 0.0
  %2606 = vmatpush1.msra.mxu0 %v2413
  %2607 = vmatprep.subr.mxu0 0.0
  %2608 = vmatpush1.msra.mxu0 %v2414
  %2609 = vmatprep.subr.mxu0 0.0
  %2610 = vmatpush1.msra.mxu0 %v2415
  %2611 = vmatprep.subr.mxu0 0.0
  %2612 = vmatpush1.msra.mxu0 %v2416
  %2613 = vmatprep.subr.mxu0 0.0
  %2614 = vmatpush1.msra.mxu0 %v2417
  %2615 = vmatprep.subr.mxu0 0.0
  %2616 = vmatpush1.msra.mxu0 %v2418
  %2617 = vmatprep.subr.mxu0 0.0
  %2618 = vmatpush1.msra.mxu0 %v2419
  %2619 = vmatprep.subr.mxu0 0.0
  %2620 = vmatpush1.msra.mxu0 %v2420
  %2621 = vmatprep.subr.mxu0 0.0
  %2622 = vmatpush1.msra.mxu0 %v2421
  %2623 = vmatprep.subr.mxu0 0.0
  %2624 = vmatpush1.msra.mxu0 %v2422
  %2625 = vmatprep.subr.mxu0 0.0
  %2626 = vmatpush1.msra.mxu0 %v2423
  %2627 = vmatprep.subr.mxu0 0.0
  %2628 = vmatpush1.msra.mxu0 %v2424
  %2629 = vmatprep.subr.mxu0 0.0
  %2630 = vmatpush1.msra.mxu0 %v2425
  %2631 = vmatprep.subr.mxu0 0.0
  %2632 = vmatpush1.msra.mxu0 0.0
  %2633 = vmatprep.subr.mxu0 0.0
  %2634 = vmatpush1.msra.mxu0 0.0
  %2635 = vmatprep.subr.mxu0 0.0
  %2636 = vmatpush1.msra.mxu0 0.0
  %2637 = vmatprep.subr.mxu0 0.0
  %2638 = vmatpush1.msra.mxu0 0.0
  %2639 = vmatprep.subr.mxu0 0.0
  %2640 = vmatpush1.msra.mxu0 0.0
  %2641 = vmatprep.subr.mxu0 0.0
  %2642 = vmatpush1.msra.mxu0 0.0
  %2643 = vmatprep.subr.mxu0 0.0
  %2644 = vmatpush1.msra.mxu0 0.0
  %2645 = vmatprep.subr.mxu0 0.0
  %2646 = vmatpush1.msra.mxu0 0.0
  %2647 = vmatprep.subr.mxu0 0.0
  %2648 = vmatpush1.msra.mxu0 0.0
  %2649 = vmatprep.subr.mxu0 0.0
  %2650 = vmatpush1.msra.mxu0 0.0
  %2651 = vmatprep.subr.mxu0 0.0
  %2652 = vmatpush1.msra.mxu0 0.0
  %2653 = vmatprep.subr.mxu0 0.0
  %2654 = vmatpush1.msra.mxu0 0.0
  %2655 = vmatprep.subr.mxu0 0.0
  %2656 = vmatpush1.msra.mxu0 0.0
  %2657 = vmatprep.subr.mxu0 0.0
  %2658 = vmatpush1.msra.mxu0 0.0
  %2659 = vmatprep.subr.mxu0 0.0
  %2660 = vmatpush1.msra.mxu0 0.0
  %2661 = vmatprep.subr.mxu0 0.0
  %2662 = vmatpush1.msra.mxu0 0.0
  %2663 = vmatprep.mubr.f32.mxu0 0.0
  %2664 = vmatmul.mubr.f32.gmra.mrb[0].mxu0 %v2596
  %v2665 = vpop.f32.mrb[0].mxu0
  %v2666 = vadd.f32 0.0, %v2665
  %v2667 = vpop.f32.mrb[0].mxu0
  %2668 = vmatprep.mubr.f32.mxu0 0.0
  %2669 = vmatmul.mubr.f32.gmra.mrb[0].mxu0 %v2595
  %v2670 = vpop.f32.mrb[0].mxu0
  %v2671 = vadd.f32 0.0, %v2670
  %v2672 = vpop.f32.mrb[0].mxu0
  %2673 = vdwg.mxu0
  %2674 = vst.msk [vmem:[%s2507 + $0x1c] sm:$0xff] %vm622, %v2666
  %2675 = vst.msk [vmem:[%s2507 + $0x24] sm:$0x3f] %vm624, %v2671
  // Predicated region
  $region14: #{_device_forward.6} parent=0 // pred_check
    _
  $region15: #{_device_forward.6} parent=0 // pred_check_branch
    %2677 = sbr.rel (0) target = $region17
  $region16: #{_device_forward.6} parent=0 // pred_region
    _
  $region17: #{_device_forward.6} parent=0 // pred_fallthru
    _
  // Predicated region
  $region18: #{_device_forward.6} parent=0 // pred_check
    _
  $region19: #{_device_forward.6} parent=0 // pred_check_branch
    %2679 = sbr.rel (0) target = $region21
  $region20: #{_device_forward.6} parent=0 // pred_region
    _
  $region21: #{_device_forward.6} parent=0 // pred_fallthru
    _

// kernel: _device_forward.5
$region0: #{_device_forward.5}
  #allocation0 [shape = 'u32[]', space=smem, size = 0x4, offset = 0x4, fixed_abs, tag = 'smem constant byte address 0x4 - core index']
  #allocation1 [shape = 'u32[144,128]{1,0:T(1,128)}', space=vmem, size = 0x12000, scoped, tag = 'internal scratch']
  %s0 = inlined_call_operand.vmem [shape: f32[1,256], index: 0, kind: input, shape index: {}]
  %s1 = inlined_call_operand.hbm [shape: s8[256,49152], index: 1, kind: input, shape index: {}]
  %s2 = inlined_call_operand.hbm [shape: f32[1,49152], index: 2, kind: input, shape index: {}]
  %s3 = inlined_call_operand.vmem [shape: bf16[1,49152], index: 3, kind: output, shape index: {}]
  %s4 = sld [smem:[#allocation0]]
  $region53: #{_device_forward.5} parent=0
    _
  %s6 = ssub.s32 1, %s4
  %s7 = scalar_select 0, %s6, %s4
  $region1: #{_device_forward.5} parent=0
    #allocation2 [shape = 'u8[4194304]{0}', space=vmem, size = 0x400000, scoped, tag = 'input window, operand 1']
    #allocation3 [shape = 's32[2]{0}', space=sflag, size = 0x8, scoped, tag = 'scoped memory for _device_forward.5']
    #allocation4 [shape = 'u8[65536]{0}', space=vmem, size = 0x10000, scoped, tag = 'input window, operand 2']
    #allocation5 [shape = 's32[2]{0}', space=sflag, size = 0x8, scoped, tag = 'scoped memory for _device_forward.5']
    %8 = vsyncpa [#allocation3], 0
    %s9 = scalar_lea.sflag [#allocation3], 1
    %10 = vsyncpa %s9, 0
    %11 = vsyncpa [#allocation5], 0
    %s12 = scalar_lea.sflag [#allocation5], 1
    %13 = vsyncpa %s12, 0
    loop: start=0, step=1, limit=8
    $region2: #{_device_forward.5} parent=1 // loop_pre_header
      _
    $region3: #{_device_forward.5} parent=1 // loop_header
      %s15 = sphi 0, %s19
      %p16 = scmp.ge.s32.totalorder %s15, 8
      %s23 = sphi 0, %s23
      %s25 = sphi 0, %s23
      %s26 = sphi 0, %s25
      %s40 = sphi 0, %s26
      %s46 = sphi 0, %s48
      %s49 = sphi 0, %s46
      %s50 = sphi 0, %s49
      %s66 = sphi 0, %s50
      %s72 = sphi 0, %s74
      %s75 = sphi 0, %s72
      %s76 = sphi 0, %s75
      %s92 = sphi 0, %s76
      %s98 = sphi 0, %s100
      %s101 = sphi 0, %s98
      %s102 = sphi 0, %s101
      %s118 = sphi 0, %s102
    $region4: #{_device_forward.5} parent=1 // loop_header_branch
      %18 = sbr.rel (%p16) target = $region8
    $region5: #{_device_forward.5} parent=1 // loop_body
      %s20 = ssub.s32 %s15, 1
      %s21 = ssub.s32 %s15, 2
      %s22 = sadd.s32 %s15, 1
      %s24 = sadd.s32 %s23, 1
      %p27 = scmp.eq.s32.totalorder %s15, 5
      %p28 = scmp.ne.s32.totalorder %s23, %s25
      %p29 = scmp.eq.s32.totalorder %s15, 0
      %p30 = por %p28, %p29
      %p31 = scmp.ne.s32.totalorder %s23, %s25
      %p32 = scmp.eq.s32.totalorder %s20, 5
      %p33 = por %p31, %p32
      %p34 = scmp.ne.s32.totalorder %s25, %s26
      %p35 = scmp.eq.s32.totalorder %s20, 0
      %p36 = por %p34, %p35
      %p37 = scmp.ne.s32.totalorder %s25, %s26
      %p38 = scmp.eq.s32.totalorder %s21, 5
      %p39 = por %p37, %p38
      %p41 = scmp.ne.s32.totalorder %s26, %s40
      %p42 = scmp.eq.s32.totalorder %s21, 0
      %p43 = por %p41, %p42
      %s44 = ssub.s32 %s15, %s22
      %p45 = scmp.eq.s32.totalorder %s44, 0
      %s47 = sadd.s32 %s46, 1
      %s48 = scalar_select %p45, %s46, %s47
      %p51 = pneg %p45
      %p52 = scmp.eq.s32.totalorder %s15, 5
      %p53 = por %p51, %p52
      %p54 = scmp.ne.s32.totalorder %s46, %s49
      %p55 = scmp.eq.s32.totalorder %s15, 0
      %p56 = por %p54, %p55
      %p57 = scmp.ne.s32.totalorder %s46, %s49
      %p58 = scmp.eq.s32.totalorder %s20, 5
      %p59 = por %p57, %p58
      %p60 = scmp.ne.s32.totalorder %s49, %s50
      %p61 = scmp.eq.s32.totalorder %s20, 0
      %p62 = por %p60, %p61
      %p63 = scmp.ne.s32.totalorder %s49, %s50
      %p64 = scmp.eq.s32.totalorder %s21, 5
      %p65 = por %p63, %p64
      %p67 = scmp.ne.s32.totalorder %s50, %s66
      %p68 = scmp.eq.s32.totalorder %s21, 0
      %p69 = por %p67, %p68
      %s70 = ssub.s32 %s15, %s22
      %p71 = scmp.eq.s32.totalorder %s70, 0
      %s73 = sadd.s32 %s72, 1
      %s74 = scalar_select %p71, %s72, %s73
      %p77 = pneg %p71
      %p78 = scmp.eq.s32.totalorder %s15, 5
      %p79 = por %p77, %p78
      %p80 = scmp.ne.s32.totalorder %s72, %s75
      %p81 = scmp.eq.s32.totalorder %s15, 0
      %p82 = por %p80, %p81
      %p83 = scmp.ne.s32.totalorder %s72, %s75
      %p84 = scmp.eq.s32.totalorder %s20, 5
      %p85 = por %p83, %p84
      %p86 = scmp.ne.s32.totalorder %s75, %s76
      %p87 = scmp.eq.s32.totalorder %s20, 0
      %p88 = por %p86, %p87
      %p89 = scmp.ne.s32.totalorder %s75, %s76
      %p90 = scmp.eq.s32.totalorder %s21, 5
      %p91 = por %p89, %p90
      %p93 = scmp.ne.s32.totalorder %s76, %s92
      %p94 = scmp.eq.s32.totalorder %s21, 0
      %p95 = por %p93, %p94
      %s96 = ssub.s32 %s15, %s22
      %p97 = scmp.eq.s32.totalorder %s96, 0
      %s99 = sadd.s32 %s98, 1
      %s100 = scalar_select %p97, %s98, %s99
      %p103 = pneg %p97
      %p104 = scmp.eq.s32.totalorder %s15, 5
      %p105 = por %p103, %p104
      %p106 = scmp.ne.s32.totalorder %s98, %s101
      %p107 = scmp.eq.s32.totalorder %s15, 0
      %p108 = por %p106, %p107
      %p109 = scmp.ne.s32.totalorder %s98, %s101
      %p110 = scmp.eq.s32.totalorder %s20, 5
      %p111 = por %p109, %p110
      %p112 = scmp.ne.s32.totalorder %s101, %s102
      %p113 = scmp.eq.s32.totalorder %s20, 0
      %p114 = por %p112, %p113
      %p115 = scmp.ne.s32.totalorder %s101, %s102
      %p116 = scmp.eq.s32.totalorder %s21, 5
      %p117 = por %p115, %p116
      %p119 = scmp.ne.s32.totalorder %s102, %s118
      %p120 = scmp.eq.s32.totalorder %s21, 0
      %p121 = por %p119, %p120
      %p122 = scmp.le.s32.totalorder 1, %s15
      %p123 = scmp.lt.s32.totalorder %s15, 7
      %p124 = pnand %p122, %p123
      %p125 = pneg %p124
      // Predicated region
      $region9: #{_device_forward.5} parent=5 // pred_check
        _
      $region10: #{_device_forward.5} parent=5 // pred_check_branch
        %127 = sbr.rel (%p124) target = $region12
      $region11: #{_device_forward.5} parent=5 // pred_region
        %s128 = ssub.s32 %s15, 1
        // Predicated region
        $region13: #{_device_forward.5} parent=11 // pred_check
          %p129 = pneg %p36
        $region14: #{_device_forward.5} parent=11 // pred_check_branch
          %131 = sbr.rel (%p129) target = $region16
        $region15: #{_device_forward.5} parent=11 // pred_region
          _
        $region16: #{_device_forward.5} parent=11 // pred_fallthru
          _
      $region12: #{_device_forward.5} parent=5 // pred_fallthru
        _
      %p132 = scmp.lt.s32.totalorder %s15, 6
      // Predicated region
      $region17: #{_device_forward.5} parent=5 // pred_check
        %p133 = pneg %p132
      $region18: #{_device_forward.5} parent=5 // pred_check_branch
        %135 = sbr.rel (%p133) target = $region20
      $region19: #{_device_forward.5} parent=5 // pred_region
        // Predicated region
        $region21: #{_device_forward.5} parent=19 // pred_check
          %p136 = pneg %p56
        $region22: #{_device_forward.5} parent=19 // pred_check_branch
          %138 = sbr.rel (%p136) target = $region24
        $region23: #{_device_forward.5} parent=19 // pred_region
          %s139 = sand.u32 %s46, 1
          %s140 = scalar_lea.sflag [#allocation3], %s139
          %s141 = sand.u32 %s46, 1
          %s142 = smul.addr %s141, 4096
          %s143 = scalar_lea.vmem [#allocation2], %s142
          %s144 = smul.u32 64, %s15
          %s146 = ssub.s32 65536, 65536
          %147 = vsyncadd %s140, %s146
          %s148 = smul.addr %s144, 128
          %s149 = scalar_lea.hbm %s1, %s148
          %s150 = sshll.u32 %s143, 4
          %s151 = int_to_ptr.vmem [resolvable:$true] %s150
          %156 = dma.hbm_to_vmem [thread:$0]  %s149, 65536, %s151, %s140, 49152, 8192, 512
        $region24: #{_device_forward.5} parent=19 // pred_fallthru
          _
        // Predicated region
        $region25: #{_device_forward.5} parent=19 // pred_check
          %p157 = pneg %p82
        $region26: #{_device_forward.5} parent=19 // pred_check_branch
          %159 = sbr.rel (%p157) target = $region28
        $region27: #{_device_forward.5} parent=19 // pred_region
          %s160 = sand.u32 %s72, 1
          %s161 = scalar_lea.sflag [#allocation5], %s160
          %s162 = sand.u32 %s72, 1
          %s163 = smul.addr %s162, 64
          %s164 = scalar_lea.vmem [#allocation4], %s163
          %s165 = smul.u32 64, %s15
          %s167 = ssub.s32 1024, 1024
          %168 = vsyncadd %s161, %s167
          %s169 = smul.addr %s165, 16
          %s170 = scalar_lea.hbm %s2, %s169
          %s172 = sshll.u32 %s164, 4
          %s173 = int_to_ptr.vmem [resolvable:$true] %s172
          %175 = dma.hbm_to_vmem [thread:$0]  %s170, 1024, %s173, %s161
        $region28: #{_device_forward.5} parent=19 // pred_fallthru
          _
      $region20: #{_device_forward.5} parent=5 // pred_fallthru
        _
      %p176 = scmp.le.s32.totalorder 1, %s15
      %p177 = scmp.lt.s32.totalorder %s15, 7
      %p178 = pnand %p176, %p177
      %p179 = pneg %p178
      // Predicated region
      $region29: #{_device_forward.5} parent=5 // pred_check
        _
      $region30: #{_device_forward.5} parent=5 // pred_check_branch
        %181 = sbr.rel (%p178) target = $region32
      $region31: #{_device_forward.5} parent=5 // pred_region
        %s182 = ssub.s32 %s15, 1
        %s183 = sand.u32 %s49, 1
        %s184 = scalar_lea.sflag [#allocation3], %s183
        %s185 = sand.u32 %s49, 1
        %s186 = smul.addr %s185, 4096
        %s187 = scalar_lea.vmem [#allocation2], %s186
        // Predicated region
        $region33: #{_device_forward.5} parent=31 // pred_check
          %p188 = pneg %p62
        $region34: #{_device_forward.5} parent=31 // pred_check_branch
          %190 = sbr.rel (%p188) target = $region36
        $region35: #{_device_forward.5} parent=31 // pred_region
          %191 = dma.done %s184, 65536
        $region36: #{_device_forward.5} parent=31 // pred_fallthru
          _
        %s192 = sand.u32 %s75, 1
        %s193 = scalar_lea.sflag [#allocation5], %s192
        %s194 = sand.u32 %s75, 1
        %s195 = smul.addr %s194, 64
        %s196 = scalar_lea.vmem [#allocation4], %s195
        // Predicated region
        $region37: #{_device_forward.5} parent=31 // pred_check
          %p197 = pneg %p88
        $region38: #{_device_forward.5} parent=31 // pred_check_branch
          %199 = sbr.rel (%p197) target = $region40
        $region39: #{_device_forward.5} parent=31 // pred_region
          %200 = dma.done %s193, 1024
        $region40: #{_device_forward.5} parent=31 // pred_fallthru
          _
        %p201 = pneg %p36
        %p202 = pneg %p33
        %s203 = sand.u32 %s49, 1
        %s204 = scalar_lea.sflag [#allocation3], %s203
        %s205 = sand.u32 %s49, 1
        %s206 = smul.addr %s205, 4096
        %s207 = scalar_lea.vmem [#allocation2], %s206
        %p208 = pneg %p62
        %p209 = pneg %p59
        %s210 = sand.u32 %s75, 1
        %s211 = scalar_lea.sflag [#allocation5], %s210
        %s212 = sand.u32 %s75, 1
        %s213 = smul.addr %s212, 64
        %s214 = scalar_lea.vmem [#allocation4], %s213
        %p215 = pneg %p88
        %p216 = pneg %p85
        %p217 = pneg %p114
        %p218 = pneg %p111
        %s219 = smul.u32 64, %s20
        %p220 = scmp.lt.s32.totalorder %s219, 383
        %s221 = scalar_select %p220, %s219, 383
        %s222 = scalar_lea.vmem %s3, %s221
        %s223 = smul.u32 64, %s20
        %s224 = smul.u32 64, %s20
        %s225 = smul.u32 64, %s20
        %p226 = scmp.lt.s32.totalorder %s225, 383
        %s227 = scalar_select %p226, %s225, 383
        %s228 = scalar_lea.vmem %s3, %s227
        %s229 = smul.u32 64, %s20
        %v230 = vld [vmem:[%s187] sm:$0xff]
        %v231 = vld [vmem:[%s187 + $0x8] sm:$0xff]
        %v232 = vld [vmem:[%s187 + $0x10] sm:$0xff]
        %v233 = vld [vmem:[%s187 + $0x18] sm:$0xff]
        %v234 = vld [vmem:[%s187 + $0x20] sm:$0xff]
        %v235 = vld [vmem:[%s187 + $0x28] sm:$0xff]
        %v236 = vld [vmem:[%s187 + $0x30] sm:$0xff]
        %v237 = vld [vmem:[%s187 + $0x38] sm:$0xff]
        %v238 = vld [vmem:[%s187 + $0x40] sm:$0xff]
        %v239 = vld [vmem:[%s187 + $0x48] sm:$0xff]
        %v240 = vld [vmem:[%s187 + $0x50] sm:$0xff]
        %v241 = vld [vmem:[%s187 + $0x58] sm:$0xff]
        %v242 = vld [vmem:[%s187 + $0x60] sm:$0xff]
        %v243 = vld [vmem:[%s187 + $0x68] sm:$0xff]
        %v244 = vld [vmem:[%s187 + $0x70] sm:$0xff]
        %v245 = vld [vmem:[%s187 + $0x78] sm:$0xff]
        %v246 = vld [vmem:[%s187 + $0x80] sm:$0xff]
        %v247 = vld [vmem:[%s187 + $0x88] sm:$0xff]
        %v248 = vld [vmem:[%s187 + $0x90] sm:$0xff]
        %v249 = vld [vmem:[%s187 + $0x98] sm:$0xff]
        %v250 = vld [vmem:[%s187 + $0xa0] sm:$0xff]
        %v251 = vld [vmem:[%s187 + $0xa8] sm:$0xff]
        %v252 = vld [vmem:[%s187 + $0xb0] sm:$0xff]
        %v253 = vld [vmem:[%s187 + $0xb8] sm:$0xff]
        %v254 = vld [vmem:[%s187 + $0xc0] sm:$0xff]
        %v255 = vld [vmem:[%s187 + $0xc8] sm:$0xff]
        %v256 = vld [vmem:[%s187 + $0xd0] sm:$0xff]
        %v257 = vld [vmem:[%s187 + $0xd8] sm:$0xff]
        %v258 = vld [vmem:[%s187 + $0xe0] sm:$0xff]
        %v259 = vld [vmem:[%s187 + $0xe8] sm:$0xff]
        %v260 = vld [vmem:[%s187 + $0xf0] sm:$0xff]
        %v261 = vld [vmem:[%s187 + $0xf8] sm:$0xff]
        %v262 = vld [vmem:[%s187 + $0x100] sm:$0xff]
        %v263 = vld [vmem:[%s187 + $0x108] sm:$0xff]
        %v264 = vld [vmem:[%s187 + $0x110] sm:$0xff]
        %v265 = vld [vmem:[%s187 + $0x118] sm:$0xff]
        %v266 = vld [vmem:[%s187 + $0x120] sm:$0xff]
        %v267 = vld [vmem:[%s187 + $0x128] sm:$0xff]
        %v268 = vld [vmem:[%s187 + $0x130] sm:$0xff]
        %v269 = vld [vmem:[%s187 + $0x138] sm:$0xff]
        %v270 = vld [vmem:[%s187 + $0x140] sm:$0xff]
        %v271 = vld [vmem:[%s187 + $0x148] sm:$0xff]
        %v272 = vld [vmem:[%s187 + $0x150] sm:$0xff]
        %v273 = vld [vmem:[%s187 + $0x158] sm:$0xff]
        %v274 = vld [vmem:[%s187 + $0x160] sm:$0xff]
        %v275 = vld [vmem:[%s187 + $0x168] sm:$0xff]
        %v276 = vld [vmem:[%s187 + $0x170] sm:$0xff]
        %v277 = vld [vmem:[%s187 + $0x178] sm:$0xff]
        %v278 = vld [vmem:[%s187 + $0x180] sm:$0xff]
        %v279 = vld [vmem:[%s187 + $0x188] sm:$0xff]
        %v280 = vld [vmem:[%s187 + $0x190] sm:$0xff]
        %v281 = vld [vmem:[%s187 + $0x198] sm:$0xff]
        %v282 = vld [vmem:[%s187 + $0x1a0] sm:$0xff]
        %v283 = vld [vmem:[%s187 + $0x1a8] sm:$0xff]
        %v284 = vld [vmem:[%s187 + $0x1b0] sm:$0xff]
        %v285 = vld [vmem:[%s187 + $0x1b8] sm:$0xff]
        %v286 = vld [vmem:[%s187 + $0x1c0] sm:$0xff]
        %v287 = vld [vmem:[%s187 + $0x1c8] sm:$0xff]
        %v288 = vld [vmem:[%s187 + $0x1d0] sm:$0xff]
        %v289 = vld [vmem:[%s187 + $0x1d8] sm:$0xff]
        %v290 = vld [vmem:[%s187 + $0x1e0] sm:$0xff]
        %v291 = vld [vmem:[%s187 + $0x1e8] sm:$0xff]
        %v292 = vld [vmem:[%s187 + $0x1f0] sm:$0xff]
        %v293 = vld [vmem:[%s187 + $0x1f8] sm:$0xff]
        %v294 = vld [vmem:[%s187 + $0x200] sm:$0xff]
        %v295 = vld [vmem:[%s187 + $0x208] sm:$0xff]
        %v296 = vld [vmem:[%s187 + $0x210] sm:$0xff]
        %v297 = vld [vmem:[%s187 + $0x218] sm:$0xff]
        %v298 = vld [vmem:[%s187 + $0x220] sm:$0xff]
        %v299 = vld [vmem:[%s187 + $0x228] sm:$0xff]
        %v300 = vld [vmem:[%s187 + $0x230] sm:$0xff]
        %v301 = vld [vmem:[%s187 + $0x238] sm:$0xff]
        %v302 = vld [vmem:[%s187 + $0x240] sm:$0xff]
        %v303 = vld [vmem:[%s187 + $0x248] sm:$0xff]
        %v304 = vld [vmem:[%s187 + $0x250] sm:$0xff]
        %v305 = vld [vmem:[%s187 + $0x258] sm:$0xff]
        %v306 = vld [vmem:[%s187 + $0x260] sm:$0xff]
        %v307 = vld [vmem:[%s187 + $0x268] sm:$0xff]
        %v308 = vld [vmem:[%s187 + $0x270] sm:$0xff]
        %v309 = vld [vmem:[%s187 + $0x278] sm:$0xff]
        %v310 = vld [vmem:[%s187 + $0x280] sm:$0xff]
        %v311 = vld [vmem:[%s187 + $0x288] sm:$0xff]
        %v312 = vld [vmem:[%s187 + $0x290] sm:$0xff]
        %v313 = vld [vmem:[%s187 + $0x298] sm:$0xff]
        %v314 = vld [vmem:[%s187 + $0x2a0] sm:$0xff]
        %v315 = vld [vmem:[%s187 + $0x2a8] sm:$0xff]
        %v316 = vld [vmem:[%s187 + $0x2b0] sm:$0xff]
        %v317 = vld [vmem:[%s187 + $0x2b8] sm:$0xff]
        %v318 = vld [vmem:[%s187 + $0x2c0] sm:$0xff]
        %v319 = vld [vmem:[%s187 + $0x2c8] sm:$0xff]
        %v320 = vld [vmem:[%s187 + $0x2d0] sm:$0xff]
        %v321 = vld [vmem:[%s187 + $0x2d8] sm:$0xff]
        %v322 = vld [vmem:[%s187 + $0x2e0] sm:$0xff]
        %v323 = vld [vmem:[%s187 + $0x2e8] sm:$0xff]
        %v324 = vld [vmem:[%s187 + $0x2f0] sm:$0xff]
        %v325 = vld [vmem:[%s187 + $0x2f8] sm:$0xff]
        %v326 = vld [vmem:[%s187 + $0x300] sm:$0xff]
        %v327 = vld [vmem:[%s187 + $0x308] sm:$0xff]
        %v328 = vld [vmem:[%s187 + $0x310] sm:$0xff]
        %v329 = vld [vmem:[%s187 + $0x318] sm:$0xff]
        %v330 = vld [vmem:[%s187 + $0x320] sm:$0xff]
        %v331 = vld [vmem:[%s187 + $0x328] sm:$0xff]
        %v332 = vld [vmem:[%s187 + $0x330] sm:$0xff]
        %v333 = vld [vmem:[%s187 + $0x338] sm:$0xff]
        %v334 = vld [vmem:[%s187 + $0x340] sm:$0xff]
        %v335 = vld [vmem:[%s187 + $0x348] sm:$0xff]
        %v336 = vld [vmem:[%s187 + $0x350] sm:$0xff]
        %v337 = vld [vmem:[%s187 + $0x358] sm:$0xff]
        %v338 = vld [vmem:[%s187 + $0x360] sm:$0xff]
        %v339 = vld [vmem:[%s187 + $0x368] sm:$0xff]
        %v340 = vld [vmem:[%s187 + $0x370] sm:$0xff]
        %v341 = vld [vmem:[%s187 + $0x378] sm:$0xff]
        %v342 = vld [vmem:[%s187 + $0x380] sm:$0xff]
        %v343 = vld [vmem:[%s187 + $0x388] sm:$0xff]
        %v344 = vld [vmem:[%s187 + $0x390] sm:$0xff]
        %v345 = vld [vmem:[%s187 + $0x398] sm:$0xff]
        %v346 = vld [vmem:[%s187 + $0x3a0] sm:$0xff]
        %v347 = vld [vmem:[%s187 + $0x3a8] sm:$0xff]
        %v348 = vld [vmem:[%s187 + $0x3b0] sm:$0xff]
        %v349 = vld [vmem:[%s187 + $0x3b8] sm:$0xff]
        %v350 = vld [vmem:[%s187 + $0x3c0] sm:$0xff]
        %v351 = vld [vmem:[%s187 + $0x3c8] sm:$0xff]
        %v352 = vld [vmem:[%s187 + $0x3d0] sm:$0xff]
        %v353 = vld [vmem:[%s187 + $0x3d8] sm:$0xff]
        %v354 = vld [vmem:[%s187 + $0x3e0] sm:$0xff]
        %v355 = vld [vmem:[%s187 + $0x3e8] sm:$0xff]
        %v356 = vld [vmem:[%s187 + $0x3f0] sm:$0xff]
        %v357 = vld [vmem:[%s187 + $0x3f8] sm:$0xff]
        %v358 = vld [vmem:[%s187 + $0x400] sm:$0xff]
        %v359 = vld [vmem:[%s187 + $0x408] sm:$0xff]
        %v360 = vld [vmem:[%s187 + $0x410] sm:$0xff]
        %v361 = vld [vmem:[%s187 + $0x418] sm:$0xff]
        %v362 = vld [vmem:[%s187 + $0x420] sm:$0xff]
        %v363 = vld [vmem:[%s187 + $0x428] sm:$0xff]
        %v364 = vld [vmem:[%s187 + $0x430] sm:$0xff]
        %v365 = vld [vmem:[%s187 + $0x438] sm:$0xff]
        %v366 = vld [vmem:[%s187 + $0x440] sm:$0xff]
        %v367 = vld [vmem:[%s187 + $0x448] sm:$0xff]
        %v368 = vld [vmem:[%s187 + $0x450] sm:$0xff]
        %v369 = vld [vmem:[%s187 + $0x458] sm:$0xff]
        %v370 = vld [vmem:[%s187 + $0x460] sm:$0xff]
        %v371 = vld [vmem:[%s187 + $0x468] sm:$0xff]
        %v372 = vld [vmem:[%s187 + $0x470] sm:$0xff]
        %v373 = vld [vmem:[%s187 + $0x478] sm:$0xff]
        %v374 = vld [vmem:[%s187 + $0x480] sm:$0xff]
        %v375 = vld [vmem:[%s187 + $0x488] sm:$0xff]
        %v376 = vld [vmem:[%s187 + $0x490] sm:$0xff]
        %v377 = vld [vmem:[%s187 + $0x498] sm:$0xff]
        %v378 = vld [vmem:[%s187 + $0x4a0] sm:$0xff]
        %v379 = vld [vmem:[%s187 + $0x4a8] sm:$0xff]
        %v380 = vld [vmem:[%s187 + $0x4b0] sm:$0xff]
        %v381 = vld [vmem:[%s187 + $0x4b8] sm:$0xff]
        %v382 = vld [vmem:[%s187 + $0x4c0] sm:$0xff]
        %v383 = vld [vmem:[%s187 + $0x4c8] sm:$0xff]
        %v384 = vld [vmem:[%s187 + $0x4d0] sm:$0xff]
        %v385 = vld [vmem:[%s187 + $0x4d8] sm:$0xff]
        %v386 = vld [vmem:[%s187 + $0x4e0] sm:$0xff]
        %v387 = vld [vmem:[%s187 + $0x4e8] sm:$0xff]
        %v388 = vld [vmem:[%s187 + $0x4f0] sm:$0xff]
        %v389 = vld [vmem:[%s187 + $0x4f8] sm:$0xff]
        %v390 = vld [vmem:[%s187 + $0x500] sm:$0xff]
        %v391 = vld [vmem:[%s187 + $0x508] sm:$0xff]
        %v392 = vld [vmem:[%s187 + $0x510] sm:$0xff]
        %v393 = vld [vmem:[%s187 + $0x518] sm:$0xff]
        %v394 = vld [vmem:[%s187 + $0x520] sm:$0xff]
        %v395 = vld [vmem:[%s187 + $0x528] sm:$0xff]
        %v396 = vld [vmem:[%s187 + $0x530] sm:$0xff]
        %v397 = vld [vmem:[%s187 + $0x538] sm:$0xff]
        %v398 = vld [vmem:[%s187 + $0x540] sm:$0xff]
        %v399 = vld [vmem:[%s187 + $0x548] sm:$0xff]
        %v400 = vld [vmem:[%s187 + $0x550] sm:$0xff]
        %v401 = vld [vmem:[%s187 + $0x558] sm:$0xff]
        %v402 = vld [vmem:[%s187 + $0x560] sm:$0xff]
        %v403 = vld [vmem:[%s187 + $0x568] sm:$0xff]
        %v404 = vld [vmem:[%s187 + $0x570] sm:$0xff]
        %v405 = vld [vmem:[%s187 + $0x578] sm:$0xff]
        %v406 = vld [vmem:[%s187 + $0x580] sm:$0xff]
        %v407 = vld [vmem:[%s187 + $0x588] sm:$0xff]
        %v408 = vld [vmem:[%s187 + $0x590] sm:$0xff]
        %v409 = vld [vmem:[%s187 + $0x598] sm:$0xff]
        %v410 = vld [vmem:[%s187 + $0x5a0] sm:$0xff]
        %v411 = vld [vmem:[%s187 + $0x5a8] sm:$0xff]
        %v412 = vld [vmem:[%s187 + $0x5b0] sm:$0xff]
        %v413 = vld [vmem:[%s187 + $0x5b8] sm:$0xff]
        %v414 = vld [vmem:[%s187 + $0x5c0] sm:$0xff]
        %v415 = vld [vmem:[%s187 + $0x5c8] sm:$0xff]
        %v416 = vld [vmem:[%s187 + $0x5d0] sm:$0xff]
        %v417 = vld [vmem:[%s187 + $0x5d8] sm:$0xff]
        %v418 = vld [vmem:[%s187 + $0x5e0] sm:$0xff]
        %v419 = vld [vmem:[%s187 + $0x5e8] sm:$0xff]
        %v420 = vld [vmem:[%s187 + $0x5f0] sm:$0xff]
        %v421 = vld [vmem:[%s187 + $0x5f8] sm:$0xff]
        %v422 = vld [vmem:[%s187 + $0x600] sm:$0xff]
        %v423 = vld [vmem:[%s187 + $0x608] sm:$0xff]
        %v424 = vld [vmem:[%s187 + $0x610] sm:$0xff]
        %v425 = vld [vmem:[%s187 + $0x618] sm:$0xff]
        %v426 = vld [vmem:[%s187 + $0x620] sm:$0xff]
        %v427 = vld [vmem:[%s187 + $0x628] sm:$0xff]
        %v428 = vld [vmem:[%s187 + $0x630] sm:$0xff]
        %v429 = vld [vmem:[%s187 + $0x638] sm:$0xff]
        %v430 = vld [vmem:[%s187 + $0x640] sm:$0xff]
        %v431 = vld [vmem:[%s187 + $0x648] sm:$0xff]
        %v432 = vld [vmem:[%s187 + $0x650] sm:$0xff]
        %v433 = vld [vmem:[%s187 + $0x658] sm:$0xff]
        %v434 = vld [vmem:[%s187 + $0x660] sm:$0xff]
        %v435 = vld [vmem:[%s187 + $0x668] sm:$0xff]
        %v436 = vld [vmem:[%s187 + $0x670] sm:$0xff]
        %v437 = vld [vmem:[%s187 + $0x678] sm:$0xff]
        %v438 = vld [vmem:[%s187 + $0x680] sm:$0xff]
        %v439 = vld [vmem:[%s187 + $0x688] sm:$0xff]
        %v440 = vld [vmem:[%s187 + $0x690] sm:$0xff]
        %v441 = vld [vmem:[%s187 + $0x698] sm:$0xff]
        %v442 = vld [vmem:[%s187 + $0x6a0] sm:$0xff]
        %v443 = vld [vmem:[%s187 + $0x6a8] sm:$0xff]
        %v444 = vld [vmem:[%s187 + $0x6b0] sm:$0xff]
        %v445 = vld [vmem:[%s187 + $0x6b8] sm:$0xff]
        %v446 = vld [vmem:[%s187 + $0x6c0] sm:$0xff]
        %v447 = vld [vmem:[%s187 + $0x6c8] sm:$0xff]
        %v448 = vld [vmem:[%s187 + $0x6d0] sm:$0xff]
        %v449 = vld [vmem:[%s187 + $0x6d8] sm:$0xff]
        %v450 = vld [vmem:[%s187 + $0x6e0] sm:$0xff]
        %v451 = vld [vmem:[%s187 + $0x6e8] sm:$0xff]
        %v452 = vld [vmem:[%s187 + $0x6f0] sm:$0xff]
        %v453 = vld [vmem:[%s187 + $0x6f8] sm:$0xff]
        %v454 = vld [vmem:[%s187 + $0x700] sm:$0xff]
        %v455 = vld [vmem:[%s187 + $0x708] sm:$0xff]
        %v456 = vld [vmem:[%s187 + $0x710] sm:$0xff]
        %v457 = vld [vmem:[%s187 + $0x718] sm:$0xff]
        %v458 = vld [vmem:[%s187 + $0x720] sm:$0xff]
        %v459 = vld [vmem:[%s187 + $0x728] sm:$0xff]
        %v460 = vld [vmem:[%s187 + $0x730] sm:$0xff]
        %v461 = vld [vmem:[%s187 + $0x738] sm:$0xff]
        %v462 = vld [vmem:[%s187 + $0x740] sm:$0xff]
        %v463 = vld [vmem:[%s187 + $0x748] sm:$0xff]
        %v464 = vld [vmem:[%s187 + $0x750] sm:$0xff]
        %v465 = vld [vmem:[%s187 + $0x758] sm:$0xff]
        %v466 = vld [vmem:[%s187 + $0x760] sm:$0xff]
        %v467 = vld [vmem:[%s187 + $0x768] sm:$0xff]
        %v468 = vld [vmem:[%s187 + $0x770] sm:$0xff]
        %v469 = vld [vmem:[%s187 + $0x778] sm:$0xff]
        %v470 = vld [vmem:[%s187 + $0x780] sm:$0xff]
        %v471 = vld [vmem:[%s187 + $0x788] sm:$0xff]
        %v472 = vld [vmem:[%s187 + $0x790] sm:$0xff]
        %v473 = vld [vmem:[%s187 + $0x798] sm:$0xff]
        %v474 = vld [vmem:[%s187 + $0x7a0] sm:$0xff]
        %v475 = vld [vmem:[%s187 + $0x7a8] sm:$0xff]
        %v476 = vld [vmem:[%s187 + $0x7b0] sm:$0xff]
        %v477 = vld [vmem:[%s187 + $0x7b8] sm:$0xff]
        %v478 = vld [vmem:[%s187 + $0x7c0] sm:$0xff]
        %v479 = vld [vmem:[%s187 + $0x7c8] sm:$0xff]
        %v480 = vld [vmem:[%s187 + $0x7d0] sm:$0xff]
        %v481 = vld [vmem:[%s187 + $0x7d8] sm:$0xff]
        %v482 = vld [vmem:[%s187 + $0x7e0] sm:$0xff]
        %v483 = vld [vmem:[%s187 + $0x7e8] sm:$0xff]
        %v484 = vld [vmem:[%s187 + $0x7f0] sm:$0xff]
        %v485 = vld [vmem:[%s187 + $0x7f8] sm:$0xff]
        %v486 = vld [vmem:[%s187 + $0x800] sm:$0xff]
        %v487 = vld [vmem:[%s187 + $0x808] sm:$0xff]
        %v488 = vld [vmem:[%s187 + $0x810] sm:$0xff]
        %v489 = vld [vmem:[%s187 + $0x818] sm:$0xff]
        %v490 = vld [vmem:[%s187 + $0x820] sm:$0xff]
        %v491 = vld [vmem:[%s187 + $0x828] sm:$0xff]
        %v492 = vld [vmem:[%s187 + $0x830] sm:$0xff]
        %v493 = vld [vmem:[%s187 + $0x838] sm:$0xff]
        %v494 = vld [vmem:[%s187 + $0x840] sm:$0xff]
        %v495 = vld [vmem:[%s187 + $0x848] sm:$0xff]
        %v496 = vld [vmem:[%s187 + $0x850] sm:$0xff]
        %v497 = vld [vmem:[%s187 + $0x858] sm:$0xff]
        %v498 = vld [vmem:[%s187 + $0x860] sm:$0xff]
        %v499 = vld [vmem:[%s187 + $0x868] sm:$0xff]
        %v500 = vld [vmem:[%s187 + $0x870] sm:$0xff]
        %v501 = vld [vmem:[%s187 + $0x878] sm:$0xff]
        %v502 = vld [vmem:[%s187 + $0x880] sm:$0xff]
        %v503 = vld [vmem:[%s187 + $0x888] sm:$0xff]
        %v504 = vld [vmem:[%s187 + $0x890] sm:$0xff]
        %v505 = vld [vmem:[%s187 + $0x898] sm:$0xff]
        %v506 = vld [vmem:[%s187 + $0x8a0] sm:$0xff]
        %v507 = vld [vmem:[%s187 + $0x8a8] sm:$0xff]
        %v508 = vld [vmem:[%s187 + $0x8b0] sm:$0xff]
        %v509 = vld [vmem:[%s187 + $0x8b8] sm:$0xff]
        %v510 = vld [vmem:[%s187 + $0x8c0] sm:$0xff]
        %v511 = vld [vmem:[%s187 + $0x8c8] sm:$0xff]
        %v512 = vld [vmem:[%s187 + $0x8d0] sm:$0xff]
        %v513 = vld [vmem:[%s187 + $0x8d8] sm:$0xff]
        %v514 = vld [vmem:[%s187 + $0x8e0] sm:$0xff]
        %v515 = vld [vmem:[%s187 + $0x8e8] sm:$0xff]
        %v516 = vld [vmem:[%s187 + $0x8f0] sm:$0xff]
        %v517 = vld [vmem:[%s187 + $0x8f8] sm:$0xff]
        %v518 = vld [vmem:[%s187 + $0x900] sm:$0xff]
        %v519 = vld [vmem:[%s187 + $0x908] sm:$0xff]
        %v520 = vld [vmem:[%s187 + $0x910] sm:$0xff]
        %v521 = vld [vmem:[%s187 + $0x918] sm:$0xff]
        %v522 = vld [vmem:[%s187 + $0x920] sm:$0xff]
        %v523 = vld [vmem:[%s187 + $0x928] sm:$0xff]
        %v524 = vld [vmem:[%s187 + $0x930] sm:$0xff]
        %v525 = vld [vmem:[%s187 + $0x938] sm:$0xff]
        %v526 = vld [vmem:[%s187 + $0x940] sm:$0xff]
        %v527 = vld [vmem:[%s187 + $0x948] sm:$0xff]
        %v528 = vld [vmem:[%s187 + $0x950] sm:$0xff]
        %v529 = vld [vmem:[%s187 + $0x958] sm:$0xff]
        %v530 = vld [vmem:[%s187 + $0x960] sm:$0xff]
        %v531 = vld [vmem:[%s187 + $0x968] sm:$0xff]
        %v532 = vld [vmem:[%s187 + $0x970] sm:$0xff]
        %v533 = vld [vmem:[%s187 + $0x978] sm:$0xff]
        %v534 = vld [vmem:[%s187 + $0x980] sm:$0xff]
        %v535 = vld [vmem:[%s187 + $0x988] sm:$0xff]
        %v536 = vld [vmem:[%s187 + $0x990] sm:$0xff]
        %v537 = vld [vmem:[%s187 + $0x998] sm:$0xff]
        %v538 = vld [vmem:[%s187 + $0x9a0] sm:$0xff]
        %v539 = vld [vmem:[%s187 + $0x9a8] sm:$0xff]
        %v540 = vld [vmem:[%s187 + $0x9b0] sm:$0xff]
        %v541 = vld [vmem:[%s187 + $0x9b8] sm:$0xff]
        %v542 = vld [vmem:[%s187 + $0x9c0] sm:$0xff]
        %v543 = vld [vmem:[%s187 + $0x9c8] sm:$0xff]
        %v544 = vld [vmem:[%s187 + $0x9d0] sm:$0xff]
        %v545 = vld [vmem:[%s187 + $0x9d8] sm:$0xff]
        %v546 = vld [vmem:[%s187 + $0x9e0] sm:$0xff]
        %v547 = vld [vmem:[%s187 + $0x9e8] sm:$0xff]
        %v548 = vld [vmem:[%s187 + $0x9f0] sm:$0xff]
        %v549 = vld [vmem:[%s187 + $0x9f8] sm:$0xff]
        %v550 = vld [vmem:[%s187 + $0xa00] sm:$0xff]
        %v551 = vld [vmem:[%s187 + $0xa08] sm:$0xff]
        %v552 = vld [vmem:[%s187 + $0xa10] sm:$0xff]
        %v553 = vld [vmem:[%s187 + $0xa18] sm:$0xff]
        %v554 = vld [vmem:[%s187 + $0xa20] sm:$0xff]
        %v555 = vld [vmem:[%s187 + $0xa28] sm:$0xff]
        %v556 = vld [vmem:[%s187 + $0xa30] sm:$0xff]
        %v557 = vld [vmem:[%s187 + $0xa38] sm:$0xff]
        %v558 = vld [vmem:[%s187 + $0xa40] sm:$0xff]
        %v559 = vld [vmem:[%s187 + $0xa48] sm:$0xff]
        %v560 = vld [vmem:[%s187 + $0xa50] sm:$0xff]
        %v561 = vld [vmem:[%s187 + $0xa58] sm:$0xff]
        %v562 = vld [vmem:[%s187 + $0xa60] sm:$0xff]
        %v563 = vld [vmem:[%s187 + $0xa68] sm:$0xff]
        %v564 = vld [vmem:[%s187 + $0xa70] sm:$0xff]
        %v565 = vld [vmem:[%s187 + $0xa78] sm:$0xff]
        %v566 = vld [vmem:[%s187 + $0xa80] sm:$0xff]
        %v567 = vld [vmem:[%s187 + $0xa88] sm:$0xff]
        %v568 = vld [vmem:[%s187 + $0xa90] sm:$0xff]
        %v569 = vld [vmem:[%s187 + $0xa98] sm:$0xff]
        %v570 = vld [vmem:[%s187 + $0xaa0] sm:$0xff]
        %v571 = vld [vmem:[%s187 + $0xaa8] sm:$0xff]
        %v572 = vld [vmem:[%s187 + $0xab0] sm:$0xff]
        %v573 = vld [vmem:[%s187 + $0xab8] sm:$0xff]
        %v574 = vld [vmem:[%s187 + $0xac0] sm:$0xff]
        %v575 = vld [vmem:[%s187 + $0xac8] sm:$0xff]
        %v576 = vld [vmem:[%s187 + $0xad0] sm:$0xff]
        %v577 = vld [vmem:[%s187 + $0xad8] sm:$0xff]
        %v578 = vld [vmem:[%s187 + $0xae0] sm:$0xff]
        %v579 = vld [vmem:[%s187 + $0xae8] sm:$0xff]
        %v580 = vld [vmem:[%s187 + $0xaf0] sm:$0xff]
        %v581 = vld [vmem:[%s187 + $0xaf8] sm:$0xff]
        %v582 = vld [vmem:[%s187 + $0xb00] sm:$0xff]
        %v583 = vld [vmem:[%s187 + $0xb08] sm:$0xff]
        %v584 = vld [vmem:[%s187 + $0xb10] sm:$0xff]
        %v585 = vld [vmem:[%s187 + $0xb18] sm:$0xff]
        %v586 = vld [vmem:[%s187 + $0xb20] sm:$0xff]
        %v587 = vld [vmem:[%s187 + $0xb28] sm:$0xff]
        %v588 = vld [vmem:[%s187 + $0xb30] sm:$0xff]
        %v589 = vld [vmem:[%s187 + $0xb38] sm:$0xff]
        %v590 = vld [vmem:[%s187 + $0xb40] sm:$0xff]
        %v591 = vld [vmem:[%s187 + $0xb48] sm:$0xff]
        %v592 = vld [vmem:[%s187 + $0xb50] sm:$0xff]
        %v593 = vld [vmem:[%s187 + $0xb58] sm:$0xff]
        %v594 = vld [vmem:[%s187 + $0xb60] sm:$0xff]
        %v595 = vld [vmem:[%s187 + $0xb68] sm:$0xff]
        %v596 = vld [vmem:[%s187 + $0xb70] sm:$0xff]
        %v597 = vld [vmem:[%s187 + $0xb78] sm:$0xff]
        %v598 = vld [vmem:[%s187 + $0xb80] sm:$0xff]
        %v599 = vld [vmem:[%s187 + $0xb88] sm:$0xff]
        %v600 = vld [vmem:[%s187 + $0xb90] sm:$0xff]
        %v601 = vld [vmem:[%s187 + $0xb98] sm:$0xff]
        %v602 = vld [vmem:[%s187 + $0xba0] sm:$0xff]
        %v603 = vld [vmem:[%s187 + $0xba8] sm:$0xff]
        %v604 = vld [vmem:[%s187 + $0xbb0] sm:$0xff]
        %v605 = vld [vmem:[%s187 + $0xbb8] sm:$0xff]
        %v606 = vld [vmem:[%s187 + $0xbc0] sm:$0xff]
        %v607 = vld [vmem:[%s187 + $0xbc8] sm:$0xff]
        %v608 = vld [vmem:[%s187 + $0xbd0] sm:$0xff]
        %v609 = vld [vmem:[%s187 + $0xbd8] sm:$0xff]
        %v610 = vld [vmem:[%s187 + $0xbe0] sm:$0xff]
        %v611 = vld [vmem:[%s187 + $0xbe8] sm:$0xff]
        %v612 = vld [vmem:[%s187 + $0xbf0] sm:$0xff]
        %v613 = vld [vmem:[%s187 + $0xbf8] sm:$0xff]
        %v614 = vld [vmem:[%s187 + $0xc00] sm:$0xff]
        %v615 = vld [vmem:[%s187 + $0xc08] sm:$0xff]
        %v616 = vld [vmem:[%s187 + $0xc10] sm:$0xff]
        %v617 = vld [vmem:[%s187 + $0xc18] sm:$0xff]
        %v618 = vld [vmem:[%s187 + $0xc20] sm:$0xff]
        %v619 = vld [vmem:[%s187 + $0xc28] sm:$0xff]
        %v620 = vld [vmem:[%s187 + $0xc30] sm:$0xff]
        %v621 = vld [vmem:[%s187 + $0xc38] sm:$0xff]
        %v622 = vld [vmem:[%s187 + $0xc40] sm:$0xff]
        %v623 = vld [vmem:[%s187 + $0xc48] sm:$0xff]
        %v624 = vld [vmem:[%s187 + $0xc50] sm:$0xff]
        %v625 = vld [vmem:[%s187 + $0xc58] sm:$0xff]
        %v626 = vld [vmem:[%s187 + $0xc60] sm:$0xff]
        %v627 = vld [vmem:[%s187 + $0xc68] sm:$0xff]
        %v628 = vld [vmem:[%s187 + $0xc70] sm:$0xff]
        %v629 = vld [vmem:[%s187 + $0xc78] sm:$0xff]
        %v630 = vld [vmem:[%s187 + $0xc80] sm:$0xff]
        %v631 = vld [vmem:[%s187 + $0xc88] sm:$0xff]
        %v632 = vld [vmem:[%s187 + $0xc90] sm:$0xff]
        %v633 = vld [vmem:[%s187 + $0xc98] sm:$0xff]
        %v634 = vld [vmem:[%s187 + $0xca0] sm:$0xff]
        %v635 = vld [vmem:[%s187 + $0xca8] sm:$0xff]
        %v636 = vld [vmem:[%s187 + $0xcb0] sm:$0xff]
        %v637 = vld [vmem:[%s187 + $0xcb8] sm:$0xff]
        %v638 = vld [vmem:[%s187 + $0xcc0] sm:$0xff]
        %v639 = vld [vmem:[%s187 + $0xcc8] sm:$0xff]
        %v640 = vld [vmem:[%s187 + $0xcd0] sm:$0xff]
        %v641 = vld [vmem:[%s187 + $0xcd8] sm:$0xff]
        %v642 = vld [vmem:[%s187 + $0xce0] sm:$0xff]
        %v643 = vld [vmem:[%s187 + $0xce8] sm:$0xff]
        %v644 = vld [vmem:[%s187 + $0xcf0] sm:$0xff]
        %v645 = vld [vmem:[%s187 + $0xcf8] sm:$0xff]
        %v646 = vld [vmem:[%s187 + $0xd00] sm:$0xff]
        %v647 = vld [vmem:[%s187 + $0xd08] sm:$0xff]
        %v648 = vld [vmem:[%s187 + $0xd10] sm:$0xff]
        %v649 = vld [vmem:[%s187 + $0xd18] sm:$0xff]
        %v650 = vld [vmem:[%s187 + $0xd20] sm:$0xff]
        %v651 = vld [vmem:[%s187 + $0xd28] sm:$0xff]
        %v652 = vld [vmem:[%s187 + $0xd30] sm:$0xff]
        %v653 = vld [vmem:[%s187 + $0xd38] sm:$0xff]
        %v654 = vld [vmem:[%s187 + $0xd40] sm:$0xff]
        %v655 = vld [vmem:[%s187 + $0xd48] sm:$0xff]
        %v656 = vld [vmem:[%s187 + $0xd50] sm:$0xff]
        %v657 = vld [vmem:[%s187 + $0xd58] sm:$0xff]
        %v658 = vld [vmem:[%s187 + $0xd60] sm:$0xff]
        %v659 = vld [vmem:[%s187 + $0xd68] sm:$0xff]
        %v660 = vld [vmem:[%s187 + $0xd70] sm:$0xff]
        %v661 = vld [vmem:[%s187 + $0xd78] sm:$0xff]
        %v662 = vld [vmem:[%s187 + $0xd80] sm:$0xff]
        %v663 = vld [vmem:[%s187 + $0xd88] sm:$0xff]
        %v664 = vld [vmem:[%s187 + $0xd90] sm:$0xff]
        %v665 = vld [vmem:[%s187 + $0xd98] sm:$0xff]
        %v666 = vld [vmem:[%s187 + $0xda0] sm:$0xff]
        %v667 = vld [vmem:[%s187 + $0xda8] sm:$0xff]
        %v668 = vld [vmem:[%s187 + $0xdb0] sm:$0xff]
        %v669 = vld [vmem:[%s187 + $0xdb8] sm:$0xff]
        %v670 = vld [vmem:[%s187 + $0xdc0] sm:$0xff]
        %v671 = vld [vmem:[%s187 + $0xdc8] sm:$0xff]
        %v672 = vld [vmem:[%s187 + $0xdd0] sm:$0xff]
        %v673 = vld [vmem:[%s187 + $0xdd8] sm:$0xff]
        %v674 = vld [vmem:[%s187 + $0xde0] sm:$0xff]
        %v675 = vld [vmem:[%s187 + $0xde8] sm:$0xff]
        %v676 = vld [vmem:[%s187 + $0xdf0] sm:$0xff]
        %v677 = vld [vmem:[%s187 + $0xdf8] sm:$0xff]
        %v678 = vld [vmem:[%s187 + $0xe00] sm:$0xff]
        %v679 = vld [vmem:[%s187 + $0xe08] sm:$0xff]
        %v680 = vld [vmem:[%s187 + $0xe10] sm:$0xff]
        %v681 = vld [vmem:[%s187 + $0xe18] sm:$0xff]
        %v682 = vld [vmem:[%s187 + $0xe20] sm:$0xff]
        %v683 = vld [vmem:[%s187 + $0xe28] sm:$0xff]
        %v684 = vld [vmem:[%s187 + $0xe30] sm:$0xff]
        %v685 = vld [vmem:[%s187 + $0xe38] sm:$0xff]
        %v686 = vld [vmem:[%s187 + $0xe40] sm:$0xff]
        %v687 = vld [vmem:[%s187 + $0xe48] sm:$0xff]
        %v688 = vld [vmem:[%s187 + $0xe50] sm:$0xff]
        %v689 = vld [vmem:[%s187 + $0xe58] sm:$0xff]
        %v690 = vld [vmem:[%s187 + $0xe60] sm:$0xff]
        %v691 = vld [vmem:[%s187 + $0xe68] sm:$0xff]
        %v692 = vld [vmem:[%s187 + $0xe70] sm:$0xff]
        %v693 = vld [vmem:[%s187 + $0xe78] sm:$0xff]
        %v694 = vld [vmem:[%s187 + $0xe80] sm:$0xff]
        %v695 = vld [vmem:[%s187 + $0xe88] sm:$0xff]
        %v696 = vld [vmem:[%s187 + $0xe90] sm:$0xff]
        %v697 = vld [vmem:[%s187 + $0xe98] sm:$0xff]
        %v698 = vld [vmem:[%s187 + $0xea0] sm:$0xff]
        %v699 = vld [vmem:[%s187 + $0xea8] sm:$0xff]
        %v700 = vld [vmem:[%s187 + $0xeb0] sm:$0xff]
        %v701 = vld [vmem:[%s187 + $0xeb8] sm:$0xff]
        %v702 = vld [vmem:[%s187 + $0xec0] sm:$0xff]
        %v703 = vld [vmem:[%s187 + $0xec8] sm:$0xff]
        %v704 = vld [vmem:[%s187 + $0xed0] sm:$0xff]
        %v705 = vld [vmem:[%s187 + $0xed8] sm:$0xff]
        %v706 = vld [vmem:[%s187 + $0xee0] sm:$0xff]
        %v707 = vld [vmem:[%s187 + $0xee8] sm:$0xff]
        %v708 = vld [vmem:[%s187 + $0xef0] sm:$0xff]
        %v709 = vld [vmem:[%s187 + $0xef8] sm:$0xff]
        %v710 = vld [vmem:[%s187 + $0xf00] sm:$0xff]
        %v711 = vld [vmem:[%s187 + $0xf08] sm:$0xff]
        %v712 = vld [vmem:[%s187 + $0xf10] sm:$0xff]
        %v713 = vld [vmem:[%s187 + $0xf18] sm:$0xff]
        %v714 = vld [vmem:[%s187 + $0xf20] sm:$0xff]
        %v715 = vld [vmem:[%s187 + $0xf28] sm:$0xff]
        %v716 = vld [vmem:[%s187 + $0xf30] sm:$0xff]
        %v717 = vld [vmem:[%s187 + $0xf38] sm:$0xff]
        %v718 = vld [vmem:[%s187 + $0xf40] sm:$0xff]
        %v719 = vld [vmem:[%s187 + $0xf48] sm:$0xff]
        %v720 = vld [vmem:[%s187 + $0xf50] sm:$0xff]
        %v721 = vld [vmem:[%s187 + $0xf58] sm:$0xff]
        %v722 = vld [vmem:[%s187 + $0xf60] sm:$0xff]
        %v723 = vld [vmem:[%s187 + $0xf68] sm:$0xff]
        %v724 = vld [vmem:[%s187 + $0xf70] sm:$0xff]
        %v725 = vld [vmem:[%s187 + $0xf78] sm:$0xff]
        %v726 = vld [vmem:[%s187 + $0xf80] sm:$0xff]
        %v727 = vld [vmem:[%s187 + $0xf88] sm:$0xff]
        %v728 = vld [vmem:[%s187 + $0xf90] sm:$0xff]
        %v729 = vld [vmem:[%s187 + $0xf98] sm:$0xff]
        %v730 = vld [vmem:[%s187 + $0xfa0] sm:$0xff]
        %v731 = vld [vmem:[%s187 + $0xfa8] sm:$0xff]
        %v732 = vld [vmem:[%s187 + $0xfb0] sm:$0xff]
        %v733 = vld [vmem:[%s187 + $0xfb8] sm:$0xff]
        %v734 = vld [vmem:[%s187 + $0xfc0] sm:$0xff]
        %v735 = vld [vmem:[%s187 + $0xfc8] sm:$0xff]
        %v736 = vld [vmem:[%s187 + $0xfd0] sm:$0xff]
        %v737 = vld [vmem:[%s187 + $0xfd8] sm:$0xff]
        %v738 = vld [vmem:[%s187 + $0xfe0] sm:$0xff]
        %v739 = vld [vmem:[%s187 + $0xfe8] sm:$0xff]
        %v740 = vld [vmem:[%s187 + $0xff0] sm:$0xff]
        %v741 = vld [vmem:[%s187 + $0xff8] sm:$0xff]
        %v742 = vunpack.c.l.s8.bf16 %v230
        %v743 = vunpack.c.l.s8.bf16 %v231
        %v744 = vunpack.c.l.s8.bf16 %v232
        %v745 = vunpack.c.l.s8.bf16 %v233
        %v746 = vunpack.c.l.s8.bf16 %v234
        %v747 = vunpack.c.l.s8.bf16 %v235
        %v748 = vunpack.c.l.s8.bf16 %v236
        %v749 = vunpack.c.l.s8.bf16 %v237
        %v750 = vunpack.c.l.s8.bf16 %v238
        %v751 = vunpack.c.l.s8.bf16 %v239
        %v752 = vunpack.c.l.s8.bf16 %v240
        %v753 = vunpack.c.l.s8.bf16 %v241
        %v754 = vunpack.c.l.s8.bf16 %v242
        %v755 = vunpack.c.l.s8.bf16 %v243
        %v756 = vunpack.c.l.s8.bf16 %v244
        %v757 = vunpack.c.l.s8.bf16 %v245
        %v758 = vunpack.c.l.s8.bf16 %v246
        %v759 = vunpack.c.l.s8.bf16 %v247
        %v760 = vunpack.c.l.s8.bf16 %v248
        %v761 = vunpack.c.l.s8.bf16 %v249
        %v762 = vunpack.c.l.s8.bf16 %v250
        %v763 = vunpack.c.l.s8.bf16 %v251
        %v764 = vunpack.c.l.s8.bf16 %v252
        %v765 = vunpack.c.l.s8.bf16 %v253
        %v766 = vunpack.c.l.s8.bf16 %v254
        %v767 = vunpack.c.l.s8.bf16 %v255
        %v768 = vunpack.c.l.s8.bf16 %v256
        %v769 = vunpack.c.l.s8.bf16 %v257
        %v770 = vunpack.c.l.s8.bf16 %v258
        %v771 = vunpack.c.l.s8.bf16 %v259
        %v772 = vunpack.c.l.s8.bf16 %v260
        %v773 = vunpack.c.l.s8.bf16 %v261
        %v774 = vunpack.c.l.s8.bf16 %v262
        %v775 = vunpack.c.l.s8.bf16 %v263
        %v776 = vunpack.c.l.s8.bf16 %v264
        %v777 = vunpack.c.l.s8.bf16 %v265
        %v778 = vunpack.c.l.s8.bf16 %v266
        %v779 = vunpack.c.l.s8.bf16 %v267
        %v780 = vunpack.c.l.s8.bf16 %v268
        %v781 = vunpack.c.l.s8.bf16 %v269
        %v782 = vunpack.c.l.s8.bf16 %v270
        %v783 = vunpack.c.l.s8.bf16 %v271
        %v784 = vunpack.c.l.s8.bf16 %v272
        %v785 = vunpack.c.l.s8.bf16 %v273
        %v786 = vunpack.c.l.s8.bf16 %v274
        %v787 = vunpack.c.l.s8.bf16 %v275
        %v788 = vunpack.c.l.s8.bf16 %v276
        %v789 = vunpack.c.l.s8.bf16 %v277
        %v790 = vunpack.c.l.s8.bf16 %v278
        %v791 = vunpack.c.l.s8.bf16 %v279
        %v792 = vunpack.c.l.s8.bf16 %v280
        %v793 = vunpack.c.l.s8.bf16 %v281
        %v794 = vunpack.c.l.s8.bf16 %v282
        %v795 = vunpack.c.l.s8.bf16 %v283
        %v796 = vunpack.c.l.s8.bf16 %v284
        %v797 = vunpack.c.l.s8.bf16 %v285
        %v798 = vunpack.c.l.s8.bf16 %v286
        %v799 = vunpack.c.l.s8.bf16 %v287
        %v800 = vunpack.c.l.s8.bf16 %v288
        %v801 = vunpack.c.l.s8.bf16 %v289
        %v802 = vunpack.c.l.s8.bf16 %v290
        %v803 = vunpack.c.l.s8.bf16 %v291
        %v804 = vunpack.c.l.s8.bf16 %v292
        %v805 = vunpack.c.l.s8.bf16 %v293
        %v806 = vunpack.c.h.s8.bf16 %v230
        %v807 = vunpack.c.h.s8.bf16 %v231
        %v808 = vunpack.c.h.s8.bf16 %v232
        %v809 = vunpack.c.h.s8.bf16 %v233
        %v810 = vunpack.c.h.s8.bf16 %v234
        %v811 = vunpack.c.h.s8.bf16 %v235
        %v812 = vunpack.c.h.s8.bf16 %v236
        %v813 = vunpack.c.h.s8.bf16 %v237
        %v814 = vunpack.c.h.s8.bf16 %v238
        %v815 = vunpack.c.h.s8.bf16 %v239
        %v816 = vunpack.c.h.s8.bf16 %v240
        %v817 = vunpack.c.h.s8.bf16 %v241
        %v818 = vunpack.c.h.s8.bf16 %v242
        %v819 = vunpack.c.h.s8.bf16 %v243
        %v820 = vunpack.c.h.s8.bf16 %v244
        %v821 = vunpack.c.h.s8.bf16 %v245
        %v822 = vunpack.c.h.s8.bf16 %v246
        %v823 = vunpack.c.h.s8.bf16 %v247
        %v824 = vunpack.c.h.s8.bf16 %v248
        %v825 = vunpack.c.h.s8.bf16 %v249
        %v826 = vunpack.c.h.s8.bf16 %v250
        %v827 = vunpack.c.h.s8.bf16 %v251
        %v828 = vunpack.c.h.s8.bf16 %v252
        %v829 = vunpack.c.h.s8.bf16 %v253
        %v830 = vunpack.c.h.s8.bf16 %v254
        %v831 = vunpack.c.h.s8.bf16 %v255
        %v832 = vunpack.c.h.s8.bf16 %v256
        %v833 = vunpack.c.h.s8.bf16 %v257
        %v834 = vunpack.c.h.s8.bf16 %v258
        %v835 = vunpack.c.h.s8.bf16 %v259
        %v836 = vunpack.c.h.s8.bf16 %v260
        %v837 = vunpack.c.h.s8.bf16 %v261
        %v838 = vunpack.c.h.s8.bf16 %v262
        %v839 = vunpack.c.h.s8.bf16 %v263
        %v840 = vunpack.c.h.s8.bf16 %v264
        %v841 = vunpack.c.h.s8.bf16 %v265
        %v842 = vunpack.c.h.s8.bf16 %v266
        %v843 = vunpack.c.h.s8.bf16 %v267
        %v844 = vunpack.c.h.s8.bf16 %v268
        %v845 = vunpack.c.h.s8.bf16 %v269
        %v846 = vunpack.c.h.s8.bf16 %v270
        %v847 = vunpack.c.h.s8.bf16 %v271
        %v848 = vunpack.c.h.s8.bf16 %v272
        %v849 = vunpack.c.h.s8.bf16 %v273
        %v850 = vunpack.c.h.s8.bf16 %v274
        %v851 = vunpack.c.h.s8.bf16 %v275
        %v852 = vunpack.c.h.s8.bf16 %v276
        %v853 = vunpack.c.h.s8.bf16 %v277
        %v854 = vunpack.c.h.s8.bf16 %v278
        %v855 = vunpack.c.h.s8.bf16 %v279
        %v856 = vunpack.c.h.s8.bf16 %v280
        %v857 = vunpack.c.h.s8.bf16 %v281
        %v858 = vunpack.c.h.s8.bf16 %v282
        %v859 = vunpack.c.h.s8.bf16 %v283
        %v860 = vunpack.c.h.s8.bf16 %v284
        %v861 = vunpack.c.h.s8.bf16 %v285
        %v862 = vunpack.c.h.s8.bf16 %v286
        %v863 = vunpack.c.h.s8.bf16 %v287
        %v864 = vunpack.c.h.s8.bf16 %v288
        %v865 = vunpack.c.h.s8.bf16 %v289
        %v866 = vunpack.c.h.s8.bf16 %v290
        %v867 = vunpack.c.h.s8.bf16 %v291
        %v868 = vunpack.c.h.s8.bf16 %v292
        %v869 = vunpack.c.h.s8.bf16 %v293
        %v870 = vunpack.c.l.s8.bf16 %v294
        %v871 = vunpack.c.l.s8.bf16 %v295
        %v872 = vunpack.c.l.s8.bf16 %v296
        %v873 = vunpack.c.l.s8.bf16 %v297
        %v874 = vunpack.c.l.s8.bf16 %v298
        %v875 = vunpack.c.l.s8.bf16 %v299
        %v876 = vunpack.c.l.s8.bf16 %v300
        %v877 = vunpack.c.l.s8.bf16 %v301
        %v878 = vunpack.c.l.s8.bf16 %v302
        %v879 = vunpack.c.l.s8.bf16 %v303
        %v880 = vunpack.c.l.s8.bf16 %v304
        %v881 = vunpack.c.l.s8.bf16 %v305
        %v882 = vunpack.c.l.s8.bf16 %v306
        %v883 = vunpack.c.l.s8.bf16 %v307
        %v884 = vunpack.c.l.s8.bf16 %v308
        %v885 = vunpack.c.l.s8.bf16 %v309
        %v886 = vunpack.c.l.s8.bf16 %v310
        %v887 = vunpack.c.l.s8.bf16 %v311
        %v888 = vunpack.c.l.s8.bf16 %v312
        %v889 = vunpack.c.l.s8.bf16 %v313
        %v890 = vunpack.c.l.s8.bf16 %v314
        %v891 = vunpack.c.l.s8.bf16 %v315
        %v892 = vunpack.c.l.s8.bf16 %v316
        %v893 = vunpack.c.l.s8.bf16 %v317
        %v894 = vunpack.c.l.s8.bf16 %v318
        %v895 = vunpack.c.l.s8.bf16 %v319
        %v896 = vunpack.c.l.s8.bf16 %v320
        %v897 = vunpack.c.l.s8.bf16 %v321
        %v898 = vunpack.c.l.s8.bf16 %v322
        %v899 = vunpack.c.l.s8.bf16 %v323
        %v900 = vunpack.c.l.s8.bf16 %v324
        %v901 = vunpack.c.l.s8.bf16 %v325
        %v902 = vunpack.c.l.s8.bf16 %v326
        %v903 = vunpack.c.l.s8.bf16 %v327
        %v904 = vunpack.c.l.s8.bf16 %v328
        %v905 = vunpack.c.l.s8.bf16 %v329
        %v906 = vunpack.c.l.s8.bf16 %v330
        %v907 = vunpack.c.l.s8.bf16 %v331
        %v908 = vunpack.c.l.s8.bf16 %v332
        %v909 = vunpack.c.l.s8.bf16 %v333
        %v910 = vunpack.c.l.s8.bf16 %v334
        %v911 = vunpack.c.l.s8.bf16 %v335
        %v912 = vunpack.c.l.s8.bf16 %v336
        %v913 = vunpack.c.l.s8.bf16 %v337
        %v914 = vunpack.c.l.s8.bf16 %v338
        %v915 = vunpack.c.l.s8.bf16 %v339
        %v916 = vunpack.c.l.s8.bf16 %v340
        %v917 = vunpack.c.l.s8.bf16 %v341
        %v918 = vunpack.c.l.s8.bf16 %v342
        %v919 = vunpack.c.l.s8.bf16 %v343
        %v920 = vunpack.c.l.s8.bf16 %v344
        %v921 = vunpack.c.l.s8.bf16 %v345
        %v922 = vunpack.c.l.s8.bf16 %v346
        %v923 = vunpack.c.l.s8.bf16 %v347
        %v924 = vunpack.c.l.s8.bf16 %v348
        %v925 = vunpack.c.l.s8.bf16 %v349
        %v926 = vunpack.c.l.s8.bf16 %v350
        %v927 = vunpack.c.l.s8.bf16 %v351
        %v928 = vunpack.c.l.s8.bf16 %v352
        %v929 = vunpack.c.l.s8.bf16 %v353
        %v930 = vunpack.c.l.s8.bf16 %v354
        %v931 = vunpack.c.l.s8.bf16 %v355
        %v932 = vunpack.c.l.s8.bf16 %v356
        %v933 = vunpack.c.l.s8.bf16 %v357
        %v934 = vunpack.c.h.s8.bf16 %v294
        %v935 = vunpack.c.h.s8.bf16 %v295
        %v936 = vunpack.c.h.s8.bf16 %v296
        %v937 = vunpack.c.h.s8.bf16 %v297
        %v938 = vunpack.c.h.s8.bf16 %v298
        %v939 = vunpack.c.h.s8.bf16 %v299
        %v940 = vunpack.c.h.s8.bf16 %v300
        %v941 = vunpack.c.h.s8.bf16 %v301
        %v942 = vunpack.c.h.s8.bf16 %v302
        %v943 = vunpack.c.h.s8.bf16 %v303
        %v944 = vunpack.c.h.s8.bf16 %v304
        %v945 = vunpack.c.h.s8.bf16 %v305
        %v946 = vunpack.c.h.s8.bf16 %v306
        %v947 = vunpack.c.h.s8.bf16 %v307
        %v948 = vunpack.c.h.s8.bf16 %v308
        %v949 = vunpack.c.h.s8.bf16 %v309
        %v950 = vunpack.c.h.s8.bf16 %v310
        %v951 = vunpack.c.h.s8.bf16 %v311
        %v952 = vunpack.c.h.s8.bf16 %v312
        %v953 = vunpack.c.h.s8.bf16 %v313
        %v954 = vunpack.c.h.s8.bf16 %v314
        %v955 = vunpack.c.h.s8.bf16 %v315
        %v956 = vunpack.c.h.s8.bf16 %v316
        %v957 = vunpack.c.h.s8.bf16 %v317
        %v958 = vunpack.c.h.s8.bf16 %v318
        %v959 = vunpack.c.h.s8.bf16 %v319
        %v960 = vunpack.c.h.s8.bf16 %v320
        %v961 = vunpack.c.h.s8.bf16 %v321
        %v962 = vunpack.c.h.s8.bf16 %v322
        %v963 = vunpack.c.h.s8.bf16 %v323
        %v964 = vunpack.c.h.s8.bf16 %v324
        %v965 = vunpack.c.h.s8.bf16 %v325
        %v966 = vunpack.c.h.s8.bf16 %v326
        %v967 = vunpack.c.h.s8.bf16 %v327
        %v968 = vunpack.c.h.s8.bf16 %v328
        %v969 = vunpack.c.h.s8.bf16 %v329
        %v970 = vunpack.c.h.s8.bf16 %v330
        %v971 = vunpack.c.h.s8.bf16 %v331
        %v972 = vunpack.c.h.s8.bf16 %v332
        %v973 = vunpack.c.h.s8.bf16 %v333
        %v974 = vunpack.c.h.s8.bf16 %v334
        %v975 = vunpack.c.h.s8.bf16 %v335
        %v976 = vunpack.c.h.s8.bf16 %v336
        %v977 = vunpack.c.h.s8.bf16 %v337
        %v978 = vunpack.c.h.s8.bf16 %v338
        %v979 = vunpack.c.h.s8.bf16 %v339
        %v980 = vunpack.c.h.s8.bf16 %v340
        %v981 = vunpack.c.h.s8.bf16 %v341
        %v982 = vunpack.c.h.s8.bf16 %v342
        %v983 = vunpack.c.h.s8.bf16 %v343
        %v984 = vunpack.c.h.s8.bf16 %v344
        %v985 = vunpack.c.h.s8.bf16 %v345
        %v986 = vunpack.c.h.s8.bf16 %v346
        %v987 = vunpack.c.h.s8.bf16 %v347
        %v988 = vunpack.c.h.s8.bf16 %v348
        %v989 = vunpack.c.h.s8.bf16 %v349
        %v990 = vunpack.c.h.s8.bf16 %v350
        %v991 = vunpack.c.h.s8.bf16 %v351
        %v992 = vunpack.c.h.s8.bf16 %v352
        %v993 = vunpack.c.h.s8.bf16 %v353
        %v994 = vunpack.c.h.s8.bf16 %v354
        %v995 = vunpack.c.h.s8.bf16 %v355
        %v996 = vunpack.c.h.s8.bf16 %v356
        %v997 = vunpack.c.h.s8.bf16 %v357
        %v998 = vunpack.c.l.s8.bf16 %v358
        %v999 = vunpack.c.l.s8.bf16 %v359
        %v1000 = vunpack.c.l.s8.bf16 %v360
        %v1001 = vunpack.c.l.s8.bf16 %v361
        %v1002 = vunpack.c.l.s8.bf16 %v362
        %v1003 = vunpack.c.l.s8.bf16 %v363
        %v1004 = vunpack.c.l.s8.bf16 %v364
        %v1005 = vunpack.c.l.s8.bf16 %v365
        %v1006 = vunpack.c.l.s8.bf16 %v366
        %v1007 = vunpack.c.l.s8.bf16 %v367
        %v1008 = vunpack.c.l.s8.bf16 %v368
        %v1009 = vunpack.c.l.s8.bf16 %v369
        %v1010 = vunpack.c.l.s8.bf16 %v370
        %v1011 = vunpack.c.l.s8.bf16 %v371
        %v1012 = vunpack.c.l.s8.bf16 %v372
        %v1013 = vunpack.c.l.s8.bf16 %v373
        %v1014 = vunpack.c.l.s8.bf16 %v374
        %v1015 = vunpack.c.l.s8.bf16 %v375
        %v1016 = vunpack.c.l.s8.bf16 %v376
        %v1017 = vunpack.c.l.s8.bf16 %v377
        %v1018 = vunpack.c.l.s8.bf16 %v378
        %v1019 = vunpack.c.l.s8.bf16 %v379
        %v1020 = vunpack.c.l.s8.bf16 %v380
        %v1021 = vunpack.c.l.s8.bf16 %v381
        %v1022 = vunpack.c.l.s8.bf16 %v382
        %v1023 = vunpack.c.l.s8.bf16 %v383
        %v1024 = vunpack.c.l.s8.bf16 %v384
        %v1025 = vunpack.c.l.s8.bf16 %v385
        %v1026 = vunpack.c.l.s8.bf16 %v386
        %v1027 = vunpack.c.l.s8.bf16 %v387
        %v1028 = vunpack.c.l.s8.bf16 %v388
        %v1029 = vunpack.c.l.s8.bf16 %v389
        %v1030 = vunpack.c.l.s8.bf16 %v390
        %v1031 = vunpack.c.l.s8.bf16 %v391
        %v1032 = vunpack.c.l.s8.bf16 %v392
        %v1033 = vunpack.c.l.s8.bf16 %v393
        %v1034 = vunpack.c.l.s8.bf16 %v394
        %v1035 = vunpack.c.l.s8.bf16 %v395
        %v1036 = vunpack.c.l.s8.bf16 %v396
        %v1037 = vunpack.c.l.s8.bf16 %v397
        %v1038 = vunpack.c.l.s8.bf16 %v398
        %v1039 = vunpack.c.l.s8.bf16 %v399
        %v1040 = vunpack.c.l.s8.bf16 %v400
        %v1041 = vunpack.c.l.s8.bf16 %v401
        %v1042 = vunpack.c.l.s8.bf16 %v402
        %v1043 = vunpack.c.l.s8.bf16 %v403
        %v1044 = vunpack.c.l.s8.bf16 %v404
        %v1045 = vunpack.c.l.s8.bf16 %v405
        %v1046 = vunpack.c.l.s8.bf16 %v406
        %v1047 = vunpack.c.l.s8.bf16 %v407
        %v1048 = vunpack.c.l.s8.bf16 %v408
        %v1049 = vunpack.c.l.s8.bf16 %v409
        %v1050 = vunpack.c.l.s8.bf16 %v410
        %v1051 = vunpack.c.l.s8.bf16 %v411
        %v1052 = vunpack.c.l.s8.bf16 %v412
        %v1053 = vunpack.c.l.s8.bf16 %v413
        %v1054 = vunpack.c.l.s8.bf16 %v414
        %v1055 = vunpack.c.l.s8.bf16 %v415
        %v1056 = vunpack.c.l.s8.bf16 %v416
        %v1057 = vunpack.c.l.s8.bf16 %v417
        %v1058 = vunpack.c.l.s8.bf16 %v418
        %v1059 = vunpack.c.l.s8.bf16 %v419
        %v1060 = vunpack.c.l.s8.bf16 %v420
        %v1061 = vunpack.c.l.s8.bf16 %v421
        %v1062 = vunpack.c.h.s8.bf16 %v358
        %v1063 = vunpack.c.h.s8.bf16 %v359
        %v1064 = vunpack.c.h.s8.bf16 %v360
        %v1065 = vunpack.c.h.s8.bf16 %v361
        %v1066 = vunpack.c.h.s8.bf16 %v362
        %v1067 = vunpack.c.h.s8.bf16 %v363
        %v1068 = vunpack.c.h.s8.bf16 %v364
        %v1069 = vunpack.c.h.s8.bf16 %v365
        %v1070 = vunpack.c.h.s8.bf16 %v366
        %v1071 = vunpack.c.h.s8.bf16 %v367
        %v1072 = vunpack.c.h.s8.bf16 %v368
        %v1073 = vunpack.c.h.s8.bf16 %v369
        %v1074 = vunpack.c.h.s8.bf16 %v370
        %v1075 = vunpack.c.h.s8.bf16 %v371
        %v1076 = vunpack.c.h.s8.bf16 %v372
        %v1077 = vunpack.c.h.s8.bf16 %v373
        %v1078 = vunpack.c.h.s8.bf16 %v374
        %v1079 = vunpack.c.h.s8.bf16 %v375
        %v1080 = vunpack.c.h.s8.bf16 %v376
        %v1081 = vunpack.c.h.s8.bf16 %v377
        %v1082 = vunpack.c.h.s8.bf16 %v378
        %v1083 = vunpack.c.h.s8.bf16 %v379
        %v1084 = vunpack.c.h.s8.bf16 %v380
        %v1085 = vunpack.c.h.s8.bf16 %v381
        %v1086 = vunpack.c.h.s8.bf16 %v382
        %v1087 = vunpack.c.h.s8.bf16 %v383
        %v1088 = vunpack.c.h.s8.bf16 %v384
        %v1089 = vunpack.c.h.s8.bf16 %v385
        %v1090 = vunpack.c.h.s8.bf16 %v386
        %v1091 = vunpack.c.h.s8.bf16 %v387
        %v1092 = vunpack.c.h.s8.bf16 %v388
        %v1093 = vunpack.c.h.s8.bf16 %v389
        %v1094 = vunpack.c.h.s8.bf16 %v390
        %v1095 = vunpack.c.h.s8.bf16 %v391
        %v1096 = vunpack.c.h.s8.bf16 %v392
        %v1097 = vunpack.c.h.s8.bf16 %v393
        %v1098 = vunpack.c.h.s8.bf16 %v394
        %v1099 = vunpack.c.h.s8.bf16 %v395
        %v1100 = vunpack.c.h.s8.bf16 %v396
        %v1101 = vunpack.c.h.s8.bf16 %v397
        %v1102 = vunpack.c.h.s8.bf16 %v398
        %v1103 = vunpack.c.h.s8.bf16 %v399
        %v1104 = vunpack.c.h.s8.bf16 %v400
        %v1105 = vunpack.c.h.s8.bf16 %v401
        %v1106 = vunpack.c.h.s8.bf16 %v402
        %v1107 = vunpack.c.h.s8.bf16 %v403
        %v1108 = vunpack.c.h.s8.bf16 %v404
        %v1109 = vunpack.c.h.s8.bf16 %v405
        %v1110 = vunpack.c.h.s8.bf16 %v406
        %v1111 = vunpack.c.h.s8.bf16 %v407
        %v1112 = vunpack.c.h.s8.bf16 %v408
        %v1113 = vunpack.c.h.s8.bf16 %v409
        %v1114 = vunpack.c.h.s8.bf16 %v410
        %v1115 = vunpack.c.h.s8.bf16 %v411
        %v1116 = vunpack.c.h.s8.bf16 %v412
        %v1117 = vunpack.c.h.s8.bf16 %v413
        %v1118 = vunpack.c.h.s8.bf16 %v414
        %v1119 = vunpack.c.h.s8.bf16 %v415
        %v1120 = vunpack.c.h.s8.bf16 %v416
        %v1121 = vunpack.c.h.s8.bf16 %v417
        %v1122 = vunpack.c.h.s8.bf16 %v418
        %v1123 = vunpack.c.h.s8.bf16 %v419
        %v1124 = vunpack.c.h.s8.bf16 %v420
        %v1125 = vunpack.c.h.s8.bf16 %v421
        %v1126 = vunpack.c.l.s8.bf16 %v422
        %v1127 = vunpack.c.l.s8.bf16 %v423
        %v1128 = vunpack.c.l.s8.bf16 %v424
        %v1129 = vunpack.c.l.s8.bf16 %v425
        %v1130 = vunpack.c.l.s8.bf16 %v426
        %v1131 = vunpack.c.l.s8.bf16 %v427
        %v1132 = vunpack.c.l.s8.bf16 %v428
        %v1133 = vunpack.c.l.s8.bf16 %v429
        %v1134 = vunpack.c.l.s8.bf16 %v430
        %v1135 = vunpack.c.l.s8.bf16 %v431
        %v1136 = vunpack.c.l.s8.bf16 %v432
        %v1137 = vunpack.c.l.s8.bf16 %v433
        %v1138 = vunpack.c.l.s8.bf16 %v434
        %v1139 = vunpack.c.l.s8.bf16 %v435
        %v1140 = vunpack.c.l.s8.bf16 %v436
        %v1141 = vunpack.c.l.s8.bf16 %v437
        %v1142 = vunpack.c.l.s8.bf16 %v438
        %v1143 = vunpack.c.l.s8.bf16 %v439
        %v1144 = vunpack.c.l.s8.bf16 %v440
        %v1145 = vunpack.c.l.s8.bf16 %v441
        %v1146 = vunpack.c.l.s8.bf16 %v442
        %v1147 = vunpack.c.l.s8.bf16 %v443
        %v1148 = vunpack.c.l.s8.bf16 %v444
        %v1149 = vunpack.c.l.s8.bf16 %v445
        %v1150 = vunpack.c.l.s8.bf16 %v446
        %v1151 = vunpack.c.l.s8.bf16 %v447
        %v1152 = vunpack.c.l.s8.bf16 %v448
        %v1153 = vunpack.c.l.s8.bf16 %v449
        %v1154 = vunpack.c.l.s8.bf16 %v450
        %v1155 = vunpack.c.l.s8.bf16 %v451
        %v1156 = vunpack.c.l.s8.bf16 %v452
        %v1157 = vunpack.c.l.s8.bf16 %v453
        %v1158 = vunpack.c.l.s8.bf16 %v454
        %v1159 = vunpack.c.l.s8.bf16 %v455
        %v1160 = vunpack.c.l.s8.bf16 %v456
        %v1161 = vunpack.c.l.s8.bf16 %v457
        %v1162 = vunpack.c.l.s8.bf16 %v458
        %v1163 = vunpack.c.l.s8.bf16 %v459
        %v1164 = vunpack.c.l.s8.bf16 %v460
        %v1165 = vunpack.c.l.s8.bf16 %v461
        %v1166 = vunpack.c.l.s8.bf16 %v462
        %v1167 = vunpack.c.l.s8.bf16 %v463
        %v1168 = vunpack.c.l.s8.bf16 %v464
        %v1169 = vunpack.c.l.s8.bf16 %v465
        %v1170 = vunpack.c.l.s8.bf16 %v466
        %v1171 = vunpack.c.l.s8.bf16 %v467
        %v1172 = vunpack.c.l.s8.bf16 %v468
        %v1173 = vunpack.c.l.s8.bf16 %v469
        %v1174 = vunpack.c.l.s8.bf16 %v470
        %v1175 = vunpack.c.l.s8.bf16 %v471
        %v1176 = vunpack.c.l.s8.bf16 %v472
        %v1177 = vunpack.c.l.s8.bf16 %v473
        %v1178 = vunpack.c.l.s8.bf16 %v474
        %v1179 = vunpack.c.l.s8.bf16 %v475
        %v1180 = vunpack.c.l.s8.bf16 %v476
        %v1181 = vunpack.c.l.s8.bf16 %v477
        %v1182 = vunpack.c.l.s8.bf16 %v478
        %v1183 = vunpack.c.l.s8.bf16 %v479
        %v1184 = vunpack.c.l.s8.bf16 %v480
        %v1185 = vunpack.c.l.s8.bf16 %v481
        %v1186 = vunpack.c.l.s8.bf16 %v482
        %v1187 = vunpack.c.l.s8.bf16 %v483
        %v1188 = vunpack.c.l.s8.bf16 %v484
        %v1189 = vunpack.c.l.s8.bf16 %v485
        %v1190 = vunpack.c.h.s8.bf16 %v422
        %v1191 = vunpack.c.h.s8.bf16 %v423
        %v1192 = vunpack.c.h.s8.bf16 %v424
        %v1193 = vunpack.c.h.s8.bf16 %v425
        %v1194 = vunpack.c.h.s8.bf16 %v426
        %v1195 = vunpack.c.h.s8.bf16 %v427
        %v1196 = vunpack.c.h.s8.bf16 %v428
        %v1197 = vunpack.c.h.s8.bf16 %v429
        %v1198 = vunpack.c.h.s8.bf16 %v430
        %v1199 = vunpack.c.h.s8.bf16 %v431
        %v1200 = vunpack.c.h.s8.bf16 %v432
        %v1201 = vunpack.c.h.s8.bf16 %v433
        %v1202 = vunpack.c.h.s8.bf16 %v434
        %v1203 = vunpack.c.h.s8.bf16 %v435
        %v1204 = vunpack.c.h.s8.bf16 %v436
        %v1205 = vunpack.c.h.s8.bf16 %v437
        %v1206 = vunpack.c.h.s8.bf16 %v438
        %v1207 = vunpack.c.h.s8.bf16 %v439
        %v1208 = vunpack.c.h.s8.bf16 %v440
        %v1209 = vunpack.c.h.s8.bf16 %v441
        %v1210 = vunpack.c.h.s8.bf16 %v442
        %v1211 = vunpack.c.h.s8.bf16 %v443
        %v1212 = vunpack.c.h.s8.bf16 %v444
        %v1213 = vunpack.c.h.s8.bf16 %v445
        %v1214 = vunpack.c.h.s8.bf16 %v446
        %v1215 = vunpack.c.h.s8.bf16 %v447
        %v1216 = vunpack.c.h.s8.bf16 %v448
        %v1217 = vunpack.c.h.s8.bf16 %v449
        %v1218 = vunpack.c.h.s8.bf16 %v450
        %v1219 = vunpack.c.h.s8.bf16 %v451
        %v1220 = vunpack.c.h.s8.bf16 %v452
        %v1221 = vunpack.c.h.s8.bf16 %v453
        %v1222 = vunpack.c.h.s8.bf16 %v454
        %v1223 = vunpack.c.h.s8.bf16 %v455
        %v1224 = vunpack.c.h.s8.bf16 %v456
        %v1225 = vunpack.c.h.s8.bf16 %v457
        %v1226 = vunpack.c.h.s8.bf16 %v458
        %v1227 = vunpack.c.h.s8.bf16 %v459
        %v1228 = vunpack.c.h.s8.bf16 %v460
        %v1229 = vunpack.c.h.s8.bf16 %v461
        %v1230 = vunpack.c.h.s8.bf16 %v462
        %v1231 = vunpack.c.h.s8.bf16 %v463
        %v1232 = vunpack.c.h.s8.bf16 %v464
        %v1233 = vunpack.c.h.s8.bf16 %v465
        %v1234 = vunpack.c.h.s8.bf16 %v466
        %v1235 = vunpack.c.h.s8.bf16 %v467
        %v1236 = vunpack.c.h.s8.bf16 %v468
        %v1237 = vunpack.c.h.s8.bf16 %v469
        %v1238 = vunpack.c.h.s8.bf16 %v470
        %v1239 = vunpack.c.h.s8.bf16 %v471
        %v1240 = vunpack.c.h.s8.bf16 %v472
        %v1241 = vunpack.c.h.s8.bf16 %v473
        %v1242 = vunpack.c.h.s8.bf16 %v474
        %v1243 = vunpack.c.h.s8.bf16 %v475
        %v1244 = vunpack.c.h.s8.bf16 %v476
        %v1245 = vunpack.c.h.s8.bf16 %v477
        %v1246 = vunpack.c.h.s8.bf16 %v478
        %v1247 = vunpack.c.h.s8.bf16 %v479
        %v1248 = vunpack.c.h.s8.bf16 %v480
        %v1249 = vunpack.c.h.s8.bf16 %v481
        %v1250 = vunpack.c.h.s8.bf16 %v482
        %v1251 = vunpack.c.h.s8.bf16 %v483
        %v1252 = vunpack.c.h.s8.bf16 %v484
        %v1253 = vunpack.c.h.s8.bf16 %v485
        %v1254 = vunpack.c.l.s8.bf16 %v486
        %v1255 = vunpack.c.l.s8.bf16 %v487
        %v1256 = vunpack.c.l.s8.bf16 %v488
        %v1257 = vunpack.c.l.s8.bf16 %v489
        %v1258 = vunpack.c.l.s8.bf16 %v490
        %v1259 = vunpack.c.l.s8.bf16 %v491
        %v1260 = vunpack.c.l.s8.bf16 %v492
        %v1261 = vunpack.c.l.s8.bf16 %v493
        %v1262 = vunpack.c.l.s8.bf16 %v494
        %v1263 = vunpack.c.l.s8.bf16 %v495
        %v1264 = vunpack.c.l.s8.bf16 %v496
        %v1265 = vunpack.c.l.s8.bf16 %v497
        %v1266 = vunpack.c.l.s8.bf16 %v498
        %v1267 = vunpack.c.l.s8.bf16 %v499
        %v1268 = vunpack.c.l.s8.bf16 %v500
        %v1269 = vunpack.c.l.s8.bf16 %v501
        %v1270 = vunpack.c.l.s8.bf16 %v502
        %v1271 = vunpack.c.l.s8.bf16 %v503
        %v1272 = vunpack.c.l.s8.bf16 %v504
        %v1273 = vunpack.c.l.s8.bf16 %v505
        %v1274 = vunpack.c.l.s8.bf16 %v506
        %v1275 = vunpack.c.l.s8.bf16 %v507
        %v1276 = vunpack.c.l.s8.bf16 %v508
        %v1277 = vunpack.c.l.s8.bf16 %v509
        %v1278 = vunpack.c.l.s8.bf16 %v510
        %v1279 = vunpack.c.l.s8.bf16 %v511
        %v1280 = vunpack.c.l.s8.bf16 %v512
        %v1281 = vunpack.c.l.s8.bf16 %v513
        %v1282 = vunpack.c.l.s8.bf16 %v514
        %v1283 = vunpack.c.l.s8.bf16 %v515
        %v1284 = vunpack.c.l.s8.bf16 %v516
        %v1285 = vunpack.c.l.s8.bf16 %v517
        %v1286 = vunpack.c.l.s8.bf16 %v518
        %v1287 = vunpack.c.l.s8.bf16 %v519
        %v1288 = vunpack.c.l.s8.bf16 %v520
        %v1289 = vunpack.c.l.s8.bf16 %v521
        %v1290 = vunpack.c.l.s8.bf16 %v522
        %v1291 = vunpack.c.l.s8.bf16 %v523
        %v1292 = vunpack.c.l.s8.bf16 %v524
        %v1293 = vunpack.c.l.s8.bf16 %v525
        %v1294 = vunpack.c.l.s8.bf16 %v526
        %v1295 = vunpack.c.l.s8.bf16 %v527
        %v1296 = vunpack.c.l.s8.bf16 %v528
        %v1297 = vunpack.c.l.s8.bf16 %v529
        %v1298 = vunpack.c.l.s8.bf16 %v530
        %v1299 = vunpack.c.l.s8.bf16 %v531
        %v1300 = vunpack.c.l.s8.bf16 %v532
        %v1301 = vunpack.c.l.s8.bf16 %v533
        %v1302 = vunpack.c.l.s8.bf16 %v534
        %v1303 = vunpack.c.l.s8.bf16 %v535
        %v1304 = vunpack.c.l.s8.bf16 %v536
        %v1305 = vunpack.c.l.s8.bf16 %v537
        %v1306 = vunpack.c.l.s8.bf16 %v538
        %v1307 = vunpack.c.l.s8.bf16 %v539
        %v1308 = vunpack.c.l.s8.bf16 %v540
        %v1309 = vunpack.c.l.s8.bf16 %v541
        %v1310 = vunpack.c.l.s8.bf16 %v542
        %v1311 = vunpack.c.l.s8.bf16 %v543
        %v1312 = vunpack.c.l.s8.bf16 %v544
        %v1313 = vunpack.c.l.s8.bf16 %v545
        %v1314 = vunpack.c.l.s8.bf16 %v546
        %v1315 = vunpack.c.l.s8.bf16 %v547
        %v1316 = vunpack.c.l.s8.bf16 %v548
        %v1317 = vunpack.c.l.s8.bf16 %v549
        %v1318 = vunpack.c.h.s8.bf16 %v486
        %v1319 = vunpack.c.h.s8.bf16 %v487
        %v1320 = vunpack.c.h.s8.bf16 %v488
        %v1321 = vunpack.c.h.s8.bf16 %v489
        %v1322 = vunpack.c.h.s8.bf16 %v490
        %v1323 = vunpack.c.h.s8.bf16 %v491
        %v1324 = vunpack.c.h.s8.bf16 %v492
        %v1325 = vunpack.c.h.s8.bf16 %v493
        %v1326 = vunpack.c.h.s8.bf16 %v494
        %v1327 = vunpack.c.h.s8.bf16 %v495
        %v1328 = vunpack.c.h.s8.bf16 %v496
        %v1329 = vunpack.c.h.s8.bf16 %v497
        %v1330 = vunpack.c.h.s8.bf16 %v498
        %v1331 = vunpack.c.h.s8.bf16 %v499
        %v1332 = vunpack.c.h.s8.bf16 %v500
        %v1333 = vunpack.c.h.s8.bf16 %v501
        %v1334 = vunpack.c.h.s8.bf16 %v502
        %v1335 = vunpack.c.h.s8.bf16 %v503
        %v1336 = vunpack.c.h.s8.bf16 %v504
        %v1337 = vunpack.c.h.s8.bf16 %v505
        %v1338 = vunpack.c.h.s8.bf16 %v506
        %v1339 = vunpack.c.h.s8.bf16 %v507
        %v1340 = vunpack.c.h.s8.bf16 %v508
        %v1341 = vunpack.c.h.s8.bf16 %v509
        %v1342 = vunpack.c.h.s8.bf16 %v510
        %v1343 = vunpack.c.h.s8.bf16 %v511
        %v1344 = vunpack.c.h.s8.bf16 %v512
        %v1345 = vunpack.c.h.s8.bf16 %v513
        %v1346 = vunpack.c.h.s8.bf16 %v514
        %v1347 = vunpack.c.h.s8.bf16 %v515
        %v1348 = vunpack.c.h.s8.bf16 %v516
        %v1349 = vunpack.c.h.s8.bf16 %v517
        %v1350 = vunpack.c.h.s8.bf16 %v518
        %v1351 = vunpack.c.h.s8.bf16 %v519
        %v1352 = vunpack.c.h.s8.bf16 %v520
        %v1353 = vunpack.c.h.s8.bf16 %v521
        %v1354 = vunpack.c.h.s8.bf16 %v522
        %v1355 = vunpack.c.h.s8.bf16 %v523
        %v1356 = vunpack.c.h.s8.bf16 %v524
        %v1357 = vunpack.c.h.s8.bf16 %v525
        %v1358 = vunpack.c.h.s8.bf16 %v526
        %v1359 = vunpack.c.h.s8.bf16 %v527
        %v1360 = vunpack.c.h.s8.bf16 %v528
        %v1361 = vunpack.c.h.s8.bf16 %v529
        %v1362 = vunpack.c.h.s8.bf16 %v530
        %v1363 = vunpack.c.h.s8.bf16 %v531
        %v1364 = vunpack.c.h.s8.bf16 %v532
        %v1365 = vunpack.c.h.s8.bf16 %v533
        %v1366 = vunpack.c.h.s8.bf16 %v534
        %v1367 = vunpack.c.h.s8.bf16 %v535
        %v1368 = vunpack.c.h.s8.bf16 %v536
        %v1369 = vunpack.c.h.s8.bf16 %v537
        %v1370 = vunpack.c.h.s8.bf16 %v538
        %v1371 = vunpack.c.h.s8.bf16 %v539
        %v1372 = vunpack.c.h.s8.bf16 %v540
        %v1373 = vunpack.c.h.s8.bf16 %v541
        %v1374 = vunpack.c.h.s8.bf16 %v542
        %v1375 = vunpack.c.h.s8.bf16 %v543
        %v1376 = vunpack.c.h.s8.bf16 %v544
        %v1377 = vunpack.c.h.s8.bf16 %v545
        %v1378 = vunpack.c.h.s8.bf16 %v546
        %v1379 = vunpack.c.h.s8.bf16 %v547
        %v1380 = vunpack.c.h.s8.bf16 %v548
        %v1381 = vunpack.c.h.s8.bf16 %v549
        %v1382 = vunpack.c.l.s8.bf16 %v550
        %v1383 = vunpack.c.l.s8.bf16 %v551
        %v1384 = vunpack.c.l.s8.bf16 %v552
        %v1385 = vunpack.c.l.s8.bf16 %v553
        %v1386 = vunpack.c.l.s8.bf16 %v554
        %v1387 = vunpack.c.l.s8.bf16 %v555
        %v1388 = vunpack.c.l.s8.bf16 %v556
        %v1389 = vunpack.c.l.s8.bf16 %v557
        %v1390 = vunpack.c.l.s8.bf16 %v558
        %v1391 = vunpack.c.l.s8.bf16 %v559
        %v1392 = vunpack.c.l.s8.bf16 %v560
        %v1393 = vunpack.c.l.s8.bf16 %v561
        %v1394 = vunpack.c.l.s8.bf16 %v562
        %v1395 = vunpack.c.l.s8.bf16 %v563
        %v1396 = vunpack.c.l.s8.bf16 %v564
        %v1397 = vunpack.c.l.s8.bf16 %v565
        %v1398 = vunpack.c.l.s8.bf16 %v566
        %v1399 = vunpack.c.l.s8.bf16 %v567
        %v1400 = vunpack.c.l.s8.bf16 %v568
        %v1401 = vunpack.c.l.s8.bf16 %v569
        %v1402 = vunpack.c.l.s8.bf16 %v570
        %v1403 = vunpack.c.l.s8.bf16 %v571
        %v1404 = vunpack.c.l.s8.bf16 %v572
        %v1405 = vunpack.c.l.s8.bf16 %v573
        %v1406 = vunpack.c.l.s8.bf16 %v574
        %v1407 = vunpack.c.l.s8.bf16 %v575
        %v1408 = vunpack.c.l.s8.bf16 %v576
        %v1409 = vunpack.c.l.s8.bf16 %v577
        %v1410 = vunpack.c.l.s8.bf16 %v578
        %v1411 = vunpack.c.l.s8.bf16 %v579
        %v1412 = vunpack.c.l.s8.bf16 %v580
        %v1413 = vunpack.c.l.s8.bf16 %v581
        %v1414 = vunpack.c.l.s8.bf16 %v582
        %v1415 = vunpack.c.l.s8.bf16 %v583
        %v1416 = vunpack.c.l.s8.bf16 %v584
        %v1417 = vunpack.c.l.s8.bf16 %v585
        %v1418 = vunpack.c.l.s8.bf16 %v586
        %v1419 = vunpack.c.l.s8.bf16 %v587
        %v1420 = vunpack.c.l.s8.bf16 %v588
        %v1421 = vunpack.c.l.s8.bf16 %v589
        %v1422 = vunpack.c.l.s8.bf16 %v590
        %v1423 = vunpack.c.l.s8.bf16 %v591
        %v1424 = vunpack.c.l.s8.bf16 %v592
        %v1425 = vunpack.c.l.s8.bf16 %v593
        %v1426 = vunpack.c.l.s8.bf16 %v594
        %v1427 = vunpack.c.l.s8.bf16 %v595
        %v1428 = vunpack.c.l.s8.bf16 %v596
        %v1429 = vunpack.c.l.s8.bf16 %v597
        %v1430 = vunpack.c.l.s8.bf16 %v598
        %v1431 = vunpack.c.l.s8.bf16 %v599
        %v1432 = vunpack.c.l.s8.bf16 %v600
        %v1433 = vunpack.c.l.s8.bf16 %v601
        %v1434 = vunpack.c.l.s8.bf16 %v602
        %v1435 = vunpack.c.l.s8.bf16 %v603
        %v1436 = vunpack.c.l.s8.bf16 %v604
        %v1437 = vunpack.c.l.s8.bf16 %v605
        %v1438 = vunpack.c.l.s8.bf16 %v606
        %v1439 = vunpack.c.l.s8.bf16 %v607
        %v1440 = vunpack.c.l.s8.bf16 %v608
        %v1441 = vunpack.c.l.s8.bf16 %v609
        %v1442 = vunpack.c.l.s8.bf16 %v610
        %v1443 = vunpack.c.l.s8.bf16 %v611
        %v1444 = vunpack.c.l.s8.bf16 %v612
        %v1445 = vunpack.c.l.s8.bf16 %v613
        %v1446 = vunpack.c.h.s8.bf16 %v550
        %v1447 = vunpack.c.h.s8.bf16 %v551
        %v1448 = vunpack.c.h.s8.bf16 %v552
        %v1449 = vunpack.c.h.s8.bf16 %v553
        %v1450 = vunpack.c.h.s8.bf16 %v554
        %v1451 = vunpack.c.h.s8.bf16 %v555
        %v1452 = vunpack.c.h.s8.bf16 %v556
        %v1453 = vunpack.c.h.s8.bf16 %v557
        %v1454 = vunpack.c.h.s8.bf16 %v558
        %v1455 = vunpack.c.h.s8.bf16 %v559
        %v1456 = vunpack.c.h.s8.bf16 %v560
        %v1457 = vunpack.c.h.s8.bf16 %v561
        %v1458 = vunpack.c.h.s8.bf16 %v562
        %v1459 = vunpack.c.h.s8.bf16 %v563
        %v1460 = vunpack.c.h.s8.bf16 %v564
        %v1461 = vunpack.c.h.s8.bf16 %v565
        %v1462 = vunpack.c.h.s8.bf16 %v566
        %v1463 = vunpack.c.h.s8.bf16 %v567
        %v1464 = vunpack.c.h.s8.bf16 %v568
        %v1465 = vunpack.c.h.s8.bf16 %v569
        %v1466 = vunpack.c.h.s8.bf16 %v570
        %v1467 = vunpack.c.h.s8.bf16 %v571
        %v1468 = vunpack.c.h.s8.bf16 %v572
        %v1469 = vunpack.c.h.s8.bf16 %v573
        %v1470 = vunpack.c.h.s8.bf16 %v574
        %v1471 = vunpack.c.h.s8.bf16 %v575
        %v1472 = vunpack.c.h.s8.bf16 %v576
        %v1473 = vunpack.c.h.s8.bf16 %v577
        %v1474 = vunpack.c.h.s8.bf16 %v578
        %v1475 = vunpack.c.h.s8.bf16 %v579
        %v1476 = vunpack.c.h.s8.bf16 %v580
        %v1477 = vunpack.c.h.s8.bf16 %v581
        %v1478 = vunpack.c.h.s8.bf16 %v582
        %v1479 = vunpack.c.h.s8.bf16 %v583
        %v1480 = vunpack.c.h.s8.bf16 %v584
        %v1481 = vunpack.c.h.s8.bf16 %v585
        %v1482 = vunpack.c.h.s8.bf16 %v586
        %v1483 = vunpack.c.h.s8.bf16 %v587
        %v1484 = vunpack.c.h.s8.bf16 %v588
        %v1485 = vunpack.c.h.s8.bf16 %v589
        %v1486 = vunpack.c.h.s8.bf16 %v590
        %v1487 = vunpack.c.h.s8.bf16 %v591
        %v1488 = vunpack.c.h.s8.bf16 %v592
        %v1489 = vunpack.c.h.s8.bf16 %v593
        %v1490 = vunpack.c.h.s8.bf16 %v594
        %v1491 = vunpack.c.h.s8.bf16 %v595
        %v1492 = vunpack.c.h.s8.bf16 %v596
        %v1493 = vunpack.c.h.s8.bf16 %v597
        %v1494 = vunpack.c.h.s8.bf16 %v598
        %v1495 = vunpack.c.h.s8.bf16 %v599
        %v1496 = vunpack.c.h.s8.bf16 %v600
        %v1497 = vunpack.c.h.s8.bf16 %v601
        %v1498 = vunpack.c.h.s8.bf16 %v602
        %v1499 = vunpack.c.h.s8.bf16 %v603
        %v1500 = vunpack.c.h.s8.bf16 %v604
        %v1501 = vunpack.c.h.s8.bf16 %v605
        %v1502 = vunpack.c.h.s8.bf16 %v606
        %v1503 = vunpack.c.h.s8.bf16 %v607
        %v1504 = vunpack.c.h.s8.bf16 %v608
        %v1505 = vunpack.c.h.s8.bf16 %v609
        %v1506 = vunpack.c.h.s8.bf16 %v610
        %v1507 = vunpack.c.h.s8.bf16 %v611
        %v1508 = vunpack.c.h.s8.bf16 %v612
        %v1509 = vunpack.c.h.s8.bf16 %v613
        %v1510 = vunpack.c.l.s8.bf16 %v614
        %v1511 = vunpack.c.l.s8.bf16 %v615
        %v1512 = vunpack.c.l.s8.bf16 %v616
        %v1513 = vunpack.c.l.s8.bf16 %v617
        %v1514 = vunpack.c.l.s8.bf16 %v618
        %v1515 = vunpack.c.l.s8.bf16 %v619
        %v1516 = vunpack.c.l.s8.bf16 %v620
        %v1517 = vunpack.c.l.s8.bf16 %v621
        %v1518 = vunpack.c.l.s8.bf16 %v622
        %v1519 = vunpack.c.l.s8.bf16 %v623
        %v1520 = vunpack.c.l.s8.bf16 %v624
        %v1521 = vunpack.c.l.s8.bf16 %v625
        %v1522 = vunpack.c.l.s8.bf16 %v626
        %v1523 = vunpack.c.l.s8.bf16 %v627
        %v1524 = vunpack.c.l.s8.bf16 %v628
        %v1525 = vunpack.c.l.s8.bf16 %v629
        %v1526 = vunpack.c.l.s8.bf16 %v630
        %v1527 = vunpack.c.l.s8.bf16 %v631
        %v1528 = vunpack.c.l.s8.bf16 %v632
        %v1529 = vunpack.c.l.s8.bf16 %v633
        %v1530 = vunpack.c.l.s8.bf16 %v634
        %v1531 = vunpack.c.l.s8.bf16 %v635
        %v1532 = vunpack.c.l.s8.bf16 %v636
        %v1533 = vunpack.c.l.s8.bf16 %v637
        %v1534 = vunpack.c.l.s8.bf16 %v638
        %v1535 = vunpack.c.l.s8.bf16 %v639
        %v1536 = vunpack.c.l.s8.bf16 %v640
        %v1537 = vunpack.c.l.s8.bf16 %v641
        %v1538 = vunpack.c.l.s8.bf16 %v642
        %v1539 = vunpack.c.l.s8.bf16 %v643
        %v1540 = vunpack.c.l.s8.bf16 %v644
        %v1541 = vunpack.c.l.s8.bf16 %v645
        %v1542 = vunpack.c.l.s8.bf16 %v646
        %v1543 = vunpack.c.l.s8.bf16 %v647
        %v1544 = vunpack.c.l.s8.bf16 %v648
        %v1545 = vunpack.c.l.s8.bf16 %v649
        %v1546 = vunpack.c.l.s8.bf16 %v650
        %v1547 = vunpack.c.l.s8.bf16 %v651
        %v1548 = vunpack.c.l.s8.bf16 %v652
        %v1549 = vunpack.c.l.s8.bf16 %v653
        %v1550 = vunpack.c.l.s8.bf16 %v654
        %v1551 = vunpack.c.l.s8.bf16 %v655
        %v1552 = vunpack.c.l.s8.bf16 %v656
        %v1553 = vunpack.c.l.s8.bf16 %v657
        %v1554 = vunpack.c.l.s8.bf16 %v658
        %v1555 = vunpack.c.l.s8.bf16 %v659
        %v1556 = vunpack.c.l.s8.bf16 %v660
        %v1557 = vunpack.c.l.s8.bf16 %v661
        %v1558 = vunpack.c.l.s8.bf16 %v662
        %v1559 = vunpack.c.l.s8.bf16 %v663
        %v1560 = vunpack.c.l.s8.bf16 %v664
        %v1561 = vunpack.c.l.s8.bf16 %v665
        %v1562 = vunpack.c.l.s8.bf16 %v666
        %v1563 = vunpack.c.l.s8.bf16 %v667
        %v1564 = vunpack.c.l.s8.bf16 %v668
        %v1565 = vunpack.c.l.s8.bf16 %v669
        %v1566 = vunpack.c.l.s8.bf16 %v670
        %v1567 = vunpack.c.l.s8.bf16 %v671
        %v1568 = vunpack.c.l.s8.bf16 %v672
        %v1569 = vunpack.c.l.s8.bf16 %v673
        %v1570 = vunpack.c.l.s8.bf16 %v674
        %v1571 = vunpack.c.l.s8.bf16 %v675
        %v1572 = vunpack.c.l.s8.bf16 %v676
        %v1573 = vunpack.c.l.s8.bf16 %v677
        %v1574 = vunpack.c.h.s8.bf16 %v614
        %v1575 = vunpack.c.h.s8.bf16 %v615
        %v1576 = vunpack.c.h.s8.bf16 %v616
        %v1577 = vunpack.c.h.s8.bf16 %v617
        %v1578 = vunpack.c.h.s8.bf16 %v618
        %v1579 = vunpack.c.h.s8.bf16 %v619
        %v1580 = vunpack.c.h.s8.bf16 %v620
        %v1581 = vunpack.c.h.s8.bf16 %v621
        %v1582 = vunpack.c.h.s8.bf16 %v622
        %v1583 = vunpack.c.h.s8.bf16 %v623
        %v1584 = vunpack.c.h.s8.bf16 %v624
        %v1585 = vunpack.c.h.s8.bf16 %v625
        %v1586 = vunpack.c.h.s8.bf16 %v626
        %v1587 = vunpack.c.h.s8.bf16 %v627
        %v1588 = vunpack.c.h.s8.bf16 %v628
        %v1589 = vunpack.c.h.s8.bf16 %v629
        %v1590 = vunpack.c.h.s8.bf16 %v630
        %v1591 = vunpack.c.h.s8.bf16 %v631
        %v1592 = vunpack.c.h.s8.bf16 %v632
        %v1593 = vunpack.c.h.s8.bf16 %v633
        %v1594 = vunpack.c.h.s8.bf16 %v634
        %v1595 = vunpack.c.h.s8.bf16 %v635
        %v1596 = vunpack.c.h.s8.bf16 %v636
        %v1597 = vunpack.c.h.s8.bf16 %v637
        %v1598 = vunpack.c.h.s8.bf16 %v638
        %v1599 = vunpack.c.h.s8.bf16 %v639
        %v1600 = vunpack.c.h.s8.bf16 %v640
        %v1601 = vunpack.c.h.s8.bf16 %v641
        %v1602 = vunpack.c.h.s8.bf16 %v642
        %v1603 = vunpack.c.h.s8.bf16 %v643
        %v1604 = vunpack.c.h.s8.bf16 %v644
        %v1605 = vunpack.c.h.s8.bf16 %v645
        %v1606 = vunpack.c.h.s8.bf16 %v646
        %v1607 = vunpack.c.h.s8.bf16 %v647
        %v1608 = vunpack.c.h.s8.bf16 %v648
        %v1609 = vunpack.c.h.s8.bf16 %v649
        %v1610 = vunpack.c.h.s8.bf16 %v650
        %v1611 = vunpack.c.h.s8.bf16 %v651
        %v1612 = vunpack.c.h.s8.bf16 %v652
        %v1613 = vunpack.c.h.s8.bf16 %v653
        %v1614 = vunpack.c.h.s8.bf16 %v654
        %v1615 = vunpack.c.h.s8.bf16 %v655
        %v1616 = vunpack.c.h.s8.bf16 %v656
        %v1617 = vunpack.c.h.s8.bf16 %v657
        %v1618 = vunpack.c.h.s8.bf16 %v658
        %v1619 = vunpack.c.h.s8.bf16 %v659
        %v1620 = vunpack.c.h.s8.bf16 %v660
        %v1621 = vunpack.c.h.s8.bf16 %v661
        %v1622 = vunpack.c.h.s8.bf16 %v662
        %v1623 = vunpack.c.h.s8.bf16 %v663
        %v1624 = vunpack.c.h.s8.bf16 %v664
        %v1625 = vunpack.c.h.s8.bf16 %v665
        %v1626 = vunpack.c.h.s8.bf16 %v666
        %v1627 = vunpack.c.h.s8.bf16 %v667
        %v1628 = vunpack.c.h.s8.bf16 %v668
        %v1629 = vunpack.c.h.s8.bf16 %v669
        %v1630 = vunpack.c.h.s8.bf16 %v670
        %v1631 = vunpack.c.h.s8.bf16 %v671
        %v1632 = vunpack.c.h.s8.bf16 %v672
        %v1633 = vunpack.c.h.s8.bf16 %v673
        %v1634 = vunpack.c.h.s8.bf16 %v674
        %v1635 = vunpack.c.h.s8.bf16 %v675
        %v1636 = vunpack.c.h.s8.bf16 %v676
        %v1637 = vunpack.c.h.s8.bf16 %v677
        %v1638 = vunpack.c.l.s8.bf16 %v678
        %v1639 = vunpack.c.l.s8.bf16 %v679
        %v1640 = vunpack.c.l.s8.bf16 %v680
        %v1641 = vunpack.c.l.s8.bf16 %v681
        %v1642 = vunpack.c.l.s8.bf16 %v682
        %v1643 = vunpack.c.l.s8.bf16 %v683
        %v1644 = vunpack.c.l.s8.bf16 %v684
        %v1645 = vunpack.c.l.s8.bf16 %v685
        %v1646 = vunpack.c.l.s8.bf16 %v686
        %v1647 = vunpack.c.l.s8.bf16 %v687
        %v1648 = vunpack.c.l.s8.bf16 %v688
        %v1649 = vunpack.c.l.s8.bf16 %v689
        %v1650 = vunpack.c.l.s8.bf16 %v690
        %v1651 = vunpack.c.l.s8.bf16 %v691
        %v1652 = vunpack.c.l.s8.bf16 %v692
        %v1653 = vunpack.c.l.s8.bf16 %v693
        %v1654 = vunpack.c.l.s8.bf16 %v694
        %v1655 = vunpack.c.l.s8.bf16 %v695
        %v1656 = vunpack.c.l.s8.bf16 %v696
        %v1657 = vunpack.c.l.s8.bf16 %v697
        %v1658 = vunpack.c.l.s8.bf16 %v698
        %v1659 = vunpack.c.l.s8.bf16 %v699
        %v1660 = vunpack.c.l.s8.bf16 %v700
        %v1661 = vunpack.c.l.s8.bf16 %v701
        %v1662 = vunpack.c.l.s8.bf16 %v702
        %v1663 = vunpack.c.l.s8.bf16 %v703
        %v1664 = vunpack.c.l.s8.bf16 %v704
        %v1665 = vunpack.c.l.s8.bf16 %v705
        %v1666 = vunpack.c.l.s8.bf16 %v706
        %v1667 = vunpack.c.l.s8.bf16 %v707
        %v1668 = vunpack.c.l.s8.bf16 %v708
        %v1669 = vunpack.c.l.s8.bf16 %v709
        %v1670 = vunpack.c.l.s8.bf16 %v710
        %v1671 = vunpack.c.l.s8.bf16 %v711
        %v1672 = vunpack.c.l.s8.bf16 %v712
        %v1673 = vunpack.c.l.s8.bf16 %v713
        %v1674 = vunpack.c.l.s8.bf16 %v714
        %v1675 = vunpack.c.l.s8.bf16 %v715
        %v1676 = vunpack.c.l.s8.bf16 %v716
        %v1677 = vunpack.c.l.s8.bf16 %v717
        %v1678 = vunpack.c.l.s8.bf16 %v718
        %v1679 = vunpack.c.l.s8.bf16 %v719
        %v1680 = vunpack.c.l.s8.bf16 %v720
        %v1681 = vunpack.c.l.s8.bf16 %v721
        %v1682 = vunpack.c.l.s8.bf16 %v722
        %v1683 = vunpack.c.l.s8.bf16 %v723
        %v1684 = vunpack.c.l.s8.bf16 %v724
        %v1685 = vunpack.c.l.s8.bf16 %v725
        %v1686 = vunpack.c.l.s8.bf16 %v726
        %v1687 = vunpack.c.l.s8.bf16 %v727
        %v1688 = vunpack.c.l.s8.bf16 %v728
        %v1689 = vunpack.c.l.s8.bf16 %v729
        %v1690 = vunpack.c.l.s8.bf16 %v730
        %v1691 = vunpack.c.l.s8.bf16 %v731
        %v1692 = vunpack.c.l.s8.bf16 %v732
        %v1693 = vunpack.c.l.s8.bf16 %v733
        %v1694 = vunpack.c.l.s8.bf16 %v734
        %v1695 = vunpack.c.l.s8.bf16 %v735
        %v1696 = vunpack.c.l.s8.bf16 %v736
        %v1697 = vunpack.c.l.s8.bf16 %v737
        %v1698 = vunpack.c.l.s8.bf16 %v738
        %v1699 = vunpack.c.l.s8.bf16 %v739
        %v1700 = vunpack.c.l.s8.bf16 %v740
        %v1701 = vunpack.c.l.s8.bf16 %v741
        %v1702 = vunpack.c.h.s8.bf16 %v678
        %v1703 = vunpack.c.h.s8.bf16 %v679
        %v1704 = vunpack.c.h.s8.bf16 %v680
        %v1705 = vunpack.c.h.s8.bf16 %v681
        %v1706 = vunpack.c.h.s8.bf16 %v682
        %v1707 = vunpack.c.h.s8.bf16 %v683
        %v1708 = vunpack.c.h.s8.bf16 %v684
        %v1709 = vunpack.c.h.s8.bf16 %v685
        %v1710 = vunpack.c.h.s8.bf16 %v686
        %v1711 = vunpack.c.h.s8.bf16 %v687
        %v1712 = vunpack.c.h.s8.bf16 %v688
        %v1713 = vunpack.c.h.s8.bf16 %v689
        %v1714 = vunpack.c.h.s8.bf16 %v690
        %v1715 = vunpack.c.h.s8.bf16 %v691
        %v1716 = vunpack.c.h.s8.bf16 %v692
        %v1717 = vunpack.c.h.s8.bf16 %v693
        %v1718 = vunpack.c.h.s8.bf16 %v694
        %v1719 = vunpack.c.h.s8.bf16 %v695
        %v1720 = vunpack.c.h.s8.bf16 %v696
        %v1721 = vunpack.c.h.s8.bf16 %v697
        %v1722 = vunpack.c.h.s8.bf16 %v698
        %v1723 = vunpack.c.h.s8.bf16 %v699
        %v1724 = vunpack.c.h.s8.bf16 %v700
        %v1725 = vunpack.c.h.s8.bf16 %v701
        %v1726 = vunpack.c.h.s8.bf16 %v702
        %v1727 = vunpack.c.h.s8.bf16 %v703
        %v1728 = vunpack.c.h.s8.bf16 %v704
        %v1729 = vunpack.c.h.s8.bf16 %v705
        %v1730 = vunpack.c.h.s8.bf16 %v706
        %v1731 = vunpack.c.h.s8.bf16 %v707
        %v1732 = vunpack.c.h.s8.bf16 %v708
        %v1733 = vunpack.c.h.s8.bf16 %v709
        %v1734 = vunpack.c.h.s8.bf16 %v710
        %v1735 = vunpack.c.h.s8.bf16 %v711
        %v1736 = vunpack.c.h.s8.bf16 %v712
        %v1737 = vunpack.c.h.s8.bf16 %v713
        %v1738 = vunpack.c.h.s8.bf16 %v714
        %v1739 = vunpack.c.h.s8.bf16 %v715
        %v1740 = vunpack.c.h.s8.bf16 %v716
        %v1741 = vunpack.c.h.s8.bf16 %v717
        %v1742 = vunpack.c.h.s8.bf16 %v718
        %v1743 = vunpack.c.h.s8.bf16 %v719
        %v1744 = vunpack.c.h.s8.bf16 %v720
        %v1745 = vunpack.c.h.s8.bf16 %v721
        %v1746 = vunpack.c.h.s8.bf16 %v722
        %v1747 = vunpack.c.h.s8.bf16 %v723
        %v1748 = vunpack.c.h.s8.bf16 %v724
        %v1749 = vunpack.c.h.s8.bf16 %v725
        %v1750 = vunpack.c.h.s8.bf16 %v726
        %v1751 = vunpack.c.h.s8.bf16 %v727
        %v1752 = vunpack.c.h.s8.bf16 %v728
        %v1753 = vunpack.c.h.s8.bf16 %v729
        %v1754 = vunpack.c.h.s8.bf16 %v730
        %v1755 = vunpack.c.h.s8.bf16 %v731
        %v1756 = vunpack.c.h.s8.bf16 %v732
        %v1757 = vunpack.c.h.s8.bf16 %v733
        %v1758 = vunpack.c.h.s8.bf16 %v734
        %v1759 = vunpack.c.h.s8.bf16 %v735
        %v1760 = vunpack.c.h.s8.bf16 %v736
        %v1761 = vunpack.c.h.s8.bf16 %v737
        %v1762 = vunpack.c.h.s8.bf16 %v738
        %v1763 = vunpack.c.h.s8.bf16 %v739
        %v1764 = vunpack.c.h.s8.bf16 %v740
        %v1765 = vunpack.c.h.s8.bf16 %v741
        %v1766 = vld [vmem:[%s0] sm:$0x3]
        %v1768 = vlaneseq
        %v1769 = vshrl.u32 %v1768, 7
        %v1770 = vsub.s32 0, %v1769
        %v1771 = vrot.slane %v1766, %v1770
        %v1772 = vlaneseq
        %v1773 = vshrl.u32 %v1772, 7
        %v1774 = vsub.s32 1, %v1773
        %v1775 = vrot.slane %v1766, %v1774
        %v1778 = vpack.c.bf16 %v1771, %v1771
        %v1779 = vpack.c.bf16 %v1775, %v1775
        %1780 = vmatprep.subr.bf16.mxu0 %v743
        %1781 = vmatpush1.bf16.msra.mxu0 %v742
        %1782 = vmatprep.subr.bf16.mxu0 %v807
        %1783 = vmatpush1.bf16.msra.mxu0 %v806
        %1784 = vmatprep.subr.bf16.mxu0 %v871
        %1785 = vmatpush1.bf16.msra.mxu0 %v870
        %1786 = vmatprep.subr.bf16.mxu0 %v935
        %1787 = vmatpush1.bf16.msra.mxu0 %v934
        %1788 = vmatprep.subr.bf16.mxu0 %v999
        %1789 = vmatpush1.bf16.msra.mxu0 %v998
        %1790 = vmatprep.subr.bf16.mxu0 %v1063
        %1791 = vmatpush1.bf16.msra.mxu0 %v1062
        %1792 = vmatprep.subr.bf16.mxu0 %v1127
        %1793 = vmatpush1.bf16.msra.mxu0 %v1126
        %1794 = vmatprep.subr.bf16.mxu0 %v1191
        %1795 = vmatpush1.bf16.msra.mxu0 %v1190
        %1796 = vmatprep.subr.bf16.mxu0 %v1255
        %1797 = vmatpush1.bf16.msra.mxu0 %v1254
        %1798 = vmatprep.subr.bf16.mxu0 %v1319
        %1799 = vmatpush1.bf16.msra.mxu0 %v1318
        %1800 = vmatprep.subr.bf16.mxu0 %v1383
        %1801 = vmatpush1.bf16.msra.mxu0 %v1382
        %1802 = vmatprep.subr.bf16.mxu0 %v1447
        %1803 = vmatpush1.bf16.msra.mxu0 %v1446
        %1804 = vmatprep.subr.bf16.mxu0 %v1511
        %1805 = vmatpush1.bf16.msra.mxu0 %v1510
        %1806 = vmatprep.subr.bf16.mxu0 %v1575
        %1807 = vmatpush1.bf16.msra.mxu0 %v1574
        %1808 = vmatprep.subr.bf16.mxu0 %v1639
        %1809 = vmatpush1.bf16.msra.mxu0 %v1638
        %1810 = vmatprep.subr.bf16.mxu0 %v1703
        %1811 = vmatpush1.bf16.msra.mxu0 %v1702
        %1812 = vmatprep.mubr.bf16.mxu0 %v1779
        %1813 = vmatmul.mubr.bf16.gmra.mrb[0].mxu0 %v1778
        %v1814 = vpop.f32.mrb[0].mxu0
        %v1815 = vadd.f32 0.0, %v1814
        %v1816 = vpop.f32.mrb[0].mxu0
        %v1817 = vadd.f32 0.0, %v1816
        %v1818 = vpop.f32.mrb[0].mxu0
        %v1819 = vpop.f32.mrb[0].mxu0
        %1820 = vdwg.mxu0
        %1821 = vmatprep.subr.bf16.mxu0 %v745
        %1822 = vmatpush1.bf16.msra.mxu0 %v744
        %1823 = vmatprep.subr.bf16.mxu0 %v809
        %1824 = vmatpush1.bf16.msra.mxu0 %v808
        %1825 = vmatprep.subr.bf16.mxu0 %v873
        %1826 = vmatpush1.bf16.msra.mxu0 %v872
        %1827 = vmatprep.subr.bf16.mxu0 %v937
        %1828 = vmatpush1.bf16.msra.mxu0 %v936
        %1829 = vmatprep.subr.bf16.mxu0 %v1001
        %1830 = vmatpush1.bf16.msra.mxu0 %v1000
        %1831 = vmatprep.subr.bf16.mxu0 %v1065
        %1832 = vmatpush1.bf16.msra.mxu0 %v1064
        %1833 = vmatprep.subr.bf16.mxu0 %v1129
        %1834 = vmatpush1.bf16.msra.mxu0 %v1128
        %1835 = vmatprep.subr.bf16.mxu0 %v1193
        %1836 = vmatpush1.bf16.msra.mxu0 %v1192
        %1837 = vmatprep.subr.bf16.mxu0 %v1257
        %1838 = vmatpush1.bf16.msra.mxu0 %v1256
        %1839 = vmatprep.subr.bf16.mxu0 %v1321
        %1840 = vmatpush1.bf16.msra.mxu0 %v1320
        %1841 = vmatprep.subr.bf16.mxu0 %v1385
        %1842 = vmatpush1.bf16.msra.mxu0 %v1384
        %1843 = vmatprep.subr.bf16.mxu0 %v1449
        %1844 = vmatpush1.bf16.msra.mxu0 %v1448
        %1845 = vmatprep.subr.bf16.mxu0 %v1513
        %1846 = vmatpush1.bf16.msra.mxu0 %v1512
        %1847 = vmatprep.subr.bf16.mxu0 %v1577
        %1848 = vmatpush1.bf16.msra.mxu0 %v1576
        %1849 = vmatprep.subr.bf16.mxu0 %v1641
        %1850 = vmatpush1.bf16.msra.mxu0 %v1640
        %1851 = vmatprep.subr.bf16.mxu0 %v1705
        %1852 = vmatpush1.bf16.msra.mxu0 %v1704
        %1853 = vmatprep.mubr.bf16.mxu0 %v1779
        %1854 = vmatmul.mubr.bf16.gmra.mrb[0].mxu0 %v1778
        %v1855 = vpop.f32.mrb[0].mxu0
        %v1856 = vadd.f32 0.0, %v1855
        %v1857 = vpop.f32.mrb[0].mxu0
        %v1858 = vadd.f32 0.0, %v1857
        %v1859 = vpop.f32.mrb[0].mxu0
        %v1860 = vpop.f32.mrb[0].mxu0
        %1861 = vdwg.mxu0
        %1862 = vmatprep.subr.bf16.mxu0 %v747
        %1863 = vmatpush1.bf16.msra.mxu0 %v746
        %1864 = vmatprep.subr.bf16.mxu0 %v811
        %1865 = vmatpush1.bf16.msra.mxu0 %v810
        %1866 = vmatprep.subr.bf16.mxu0 %v875
        %1867 = vmatpush1.bf16.msra.mxu0 %v874
        %1868 = vmatprep.subr.bf16.mxu0 %v939
        %1869 = vmatpush1.bf16.msra.mxu0 %v938
        %1870 = vmatprep.subr.bf16.mxu0 %v1003
        %1871 = vmatpush1.bf16.msra.mxu0 %v1002
        %1872 = vmatprep.subr.bf16.mxu0 %v1067
        %1873 = vmatpush1.bf16.msra.mxu0 %v1066
        %1874 = vmatprep.subr.bf16.mxu0 %v1131
        %1875 = vmatpush1.bf16.msra.mxu0 %v1130
        %1876 = vmatprep.subr.bf16.mxu0 %v1195
        %1877 = vmatpush1.bf16.msra.mxu0 %v1194
        %1878 = vmatprep.subr.bf16.mxu0 %v1259
        %1879 = vmatpush1.bf16.msra.mxu0 %v1258
        %1880 = vmatprep.subr.bf16.mxu0 %v1323
        %1881 = vmatpush1.bf16.msra.mxu0 %v1322
        %1882 = vmatprep.subr.bf16.mxu0 %v1387
        %1883 = vmatpush1.bf16.msra.mxu0 %v1386
        %1884 = vmatprep.subr.bf16.mxu0 %v1451
        %1885 = vmatpush1.bf16.msra.mxu0 %v1450
        %1886 = vmatprep.subr.bf16.mxu0 %v1515
        %1887 = vmatpush1.bf16.msra.mxu0 %v1514
        %1888 = vmatprep.subr.bf16.mxu0 %v1579
        %1889 = vmatpush1.bf16.msra.mxu0 %v1578
        %1890 = vmatprep.subr.bf16.mxu0 %v1643
        %1891 = vmatpush1.bf16.msra.mxu0 %v1642
        %1892 = vmatprep.subr.bf16.mxu0 %v1707
        %1893 = vmatpush1.bf16.msra.mxu0 %v1706
        %1894 = vmatprep.mubr.bf16.mxu0 %v1779
        %1895 = vmatmul.mubr.bf16.gmra.mrb[0].mxu0 %v1778
        %v1896 = vpop.f32.mrb[0].mxu0
        %v1897 = vadd.f32 0.0, %v1896
        %v1898 = vpop.f32.mrb[0].mxu0
        %v1899 = vadd.f32 0.0, %v1898
        %v1900 = vpop.f32.mrb[0].mxu0
        %v1901 = vpop.f32.mrb[0].mxu0
        %1902 = vdwg.mxu0
        %1903 = vmatprep.subr.bf16.mxu0 %v749
        %1904 = vmatpush1.bf16.msra.mxu0 %v748
        %1905 = vmatprep.subr.bf16.mxu0 %v813
        %1906 = vmatpush1.bf16.msra.mxu0 %v812
        %1907 = vmatprep.subr.bf16.mxu0 %v877
        %1908 = vmatpush1.bf16.msra.mxu0 %v876
        %1909 = vmatprep.subr.bf16.mxu0 %v941
        %1910 = vmatpush1.bf16.msra.mxu0 %v940
        %1911 = vmatprep.subr.bf16.mxu0 %v1005
        %1912 = vmatpush1.bf16.msra.mxu0 %v1004
        %1913 = vmatprep.subr.bf16.mxu0 %v1069
        %1914 = vmatpush1.bf16.msra.mxu0 %v1068
        %1915 = vmatprep.subr.bf16.mxu0 %v1133
        %1916 = vmatpush1.bf16.msra.mxu0 %v1132
        %1917 = vmatprep.subr.bf16.mxu0 %v1197
        %1918 = vmatpush1.bf16.msra.mxu0 %v1196
        %1919 = vmatprep.subr.bf16.mxu0 %v1261
        %1920 = vmatpush1.bf16.msra.mxu0 %v1260
        %1921 = vmatprep.subr.bf16.mxu0 %v1325
        %1922 = vmatpush1.bf16.msra.mxu0 %v1324
        %1923 = vmatprep.subr.bf16.mxu0 %v1389
        %1924 = vmatpush1.bf16.msra.mxu0 %v1388
        %1925 = vmatprep.subr.bf16.mxu0 %v1453
        %1926 = vmatpush1.bf16.msra.mxu0 %v1452
        %1927 = vmatprep.subr.bf16.mxu0 %v1517
        %1928 = vmatpush1.bf16.msra.mxu0 %v1516
        %1929 = vmatprep.subr.bf16.mxu0 %v1581
        %1930 = vmatpush1.bf16.msra.mxu0 %v1580
        %1931 = vmatprep.subr.bf16.mxu0 %v1645
        %1932 = vmatpush1.bf16.msra.mxu0 %v1644
        %1933 = vmatprep.subr.bf16.mxu0 %v1709
        %1934 = vmatpush1.bf16.msra.mxu0 %v1708
        %1935 = vmatprep.mubr.bf16.mxu0 %v1779
        %1936 = vmatmul.mubr.bf16.gmra.mrb[0].mxu0 %v1778
        %v1937 = vpop.f32.mrb[0].mxu0
        %v1938 = vadd.f32 0.0, %v1937
        %v1939 = vpop.f32.mrb[0].mxu0
        %v1940 = vadd.f32 0.0, %v1939
        %v1941 = vpop.f32.mrb[0].mxu0
        %v1942 = vpop.f32.mrb[0].mxu0
        %1943 = vdwg.mxu0
        %1944 = vmatprep.subr.bf16.mxu0 %v751
        %1945 = vmatpush1.bf16.msra.mxu0 %v750
        %1946 = vmatprep.subr.bf16.mxu0 %v815
        %1947 = vmatpush1.bf16.msra.mxu0 %v814
        %1948 = vmatprep.subr.bf16.mxu0 %v879
        %1949 = vmatpush1.bf16.msra.mxu0 %v878
        %1950 = vmatprep.subr.bf16.mxu0 %v943
        %1951 = vmatpush1.bf16.msra.mxu0 %v942
        %1952 = vmatprep.subr.bf16.mxu0 %v1007
        %1953 = vmatpush1.bf16.msra.mxu0 %v1006
        %1954 = vmatprep.subr.bf16.mxu0 %v1071
        %1955 = vmatpush1.bf16.msra.mxu0 %v1070
        %1956 = vmatprep.subr.bf16.mxu0 %v1135
        %1957 = vmatpush1.bf16.msra.mxu0 %v1134
        %1958 = vmatprep.subr.bf16.mxu0 %v1199
        %1959 = vmatpush1.bf16.msra.mxu0 %v1198
        %1960 = vmatprep.subr.bf16.mxu0 %v1263
        %1961 = vmatpush1.bf16.msra.mxu0 %v1262
        %1962 = vmatprep.subr.bf16.mxu0 %v1327
        %1963 = vmatpush1.bf16.msra.mxu0 %v1326
        %1964 = vmatprep.subr.bf16.mxu0 %v1391
        %1965 = vmatpush1.bf16.msra.mxu0 %v1390
        %1966 = vmatprep.subr.bf16.mxu0 %v1455
        %1967 = vmatpush1.bf16.msra.mxu0 %v1454
        %1968 = vmatprep.subr.bf16.mxu0 %v1519
        %1969 = vmatpush1.bf16.msra.mxu0 %v1518
        %1970 = vmatprep.subr.bf16.mxu0 %v1583
        %1971 = vmatpush1.bf16.msra.mxu0 %v1582
        %1972 = vmatprep.subr.bf16.mxu0 %v1647
        %1973 = vmatpush1.bf16.msra.mxu0 %v1646
        %1974 = vmatprep.subr.bf16.mxu0 %v1711
        %1975 = vmatpush1.bf16.msra.mxu0 %v1710
        %1976 = vmatprep.mubr.bf16.mxu0 %v1779
        %1977 = vmatmul.mubr.bf16.gmra.mrb[0].mxu0 %v1778
        %v1978 = vpop.f32.mrb[0].mxu0
        %v1979 = vadd.f32 0.0, %v1978
        %v1980 = vpop.f32.mrb[0].mxu0
        %v1981 = vadd.f32 0.0, %v1980
        %v1982 = vpop.f32.mrb[0].mxu0
        %v1983 = vpop.f32.mrb[0].mxu0
        %1984 = vdwg.mxu0
        %1985 = vmatprep.subr.bf16.mxu0 %v753
        %1986 = vmatpush1.bf16.msra.mxu0 %v752
        %1987 = vmatprep.subr.bf16.mxu0 %v817
        %1988 = vmatpush1.bf16.msra.mxu0 %v816
        %1989 = vmatprep.subr.bf16.mxu0 %v881
        %1990 = vmatpush1.bf16.msra.mxu0 %v880
        %1991 = vmatprep.subr.bf16.mxu0 %v945
        %1992 = vmatpush1.bf16.msra.mxu0 %v944
        %1993 = vmatprep.subr.bf16.mxu0 %v1009
        %1994 = vmatpush1.bf16.msra.mxu0 %v1008
        %1995 = vmatprep.subr.bf16.mxu0 %v1073
        %1996 = vmatpush1.bf16.msra.mxu0 %v1072
        %1997 = vmatprep.subr.bf16.mxu0 %v1137
        %1998 = vmatpush1.bf16.msra.mxu0 %v1136
        %1999 = vmatprep.subr.bf16.mxu0 %v1201
        %2000 = vmatpush1.bf16.msra.mxu0 %v1200
        %2001 = vmatprep.subr.bf16.mxu0 %v1265
        %2002 = vmatpush1.bf16.msra.mxu0 %v1264
        %2003 = vmatprep.subr.bf16.mxu0 %v1329
        %2004 = vmatpush1.bf16.msra.mxu0 %v1328
        %2005 = vmatprep.subr.bf16.mxu0 %v1393
        %2006 = vmatpush1.bf16.msra.mxu0 %v1392
        %2007 = vmatprep.subr.bf16.mxu0 %v1457
        %2008 = vmatpush1.bf16.msra.mxu0 %v1456
        %2009 = vmatprep.subr.bf16.mxu0 %v1521
        %2010 = vmatpush1.bf16.msra.mxu0 %v1520
        %2011 = vmatprep.subr.bf16.mxu0 %v1585
        %2012 = vmatpush1.bf16.msra.mxu0 %v1584
        %2013 = vmatprep.subr.bf16.mxu0 %v1649
        %2014 = vmatpush1.bf16.msra.mxu0 %v1648
        %2015 = vmatprep.subr.bf16.mxu0 %v1713
        %2016 = vmatpush1.bf16.msra.mxu0 %v1712
        %2017 = vmatprep.mubr.bf16.mxu0 %v1779
        %2018 = vmatmul.mubr.bf16.gmra.mrb[0].mxu0 %v1778
        %v2019 = vpop.f32.mrb[0].mxu0
        %v2020 = vadd.f32 0.0, %v2019
        %v2021 = vpop.f32.mrb[0].mxu0
        %v2022 = vadd.f32 0.0, %v2021
        %v2023 = vpop.f32.mrb[0].mxu0
        %v2024 = vpop.f32.mrb[0].mxu0
        %2025 = vdwg.mxu0
        %2026 = vmatprep.subr.bf16.mxu0 %v755
        %2027 = vmatpush1.bf16.msra.mxu0 %v754
        %2028 = vmatprep.subr.bf16.mxu0 %v819
        %2029 = vmatpush1.bf16.msra.mxu0 %v818
        %2030 = vmatprep.subr.bf16.mxu0 %v883
        %2031 = vmatpush1.bf16.msra.mxu0 %v882
        %2032 = vmatprep.subr.bf16.mxu0 %v947
        %2033 = vmatpush1.bf16.msra.mxu0 %v946
        %2034 = vmatprep.subr.bf16.mxu0 %v1011
        %2035 = vmatpush1.bf16.msra.mxu0 %v1010
        %2036 = vmatprep.subr.bf16.mxu0 %v1075
        %2037 = vmatpush1.bf16.msra.mxu0 %v1074
        %2038 = vmatprep.subr.bf16.mxu0 %v1139
        %2039 = vmatpush1.bf16.msra.mxu0 %v1138
        %2040 = vmatprep.subr.bf16.mxu0 %v1203
        %2041 = vmatpush1.bf16.msra.mxu0 %v1202
        %2042 = vmatprep.subr.bf16.mxu0 %v1267
        %2043 = vmatpush1.bf16.msra.mxu0 %v1266
        %2044 = vmatprep.subr.bf16.mxu0 %v1331
        %2045 = vmatpush1.bf16.msra.mxu0 %v1330
        %2046 = vmatprep.subr.bf16.mxu0 %v1395
        %2047 = vmatpush1.bf16.msra.mxu0 %v1394
        %2048 = vmatprep.subr.bf16.mxu0 %v1459
        %2049 = vmatpush1.bf16.msra.mxu0 %v1458
        %2050 = vmatprep.subr.bf16.mxu0 %v1523
        %2051 = vmatpush1.bf16.msra.mxu0 %v1522
        %2052 = vmatprep.subr.bf16.mxu0 %v1587
        %2053 = vmatpush1.bf16.msra.mxu0 %v1586
        %2054 = vmatprep.subr.bf16.mxu0 %v1651
        %2055 = vmatpush1.bf16.msra.mxu0 %v1650
        %2056 = vmatprep.subr.bf16.mxu0 %v1715
        %2057 = vmatpush1.bf16.msra.mxu0 %v1714
        %2058 = vmatprep.mubr.bf16.mxu0 %v1779
        %2059 = vmatmul.mubr.bf16.gmra.mrb[0].mxu0 %v1778
        %v2060 = vpop.f32.mrb[0].mxu0
        %v2061 = vadd.f32 0.0, %v2060
        %v2062 = vpop.f32.mrb[0].mxu0
        %v2063 = vadd.f32 0.0, %v2062
        %v2064 = vpop.f32.mrb[0].mxu0
        %v2065 = vpop.f32.mrb[0].mxu0
        %2066 = vdwg.mxu0
        %2067 = vmatprep.subr.bf16.mxu0 %v757
        %2068 = vmatpush1.bf16.msra.mxu0 %v756
        %2069 = vmatprep.subr.bf16.mxu0 %v821
        %2070 = vmatpush1.bf16.msra.mxu0 %v820
        %2071 = vmatprep.subr.bf16.mxu0 %v885
        %2072 = vmatpush1.bf16.msra.mxu0 %v884
        %2073 = vmatprep.subr.bf16.mxu0 %v949
        %2074 = vmatpush1.bf16.msra.mxu0 %v948
        %2075 = vmatprep.subr.bf16.mxu0 %v1013
        %2076 = vmatpush1.bf16.msra.mxu0 %v1012
        %2077 = vmatprep.subr.bf16.mxu0 %v1077
        %2078 = vmatpush1.bf16.msra.mxu0 %v1076
        %2079 = vmatprep.subr.bf16.mxu0 %v1141
        %2080 = vmatpush1.bf16.msra.mxu0 %v1140
        %2081 = vmatprep.subr.bf16.mxu0 %v1205
        %2082 = vmatpush1.bf16.msra.mxu0 %v1204
        %2083 = vmatprep.subr.bf16.mxu0 %v1269
        %2084 = vmatpush1.bf16.msra.mxu0 %v1268
        %2085 = vmatprep.subr.bf16.mxu0 %v1333
        %2086 = vmatpush1.bf16.msra.mxu0 %v1332
        %2087 = vmatprep.subr.bf16.mxu0 %v1397
        %2088 = vmatpush1.bf16.msra.mxu0 %v1396
        %2089 = vmatprep.subr.bf16.mxu0 %v1461
        %2090 = vmatpush1.bf16.msra.mxu0 %v1460
        %2091 = vmatprep.subr.bf16.mxu0 %v1525
        %2092 = vmatpush1.bf16.msra.mxu0 %v1524
        %2093 = vmatprep.subr.bf16.mxu0 %v1589
        %2094 = vmatpush1.bf16.msra.mxu0 %v1588
        %2095 = vmatprep.subr.bf16.mxu0 %v1653
        %2096 = vmatpush1.bf16.msra.mxu0 %v1652
        %2097 = vmatprep.subr.bf16.mxu0 %v1717
        %2098 = vmatpush1.bf16.msra.mxu0 %v1716
        %2099 = vmatprep.mubr.bf16.mxu0 %v1779
        %2100 = vmatmul.mubr.bf16.gmra.mrb[0].mxu0 %v1778
        %v2101 = vpop.f32.mrb[0].mxu0
        %v2102 = vadd.f32 0.0, %v2101
        %v2103 = vpop.f32.mrb[0].mxu0
        %v2104 = vadd.f32 0.0, %v2103
        %v2105 = vpop.f32.mrb[0].mxu0
        %v2106 = vpop.f32.mrb[0].mxu0
        %2107 = vdwg.mxu0
        %2108 = vmatprep.subr.bf16.mxu0 %v759
        %2109 = vmatpush1.bf16.msra.mxu0 %v758
        %2110 = vmatprep.subr.bf16.mxu0 %v823
        %2111 = vmatpush1.bf16.msra.mxu0 %v822
        %2112 = vmatprep.subr.bf16.mxu0 %v887
        %2113 = vmatpush1.bf16.msra.mxu0 %v886
        %2114 = vmatprep.subr.bf16.mxu0 %v951
        %2115 = vmatpush1.bf16.msra.mxu0 %v950
        %2116 = vmatprep.subr.bf16.mxu0 %v1015
        %2117 = vmatpush1.bf16.msra.mxu0 %v1014
        %2118 = vmatprep.subr.bf16.mxu0 %v1079
        %2119 = vmatpush1.bf16.msra.mxu0 %v1078
        %2120 = vmatprep.subr.bf16.mxu0 %v1143
        %2121 = vmatpush1.bf16.msra.mxu0 %v1142
        %2122 = vmatprep.subr.bf16.mxu0 %v1207
        %2123 = vmatpush1.bf16.msra.mxu0 %v1206
        %2124 = vmatprep.subr.bf16.mxu0 %v1271
        %2125 = vmatpush1.bf16.msra.mxu0 %v1270
        %2126 = vmatprep.subr.bf16.mxu0 %v1335
        %2127 = vmatpush1.bf16.msra.mxu0 %v1334
        %2128 = vmatprep.subr.bf16.mxu0 %v1399
        %2129 = vmatpush1.bf16.msra.mxu0 %v1398
        %2130 = vmatprep.subr.bf16.mxu0 %v1463
        %2131 = vmatpush1.bf16.msra.mxu0 %v1462
        %2132 = vmatprep.subr.bf16.mxu0 %v1527
        %2133 = vmatpush1.bf16.msra.mxu0 %v1526
        %2134 = vmatprep.subr.bf16.mxu0 %v1591
        %2135 = vmatpush1.bf16.msra.mxu0 %v1590
        %2136 = vmatprep.subr.bf16.mxu0 %v1655
        %2137 = vmatpush1.bf16.msra.mxu0 %v1654
        %2138 = vmatprep.subr.bf16.mxu0 %v1719
        %2139 = vmatpush1.bf16.msra.mxu0 %v1718
        %2140 = vmatprep.mubr.bf16.mxu0 %v1779
        %2141 = vmatmul.mubr.bf16.gmra.mrb[0].mxu0 %v1778
        %v2142 = vpop.f32.mrb[0].mxu0
        %v2143 = vadd.f32 0.0, %v2142
        %v2144 = vpop.f32.mrb[0].mxu0
        %v2145 = vadd.f32 0.0, %v2144
        %v2146 = vpop.f32.mrb[0].mxu0
        %v2147 = vpop.f32.mrb[0].mxu0
        %2148 = vdwg.mxu0
        %2149 = vmatprep.subr.bf16.mxu0 %v761
        %2150 = vmatpush1.bf16.msra.mxu0 %v760
        %2151 = vmatprep.subr.bf16.mxu0 %v825
        %2152 = vmatpush1.bf16.msra.mxu0 %v824
        %2153 = vmatprep.subr.bf16.mxu0 %v889
        %2154 = vmatpush1.bf16.msra.mxu0 %v888
        %2155 = vmatprep.subr.bf16.mxu0 %v953
        %2156 = vmatpush1.bf16.msra.mxu0 %v952
        %2157 = vmatprep.subr.bf16.mxu0 %v1017
        %2158 = vmatpush1.bf16.msra.mxu0 %v1016
        %2159 = vmatprep.subr.bf16.mxu0 %v1081
        %2160 = vmatpush1.bf16.msra.mxu0 %v1080
        %2161 = vmatprep.subr.bf16.mxu0 %v1145
        %2162 = vmatpush1.bf16.msra.mxu0 %v1144
        %2163 = vmatprep.subr.bf16.mxu0 %v1209
        %2164 = vmatpush1.bf16.msra.mxu0 %v1208
        %2165 = vmatprep.subr.bf16.mxu0 %v1273
        %2166 = vmatpush1.bf16.msra.mxu0 %v1272
        %2167 = vmatprep.subr.bf16.mxu0 %v1337
        %2168 = vmatpush1.bf16.msra.mxu0 %v1336
        %2169 = vmatprep.subr.bf16.mxu0 %v1401
        %2170 = vmatpush1.bf16.msra.mxu0 %v1400
        %2171 = vmatprep.subr.bf16.mxu0 %v1465
        %2172 = vmatpush1.bf16.msra.mxu0 %v1464
        %2173 = vmatprep.subr.bf16.mxu0 %v1529
        %2174 = vmatpush1.bf16.msra.mxu0 %v1528
        %2175 = vmatprep.subr.bf16.mxu0 %v1593
        %2176 = vmatpush1.bf16.msra.mxu0 %v1592
        %2177 = vmatprep.subr.bf16.mxu0 %v1657
        %2178 = vmatpush1.bf16.msra.mxu0 %v1656
        %2179 = vmatprep.subr.bf16.mxu0 %v1721
        %2180 = vmatpush1.bf16.msra.mxu0 %v1720
        %2181 = vmatprep.mubr.bf16.mxu0 %v1779
        %2182 = vmatmul.mubr.bf16.gmra.mrb[0].mxu0 %v1778
        %v2183 = vpop.f32.mrb[0].mxu0
        %v2184 = vadd.f32 0.0, %v2183
        %v2185 = vpop.f32.mrb[0].mxu0
        %v2186 = vadd.f32 0.0, %v2185
        %v2187 = vpop.f32.mrb[0].mxu0
        %v2188 = vpop.f32.mrb[0].mxu0
        %2189 = vdwg.mxu0
        %2190 = vmatprep.subr.bf16.mxu0 %v763
        %2191 = vmatpush1.bf16.msra.mxu0 %v762
        %2192 = vmatprep.subr.bf16.mxu0 %v827
        %2193 = vmatpush1.bf16.msra.mxu0 %v826
        %2194 = vmatprep.subr.bf16.mxu0 %v891
        %2195 = vmatpush1.bf16.msra.mxu0 %v890
        %2196 = vmatprep.subr.bf16.mxu0 %v955
        %2197 = vmatpush1.bf16.msra.mxu0 %v954
        %2198 = vmatprep.subr.bf16.mxu0 %v1019
        %2199 = vmatpush1.bf16.msra.mxu0 %v1018
        %2200 = vmatprep.subr.bf16.mxu0 %v1083
        %2201 = vmatpush1.bf16.msra.mxu0 %v1082
        %2202 = vmatprep.subr.bf16.mxu0 %v1147
        %2203 = vmatpush1.bf16.msra.mxu0 %v1146
        %2204 = vmatprep.subr.bf16.mxu0 %v1211
        %2205 = vmatpush1.bf16.msra.mxu0 %v1210
        %2206 = vmatprep.subr.bf16.mxu0 %v1275
        %2207 = vmatpush1.bf16.msra.mxu0 %v1274
        %2208 = vmatprep.subr.bf16.mxu0 %v1339
        %2209 = vmatpush1.bf16.msra.mxu0 %v1338
        %2210 = vmatprep.subr.bf16.mxu0 %v1403
        %2211 = vmatpush1.bf16.msra.mxu0 %v1402
        %2212 = vmatprep.subr.bf16.mxu0 %v1467
        %2213 = vmatpush1.bf16.msra.mxu0 %v1466
        %2214 = vmatprep.subr.bf16.mxu0 %v1531
        %2215 = vmatpush1.bf16.msra.mxu0 %v1530
        %2216 = vmatprep.subr.bf16.mxu0 %v1595
        %2217 = vmatpush1.bf16.msra.mxu0 %v1594
        %2218 = vmatprep.subr.bf16.mxu0 %v1659
        %2219 = vmatpush1.bf16.msra.mxu0 %v1658
        %2220 = vmatprep.subr.bf16.mxu0 %v1723
        %2221 = vmatpush1.bf16.msra.mxu0 %v1722
        %2222 = vmatprep.mubr.bf16.mxu0 %v1779
        %2223 = vmatmul.mubr.bf16.gmra.mrb[0].mxu0 %v1778
        %v2224 = vpop.f32.mrb[0].mxu0
        %v2225 = vadd.f32 0.0, %v2224
        %v2226 = vpop.f32.mrb[0].mxu0
        %v2227 = vadd.f32 0.0, %v2226
        %v2228 = vpop.f32.mrb[0].mxu0
        %v2229 = vpop.f32.mrb[0].mxu0
        %2230 = vdwg.mxu0
        %2231 = vmatprep.subr.bf16.mxu0 %v765
        %2232 = vmatpush1.bf16.msra.mxu0 %v764
        %2233 = vmatprep.subr.bf16.mxu0 %v829
        %2234 = vmatpush1.bf16.msra.mxu0 %v828
        %2235 = vmatprep.subr.bf16.mxu0 %v893
        %2236 = vmatpush1.bf16.msra.mxu0 %v892
        %2237 = vmatprep.subr.bf16.mxu0 %v957
        %2238 = vmatpush1.bf16.msra.mxu0 %v956
        %2239 = vmatprep.subr.bf16.mxu0 %v1021
        %2240 = vmatpush1.bf16.msra.mxu0 %v1020
        %2241 = vmatprep.subr.bf16.mxu0 %v1085
        %2242 = vmatpush1.bf16.msra.mxu0 %v1084
        %2243 = vmatprep.subr.bf16.mxu0 %v1149
        %2244 = vmatpush1.bf16.msra.mxu0 %v1148
        %2245 = vmatprep.subr.bf16.mxu0 %v1213
        %2246 = vmatpush1.bf16.msra.mxu0 %v1212
        %2247 = vmatprep.subr.bf16.mxu0 %v1277
        %2248 = vmatpush1.bf16.msra.mxu0 %v1276
        %2249 = vmatprep.subr.bf16.mxu0 %v1341
        %2250 = vmatpush1.bf16.msra.mxu0 %v1340
        %2251 = vmatprep.subr.bf16.mxu0 %v1405
        %2252 = vmatpush1.bf16.msra.mxu0 %v1404
        %2253 = vmatprep.subr.bf16.mxu0 %v1469
        %2254 = vmatpush1.bf16.msra.mxu0 %v1468
        %2255 = vmatprep.subr.bf16.mxu0 %v1533
        %2256 = vmatpush1.bf16.msra.mxu0 %v1532
        %2257 = vmatprep.subr.bf16.mxu0 %v1597
        %2258 = vmatpush1.bf16.msra.mxu0 %v1596
        %2259 = vmatprep.subr.bf16.mxu0 %v1661
        %2260 = vmatpush1.bf16.msra.mxu0 %v1660
        %2261 = vmatprep.subr.bf16.mxu0 %v1725
        %2262 = vmatpush1.bf16.msra.mxu0 %v1724
        %2263 = vmatprep.mubr.bf16.mxu0 %v1779
        %2264 = vmatmul.mubr.bf16.gmra.mrb[0].mxu0 %v1778
        %v2265 = vpop.f32.mrb[0].mxu0
        %v2266 = vadd.f32 0.0, %v2265
        %v2267 = vpop.f32.mrb[0].mxu0
        %v2268 = vadd.f32 0.0, %v2267
        %v2269 = vpop.f32.mrb[0].mxu0
        %v2270 = vpop.f32.mrb[0].mxu0
        %2271 = vdwg.mxu0
        %2272 = vmatprep.subr.bf16.mxu0 %v767
        %2273 = vmatpush1.bf16.msra.mxu0 %v766
        %2274 = vmatprep.subr.bf16.mxu0 %v831
        %2275 = vmatpush1.bf16.msra.mxu0 %v830
        %2276 = vmatprep.subr.bf16.mxu0 %v895
        %2277 = vmatpush1.bf16.msra.mxu0 %v894
        %2278 = vmatprep.subr.bf16.mxu0 %v959
        %2279 = vmatpush1.bf16.msra.mxu0 %v958
        %2280 = vmatprep.subr.bf16.mxu0 %v1023
        %2281 = vmatpush1.bf16.msra.mxu0 %v1022
        %2282 = vmatprep.subr.bf16.mxu0 %v1087
        %2283 = vmatpush1.bf16.msra.mxu0 %v1086
        %2284 = vmatprep.subr.bf16.mxu0 %v1151
        %2285 = vmatpush1.bf16.msra.mxu0 %v1150
        %2286 = vmatprep.subr.bf16.mxu0 %v1215
        %2287 = vmatpush1.bf16.msra.mxu0 %v1214
        %2288 = vmatprep.subr.bf16.mxu0 %v1279
        %2289 = vmatpush1.bf16.msra.mxu0 %v1278
        %2290 = vmatprep.subr.bf16.mxu0 %v1343
        %2291 = vmatpush1.bf16.msra.mxu0 %v1342
        %2292 = vmatprep.subr.bf16.mxu0 %v1407
        %2293 = vmatpush1.bf16.msra.mxu0 %v1406
        %2294 = vmatprep.subr.bf16.mxu0 %v1471
        %2295 = vmatpush1.bf16.msra.mxu0 %v1470
        %2296 = vmatprep.subr.bf16.mxu0 %v1535
        %2297 = vmatpush1.bf16.msra.mxu0 %v1534
        %2298 = vmatprep.subr.bf16.mxu0 %v1599
        %2299 = vmatpush1.bf16.msra.mxu0 %v1598
        %2300 = vmatprep.subr.bf16.mxu0 %v1663
        %2301 = vmatpush1.bf16.msra.mxu0 %v1662
        %2302 = vmatprep.subr.bf16.mxu0 %v1727
        %2303 = vmatpush1.bf16.msra.mxu0 %v1726
        %2304 = vmatprep.mubr.bf16.mxu0 %v1779
        %2305 = vmatmul.mubr.bf16.gmra.mrb[0].mxu0 %v1778
        %v2306 = vpop.f32.mrb[0].mxu0
        %v2307 = vadd.f32 0.0, %v2306
        %v2308 = vpop.f32.mrb[0].mxu0
        %v2309 = vadd.f32 0.0, %v2308
        %v2310 = vpop.f32.mrb[0].mxu0
        %v2311 = vpop.f32.mrb[0].mxu0
        %2312 = vdwg.mxu0
        %2313 = vmatprep.subr.bf16.mxu0 %v769
        %2314 = vmatpush1.bf16.msra.mxu0 %v768
        %2315 = vmatprep.subr.bf16.mxu0 %v833
        %2316 = vmatpush1.bf16.msra.mxu0 %v832
        %2317 = vmatprep.subr.bf16.mxu0 %v897
        %2318 = vmatpush1.bf16.msra.mxu0 %v896
        %2319 = vmatprep.subr.bf16.mxu0 %v961
        %2320 = vmatpush1.bf16.msra.mxu0 %v960
        %2321 = vmatprep.subr.bf16.mxu0 %v1025
        %2322 = vmatpush1.bf16.msra.mxu0 %v1024
        %2323 = vmatprep.subr.bf16.mxu0 %v1089
        %2324 = vmatpush1.bf16.msra.mxu0 %v1088
        %2325 = vmatprep.subr.bf16.mxu0 %v1153
        %2326 = vmatpush1.bf16.msra.mxu0 %v1152
        %2327 = vmatprep.subr.bf16.mxu0 %v1217
        %2328 = vmatpush1.bf16.msra.mxu0 %v1216
        %2329 = vmatprep.subr.bf16.mxu0 %v1281
        %2330 = vmatpush1.bf16.msra.mxu0 %v1280
        %2331 = vmatprep.subr.bf16.mxu0 %v1345
        %2332 = vmatpush1.bf16.msra.mxu0 %v1344
        %2333 = vmatprep.subr.bf16.mxu0 %v1409
        %2334 = vmatpush1.bf16.msra.mxu0 %v1408
        %2335 = vmatprep.subr.bf16.mxu0 %v1473
        %2336 = vmatpush1.bf16.msra.mxu0 %v1472
        %2337 = vmatprep.subr.bf16.mxu0 %v1537
        %2338 = vmatpush1.bf16.msra.mxu0 %v1536
        %2339 = vmatprep.subr.bf16.mxu0 %v1601
        %2340 = vmatpush1.bf16.msra.mxu0 %v1600
        %2341 = vmatprep.subr.bf16.mxu0 %v1665
        %2342 = vmatpush1.bf16.msra.mxu0 %v1664
        %2343 = vmatprep.subr.bf16.mxu0 %v1729
        %2344 = vmatpush1.bf16.msra.mxu0 %v1728
        %2345 = vmatprep.mubr.bf16.mxu0 %v1779
        %2346 = vmatmul.mubr.bf16.gmra.mrb[0].mxu0 %v1778
        %v2347 = vpop.f32.mrb[0].mxu0
        %v2348 = vadd.f32 0.0, %v2347
        %v2349 = vpop.f32.mrb[0].mxu0
        %v2350 = vadd.f32 0.0, %v2349
        %v2351 = vpop.f32.mrb[0].mxu0
        %v2352 = vpop.f32.mrb[0].mxu0
        %2353 = vdwg.mxu0
        %2354 = vmatprep.subr.bf16.mxu0 %v771
        %2355 = vmatpush1.bf16.msra.mxu0 %v770
        %2356 = vmatprep.subr.bf16.mxu0 %v835
        %2357 = vmatpush1.bf16.msra.mxu0 %v834
        %2358 = vmatprep.subr.bf16.mxu0 %v899
        %2359 = vmatpush1.bf16.msra.mxu0 %v898
        %2360 = vmatprep.subr.bf16.mxu0 %v963
        %2361 = vmatpush1.bf16.msra.mxu0 %v962
        %2362 = vmatprep.subr.bf16.mxu0 %v1027
        %2363 = vmatpush1.bf16.msra.mxu0 %v1026
        %2364 = vmatprep.subr.bf16.mxu0 %v1091
        %2365 = vmatpush1.bf16.msra.mxu0 %v1090
        %2366 = vmatprep.subr.bf16.mxu0 %v1155
        %2367 = vmatpush1.bf16.msra.mxu0 %v1154
        %2368 = vmatprep.subr.bf16.mxu0 %v1219
        %2369 = vmatpush1.bf16.msra.mxu0 %v1218
        %2370 = vmatprep.subr.bf16.mxu0 %v1283
        %2371 = vmatpush1.bf16.msra.mxu0 %v1282
        %2372 = vmatprep.subr.bf16.mxu0 %v1347
        %2373 = vmatpush1.bf16.msra.mxu0 %v1346
        %2374 = vmatprep.subr.bf16.mxu0 %v1411
        %2375 = vmatpush1.bf16.msra.mxu0 %v1410
        %2376 = vmatprep.subr.bf16.mxu0 %v1475
        %2377 = vmatpush1.bf16.msra.mxu0 %v1474
        %2378 = vmatprep.subr.bf16.mxu0 %v1539
        %2379 = vmatpush1.bf16.msra.mxu0 %v1538
        %2380 = vmatprep.subr.bf16.mxu0 %v1603
        %2381 = vmatpush1.bf16.msra.mxu0 %v1602
        %2382 = vmatprep.subr.bf16.mxu0 %v1667
        %2383 = vmatpush1.bf16.msra.mxu0 %v1666
        %2384 = vmatprep.subr.bf16.mxu0 %v1731
        %2385 = vmatpush1.bf16.msra.mxu0 %v1730
        %2386 = vmatprep.mubr.bf16.mxu0 %v1779
        %2387 = vmatmul.mubr.bf16.gmra.mrb[0].mxu0 %v1778
        %v2388 = vpop.f32.mrb[0].mxu0
        %v2389 = vadd.f32 0.0, %v2388
        %v2390 = vpop.f32.mrb[0].mxu0
        %v2391 = vadd.f32 0.0, %v2390
        %v2392 = vpop.f32.mrb[0].mxu0
        %v2393 = vpop.f32.mrb[0].mxu0
        %2394 = vdwg.mxu0
        %2395 = vmatprep.subr.bf16.mxu0 %v773
        %2396 = vmatpush1.bf16.msra.mxu0 %v772
        %2397 = vmatprep.subr.bf16.mxu0 %v837
        %2398 = vmatpush1.bf16.msra.mxu0 %v836
        %2399 = vmatprep.subr.bf16.mxu0 %v901
        %2400 = vmatpush1.bf16.msra.mxu0 %v900
        %2401 = vmatprep.subr.bf16.mxu0 %v965
        %2402 = vmatpush1.bf16.msra.mxu0 %v964
        %2403 = vmatprep.subr.bf16.mxu0 %v1029
        %2404 = vmatpush1.bf16.msra.mxu0 %v1028
        %2405 = vmatprep.subr.bf16.mxu0 %v1093
        %2406 = vmatpush1.bf16.msra.mxu0 %v1092
        %2407 = vmatprep.subr.bf16.mxu0 %v1157
        %2408 = vmatpush1.bf16.msra.mxu0 %v1156
        %2409 = vmatprep.subr.bf16.mxu0 %v1221
        %2410 = vmatpush1.bf16.msra.mxu0 %v1220
        %2411 = vmatprep.subr.bf16.mxu0 %v1285
        %2412 = vmatpush1.bf16.msra.mxu0 %v1284
        %2413 = vmatprep.subr.bf16.mxu0 %v1349
        %2414 = vmatpush1.bf16.msra.mxu0 %v1348
        %2415 = vmatprep.subr.bf16.mxu0 %v1413
        %2416 = vmatpush1.bf16.msra.mxu0 %v1412
        %2417 = vmatprep.subr.bf16.mxu0 %v1477
        %2418 = vmatpush1.bf16.msra.mxu0 %v1476
        %2419 = vmatprep.subr.bf16.mxu0 %v1541
        %2420 = vmatpush1.bf16.msra.mxu0 %v1540
        %2421 = vmatprep.subr.bf16.mxu0 %v1605
        %2422 = vmatpush1.bf16.msra.mxu0 %v1604
        %2423 = vmatprep.subr.bf16.mxu0 %v1669
        %2424 = vmatpush1.bf16.msra.mxu0 %v1668
        %2425 = vmatprep.subr.bf16.mxu0 %v1733
        %2426 = vmatpush1.bf16.msra.mxu0 %v1732
        %2427 = vmatprep.mubr.bf16.mxu0 %v1779
        %2428 = vmatmul.mubr.bf16.gmra.mrb[0].mxu0 %v1778
        %v2429 = vpop.f32.mrb[0].mxu0
        %v2430 = vadd.f32 0.0, %v2429
        %v2431 = vpop.f32.mrb[0].mxu0
        %v2432 = vadd.f32 0.0, %v2431
        %v2433 = vpop.f32.mrb[0].mxu0
        %v2434 = vpop.f32.mrb[0].mxu0
        %2435 = vdwg.mxu0
        %2436 = vmatprep.subr.bf16.mxu0 %v775
        %2437 = vmatpush1.bf16.msra.mxu0 %v774
        %2438 = vmatprep.subr.bf16.mxu0 %v839
        %2439 = vmatpush1.bf16.msra.mxu0 %v838
        %2440 = vmatprep.subr.bf16.mxu0 %v903
        %2441 = vmatpush1.bf16.msra.mxu0 %v902
        %2442 = vmatprep.subr.bf16.mxu0 %v967
        %2443 = vmatpush1.bf16.msra.mxu0 %v966
        %2444 = vmatprep.subr.bf16.mxu0 %v1031
        %2445 = vmatpush1.bf16.msra.mxu0 %v1030
        %2446 = vmatprep.subr.bf16.mxu0 %v1095
        %2447 = vmatpush1.bf16.msra.mxu0 %v1094
        %2448 = vmatprep.subr.bf16.mxu0 %v1159
        %2449 = vmatpush1.bf16.msra.mxu0 %v1158
        %2450 = vmatprep.subr.bf16.mxu0 %v1223
        %2451 = vmatpush1.bf16.msra.mxu0 %v1222
        %2452 = vmatprep.subr.bf16.mxu0 %v1287
        %2453 = vmatpush1.bf16.msra.mxu0 %v1286
        %2454 = vmatprep.subr.bf16.mxu0 %v1351
        %2455 = vmatpush1.bf16.msra.mxu0 %v1350
        %2456 = vmatprep.subr.bf16.mxu0 %v1415
        %2457 = vmatpush1.bf16.msra.mxu0 %v1414
        %2458 = vmatprep.subr.bf16.mxu0 %v1479
        %2459 = vmatpush1.bf16.msra.mxu0 %v1478
        %2460 = vmatprep.subr.bf16.mxu0 %v1543
        %2461 = vmatpush1.bf16.msra.mxu0 %v1542
        %2462 = vmatprep.subr.bf16.mxu0 %v1607
        %2463 = vmatpush1.bf16.msra.mxu0 %v1606
        %2464 = vmatprep.subr.bf16.mxu0 %v1671
        %2465 = vmatpush1.bf16.msra.mxu0 %v1670
        %2466 = vmatprep.subr.bf16.mxu0 %v1735
        %2467 = vmatpush1.bf16.msra.mxu0 %v1734
        %2468 = vmatprep.mubr.bf16.mxu0 %v1779
        %2469 = vmatmul.mubr.bf16.gmra.mrb[0].mxu0 %v1778
        %v2470 = vpop.f32.mrb[0].mxu0
        %v2471 = vadd.f32 0.0, %v2470
        %v2472 = vpop.f32.mrb[0].mxu0
        %v2473 = vadd.f32 0.0, %v2472
        %v2474 = vpop.f32.mrb[0].mxu0
        %v2475 = vpop.f32.mrb[0].mxu0
        %2476 = vdwg.mxu0
        %2477 = vmatprep.subr.bf16.mxu0 %v777
        %2478 = vmatpush1.bf16.msra.mxu0 %v776
        %2479 = vmatprep.subr.bf16.mxu0 %v841
        %2480 = vmatpush1.bf16.msra.mxu0 %v840
        %2481 = vmatprep.subr.bf16.mxu0 %v905
        %2482 = vmatpush1.bf16.msra.mxu0 %v904
        %2483 = vmatprep.subr.bf16.mxu0 %v969
        %2484 = vmatpush1.bf16.msra.mxu0 %v968
        %2485 = vmatprep.subr.bf16.mxu0 %v1033
        %2486 = vmatpush1.bf16.msra.mxu0 %v1032
        %2487 = vmatprep.subr.bf16.mxu0 %v1097
        %2488 = vmatpush1.bf16.msra.mxu0 %v1096
        %2489 = vmatprep.subr.bf16.mxu0 %v1161
        %2490 = vmatpush1.bf16.msra.mxu0 %v1160
        %2491 = vmatprep.subr.bf16.mxu0 %v1225
        %2492 = vmatpush1.bf16.msra.mxu0 %v1224
        %2493 = vmatprep.subr.bf16.mxu0 %v1289
        %2494 = vmatpush1.bf16.msra.mxu0 %v1288
        %2495 = vmatprep.subr.bf16.mxu0 %v1353
        %2496 = vmatpush1.bf16.msra.mxu0 %v1352
        %2497 = vmatprep.subr.bf16.mxu0 %v1417
        %2498 = vmatpush1.bf16.msra.mxu0 %v1416
        %2499 = vmatprep.subr.bf16.mxu0 %v1481
        %2500 = vmatpush1.bf16.msra.mxu0 %v1480
        %2501 = vmatprep.subr.bf16.mxu0 %v1545
        %2502 = vmatpush1.bf16.msra.mxu0 %v1544
        %2503 = vmatprep.subr.bf16.mxu0 %v1609
        %2504 = vmatpush1.bf16.msra.mxu0 %v1608
        %2505 = vmatprep.subr.bf16.mxu0 %v1673
        %2506 = vmatpush1.bf16.msra.mxu0 %v1672
        %2507 = vmatprep.subr.bf16.mxu0 %v1737
        %2508 = vmatpush1.bf16.msra.mxu0 %v1736
        %2509 = vmatprep.mubr.bf16.mxu0 %v1779
        %2510 = vmatmul.mubr.bf16.gmra.mrb[0].mxu0 %v1778
        %v2511 = vpop.f32.mrb[0].mxu0
        %v2512 = vadd.f32 0.0, %v2511
        %v2513 = vpop.f32.mrb[0].mxu0
        %v2514 = vadd.f32 0.0, %v2513
        %v2515 = vpop.f32.mrb[0].mxu0
        %v2516 = vpop.f32.mrb[0].mxu0
        %2517 = vdwg.mxu0
        %2518 = vmatprep.subr.bf16.mxu0 %v779
        %2519 = vmatpush1.bf16.msra.mxu0 %v778
        %2520 = vmatprep.subr.bf16.mxu0 %v843
        %2521 = vmatpush1.bf16.msra.mxu0 %v842
        %2522 = vmatprep.subr.bf16.mxu0 %v907
        %2523 = vmatpush1.bf16.msra.mxu0 %v906
        %2524 = vmatprep.subr.bf16.mxu0 %v971
        %2525 = vmatpush1.bf16.msra.mxu0 %v970
        %2526 = vmatprep.subr.bf16.mxu0 %v1035
        %2527 = vmatpush1.bf16.msra.mxu0 %v1034
        %2528 = vmatprep.subr.bf16.mxu0 %v1099
        %2529 = vmatpush1.bf16.msra.mxu0 %v1098
        %2530 = vmatprep.subr.bf16.mxu0 %v1163
        %2531 = vmatpush1.bf16.msra.mxu0 %v1162
        %2532 = vmatprep.subr.bf16.mxu0 %v1227
        %2533 = vmatpush1.bf16.msra.mxu0 %v1226
        %2534 = vmatprep.subr.bf16.mxu0 %v1291
        %2535 = vmatpush1.bf16.msra.mxu0 %v1290
        %2536 = vmatprep.subr.bf16.mxu0 %v1355
        %2537 = vmatpush1.bf16.msra.mxu0 %v1354
        %2538 = vmatprep.subr.bf16.mxu0 %v1419
        %2539 = vmatpush1.bf16.msra.mxu0 %v1418
        %2540 = vmatprep.subr.bf16.mxu0 %v1483
        %2541 = vmatpush1.bf16.msra.mxu0 %v1482
        %2542 = vmatprep.subr.bf16.mxu0 %v1547
        %2543 = vmatpush1.bf16.msra.mxu0 %v1546
        %2544 = vmatprep.subr.bf16.mxu0 %v1611
        %2545 = vmatpush1.bf16.msra.mxu0 %v1610
        %2546 = vmatprep.subr.bf16.mxu0 %v1675
        %2547 = vmatpush1.bf16.msra.mxu0 %v1674
        %2548 = vmatprep.subr.bf16.mxu0 %v1739
        %2549 = vmatpush1.bf16.msra.mxu0 %v1738
        %2550 = vmatprep.mubr.bf16.mxu0 %v1779
        %2551 = vmatmul.mubr.bf16.gmra.mrb[0].mxu0 %v1778
        %v2552 = vpop.f32.mrb[0].mxu0
        %v2553 = vadd.f32 0.0, %v2552
        %v2554 = vpop.f32.mrb[0].mxu0
        %v2555 = vadd.f32 0.0, %v2554
        %v2556 = vpop.f32.mrb[0].mxu0
        %v2557 = vpop.f32.mrb[0].mxu0
        %2558 = vdwg.mxu0
        %2559 = vmatprep.subr.bf16.mxu0 %v781
        %2560 = vmatpush1.bf16.msra.mxu0 %v780
        %2561 = vmatprep.subr.bf16.mxu0 %v845
        %2562 = vmatpush1.bf16.msra.mxu0 %v844
        %2563 = vmatprep.subr.bf16.mxu0 %v909
        %2564 = vmatpush1.bf16.msra.mxu0 %v908
        %2565 = vmatprep.subr.bf16.mxu0 %v973
        %2566 = vmatpush1.bf16.msra.mxu0 %v972
        %2567 = vmatprep.subr.bf16.mxu0 %v1037
        %2568 = vmatpush1.bf16.msra.mxu0 %v1036
        %2569 = vmatprep.subr.bf16.mxu0 %v1101
        %2570 = vmatpush1.bf16.msra.mxu0 %v1100
        %2571 = vmatprep.subr.bf16.mxu0 %v1165
        %2572 = vmatpush1.bf16.msra.mxu0 %v1164
        %2573 = vmatprep.subr.bf16.mxu0 %v1229
        %2574 = vmatpush1.bf16.msra.mxu0 %v1228
        %2575 = vmatprep.subr.bf16.mxu0 %v1293
        %2576 = vmatpush1.bf16.msra.mxu0 %v1292
        %2577 = vmatprep.subr.bf16.mxu0 %v1357
        %2578 = vmatpush1.bf16.msra.mxu0 %v1356
        %2579 = vmatprep.subr.bf16.mxu0 %v1421
        %2580 = vmatpush1.bf16.msra.mxu0 %v1420
        %2581 = vmatprep.subr.bf16.mxu0 %v1485
        %2582 = vmatpush1.bf16.msra.mxu0 %v1484
        %2583 = vmatprep.subr.bf16.mxu0 %v1549
        %2584 = vmatpush1.bf16.msra.mxu0 %v1548
        %2585 = vmatprep.subr.bf16.mxu0 %v1613
        %2586 = vmatpush1.bf16.msra.mxu0 %v1612
        %2587 = vmatprep.subr.bf16.mxu0 %v1677
        %2588 = vmatpush1.bf16.msra.mxu0 %v1676
        %2589 = vmatprep.subr.bf16.mxu0 %v1741
        %2590 = vmatpush1.bf16.msra.mxu0 %v1740
        %2591 = vmatprep.mubr.bf16.mxu0 %v1779
        %2592 = vmatmul.mubr.bf16.gmra.mrb[0].mxu0 %v1778
        %v2593 = vpop.f32.mrb[0].mxu0
        %v2594 = vadd.f32 0.0, %v2593
        %v2595 = vpop.f32.mrb[0].mxu0
        %v2596 = vadd.f32 0.0, %v2595
        %v2597 = vpop.f32.mrb[0].mxu0
        %v2598 = vpop.f32.mrb[0].mxu0
        %2599 = vdwg.mxu0
        %2600 = vmatprep.subr.bf16.mxu0 %v783
        %2601 = vmatpush1.bf16.msra.mxu0 %v782
        %2602 = vmatprep.subr.bf16.mxu0 %v847
        %2603 = vmatpush1.bf16.msra.mxu0 %v846
        %2604 = vmatprep.subr.bf16.mxu0 %v911
        %2605 = vmatpush1.bf16.msra.mxu0 %v910
        %2606 = vmatprep.subr.bf16.mxu0 %v975
        %2607 = vmatpush1.bf16.msra.mxu0 %v974
        %2608 = vmatprep.subr.bf16.mxu0 %v1039
        %2609 = vmatpush1.bf16.msra.mxu0 %v1038
        %2610 = vmatprep.subr.bf16.mxu0 %v1103
        %2611 = vmatpush1.bf16.msra.mxu0 %v1102
        %2612 = vmatprep.subr.bf16.mxu0 %v1167
        %2613 = vmatpush1.bf16.msra.mxu0 %v1166
        %2614 = vmatprep.subr.bf16.mxu0 %v1231
        %2615 = vmatpush1.bf16.msra.mxu0 %v1230
        %2616 = vmatprep.subr.bf16.mxu0 %v1295
        %2617 = vmatpush1.bf16.msra.mxu0 %v1294
        %2618 = vmatprep.subr.bf16.mxu0 %v1359
        %2619 = vmatpush1.bf16.msra.mxu0 %v1358
        %2620 = vmatprep.subr.bf16.mxu0 %v1423
        %2621 = vmatpush1.bf16.msra.mxu0 %v1422
        %2622 = vmatprep.subr.bf16.mxu0 %v1487
        %2623 = vmatpush1.bf16.msra.mxu0 %v1486
        %2624 = vmatprep.subr.bf16.mxu0 %v1551
        %2625 = vmatpush1.bf16.msra.mxu0 %v1550
        %2626 = vmatprep.subr.bf16.mxu0 %v1615
        %2627 = vmatpush1.bf16.msra.mxu0 %v1614
        %2628 = vmatprep.subr.bf16.mxu0 %v1679
        %2629 = vmatpush1.bf16.msra.mxu0 %v1678
        %2630 = vmatprep.subr.bf16.mxu0 %v1743
        %2631 = vmatpush1.bf16.msra.mxu0 %v1742
        %2632 = vmatprep.mubr.bf16.mxu0 %v1779
        %2633 = vmatmul.mubr.bf16.gmra.mrb[0].mxu0 %v1778
        %v2634 = vpop.f32.mrb[0].mxu0
        %v2635 = vadd.f32 0.0, %v2634
        %v2636 = vpop.f32.mrb[0].mxu0
        %v2637 = vadd.f32 0.0, %v2636
        %v2638 = vpop.f32.mrb[0].mxu0
        %v2639 = vpop.f32.mrb[0].mxu0
        %2640 = vdwg.mxu0
        %2641 = vmatprep.subr.bf16.mxu0 %v785
        %2642 = vmatpush1.bf16.msra.mxu0 %v784
        %2643 = vmatprep.subr.bf16.mxu0 %v849
        %2644 = vmatpush1.bf16.msra.mxu0 %v848
        %2645 = vmatprep.subr.bf16.mxu0 %v913
        %2646 = vmatpush1.bf16.msra.mxu0 %v912
        %2647 = vmatprep.subr.bf16.mxu0 %v977
        %2648 = vmatpush1.bf16.msra.mxu0 %v976
        %2649 = vmatprep.subr.bf16.mxu0 %v1041
        %2650 = vmatpush1.bf16.msra.mxu0 %v1040
        %2651 = vmatprep.subr.bf16.mxu0 %v1105
        %2652 = vmatpush1.bf16.msra.mxu0 %v1104
        %2653 = vmatprep.subr.bf16.mxu0 %v1169
        %2654 = vmatpush1.bf16.msra.mxu0 %v1168
        %2655 = vmatprep.subr.bf16.mxu0 %v1233
        %2656 = vmatpush1.bf16.msra.mxu0 %v1232
        %2657 = vmatprep.subr.bf16.mxu0 %v1297
        %2658 = vmatpush1.bf16.msra.mxu0 %v1296
        %2659 = vmatprep.subr.bf16.mxu0 %v1361
        %2660 = vmatpush1.bf16.msra.mxu0 %v1360
        %2661 = vmatprep.subr.bf16.mxu0 %v1425
        %2662 = vmatpush1.bf16.msra.mxu0 %v1424
        %2663 = vmatprep.subr.bf16.mxu0 %v1489
        %2664 = vmatpush1.bf16.msra.mxu0 %v1488
        %2665 = vmatprep.subr.bf16.mxu0 %v1553
        %2666 = vmatpush1.bf16.msra.mxu0 %v1552
        %2667 = vmatprep.subr.bf16.mxu0 %v1617
        %2668 = vmatpush1.bf16.msra.mxu0 %v1616
        %2669 = vmatprep.subr.bf16.mxu0 %v1681
        %2670 = vmatpush1.bf16.msra.mxu0 %v1680
        %2671 = vmatprep.subr.bf16.mxu0 %v1745
        %2672 = vmatpush1.bf16.msra.mxu0 %v1744
        %2673 = vmatprep.mubr.bf16.mxu0 %v1779
        %2674 = vmatmul.mubr.bf16.gmra.mrb[0].mxu0 %v1778
        %v2675 = vpop.f32.mrb[0].mxu0
        %v2676 = vadd.f32 0.0, %v2675
        %v2677 = vpop.f32.mrb[0].mxu0
        %v2678 = vadd.f32 0.0, %v2677
        %v2679 = vpop.f32.mrb[0].mxu0
        %v2680 = vpop.f32.mrb[0].mxu0
        %2681 = vdwg.mxu0
        %2682 = vmatprep.subr.bf16.mxu0 %v787
        %2683 = vmatpush1.bf16.msra.mxu0 %v786
        %2684 = vmatprep.subr.bf16.mxu0 %v851
        %2685 = vmatpush1.bf16.msra.mxu0 %v850
        %2686 = vmatprep.subr.bf16.mxu0 %v915
        %2687 = vmatpush1.bf16.msra.mxu0 %v914
        %2688 = vmatprep.subr.bf16.mxu0 %v979
        %2689 = vmatpush1.bf16.msra.mxu0 %v978
        %2690 = vmatprep.subr.bf16.mxu0 %v1043
        %2691 = vmatpush1.bf16.msra.mxu0 %v1042
        %2692 = vmatprep.subr.bf16.mxu0 %v1107
        %2693 = vmatpush1.bf16.msra.mxu0 %v1106
        %2694 = vmatprep.subr.bf16.mxu0 %v1171
        %2695 = vmatpush1.bf16.msra.mxu0 %v1170
        %2696 = vmatprep.subr.bf16.mxu0 %v1235
        %2697 = vmatpush1.bf16.msra.mxu0 %v1234
        %2698 = vmatprep.subr.bf16.mxu0 %v1299
        %2699 = vmatpush1.bf16.msra.mxu0 %v1298
        %2700 = vmatprep.subr.bf16.mxu0 %v1363
        %2701 = vmatpush1.bf16.msra.mxu0 %v1362
        %2702 = vmatprep.subr.bf16.mxu0 %v1427
        %2703 = vmatpush1.bf16.msra.mxu0 %v1426
        %2704 = vmatprep.subr.bf16.mxu0 %v1491
        %2705 = vmatpush1.bf16.msra.mxu0 %v1490
        %2706 = vmatprep.subr.bf16.mxu0 %v1555
        %2707 = vmatpush1.bf16.msra.mxu0 %v1554
        %2708 = vmatprep.subr.bf16.mxu0 %v1619
        %2709 = vmatpush1.bf16.msra.mxu0 %v1618
        %2710 = vmatprep.subr.bf16.mxu0 %v1683
        %2711 = vmatpush1.bf16.msra.mxu0 %v1682
        %2712 = vmatprep.subr.bf16.mxu0 %v1747
        %2713 = vmatpush1.bf16.msra.mxu0 %v1746
        %2714 = vmatprep.mubr.bf16.mxu0 %v1779
        %2715 = vmatmul.mubr.bf16.gmra.mrb[0].mxu0 %v1778
        %v2716 = vpop.f32.mrb[0].mxu0
        %v2717 = vadd.f32 0.0, %v2716
        %v2718 = vpop.f32.mrb[0].mxu0
        %v2719 = vadd.f32 0.0, %v2718
        %v2720 = vpop.f32.mrb[0].mxu0
        %v2721 = vpop.f32.mrb[0].mxu0
        %2722 = vdwg.mxu0
        %2723 = vmatprep.subr.bf16.mxu0 %v789
        %2724 = vmatpush1.bf16.msra.mxu0 %v788
        %2725 = vmatprep.subr.bf16.mxu0 %v853
        %2726 = vmatpush1.bf16.msra.mxu0 %v852
        %2727 = vmatprep.subr.bf16.mxu0 %v917
        %2728 = vmatpush1.bf16.msra.mxu0 %v916
        %2729 = vmatprep.subr.bf16.mxu0 %v981
        %2730 = vmatpush1.bf16.msra.mxu0 %v980
        %2731 = vmatprep.subr.bf16.mxu0 %v1045
        %2732 = vmatpush1.bf16.msra.mxu0 %v1044
        %2733 = vmatprep.subr.bf16.mxu0 %v1109
        %2734 = vmatpush1.bf16.msra.mxu0 %v1108
        %2735 = vmatprep.subr.bf16.mxu0 %v1173
        %2736 = vmatpush1.bf16.msra.mxu0 %v1172
        %2737 = vmatprep.subr.bf16.mxu0 %v1237
        %2738 = vmatpush1.bf16.msra.mxu0 %v1236
        %2739 = vmatprep.subr.bf16.mxu0 %v1301
        %2740 = vmatpush1.bf16.msra.mxu0 %v1300
        %2741 = vmatprep.subr.bf16.mxu0 %v1365
        %2742 = vmatpush1.bf16.msra.mxu0 %v1364
        %2743 = vmatprep.subr.bf16.mxu0 %v1429
        %2744 = vmatpush1.bf16.msra.mxu0 %v1428
        %2745 = vmatprep.subr.bf16.mxu0 %v1493
        %2746 = vmatpush1.bf16.msra.mxu0 %v1492
        %2747 = vmatprep.subr.bf16.mxu0 %v1557
        %2748 = vmatpush1.bf16.msra.mxu0 %v1556
        %2749 = vmatprep.subr.bf16.mxu0 %v1621
        %2750 = vmatpush1.bf16.msra.mxu0 %v1620
        %2751 = vmatprep.subr.bf16.mxu0 %v1685
        %2752 = vmatpush1.bf16.msra.mxu0 %v1684
        %2753 = vmatprep.subr.bf16.mxu0 %v1749
        %2754 = vmatpush1.bf16.msra.mxu0 %v1748
        %2755 = vmatprep.mubr.bf16.mxu0 %v1779
        %2756 = vmatmul.mubr.bf16.gmra.mrb[0].mxu0 %v1778
        %v2757 = vpop.f32.mrb[0].mxu0
        %v2758 = vadd.f32 0.0, %v2757
        %v2759 = vpop.f32.mrb[0].mxu0
        %v2760 = vadd.f32 0.0, %v2759
        %v2761 = vpop.f32.mrb[0].mxu0
        %v2762 = vpop.f32.mrb[0].mxu0
        %2763 = vdwg.mxu0
        %2764 = vmatprep.subr.bf16.mxu0 %v791
        %2765 = vmatpush1.bf16.msra.mxu0 %v790
        %2766 = vmatprep.subr.bf16.mxu0 %v855
        %2767 = vmatpush1.bf16.msra.mxu0 %v854
        %2768 = vmatprep.subr.bf16.mxu0 %v919
        %2769 = vmatpush1.bf16.msra.mxu0 %v918
        %2770 = vmatprep.subr.bf16.mxu0 %v983
        %2771 = vmatpush1.bf16.msra.mxu0 %v982
        %2772 = vmatprep.subr.bf16.mxu0 %v1047
        %2773 = vmatpush1.bf16.msra.mxu0 %v1046
        %2774 = vmatprep.subr.bf16.mxu0 %v1111
        %2775 = vmatpush1.bf16.msra.mxu0 %v1110
        %2776 = vmatprep.subr.bf16.mxu0 %v1175
        %2777 = vmatpush1.bf16.msra.mxu0 %v1174
        %2778 = vmatprep.subr.bf16.mxu0 %v1239
        %2779 = vmatpush1.bf16.msra.mxu0 %v1238
        %2780 = vmatprep.subr.bf16.mxu0 %v1303
        %2781 = vmatpush1.bf16.msra.mxu0 %v1302
        %2782 = vmatprep.subr.bf16.mxu0 %v1367
        %2783 = vmatpush1.bf16.msra.mxu0 %v1366
        %2784 = vmatprep.subr.bf16.mxu0 %v1431
        %2785 = vmatpush1.bf16.msra.mxu0 %v1430
        %2786 = vmatprep.subr.bf16.mxu0 %v1495
        %2787 = vmatpush1.bf16.msra.mxu0 %v1494
        %2788 = vmatprep.subr.bf16.mxu0 %v1559
        %2789 = vmatpush1.bf16.msra.mxu0 %v1558
        %2790 = vmatprep.subr.bf16.mxu0 %v1623
        %2791 = vmatpush1.bf16.msra.mxu0 %v1622
        %2792 = vmatprep.subr.bf16.mxu0 %v1687
        %2793 = vmatpush1.bf16.msra.mxu0 %v1686
        %2794 = vmatprep.subr.bf16.mxu0 %v1751
        %2795 = vmatpush1.bf16.msra.mxu0 %v1750
        %2796 = vmatprep.mubr.bf16.mxu0 %v1779
        %2797 = vmatmul.mubr.bf16.gmra.mrb[0].mxu0 %v1778
        %v2798 = vpop.f32.mrb[0].mxu0
        %v2799 = vadd.f32 0.0, %v2798
        %v2800 = vpop.f32.mrb[0].mxu0
        %v2801 = vadd.f32 0.0, %v2800
        %v2802 = vpop.f32.mrb[0].mxu0
        %v2803 = vpop.f32.mrb[0].mxu0
        %2804 = vdwg.mxu0
        %2805 = vmatprep.subr.bf16.mxu0 %v793
        %2806 = vmatpush1.bf16.msra.mxu0 %v792
        %2807 = vmatprep.subr.bf16.mxu0 %v857
        %2808 = vmatpush1.bf16.msra.mxu0 %v856
        %2809 = vmatprep.subr.bf16.mxu0 %v921
        %2810 = vmatpush1.bf16.msra.mxu0 %v920
        %2811 = vmatprep.subr.bf16.mxu0 %v985
        %2812 = vmatpush1.bf16.msra.mxu0 %v984
        %2813 = vmatprep.subr.bf16.mxu0 %v1049
        %2814 = vmatpush1.bf16.msra.mxu0 %v1048
        %2815 = vmatprep.subr.bf16.mxu0 %v1113
        %2816 = vmatpush1.bf16.msra.mxu0 %v1112
        %2817 = vmatprep.subr.bf16.mxu0 %v1177
        %2818 = vmatpush1.bf16.msra.mxu0 %v1176
        %2819 = vmatprep.subr.bf16.mxu0 %v1241
        %2820 = vmatpush1.bf16.msra.mxu0 %v1240
        %2821 = vmatprep.subr.bf16.mxu0 %v1305
        %2822 = vmatpush1.bf16.msra.mxu0 %v1304
        %2823 = vmatprep.subr.bf16.mxu0 %v1369
        %2824 = vmatpush1.bf16.msra.mxu0 %v1368
        %2825 = vmatprep.subr.bf16.mxu0 %v1433
        %2826 = vmatpush1.bf16.msra.mxu0 %v1432
        %2827 = vmatprep.subr.bf16.mxu0 %v1497
        %2828 = vmatpush1.bf16.msra.mxu0 %v1496
        %2829 = vmatprep.subr.bf16.mxu0 %v1561
        %2830 = vmatpush1.bf16.msra.mxu0 %v1560
        %2831 = vmatprep.subr.bf16.mxu0 %v1625
        %2832 = vmatpush1.bf16.msra.mxu0 %v1624
        %2833 = vmatprep.subr.bf16.mxu0 %v1689
        %2834 = vmatpush1.bf16.msra.mxu0 %v1688
        %2835 = vmatprep.subr.bf16.mxu0 %v1753
        %2836 = vmatpush1.bf16.msra.mxu0 %v1752
        %2837 = vmatprep.mubr.bf16.mxu0 %v1779
        %2838 = vmatmul.mubr.bf16.gmra.mrb[0].mxu0 %v1778
        %v2839 = vpop.f32.mrb[0].mxu0
        %v2840 = vadd.f32 0.0, %v2839
        %v2841 = vpop.f32.mrb[0].mxu0
        %v2842 = vadd.f32 0.0, %v2841
        %v2843 = vpop.f32.mrb[0].mxu0
        %v2844 = vpop.f32.mrb[0].mxu0
        %2845 = vdwg.mxu0
        %2846 = vmatprep.subr.bf16.mxu0 %v795
        %2847 = vmatpush1.bf16.msra.mxu0 %v794
        %2848 = vmatprep.subr.bf16.mxu0 %v859
        %2849 = vmatpush1.bf16.msra.mxu0 %v858
        %2850 = vmatprep.subr.bf16.mxu0 %v923
        %2851 = vmatpush1.bf16.msra.mxu0 %v922
        %2852 = vmatprep.subr.bf16.mxu0 %v987
        %2853 = vmatpush1.bf16.msra.mxu0 %v986
        %2854 = vmatprep.subr.bf16.mxu0 %v1051
        %2855 = vmatpush1.bf16.msra.mxu0 %v1050
        %2856 = vmatprep.subr.bf16.mxu0 %v1115
        %2857 = vmatpush1.bf16.msra.mxu0 %v1114
        %2858 = vmatprep.subr.bf16.mxu0 %v1179
        %2859 = vmatpush1.bf16.msra.mxu0 %v1178
        %2860 = vmatprep.subr.bf16.mxu0 %v1243
        %2861 = vmatpush1.bf16.msra.mxu0 %v1242
        %2862 = vmatprep.subr.bf16.mxu0 %v1307
        %2863 = vmatpush1.bf16.msra.mxu0 %v1306
        %2864 = vmatprep.subr.bf16.mxu0 %v1371
        %2865 = vmatpush1.bf16.msra.mxu0 %v1370
        %2866 = vmatprep.subr.bf16.mxu0 %v1435
        %2867 = vmatpush1.bf16.msra.mxu0 %v1434
        %2868 = vmatprep.subr.bf16.mxu0 %v1499
        %2869 = vmatpush1.bf16.msra.mxu0 %v1498
        %2870 = vmatprep.subr.bf16.mxu0 %v1563
        %2871 = vmatpush1.bf16.msra.mxu0 %v1562
        %2872 = vmatprep.subr.bf16.mxu0 %v1627
        %2873 = vmatpush1.bf16.msra.mxu0 %v1626
        %2874 = vmatprep.subr.bf16.mxu0 %v1691
        %2875 = vmatpush1.bf16.msra.mxu0 %v1690
        %2876 = vmatprep.subr.bf16.mxu0 %v1755
        %2877 = vmatpush1.bf16.msra.mxu0 %v1754
        %2878 = vmatprep.mubr.bf16.mxu0 %v1779
        %2879 = vmatmul.mubr.bf16.gmra.mrb[0].mxu0 %v1778
        %v2880 = vpop.f32.mrb[0].mxu0
        %v2881 = vadd.f32 0.0, %v2880
        %v2882 = vpop.f32.mrb[0].mxu0
        %v2883 = vadd.f32 0.0, %v2882
        %v2884 = vpop.f32.mrb[0].mxu0
        %v2885 = vpop.f32.mrb[0].mxu0
        %2886 = vdwg.mxu0
        %2887 = vmatprep.subr.bf16.mxu0 %v797
        %2888 = vmatpush1.bf16.msra.mxu0 %v796
        %2889 = vmatprep.subr.bf16.mxu0 %v861
        %2890 = vmatpush1.bf16.msra.mxu0 %v860
        %2891 = vmatprep.subr.bf16.mxu0 %v925
        %2892 = vmatpush1.bf16.msra.mxu0 %v924
        %2893 = vmatprep.subr.bf16.mxu0 %v989
        %2894 = vmatpush1.bf16.msra.mxu0 %v988
        %2895 = vmatprep.subr.bf16.mxu0 %v1053
        %2896 = vmatpush1.bf16.msra.mxu0 %v1052
        %2897 = vmatprep.subr.bf16.mxu0 %v1117
        %2898 = vmatpush1.bf16.msra.mxu0 %v1116
        %2899 = vmatprep.subr.bf16.mxu0 %v1181
        %2900 = vmatpush1.bf16.msra.mxu0 %v1180
        %2901 = vmatprep.subr.bf16.mxu0 %v1245
        %2902 = vmatpush1.bf16.msra.mxu0 %v1244
        %2903 = vmatprep.subr.bf16.mxu0 %v1309
        %2904 = vmatpush1.bf16.msra.mxu0 %v1308
        %2905 = vmatprep.subr.bf16.mxu0 %v1373
        %2906 = vmatpush1.bf16.msra.mxu0 %v1372
        %2907 = vmatprep.subr.bf16.mxu0 %v1437
        %2908 = vmatpush1.bf16.msra.mxu0 %v1436
        %2909 = vmatprep.subr.bf16.mxu0 %v1501
        %2910 = vmatpush1.bf16.msra.mxu0 %v1500
        %2911 = vmatprep.subr.bf16.mxu0 %v1565
        %2912 = vmatpush1.bf16.msra.mxu0 %v1564
        %2913 = vmatprep.subr.bf16.mxu0 %v1629
        %2914 = vmatpush1.bf16.msra.mxu0 %v1628
        %2915 = vmatprep.subr.bf16.mxu0 %v1693
        %2916 = vmatpush1.bf16.msra.mxu0 %v1692
        %2917 = vmatprep.subr.bf16.mxu0 %v1757
        %2918 = vmatpush1.bf16.msra.mxu0 %v1756
        %2919 = vmatprep.mubr.bf16.mxu0 %v1779
        %2920 = vmatmul.mubr.bf16.gmra.mrb[0].mxu0 %v1778
        %v2921 = vpop.f32.mrb[0].mxu0
        %v2922 = vadd.f32 0.0, %v2921
        %v2923 = vpop.f32.mrb[0].mxu0
        %v2924 = vadd.f32 0.0, %v2923
        %v2925 = vpop.f32.mrb[0].mxu0
        %v2926 = vpop.f32.mrb[0].mxu0
        %2927 = vdwg.mxu0
        %2928 = vmatprep.subr.bf16.mxu0 %v799
        %2929 = vmatpush1.bf16.msra.mxu0 %v798
        %2930 = vmatprep.subr.bf16.mxu0 %v863
        %2931 = vmatpush1.bf16.msra.mxu0 %v862
        %2932 = vmatprep.subr.bf16.mxu0 %v927
        %2933 = vmatpush1.bf16.msra.mxu0 %v926
        %2934 = vmatprep.subr.bf16.mxu0 %v991
        %2935 = vmatpush1.bf16.msra.mxu0 %v990
        %2936 = vmatprep.subr.bf16.mxu0 %v1055
        %2937 = vmatpush1.bf16.msra.mxu0 %v1054
        %2938 = vmatprep.subr.bf16.mxu0 %v1119
        %2939 = vmatpush1.bf16.msra.mxu0 %v1118
        %2940 = vmatprep.subr.bf16.mxu0 %v1183
        %2941 = vmatpush1.bf16.msra.mxu0 %v1182
        %2942 = vmatprep.subr.bf16.mxu0 %v1247
        %2943 = vmatpush1.bf16.msra.mxu0 %v1246
        %2944 = vmatprep.subr.bf16.mxu0 %v1311
        %2945 = vmatpush1.bf16.msra.mxu0 %v1310
        %2946 = vmatprep.subr.bf16.mxu0 %v1375
        %2947 = vmatpush1.bf16.msra.mxu0 %v1374
        %2948 = vmatprep.subr.bf16.mxu0 %v1439
        %2949 = vmatpush1.bf16.msra.mxu0 %v1438
        %2950 = vmatprep.subr.bf16.mxu0 %v1503
        %2951 = vmatpush1.bf16.msra.mxu0 %v1502
        %2952 = vmatprep.subr.bf16.mxu0 %v1567
        %2953 = vmatpush1.bf16.msra.mxu0 %v1566
        %2954 = vmatprep.subr.bf16.mxu0 %v1631
        %2955 = vmatpush1.bf16.msra.mxu0 %v1630
        %2956 = vmatprep.subr.bf16.mxu0 %v1695
        %2957 = vmatpush1.bf16.msra.mxu0 %v1694
        %2958 = vmatprep.subr.bf16.mxu0 %v1759
        %2959 = vmatpush1.bf16.msra.mxu0 %v1758
        %2960 = vmatprep.mubr.bf16.mxu0 %v1779
        %2961 = vmatmul.mubr.bf16.gmra.mrb[0].mxu0 %v1778
        %v2962 = vpop.f32.mrb[0].mxu0
        %v2963 = vadd.f32 0.0, %v2962
        %v2964 = vpop.f32.mrb[0].mxu0
        %v2965 = vadd.f32 0.0, %v2964
        %v2966 = vpop.f32.mrb[0].mxu0
        %v2967 = vpop.f32.mrb[0].mxu0
        %2968 = vdwg.mxu0
        %2969 = vmatprep.subr.bf16.mxu0 %v801
        %2970 = vmatpush1.bf16.msra.mxu0 %v800
        %2971 = vmatprep.subr.bf16.mxu0 %v865
        %2972 = vmatpush1.bf16.msra.mxu0 %v864
        %2973 = vmatprep.subr.bf16.mxu0 %v929
        %2974 = vmatpush1.bf16.msra.mxu0 %v928
        %2975 = vmatprep.subr.bf16.mxu0 %v993
        %2976 = vmatpush1.bf16.msra.mxu0 %v992
        %2977 = vmatprep.subr.bf16.mxu0 %v1057
        %2978 = vmatpush1.bf16.msra.mxu0 %v1056
        %2979 = vmatprep.subr.bf16.mxu0 %v1121
        %2980 = vmatpush1.bf16.msra.mxu0 %v1120
        %2981 = vmatprep.subr.bf16.mxu0 %v1185
        %2982 = vmatpush1.bf16.msra.mxu0 %v1184
        %2983 = vmatprep.subr.bf16.mxu0 %v1249
        %2984 = vmatpush1.bf16.msra.mxu0 %v1248
        %2985 = vmatprep.subr.bf16.mxu0 %v1313
        %2986 = vmatpush1.bf16.msra.mxu0 %v1312
        %2987 = vmatprep.subr.bf16.mxu0 %v1377
        %2988 = vmatpush1.bf16.msra.mxu0 %v1376
        %2989 = vmatprep.subr.bf16.mxu0 %v1441
        %2990 = vmatpush1.bf16.msra.mxu0 %v1440
        %2991 = vmatprep.subr.bf16.mxu0 %v1505
        %2992 = vmatpush1.bf16.msra.mxu0 %v1504
        %2993 = vmatprep.subr.bf16.mxu0 %v1569
        %2994 = vmatpush1.bf16.msra.mxu0 %v1568
        %2995 = vmatprep.subr.bf16.mxu0 %v1633
        %2996 = vmatpush1.bf16.msra.mxu0 %v1632
        %2997 = vmatprep.subr.bf16.mxu0 %v1697
        %2998 = vmatpush1.bf16.msra.mxu0 %v1696
        %2999 = vmatprep.subr.bf16.mxu0 %v1761
        %3000 = vmatpush1.bf16.msra.mxu0 %v1760
        %3001 = vmatprep.mubr.bf16.mxu0 %v1779
        %3002 = vmatmul.mubr.bf16.gmra.mrb[0].mxu0 %v1778
        %v3003 = vpop.f32.mrb[0].mxu0
        %v3004 = vadd.f32 0.0, %v3003
        %v3005 = vpop.f32.mrb[0].mxu0
        %v3006 = vadd.f32 0.0, %v3005
        %v3007 = vpop.f32.mrb[0].mxu0
        %v3008 = vpop.f32.mrb[0].mxu0
        %3009 = vdwg.mxu0
        %3010 = vmatprep.subr.bf16.mxu0 %v803
        %3011 = vmatpush1.bf16.msra.mxu0 %v802
        %3012 = vmatprep.subr.bf16.mxu0 %v867
        %3013 = vmatpush1.bf16.msra.mxu0 %v866
        %3014 = vmatprep.subr.bf16.mxu0 %v931
        %3015 = vmatpush1.bf16.msra.mxu0 %v930
        %3016 = vmatprep.subr.bf16.mxu0 %v995
        %3017 = vmatpush1.bf16.msra.mxu0 %v994
        %3018 = vmatprep.subr.bf16.mxu0 %v1059
        %3019 = vmatpush1.bf16.msra.mxu0 %v1058
        %3020 = vmatprep.subr.bf16.mxu0 %v1123
        %3021 = vmatpush1.bf16.msra.mxu0 %v1122
        %3022 = vmatprep.subr.bf16.mxu0 %v1187
        %3023 = vmatpush1.bf16.msra.mxu0 %v1186
        %3024 = vmatprep.subr.bf16.mxu0 %v1251
        %3025 = vmatpush1.bf16.msra.mxu0 %v1250
        %3026 = vmatprep.subr.bf16.mxu0 %v1315
        %3027 = vmatpush1.bf16.msra.mxu0 %v1314
        %3028 = vmatprep.subr.bf16.mxu0 %v1379
        %3029 = vmatpush1.bf16.msra.mxu0 %v1378
        %3030 = vmatprep.subr.bf16.mxu0 %v1443
        %3031 = vmatpush1.bf16.msra.mxu0 %v1442
        %3032 = vmatprep.subr.bf16.mxu0 %v1507
        %3033 = vmatpush1.bf16.msra.mxu0 %v1506
        %3034 = vmatprep.subr.bf16.mxu0 %v1571
        %3035 = vmatpush1.bf16.msra.mxu0 %v1570
        %3036 = vmatprep.subr.bf16.mxu0 %v1635
        %3037 = vmatpush1.bf16.msra.mxu0 %v1634
        %3038 = vmatprep.subr.bf16.mxu0 %v1699
        %3039 = vmatpush1.bf16.msra.mxu0 %v1698
        %3040 = vmatprep.subr.bf16.mxu0 %v1763
        %3041 = vmatpush1.bf16.msra.mxu0 %v1762
        %3042 = vmatprep.mubr.bf16.mxu0 %v1779
        %3043 = vmatmul.mubr.bf16.gmra.mrb[0].mxu0 %v1778
        %v3044 = vpop.f32.mrb[0].mxu0
        %v3045 = vadd.f32 0.0, %v3044
        %v3046 = vpop.f32.mrb[0].mxu0
        %v3047 = vadd.f32 0.0, %v3046
        %v3048 = vpop.f32.mrb[0].mxu0
        %v3049 = vpop.f32.mrb[0].mxu0
        %3050 = vdwg.mxu0
        %3051 = vmatprep.subr.bf16.mxu0 %v805
        %3052 = vmatpush1.bf16.msra.mxu0 %v804
        %3053 = vmatprep.subr.bf16.mxu0 %v869
        %3054 = vmatpush1.bf16.msra.mxu0 %v868
        %3055 = vmatprep.subr.bf16.mxu0 %v933
        %3056 = vmatpush1.bf16.msra.mxu0 %v932
        %3057 = vmatprep.subr.bf16.mxu0 %v997
        %3058 = vmatpush1.bf16.msra.mxu0 %v996
        %3059 = vmatprep.subr.bf16.mxu0 %v1061
        %3060 = vmatpush1.bf16.msra.mxu0 %v1060
        %3061 = vmatprep.subr.bf16.mxu0 %v1125
        %3062 = vmatpush1.bf16.msra.mxu0 %v1124
        %3063 = vmatprep.subr.bf16.mxu0 %v1189
        %3064 = vmatpush1.bf16.msra.mxu0 %v1188
        %3065 = vmatprep.subr.bf16.mxu0 %v1253
        %3066 = vmatpush1.bf16.msra.mxu0 %v1252
        %3067 = vmatprep.subr.bf16.mxu0 %v1317
        %3068 = vmatpush1.bf16.msra.mxu0 %v1316
        %3069 = vmatprep.subr.bf16.mxu0 %v1381
        %3070 = vmatpush1.bf16.msra.mxu0 %v1380
        %3071 = vmatprep.subr.bf16.mxu0 %v1445
        %3072 = vmatpush1.bf16.msra.mxu0 %v1444
        %3073 = vmatprep.subr.bf16.mxu0 %v1509
        %3074 = vmatpush1.bf16.msra.mxu0 %v1508
        %3075 = vmatprep.subr.bf16.mxu0 %v1573
        %3076 = vmatpush1.bf16.msra.mxu0 %v1572
        %3077 = vmatprep.subr.bf16.mxu0 %v1637
        %3078 = vmatpush1.bf16.msra.mxu0 %v1636
        %3079 = vmatprep.subr.bf16.mxu0 %v1701
        %3080 = vmatpush1.bf16.msra.mxu0 %v1700
        %3081 = vmatprep.subr.bf16.mxu0 %v1765
        %3082 = vmatpush1.bf16.msra.mxu0 %v1764
        %3083 = vmatprep.mubr.bf16.mxu0 %v1779
        %3084 = vmatmul.mubr.bf16.gmra.mrb[0].mxu0 %v1778
        %v3085 = vpop.f32.mrb[0].mxu0
        %v3086 = vadd.f32 0.0, %v3085
        %v3087 = vpop.f32.mrb[0].mxu0
        %v3088 = vadd.f32 0.0, %v3087
        %v3089 = vpop.f32.mrb[0].mxu0
        %v3090 = vpop.f32.mrb[0].mxu0
        %3091 = vdwg.mxu0
        %v3092 = vld [vmem:[%s196] sm:$0xff]
        %v3093 = vld [vmem:[%s196 + $0x8] sm:$0xff]
        %v3094 = vld [vmem:[%s196 + $0x10] sm:$0xff]
        %v3095 = vld [vmem:[%s196 + $0x18] sm:$0xff]
        %v3096 = vld [vmem:[%s196 + $0x20] sm:$0xff]
        %v3097 = vld [vmem:[%s196 + $0x28] sm:$0xff]
        %v3098 = vld [vmem:[%s196 + $0x30] sm:$0xff]
        %v3099 = vld [vmem:[%s196 + $0x38] sm:$0xff]
        %v3108 = vlaneseq
        %v3109 = vshrl.u32 %v3108, 7
        %v3110 = vsub.s32 0, %v3109
        %v3111 = vrot.slane %v3092, %v3110
        %v3112 = vlaneseq
        %v3113 = vshrl.u32 %v3112, 7
        %v3114 = vsub.s32 1, %v3113
        %v3115 = vrot.slane %v3092, %v3114
        %v3116 = vlaneseq
        %v3117 = vshrl.u32 %v3116, 7
        %v3118 = vsub.s32 2, %v3117
        %v3119 = vrot.slane %v3092, %v3118
        %v3120 = vlaneseq
        %v3121 = vshrl.u32 %v3120, 7
        %v3122 = vsub.s32 3, %v3121
        %v3123 = vrot.slane %v3092, %v3122
        %v3124 = vlaneseq
        %v3125 = vshrl.u32 %v3124, 7
        %v3126 = vsub.s32 4, %v3125
        %v3127 = vrot.slane %v3092, %v3126
        %v3128 = vlaneseq
        %v3129 = vshrl.u32 %v3128, 7
        %v3130 = vsub.s32 5, %v3129
        %v3131 = vrot.slane %v3092, %v3130
        %v3132 = vlaneseq
        %v3133 = vshrl.u32 %v3132, 7
        %v3134 = vsub.s32 6, %v3133
        %v3135 = vrot.slane %v3092, %v3134
        %v3136 = vlaneseq
        %v3137 = vshrl.u32 %v3136, 7
        %v3138 = vsub.s32 7, %v3137
        %v3139 = vrot.slane %v3092, %v3138
        %v3140 = vlaneseq
        %v3141 = vshrl.u32 %v3140, 7
        %v3142 = vsub.s32 0, %v3141
        %v3143 = vrot.slane %v3093, %v3142
        %v3144 = vlaneseq
        %v3145 = vshrl.u32 %v3144, 7
        %v3146 = vsub.s32 1, %v3145
        %v3147 = vrot.slane %v3093, %v3146
        %v3148 = vlaneseq
        %v3149 = vshrl.u32 %v3148, 7
        %v3150 = vsub.s32 2, %v3149
        %v3151 = vrot.slane %v3093, %v3150
        %v3152 = vlaneseq
        %v3153 = vshrl.u32 %v3152, 7
        %v3154 = vsub.s32 3, %v3153
        %v3155 = vrot.slane %v3093, %v3154
        %v3156 = vlaneseq
        %v3157 = vshrl.u32 %v3156, 7
        %v3158 = vsub.s32 4, %v3157
        %v3159 = vrot.slane %v3093, %v3158
        %v3160 = vlaneseq
        %v3161 = vshrl.u32 %v3160, 7
        %v3162 = vsub.s32 5, %v3161
        %v3163 = vrot.slane %v3093, %v3162
        %v3164 = vlaneseq
        %v3165 = vshrl.u32 %v3164, 7
        %v3166 = vsub.s32 6, %v3165
        %v3167 = vrot.slane %v3093, %v3166
        %v3168 = vlaneseq
        %v3169 = vshrl.u32 %v3168, 7
        %v3170 = vsub.s32 7, %v3169
        %v3171 = vrot.slane %v3093, %v3170
        %v3172 = vlaneseq
        %v3173 = vshrl.u32 %v3172, 7
        %v3174 = vsub.s32 0, %v3173
        %v3175 = vrot.slane %v3094, %v3174
        %v3176 = vlaneseq
        %v3177 = vshrl.u32 %v3176, 7
        %v3178 = vsub.s32 1, %v3177
        %v3179 = vrot.slane %v3094, %v3178
        %v3180 = vlaneseq
        %v3181 = vshrl.u32 %v3180, 7
        %v3182 = vsub.s32 2, %v3181
        %v3183 = vrot.slane %v3094, %v3182
        %v3184 = vlaneseq
        %v3185 = vshrl.u32 %v3184, 7
        %v3186 = vsub.s32 3, %v3185
        %v3187 = vrot.slane %v3094, %v3186
        %v3188 = vlaneseq
        %v3189 = vshrl.u32 %v3188, 7
        %v3190 = vsub.s32 4, %v3189
        %v3191 = vrot.slane %v3094, %v3190
        %v3192 = vlaneseq
        %v3193 = vshrl.u32 %v3192, 7
        %v3194 = vsub.s32 5, %v3193
        %v3195 = vrot.slane %v3094, %v3194
        %v3196 = vlaneseq
        %v3197 = vshrl.u32 %v3196, 7
        %v3198 = vsub.s32 6, %v3197
        %v3199 = vrot.slane %v3094, %v3198
        %v3200 = vlaneseq
        %v3201 = vshrl.u32 %v3200, 7
        %v3202 = vsub.s32 7, %v3201
        %v3203 = vrot.slane %v3094, %v3202
        %v3204 = vlaneseq
        %v3205 = vshrl.u32 %v3204, 7
        %v3206 = vsub.s32 0, %v3205
        %v3207 = vrot.slane %v3095, %v3206
        %v3208 = vlaneseq
        %v3209 = vshrl.u32 %v3208, 7
        %v3210 = vsub.s32 1, %v3209
        %v3211 = vrot.slane %v3095, %v3210
        %v3212 = vlaneseq
        %v3213 = vshrl.u32 %v3212, 7
        %v3214 = vsub.s32 2, %v3213
        %v3215 = vrot.slane %v3095, %v3214
        %v3216 = vlaneseq
        %v3217 = vshrl.u32 %v3216, 7
        %v3218 = vsub.s32 3, %v3217
        %v3219 = vrot.slane %v3095, %v3218
        %v3220 = vlaneseq
        %v3221 = vshrl.u32 %v3220, 7
        %v3222 = vsub.s32 4, %v3221
        %v3223 = vrot.slane %v3095, %v3222
        %v3224 = vlaneseq
        %v3225 = vshrl.u32 %v3224, 7
        %v3226 = vsub.s32 5, %v3225
        %v3227 = vrot.slane %v3095, %v3226
        %v3228 = vlaneseq
        %v3229 = vshrl.u32 %v3228, 7
        %v3230 = vsub.s32 6, %v3229
        %v3231 = vrot.slane %v3095, %v3230
        %v3232 = vlaneseq
        %v3233 = vshrl.u32 %v3232, 7
        %v3234 = vsub.s32 7, %v3233
        %v3235 = vrot.slane %v3095, %v3234
        %v3236 = vlaneseq
        %v3237 = vshrl.u32 %v3236, 7
        %v3238 = vsub.s32 0, %v3237
        %v3239 = vrot.slane %v3096, %v3238
        %v3240 = vlaneseq
        %v3241 = vshrl.u32 %v3240, 7
        %v3242 = vsub.s32 1, %v3241
        %v3243 = vrot.slane %v3096, %v3242
        %v3244 = vlaneseq
        %v3245 = vshrl.u32 %v3244, 7
        %v3246 = vsub.s32 2, %v3245
        %v3247 = vrot.slane %v3096, %v3246
        %v3248 = vlaneseq
        %v3249 = vshrl.u32 %v3248, 7
        %v3250 = vsub.s32 3, %v3249
        %v3251 = vrot.slane %v3096, %v3250
        %v3252 = vlaneseq
        %v3253 = vshrl.u32 %v3252, 7
        %v3254 = vsub.s32 4, %v3253
        %v3255 = vrot.slane %v3096, %v3254
        %v3256 = vlaneseq
        %v3257 = vshrl.u32 %v3256, 7
        %v3258 = vsub.s32 5, %v3257
        %v3259 = vrot.slane %v3096, %v3258
        %v3260 = vlaneseq
        %v3261 = vshrl.u32 %v3260, 7
        %v3262 = vsub.s32 6, %v3261
        %v3263 = vrot.slane %v3096, %v3262
        %v3264 = vlaneseq
        %v3265 = vshrl.u32 %v3264, 7
        %v3266 = vsub.s32 7, %v3265
        %v3267 = vrot.slane %v3096, %v3266
        %v3268 = vlaneseq
        %v3269 = vshrl.u32 %v3268, 7
        %v3270 = vsub.s32 0, %v3269
        %v3271 = vrot.slane %v3097, %v3270
        %v3272 = vlaneseq
        %v3273 = vshrl.u32 %v3272, 7
        %v3274 = vsub.s32 1, %v3273
        %v3275 = vrot.slane %v3097, %v3274
        %v3276 = vlaneseq
        %v3277 = vshrl.u32 %v3276, 7
        %v3278 = vsub.s32 2, %v3277
        %v3279 = vrot.slane %v3097, %v3278
        %v3280 = vlaneseq
        %v3281 = vshrl.u32 %v3280, 7
        %v3282 = vsub.s32 3, %v3281
        %v3283 = vrot.slane %v3097, %v3282
        %v3284 = vlaneseq
        %v3285 = vshrl.u32 %v3284, 7
        %v3286 = vsub.s32 4, %v3285
        %v3287 = vrot.slane %v3097, %v3286
        %v3288 = vlaneseq
        %v3289 = vshrl.u32 %v3288, 7
        %v3290 = vsub.s32 5, %v3289
        %v3291 = vrot.slane %v3097, %v3290
        %v3292 = vlaneseq
        %v3293 = vshrl.u32 %v3292, 7
        %v3294 = vsub.s32 6, %v3293
        %v3295 = vrot.slane %v3097, %v3294
        %v3296 = vlaneseq
        %v3297 = vshrl.u32 %v3296, 7
        %v3298 = vsub.s32 7, %v3297
        %v3299 = vrot.slane %v3097, %v3298
        %v3300 = vlaneseq
        %v3301 = vshrl.u32 %v3300, 7
        %v3302 = vsub.s32 0, %v3301
        %v3303 = vrot.slane %v3098, %v3302
        %v3304 = vlaneseq
        %v3305 = vshrl.u32 %v3304, 7
        %v3306 = vsub.s32 1, %v3305
        %v3307 = vrot.slane %v3098, %v3306
        %v3308 = vlaneseq
        %v3309 = vshrl.u32 %v3308, 7
        %v3310 = vsub.s32 2, %v3309
        %v3311 = vrot.slane %v3098, %v3310
        %v3312 = vlaneseq
        %v3313 = vshrl.u32 %v3312, 7
        %v3314 = vsub.s32 3, %v3313
        %v3315 = vrot.slane %v3098, %v3314
        %v3316 = vlaneseq
        %v3317 = vshrl.u32 %v3316, 7
        %v3318 = vsub.s32 4, %v3317
        %v3319 = vrot.slane %v3098, %v3318
        %v3320 = vlaneseq
        %v3321 = vshrl.u32 %v3320, 7
        %v3322 = vsub.s32 5, %v3321
        %v3323 = vrot.slane %v3098, %v3322
        %v3324 = vlaneseq
        %v3325 = vshrl.u32 %v3324, 7
        %v3326 = vsub.s32 6, %v3325
        %v3327 = vrot.slane %v3098, %v3326
        %v3328 = vlaneseq
        %v3329 = vshrl.u32 %v3328, 7
        %v3330 = vsub.s32 7, %v3329
        %v3331 = vrot.slane %v3098, %v3330
        %v3332 = vlaneseq
        %v3333 = vshrl.u32 %v3332, 7
        %v3334 = vsub.s32 0, %v3333
        %v3335 = vrot.slane %v3099, %v3334
        %v3336 = vlaneseq
        %v3337 = vshrl.u32 %v3336, 7
        %v3338 = vsub.s32 1, %v3337
        %v3339 = vrot.slane %v3099, %v3338
        %v3340 = vlaneseq
        %v3341 = vshrl.u32 %v3340, 7
        %v3342 = vsub.s32 2, %v3341
        %v3343 = vrot.slane %v3099, %v3342
        %v3344 = vlaneseq
        %v3345 = vshrl.u32 %v3344, 7
        %v3346 = vsub.s32 3, %v3345
        %v3347 = vrot.slane %v3099, %v3346
        %v3348 = vlaneseq
        %v3349 = vshrl.u32 %v3348, 7
        %v3350 = vsub.s32 4, %v3349
        %v3351 = vrot.slane %v3099, %v3350
        %v3352 = vlaneseq
        %v3353 = vshrl.u32 %v3352, 7
        %v3354 = vsub.s32 5, %v3353
        %v3355 = vrot.slane %v3099, %v3354
        %v3356 = vlaneseq
        %v3357 = vshrl.u32 %v3356, 7
        %v3358 = vsub.s32 6, %v3357
        %v3359 = vrot.slane %v3099, %v3358
        %v3360 = vlaneseq
        %v3361 = vshrl.u32 %v3360, 7
        %v3362 = vsub.s32 7, %v3361
        %v3363 = vrot.slane %v3099, %v3362
        %v3428 = vmul.f32 %v1815, %v3111
        %v3429 = vmul.f32 %v1817, %v3115
        %v3430 = vmul.f32 %v1856, %v3119
        %v3431 = vmul.f32 %v1858, %v3123
        %v3432 = vmul.f32 %v1897, %v3127
        %v3433 = vmul.f32 %v1899, %v3131
        %v3434 = vmul.f32 %v1938, %v3135
        %v3435 = vmul.f32 %v1940, %v3139
        %v3436 = vmul.f32 %v1979, %v3143
        %v3437 = vmul.f32 %v1981, %v3147
        %v3438 = vmul.f32 %v2020, %v3151
        %v3439 = vmul.f32 %v2022, %v3155
        %v3440 = vmul.f32 %v2061, %v3159
        %v3441 = vmul.f32 %v2063, %v3163
        %v3442 = vmul.f32 %v2102, %v3167
        %v3443 = vmul.f32 %v2104, %v3171
        %v3444 = vmul.f32 %v2143, %v3175
        %v3445 = vmul.f32 %v2145, %v3179
        %v3446 = vmul.f32 %v2184, %v3183
        %v3447 = vmul.f32 %v2186, %v3187
        %v3448 = vmul.f32 %v2225, %v3191
        %v3449 = vmul.f32 %v2227, %v3195
        %v3450 = vmul.f32 %v2266, %v3199
        %v3451 = vmul.f32 %v2268, %v3203
        %v3452 = vmul.f32 %v2307, %v3207
        %v3453 = vmul.f32 %v2309, %v3211
        %v3454 = vmul.f32 %v2348, %v3215
        %v3455 = vmul.f32 %v2350, %v3219
        %v3456 = vmul.f32 %v2389, %v3223
        %v3457 = vmul.f32 %v2391, %v3227
        %v3458 = vmul.f32 %v2430, %v3231
        %v3459 = vmul.f32 %v2432, %v3235
        %v3460 = vmul.f32 %v2471, %v3239
        %v3461 = vmul.f32 %v2473, %v3243
        %v3462 = vmul.f32 %v2512, %v3247
        %v3463 = vmul.f32 %v2514, %v3251
        %v3464 = vmul.f32 %v2553, %v3255
        %v3465 = vmul.f32 %v2555, %v3259
        %v3466 = vmul.f32 %v2594, %v3263
        %v3467 = vmul.f32 %v2596, %v3267
        %v3468 = vmul.f32 %v2635, %v3271
        %v3469 = vmul.f32 %v2637, %v3275
        %v3470 = vmul.f32 %v2676, %v3279
        %v3471 = vmul.f32 %v2678, %v3283
        %v3472 = vmul.f32 %v2717, %v3287
        %v3473 = vmul.f32 %v2719, %v3291
        %v3474 = vmul.f32 %v2758, %v3295
        %v3475 = vmul.f32 %v2760, %v3299
        %v3476 = vmul.f32 %v2799, %v3303
        %v3477 = vmul.f32 %v2801, %v3307
        %v3478 = vmul.f32 %v2840, %v3311
        %v3479 = vmul.f32 %v2842, %v3315
        %v3480 = vmul.f32 %v2881, %v3319
        %v3481 = vmul.f32 %v2883, %v3323
        %v3482 = vmul.f32 %v2922, %v3327
        %v3483 = vmul.f32 %v2924, %v3331
        %v3484 = vmul.f32 %v2963, %v3335
        %v3485 = vmul.f32 %v2965, %v3339
        %v3486 = vmul.f32 %v3004, %v3343
        %v3487 = vmul.f32 %v3006, %v3347
        %v3488 = vmul.f32 %v3045, %v3351
        %v3489 = vmul.f32 %v3047, %v3355
        %v3490 = vmul.f32 %v3086, %v3359
        %v3491 = vmul.f32 %v3088, %v3363
        %v3492 = vtanh.pop %v3428
        %v3493 = vtanh.pop %v3429
        %v3494 = vtanh.pop %v3430
        %v3495 = vtanh.pop %v3431
        %v3496 = vtanh.pop %v3432
        %v3497 = vtanh.pop %v3433
        %v3498 = vtanh.pop %v3434
        %v3499 = vtanh.pop %v3435
        %v3500 = vtanh.pop %v3436
        %v3501 = vtanh.pop %v3437
        %v3502 = vtanh.pop %v3438
        %v3503 = vtanh.pop %v3439
        %v3504 = vtanh.pop %v3440
        %v3505 = vtanh.pop %v3441
        %v3506 = vtanh.pop %v3442
        %v3507 = vtanh.pop %v3443
        %v3508 = vtanh.pop %v3444
        %v3509 = vtanh.pop %v3445
        %v3510 = vtanh.pop %v3446
        %v3511 = vtanh.pop %v3447
        %v3512 = vtanh.pop %v3448
        %v3513 = vtanh.pop %v3449
        %v3514 = vtanh.pop %v3450
        %v3515 = vtanh.pop %v3451
        %v3516 = vtanh.pop %v3452
        %v3517 = vtanh.pop %v3453
        %v3518 = vtanh.pop %v3454
        %v3519 = vtanh.pop %v3455
        %v3520 = vtanh.pop %v3456
        %v3521 = vtanh.pop %v3457
        %v3522 = vtanh.pop %v3458
        %v3523 = vtanh.pop %v3459
        %v3524 = vtanh.pop %v3460
        %v3525 = vtanh.pop %v3461
        %v3526 = vtanh.pop %v3462
        %v3527 = vtanh.pop %v3463
        %v3528 = vtanh.pop %v3464
        %v3529 = vtanh.pop %v3465
        %v3530 = vtanh.pop %v3466
        %v3531 = vtanh.pop %v3467
        %v3532 = vtanh.pop %v3468
        %v3533 = vtanh.pop %v3469
        %v3534 = vtanh.pop %v3470
        %v3535 = vtanh.pop %v3471
        %v3536 = vtanh.pop %v3472
        %v3537 = vtanh.pop %v3473
        %v3538 = vtanh.pop %v3474
        %v3539 = vtanh.pop %v3475
        %v3540 = vtanh.pop %v3476
        %v3541 = vtanh.pop %v3477
        %v3542 = vtanh.pop %v3478
        %v3543 = vtanh.pop %v3479
        %v3544 = vtanh.pop %v3480
        %v3545 = vtanh.pop %v3481
        %v3546 = vtanh.pop %v3482
        %v3547 = vtanh.pop %v3483
        %v3548 = vtanh.pop %v3484
        %v3549 = vtanh.pop %v3485
        %v3550 = vtanh.pop %v3486
        %v3551 = vtanh.pop %v3487
        %v3552 = vtanh.pop %v3488
        %v3553 = vtanh.pop %v3489
        %v3554 = vtanh.pop %v3490
        %v3555 = vtanh.pop %v3491
        %v3556 = vadd.f32 %v3492, 1.0
        %v3557 = vadd.f32 %v3493, 1.0
        %v3558 = vadd.f32 %v3494, 1.0
        %v3559 = vadd.f32 %v3495, 1.0
        %v3560 = vadd.f32 %v3496, 1.0
        %v3561 = vadd.f32 %v3497, 1.0
        %v3562 = vadd.f32 %v3498, 1.0
        %v3563 = vadd.f32 %v3499, 1.0
        %v3564 = vadd.f32 %v3500, 1.0
        %v3565 = vadd.f32 %v3501, 1.0
        %v3566 = vadd.f32 %v3502, 1.0
        %v3567 = vadd.f32 %v3503, 1.0
        %v3568 = vadd.f32 %v3504, 1.0
        %v3569 = vadd.f32 %v3505, 1.0
        %v3570 = vadd.f32 %v3506, 1.0
        %v3571 = vadd.f32 %v3507, 1.0
        %v3572 = vadd.f32 %v3508, 1.0
        %v3573 = vadd.f32 %v3509, 1.0
        %v3574 = vadd.f32 %v3510, 1.0
        %v3575 = vadd.f32 %v3511, 1.0
        %v3576 = vadd.f32 %v3512, 1.0
        %v3577 = vadd.f32 %v3513, 1.0
        %v3578 = vadd.f32 %v3514, 1.0
        %v3579 = vadd.f32 %v3515, 1.0
        %v3580 = vadd.f32 %v3516, 1.0
        %v3581 = vadd.f32 %v3517, 1.0
        %v3582 = vadd.f32 %v3518, 1.0
        %v3583 = vadd.f32 %v3519, 1.0
        %v3584 = vadd.f32 %v3520, 1.0
        %v3585 = vadd.f32 %v3521, 1.0
        %v3586 = vadd.f32 %v3522, 1.0
        %v3587 = vadd.f32 %v3523, 1.0
        %v3588 = vadd.f32 %v3524, 1.0
        %v3589 = vadd.f32 %v3525, 1.0
        %v3590 = vadd.f32 %v3526, 1.0
        %v3591 = vadd.f32 %v3527, 1.0
        %v3592 = vadd.f32 %v3528, 1.0
        %v3593 = vadd.f32 %v3529, 1.0
        %v3594 = vadd.f32 %v3530, 1.0
        %v3595 = vadd.f32 %v3531, 1.0
        %v3596 = vadd.f32 %v3532, 1.0
        %v3597 = vadd.f32 %v3533, 1.0
        %v3598 = vadd.f32 %v3534, 1.0
        %v3599 = vadd.f32 %v3535, 1.0
        %v3600 = vadd.f32 %v3536, 1.0
        %v3601 = vadd.f32 %v3537, 1.0
        %v3602 = vadd.f32 %v3538, 1.0
        %v3603 = vadd.f32 %v3539, 1.0
        %v3604 = vadd.f32 %v3540, 1.0
        %v3605 = vadd.f32 %v3541, 1.0
        %v3606 = vadd.f32 %v3542, 1.0
        %v3607 = vadd.f32 %v3543, 1.0
        %v3608 = vadd.f32 %v3544, 1.0
        %v3609 = vadd.f32 %v3545, 1.0
        %v3610 = vadd.f32 %v3546, 1.0
        %v3611 = vadd.f32 %v3547, 1.0
        %v3612 = vadd.f32 %v3548, 1.0
        %v3613 = vadd.f32 %v3549, 1.0
        %v3614 = vadd.f32 %v3550, 1.0
        %v3615 = vadd.f32 %v3551, 1.0
        %v3616 = vadd.f32 %v3552, 1.0
        %v3617 = vadd.f32 %v3553, 1.0
        %v3618 = vadd.f32 %v3554, 1.0
        %v3619 = vadd.f32 %v3555, 1.0
        %v3620 = vmul.f32 %v3556, 0.5
        %v3621 = vmul.f32 %v3557, 0.5
        %v3622 = vmul.f32 %v3558, 0.5
        %v3623 = vmul.f32 %v3559, 0.5
        %v3624 = vmul.f32 %v3560, 0.5
        %v3625 = vmul.f32 %v3561, 0.5
        %v3626 = vmul.f32 %v3562, 0.5
        %v3627 = vmul.f32 %v3563, 0.5
        %v3628 = vmul.f32 %v3564, 0.5
        %v3629 = vmul.f32 %v3565, 0.5
        %v3630 = vmul.f32 %v3566, 0.5
        %v3631 = vmul.f32 %v3567, 0.5
        %v3632 = vmul.f32 %v3568, 0.5
        %v3633 = vmul.f32 %v3569, 0.5
        %v3634 = vmul.f32 %v3570, 0.5
        %v3635 = vmul.f32 %v3571, 0.5
        %v3636 = vmul.f32 %v3572, 0.5
        %v3637 = vmul.f32 %v3573, 0.5
        %v3638 = vmul.f32 %v3574, 0.5
        %v3639 = vmul.f32 %v3575, 0.5
        %v3640 = vmul.f32 %v3576, 0.5
        %v3641 = vmul.f32 %v3577, 0.5
        %v3642 = vmul.f32 %v3578, 0.5
        %v3643 = vmul.f32 %v3579, 0.5
        %v3644 = vmul.f32 %v3580, 0.5
        %v3645 = vmul.f32 %v3581, 0.5
        %v3646 = vmul.f32 %v3582, 0.5
        %v3647 = vmul.f32 %v3583, 0.5
        %v3648 = vmul.f32 %v3584, 0.5
        %v3649 = vmul.f32 %v3585, 0.5
        %v3650 = vmul.f32 %v3586, 0.5
        %v3651 = vmul.f32 %v3587, 0.5
        %v3652 = vmul.f32 %v3588, 0.5
        %v3653 = vmul.f32 %v3589, 0.5
        %v3654 = vmul.f32 %v3590, 0.5
        %v3655 = vmul.f32 %v3591, 0.5
        %v3656 = vmul.f32 %v3592, 0.5
        %v3657 = vmul.f32 %v3593, 0.5
        %v3658 = vmul.f32 %v3594, 0.5
        %v3659 = vmul.f32 %v3595, 0.5
        %v3660 = vmul.f32 %v3596, 0.5
        %v3661 = vmul.f32 %v3597, 0.5
        %v3662 = vmul.f32 %v3598, 0.5
        %v3663 = vmul.f32 %v3599, 0.5
        %v3664 = vmul.f32 %v3600, 0.5
        %v3665 = vmul.f32 %v3601, 0.5
        %v3666 = vmul.f32 %v3602, 0.5
        %v3667 = vmul.f32 %v3603, 0.5
        %v3668 = vmul.f32 %v3604, 0.5
        %v3669 = vmul.f32 %v3605, 0.5
        %v3670 = vmul.f32 %v3606, 0.5
        %v3671 = vmul.f32 %v3607, 0.5
        %v3672 = vmul.f32 %v3608, 0.5
        %v3673 = vmul.f32 %v3609, 0.5
        %v3674 = vmul.f32 %v3610, 0.5
        %v3675 = vmul.f32 %v3611, 0.5
        %v3676 = vmul.f32 %v3612, 0.5
        %v3677 = vmul.f32 %v3613, 0.5
        %v3678 = vmul.f32 %v3614, 0.5
        %v3679 = vmul.f32 %v3615, 0.5
        %v3680 = vmul.f32 %v3616, 0.5
        %v3681 = vmul.f32 %v3617, 0.5
        %v3682 = vmul.f32 %v3618, 0.5
        %v3683 = vmul.f32 %v3619, 0.5
        %v3684 = vpack.c.bf16 %v3620, %v3620
        %v3685 = vpack.c.bf16 %v3621, %v3621
        %v3686 = vpack.c.bf16 %v3622, %v3622
        %v3687 = vpack.c.bf16 %v3623, %v3623
        %v3688 = vpack.c.bf16 %v3624, %v3624
        %v3689 = vpack.c.bf16 %v3625, %v3625
        %v3690 = vpack.c.bf16 %v3626, %v3626
        %v3691 = vpack.c.bf16 %v3627, %v3627
        %v3692 = vpack.c.bf16 %v3628, %v3628
        %v3693 = vpack.c.bf16 %v3629, %v3629
        %v3694 = vpack.c.bf16 %v3630, %v3630
        %v3695 = vpack.c.bf16 %v3631, %v3631
        %v3696 = vpack.c.bf16 %v3632, %v3632
        %v3697 = vpack.c.bf16 %v3633, %v3633
        %v3698 = vpack.c.bf16 %v3634, %v3634
        %v3699 = vpack.c.bf16 %v3635, %v3635
        %v3700 = vpack.c.bf16 %v3636, %v3636
        %v3701 = vpack.c.bf16 %v3637, %v3637
        %v3702 = vpack.c.bf16 %v3638, %v3638
        %v3703 = vpack.c.bf16 %v3639, %v3639
        %v3704 = vpack.c.bf16 %v3640, %v3640
        %v3705 = vpack.c.bf16 %v3641, %v3641
        %v3706 = vpack.c.bf16 %v3642, %v3642
        %v3707 = vpack.c.bf16 %v3643, %v3643
        %v3708 = vpack.c.bf16 %v3644, %v3644
        %v3709 = vpack.c.bf16 %v3645, %v3645
        %v3710 = vpack.c.bf16 %v3646, %v3646
        %v3711 = vpack.c.bf16 %v3647, %v3647
        %v3712 = vpack.c.bf16 %v3648, %v3648
        %v3713 = vpack.c.bf16 %v3649, %v3649
        %v3714 = vpack.c.bf16 %v3650, %v3650
        %v3715 = vpack.c.bf16 %v3651, %v3651
        %v3716 = vpack.c.bf16 %v3652, %v3652
        %v3717 = vpack.c.bf16 %v3653, %v3653
        %v3718 = vpack.c.bf16 %v3654, %v3654
        %v3719 = vpack.c.bf16 %v3655, %v3655
        %v3720 = vpack.c.bf16 %v3656, %v3656
        %v3721 = vpack.c.bf16 %v3657, %v3657
        %v3722 = vpack.c.bf16 %v3658, %v3658
        %v3723 = vpack.c.bf16 %v3659, %v3659
        %v3724 = vpack.c.bf16 %v3660, %v3660
        %v3725 = vpack.c.bf16 %v3661, %v3661
        %v3726 = vpack.c.bf16 %v3662, %v3662
        %v3727 = vpack.c.bf16 %v3663, %v3663
        %v3728 = vpack.c.bf16 %v3664, %v3664
        %v3729 = vpack.c.bf16 %v3665, %v3665
        %v3730 = vpack.c.bf16 %v3666, %v3666
        %v3731 = vpack.c.bf16 %v3667, %v3667
        %v3732 = vpack.c.bf16 %v3668, %v3668
        %v3733 = vpack.c.bf16 %v3669, %v3669
        %v3734 = vpack.c.bf16 %v3670, %v3670
        %v3735 = vpack.c.bf16 %v3671, %v3671
        %v3736 = vpack.c.bf16 %v3672, %v3672
        %v3737 = vpack.c.bf16 %v3673, %v3673
        %v3738 = vpack.c.bf16 %v3674, %v3674
        %v3739 = vpack.c.bf16 %v3675, %v3675
        %v3740 = vpack.c.bf16 %v3676, %v3676
        %v3741 = vpack.c.bf16 %v3677, %v3677
        %v3742 = vpack.c.bf16 %v3678, %v3678
        %v3743 = vpack.c.bf16 %v3679, %v3679
        %v3744 = vpack.c.bf16 %v3680, %v3680
        %v3745 = vpack.c.bf16 %v3681, %v3681
        %v3746 = vpack.c.bf16 %v3682, %v3682
        %v3747 = vpack.c.bf16 %v3683, %v3683
        %v3812 = vcombine.low %v3684, %v3685
        %v3813 = vcombine.low %v3686, %v3687
        %v3814 = vcombine.low %v3688, %v3689
        %v3815 = vcombine.low %v3690, %v3691
        %v3817 = vunpack.c.l.s4 1966171168
        %v3818 = vunpack.c.0.s8 %v3817
        %v3819 = vlaneseq
        %v3820 = vshrl.u32 %v3819, 7
        %v3821 = vsub.s32 %v3818, %v3820
        %v3822 = vrot.slane %v3812, %v3821
        %v3824 = vunpack.c.l.s4 1966171168
        %v3825 = vunpack.c.0.s8 %v3824
        %v3826 = vlaneseq
        %v3827 = vshrl.u32 %v3826, 7
        %v3828 = vsub.s32 %v3825, %v3827
        %v3829 = vrot.slane %v3813, %v3828
        %v3831 = vunpack.c.l.s4 1966171168
        %v3832 = vunpack.c.0.s8 %v3831
        %v3833 = vlaneseq
        %v3834 = vshrl.u32 %v3833, 7
        %v3835 = vsub.s32 %v3832, %v3834
        %v3836 = vrot.slane %v3814, %v3835
        %v3838 = vunpack.c.l.s4 1966171168
        %v3839 = vunpack.c.0.s8 %v3838
        %v3840 = vlaneseq
        %v3841 = vshrl.u32 %v3840, 7
        %v3842 = vsub.s32 %v3839, %v3841
        %v3843 = vrot.slane %v3815, %v3842
        %v3844 = vcombine.low %v3822, %v3829
        %v3845 = vcombine.low %v3836, %v3843
        %v3847 = vunpack.c.l.s4 1966171168
        %v3848 = vunpack.c.0.s8 %v3847
        %v3849 = vlaneseq
        %v3850 = vshrl.u32 %v3849, 7
        %v3851 = vsub.s32 %v3848, %v3850
        %v3852 = vrot.slane %v3844, %v3851
        %v3854 = vunpack.c.l.s4 1966171168
        %v3855 = vunpack.c.0.s8 %v3854
        %v3856 = vlaneseq
        %v3857 = vshrl.u32 %v3856, 7
        %v3858 = vsub.s32 %v3855, %v3857
        %v3859 = vrot.slane %v3845, %v3858
        %v3860 = vcombine.low %v3852, %v3859
        %v3861 = vcombine.low %v3692, %v3693
        %v3862 = vcombine.low %v3694, %v3695
        %v3863 = vcombine.low %v3696, %v3697
        %v3864 = vcombine.low %v3698, %v3699
        %v3866 = vunpack.c.l.s4 1966171168
        %v3867 = vunpack.c.0.s8 %v3866
        %v3868 = vlaneseq
        %v3869 = vshrl.u32 %v3868, 7
        %v3870 = vsub.s32 %v3867, %v3869
        %v3871 = vrot.slane %v3861, %v3870
        %v3873 = vunpack.c.l.s4 1966171168
        %v3874 = vunpack.c.0.s8 %v3873
        %v3875 = vlaneseq
        %v3876 = vshrl.u32 %v3875, 7
        %v3877 = vsub.s32 %v3874, %v3876
        %v3878 = vrot.slane %v3862, %v3877
        %v3880 = vunpack.c.l.s4 1966171168
        %v3881 = vunpack.c.0.s8 %v3880
        %v3882 = vlaneseq
        %v3883 = vshrl.u32 %v3882, 7
        %v3884 = vsub.s32 %v3881, %v3883
        %v3885 = vrot.slane %v3863, %v3884
        %v3887 = vunpack.c.l.s4 1966171168
        %v3888 = vunpack.c.0.s8 %v3887
        %v3889 = vlaneseq
        %v3890 = vshrl.u32 %v3889, 7
        %v3891 = vsub.s32 %v3888, %v3890
        %v3892 = vrot.slane %v3864, %v3891
        %v3893 = vcombine.low %v3871, %v3878
        %v3894 = vcombine.low %v3885, %v3892
        %v3896 = vunpack.c.l.s4 1966171168
        %v3897 = vunpack.c.0.s8 %v3896
        %v3898 = vlaneseq
        %v3899 = vshrl.u32 %v3898, 7
        %v3900 = vsub.s32 %v3897, %v3899
        %v3901 = vrot.slane %v3893, %v3900
        %v3903 = vunpack.c.l.s4 1966171168
        %v3904 = vunpack.c.0.s8 %v3903
        %v3905 = vlaneseq
        %v3906 = vshrl.u32 %v3905, 7
        %v3907 = vsub.s32 %v3904, %v3906
        %v3908 = vrot.slane %v3894, %v3907
        %v3909 = vcombine.low %v3901, %v3908
        %v3910 = vcombine.low %v3700, %v3701
        %v3911 = vcombine.low %v3702, %v3703
        %v3912 = vcombine.low %v3704, %v3705
        %v3913 = vcombine.low %v3706, %v3707
        %v3915 = vunpack.c.l.s4 1966171168
        %v3916 = vunpack.c.0.s8 %v3915
        %v3917 = vlaneseq
        %v3918 = vshrl.u32 %v3917, 7
        %v3919 = vsub.s32 %v3916, %v3918
        %v3920 = vrot.slane %v3910, %v3919
        %v3922 = vunpack.c.l.s4 1966171168
        %v3923 = vunpack.c.0.s8 %v3922
        %v3924 = vlaneseq
        %v3925 = vshrl.u32 %v3924, 7
        %v3926 = vsub.s32 %v3923, %v3925
        %v3927 = vrot.slane %v3911, %v3926
        %v3929 = vunpack.c.l.s4 1966171168
        %v3930 = vunpack.c.0.s8 %v3929
        %v3931 = vlaneseq
        %v3932 = vshrl.u32 %v3931, 7
        %v3933 = vsub.s32 %v3930, %v3932
        %v3934 = vrot.slane %v3912, %v3933
        %v3936 = vunpack.c.l.s4 1966171168
        %v3937 = vunpack.c.0.s8 %v3936
        %v3938 = vlaneseq
        %v3939 = vshrl.u32 %v3938, 7
        %v3940 = vsub.s32 %v3937, %v3939
        %v3941 = vrot.slane %v3913, %v3940
        %v3942 = vcombine.low %v3920, %v3927
        %v3943 = vcombine.low %v3934, %v3941
        %v3945 = vunpack.c.l.s4 1966171168
        %v3946 = vunpack.c.0.s8 %v3945
        %v3947 = vlaneseq
        %v3948 = vshrl.u32 %v3947, 7
        %v3949 = vsub.s32 %v3946, %v3948
        %v3950 = vrot.slane %v3942, %v3949
        %v3952 = vunpack.c.l.s4 1966171168
        %v3953 = vunpack.c.0.s8 %v3952
        %v3954 = vlaneseq
        %v3955 = vshrl.u32 %v3954, 7
        %v3956 = vsub.s32 %v3953, %v3955
        %v3957 = vrot.slane %v3943, %v3956
        %v3958 = vcombine.low %v3950, %v3957
        %v3959 = vcombine.low %v3708, %v3709
        %v3960 = vcombine.low %v3710, %v3711
        %v3961 = vcombine.low %v3712, %v3713
        %v3962 = vcombine.low %v3714, %v3715
        %v3964 = vunpack.c.l.s4 1966171168
        %v3965 = vunpack.c.0.s8 %v3964
        %v3966 = vlaneseq
        %v3967 = vshrl.u32 %v3966, 7
        %v3968 = vsub.s32 %v3965, %v3967
        %v3969 = vrot.slane %v3959, %v3968
        %v3971 = vunpack.c.l.s4 1966171168
        %v3972 = vunpack.c.0.s8 %v3971
        %v3973 = vlaneseq
        %v3974 = vshrl.u32 %v3973, 7
        %v3975 = vsub.s32 %v3972, %v3974
        %v3976 = vrot.slane %v3960, %v3975
        %v3978 = vunpack.c.l.s4 1966171168
        %v3979 = vunpack.c.0.s8 %v3978
        %v3980 = vlaneseq
        %v3981 = vshrl.u32 %v3980, 7
        %v3982 = vsub.s32 %v3979, %v3981
        %v3983 = vrot.slane %v3961, %v3982
        %v3985 = vunpack.c.l.s4 1966171168
        %v3986 = vunpack.c.0.s8 %v3985
        %v3987 = vlaneseq
        %v3988 = vshrl.u32 %v3987, 7
        %v3989 = vsub.s32 %v3986, %v3988
        %v3990 = vrot.slane %v3962, %v3989
        %v3991 = vcombine.low %v3969, %v3976
        %v3992 = vcombine.low %v3983, %v3990
        %v3994 = vunpack.c.l.s4 1966171168
        %v3995 = vunpack.c.0.s8 %v3994
        %v3996 = vlaneseq
        %v3997 = vshrl.u32 %v3996, 7
        %v3998 = vsub.s32 %v3995, %v3997
        %v3999 = vrot.slane %v3991, %v3998
        %v4001 = vunpack.c.l.s4 1966171168
        %v4002 = vunpack.c.0.s8 %v4001
        %v4003 = vlaneseq
        %v4004 = vshrl.u32 %v4003, 7
        %v4005 = vsub.s32 %v4002, %v4004
        %v4006 = vrot.slane %v3992, %v4005
        %v4007 = vcombine.low %v3999, %v4006
        %v4008 = vcombine.low %v3716, %v3717
        %v4009 = vcombine.low %v3718, %v3719
        %v4010 = vcombine.low %v3720, %v3721
        %v4011 = vcombine.low %v3722, %v3723
        %v4013 = vunpack.c.l.s4 1966171168
        %v4014 = vunpack.c.0.s8 %v4013
        %v4015 = vlaneseq
        %v4016 = vshrl.u32 %v4015, 7
        %v4017 = vsub.s32 %v4014, %v4016
        %v4018 = vrot.slane %v4008, %v4017
        %v4020 = vunpack.c.l.s4 1966171168
        %v4021 = vunpack.c.0.s8 %v4020
        %v4022 = vlaneseq
        %v4023 = vshrl.u32 %v4022, 7
        %v4024 = vsub.s32 %v4021, %v4023
        %v4025 = vrot.slane %v4009, %v4024
        %v4027 = vunpack.c.l.s4 1966171168
        %v4028 = vunpack.c.0.s8 %v4027
        %v4029 = vlaneseq
        %v4030 = vshrl.u32 %v4029, 7
        %v4031 = vsub.s32 %v4028, %v4030
        %v4032 = vrot.slane %v4010, %v4031
        %v4034 = vunpack.c.l.s4 1966171168
        %v4035 = vunpack.c.0.s8 %v4034
        %v4036 = vlaneseq
        %v4037 = vshrl.u32 %v4036, 7
        %v4038 = vsub.s32 %v4035, %v4037
        %v4039 = vrot.slane %v4011, %v4038
        %v4040 = vcombine.low %v4018, %v4025
        %v4041 = vcombine.low %v4032, %v4039
        %v4043 = vunpack.c.l.s4 1966171168
        %v4044 = vunpack.c.0.s8 %v4043
        %v4045 = vlaneseq
        %v4046 = vshrl.u32 %v4045, 7
        %v4047 = vsub.s32 %v4044, %v4046
        %v4048 = vrot.slane %v4040, %v4047
        %v4050 = vunpack.c.l.s4 1966171168
        %v4051 = vunpack.c.0.s8 %v4050
        %v4052 = vlaneseq
        %v4053 = vshrl.u32 %v4052, 7
        %v4054 = vsub.s32 %v4051, %v4053
        %v4055 = vrot.slane %v4041, %v4054
        %v4056 = vcombine.low %v4048, %v4055
        %v4057 = vcombine.low %v3724, %v3725
        %v4058 = vcombine.low %v3726, %v3727
        %v4059 = vcombine.low %v3728, %v3729
        %v4060 = vcombine.low %v3730, %v3731
        %v4062 = vunpack.c.l.s4 1966171168
        %v4063 = vunpack.c.0.s8 %v4062
        %v4064 = vlaneseq
        %v4065 = vshrl.u32 %v4064, 7
        %v4066 = vsub.s32 %v4063, %v4065
        %v4067 = vrot.slane %v4057, %v4066
        %v4069 = vunpack.c.l.s4 1966171168
        %v4070 = vunpack.c.0.s8 %v4069
        %v4071 = vlaneseq
        %v4072 = vshrl.u32 %v4071, 7
        %v4073 = vsub.s32 %v4070, %v4072
        %v4074 = vrot.slane %v4058, %v4073
        %v4076 = vunpack.c.l.s4 1966171168
        %v4077 = vunpack.c.0.s8 %v4076
        %v4078 = vlaneseq
        %v4079 = vshrl.u32 %v4078, 7
        %v4080 = vsub.s32 %v4077, %v4079
        %v4081 = vrot.slane %v4059, %v4080
        %v4083 = vunpack.c.l.s4 1966171168
        %v4084 = vunpack.c.0.s8 %v4083
        %v4085 = vlaneseq
        %v4086 = vshrl.u32 %v4085, 7
        %v4087 = vsub.s32 %v4084, %v4086
        %v4088 = vrot.slane %v4060, %v4087
        %v4089 = vcombine.low %v4067, %v4074
        %v4090 = vcombine.low %v4081, %v4088
        %v4092 = vunpack.c.l.s4 1966171168
        %v4093 = vunpack.c.0.s8 %v4092
        %v4094 = vlaneseq
        %v4095 = vshrl.u32 %v4094, 7
        %v4096 = vsub.s32 %v4093, %v4095
        %v4097 = vrot.slane %v4089, %v4096
        %v4099 = vunpack.c.l.s4 1966171168
        %v4100 = vunpack.c.0.s8 %v4099
        %v4101 = vlaneseq
        %v4102 = vshrl.u32 %v4101, 7
        %v4103 = vsub.s32 %v4100, %v4102
        %v4104 = vrot.slane %v4090, %v4103
        %v4105 = vcombine.low %v4097, %v4104
        %v4106 = vcombine.low %v3732, %v3733
        %v4107 = vcombine.low %v3734, %v3735
        %v4108 = vcombine.low %v3736, %v3737
        %v4109 = vcombine.low %v3738, %v3739
        %v4111 = vunpack.c.l.s4 1966171168
        %v4112 = vunpack.c.0.s8 %v4111
        %v4113 = vlaneseq
        %v4114 = vshrl.u32 %v4113, 7
        %v4115 = vsub.s32 %v4112, %v4114
        %v4116 = vrot.slane %v4106, %v4115
        %v4118 = vunpack.c.l.s4 1966171168
        %v4119 = vunpack.c.0.s8 %v4118
        %v4120 = vlaneseq
        %v4121 = vshrl.u32 %v4120, 7
        %v4122 = vsub.s32 %v4119, %v4121
        %v4123 = vrot.slane %v4107, %v4122
        %v4125 = vunpack.c.l.s4 1966171168
        %v4126 = vunpack.c.0.s8 %v4125
        %v4127 = vlaneseq
        %v4128 = vshrl.u32 %v4127, 7
        %v4129 = vsub.s32 %v4126, %v4128
        %v4130 = vrot.slane %v4108, %v4129
        %v4132 = vunpack.c.l.s4 1966171168
        %v4133 = vunpack.c.0.s8 %v4132
        %v4134 = vlaneseq
        %v4135 = vshrl.u32 %v4134, 7
        %v4136 = vsub.s32 %v4133, %v4135
        %v4137 = vrot.slane %v4109, %v4136
        %v4138 = vcombine.low %v4116, %v4123
        %v4139 = vcombine.low %v4130, %v4137
        %v4141 = vunpack.c.l.s4 1966171168
        %v4142 = vunpack.c.0.s8 %v4141
        %v4143 = vlaneseq
        %v4144 = vshrl.u32 %v4143, 7
        %v4145 = vsub.s32 %v4142, %v4144
        %v4146 = vrot.slane %v4138, %v4145
        %v4148 = vunpack.c.l.s4 1966171168
        %v4149 = vunpack.c.0.s8 %v4148
        %v4150 = vlaneseq
        %v4151 = vshrl.u32 %v4150, 7
        %v4152 = vsub.s32 %v4149, %v4151
        %v4153 = vrot.slane %v4139, %v4152
        %v4154 = vcombine.low %v4146, %v4153
        %v4155 = vcombine.low %v3740, %v3741
        %v4156 = vcombine.low %v3742, %v3743
        %v4157 = vcombine.low %v3744, %v3745
        %v4158 = vcombine.low %v3746, %v3747
        %v4160 = vunpack.c.l.s4 1966171168
        %v4161 = vunpack.c.0.s8 %v4160
        %v4162 = vlaneseq
        %v4163 = vshrl.u32 %v4162, 7
        %v4164 = vsub.s32 %v4161, %v4163
        %v4165 = vrot.slane %v4155, %v4164
        %v4167 = vunpack.c.l.s4 1966171168
        %v4168 = vunpack.c.0.s8 %v4167
        %v4169 = vlaneseq
        %v4170 = vshrl.u32 %v4169, 7
        %v4171 = vsub.s32 %v4168, %v4170
        %v4172 = vrot.slane %v4156, %v4171
        %v4174 = vunpack.c.l.s4 1966171168
        %v4175 = vunpack.c.0.s8 %v4174
        %v4176 = vlaneseq
        %v4177 = vshrl.u32 %v4176, 7
        %v4178 = vsub.s32 %v4175, %v4177
        %v4179 = vrot.slane %v4157, %v4178
        %v4181 = vunpack.c.l.s4 1966171168
        %v4182 = vunpack.c.0.s8 %v4181
        %v4183 = vlaneseq
        %v4184 = vshrl.u32 %v4183, 7
        %v4185 = vsub.s32 %v4182, %v4184
        %v4186 = vrot.slane %v4158, %v4185
        %v4187 = vcombine.low %v4165, %v4172
        %v4188 = vcombine.low %v4179, %v4186
        %v4190 = vunpack.c.l.s4 1966171168
        %v4191 = vunpack.c.0.s8 %v4190
        %v4192 = vlaneseq
        %v4193 = vshrl.u32 %v4192, 7
        %v4194 = vsub.s32 %v4191, %v4193
        %v4195 = vrot.slane %v4187, %v4194
        %v4197 = vunpack.c.l.s4 1966171168
        %v4198 = vunpack.c.0.s8 %v4197
        %v4199 = vlaneseq
        %v4200 = vshrl.u32 %v4199, 7
        %v4201 = vsub.s32 %v4198, %v4200
        %v4202 = vrot.slane %v4188, %v4201
        %v4203 = vcombine.low %v4195, %v4202
        %vm4212 = vcmask 1040384
        %vm4213 = vsmask.f32 256
        %vm4214 = vmand %vm4212, %vm4213
        %vm4215 = vcmask 1041409
        %vm4216 = vsmask.f32 1280
        %vm4217 = vmand %vm4215, %vm4216
        %vm4218 = vmor %vm4217, %vm4214
        %vm4219 = vcmask 1042434
        %vm4220 = vsmask.f32 2304
        %vm4221 = vmand %vm4219, %vm4220
        %vm4222 = vmor %vm4221, %vm4218
        %vm4223 = vcmask 1043459
        %vm4224 = vsmask.f32 3328
        %vm4225 = vmand %vm4223, %vm4224
        %vm4226 = vmor %vm4225, %vm4222
        %vm4227 = vcmask 1044484
        %vm4228 = vsmask.f32 4352
        %vm4229 = vmand %vm4227, %vm4228
        %vm4230 = vmor %vm4229, %vm4226
        %vm4231 = vcmask 1045509
        %vm4232 = vsmask.f32 5376
        %vm4233 = vmand %vm4231, %vm4232
        %vm4234 = vmor %vm4233, %vm4230
        %vm4235 = vcmask 1046534
        %vm4236 = vsmask.f32 6400
        %vm4237 = vmand %vm4235, %vm4236
        %vm4238 = vmor %vm4237, %vm4234
        %vm4239 = vcmask 1047559
        %vm4240 = vsmask.f32 7424
        %vm4241 = vmand %vm4239, %vm4240
        %vm4242 = vmor %vm4241, %vm4238
        %v4243 = vld [vmem:[%s228] sm:$0xff]
        %v4244 = vsel %vm4242, %v3860, %v4243
        %4245 = vst [vmem:[%s228] sm:$0xff] %v4244
        %v4246 = vld [vmem:[%s228 + $0x8] sm:$0xff]
        %v4247 = vsel %vm4242, %v3909, %v4246
        %4248 = vst [vmem:[%s228 + $0x8] sm:$0xff] %v4247
        %v4249 = vld [vmem:[%s228 + $0x10] sm:$0xff]
        %v4250 = vsel %vm4242, %v3958, %v4249
        %4251 = vst [vmem:[%s228 + $0x10] sm:$0xff] %v4250
        %v4252 = vld [vmem:[%s228 + $0x18] sm:$0xff]
        %v4253 = vsel %vm4242, %v4007, %v4252
        %4254 = vst [vmem:[%s228 + $0x18] sm:$0xff] %v4253
        %v4255 = vld [vmem:[%s228 + $0x20] sm:$0xff]
        %v4256 = vsel %vm4242, %v4056, %v4255
        %4257 = vst [vmem:[%s228 + $0x20] sm:$0xff] %v4256
        %v4258 = vld [vmem:[%s228 + $0x28] sm:$0xff]
        %v4259 = vsel %vm4242, %v4105, %v4258
        %4260 = vst [vmem:[%s228 + $0x28] sm:$0xff] %v4259
        %v4261 = vld [vmem:[%s228 + $0x30] sm:$0xff]
        %v4262 = vsel %vm4242, %v4154, %v4261
        %4263 = vst [vmem:[%s228 + $0x30] sm:$0xff] %v4262
        %v4264 = vld [vmem:[%s228 + $0x38] sm:$0xff]
        %v4265 = vsel %vm4242, %v4203, %v4264
        %4266 = vst [vmem:[%s228 + $0x38] sm:$0xff] %v4265
        %s4267 = smul.u32 64, %s20
        %p4268 = scmp.lt.s32.totalorder %s4267, 383
        %s4269 = scalar_select %p4268, %s4267, 383
        %s4270 = scalar_lea.vmem %s3, %s4269
        // Predicated region
        $region41: #{_device_forward.5} parent=31 // pred_check
          %p4271 = pneg %p111
        $region42: #{_device_forward.5} parent=31 // pred_check_branch
          %4273 = sbr.rel (%p4271) target = $region44
        $region43: #{_device_forward.5} parent=31 // pred_region
          %s4274 = smul.u32 64, %s20
        $region44: #{_device_forward.5} parent=31 // pred_fallthru
          _
      $region32: #{_device_forward.5} parent=5 // pred_fallthru
        _
      %p4275 = scmp.le.s32.totalorder 2, %s15
      // Predicated region
      $region45: #{_device_forward.5} parent=5 // pred_check
        %p4276 = pneg %p4275
      $region46: #{_device_forward.5} parent=5 // pred_check_branch
        %4278 = sbr.rel (%p4276) target = $region48
      $region47: #{_device_forward.5} parent=5 // pred_region
        %s4279 = ssub.s32 %s15, 2
        // Predicated region
        $region49: #{_device_forward.5} parent=47 // pred_check
          %p4280 = pneg %p117
        $region50: #{_device_forward.5} parent=47 // pred_check_branch
          %4282 = sbr.rel (%p4280) target = $region52
        $region51: #{_device_forward.5} parent=47 // pred_region
          %s4283 = smul.u32 64, %s21
          %p4284 = scmp.lt.s32.totalorder %s4283, 383
          %s4285 = scalar_select %p4284, %s4283, 383
          %s4286 = scalar_lea.vmem %s3, %s4285
        $region52: #{_device_forward.5} parent=47 // pred_fallthru
          _
      $region48: #{_device_forward.5} parent=5 // pred_fallthru
        _
    $region6: #{_device_forward.5} parent=1 // loop_footer
      %s19 = sadd.s32 1, %s15
    $region7: #{_device_forward.5} parent=1 // loop_footer_branch
      %14 = sbr.rel target = $region3
    $region8: #{_device_forward.5} parent=1 // loop_exit
      _
    %4287 = vsyncpa [#allocation3], 1
    %s4288 = scalar_lea.sflag [#allocation3], 1
    %4289 = vsyncpa %s4288, 1
    %4290 = vsyncpa [#allocation5], 1
    %s4291 = scalar_lea.sflag [#allocation5], 1
    %4292 = vsyncpa %s4291, 1

// kernel: _device_forward.7
$region0: #{_device_forward.7}
  #allocation0 [shape = 'u32[]', space=smem, size = 0x4, offset = 0x4, fixed_abs, tag = 'smem constant byte address 0x4 - core index']
  #allocation1 [shape = 'u32[144,128]{1,0:T(1,128)}', space=vmem, size = 0x12000, scoped, tag = 'internal scratch']
  %s0 = inlined_call_operand.vmem [shape: f32[8,588], index: 0, kind: input, shape index: {}]
  %s1 = inlined_call_operand.vmem [shape: bf16[588,512], index: 1, kind: input, shape index: {}]
  %s2 = inlined_call_operand.vmem [shape: f32[1,512], index: 2, kind: input, shape index: {}]
  %s3 = inlined_call_operand.vmem [shape: f32[3,512], index: 3, kind: input, shape index: {}]
  %s4 = inlined_call_operand.vmem [shape: f32[3,1], index: 4, kind: input, shape index: {}]
  %s5 = inlined_call_operand.hbm [shape: f32[1], index: 5, kind: output, shape index: {}]
  %s6 = sld [smem:[#allocation0]]
  $region30: #{_device_forward.7} parent=0
    _
  %s8 = ssub.s32 1, %s6
  %s9 = scalar_select 0, %s8, %s6
  $region1: #{_device_forward.7} parent=0
    #allocation2 [shape = 'u8[512]{0}', space=smem, size = 0x200, scoped, tag = 'output window, operand 0, single buffered']
    #allocation3 [shape = 's32[1]{0}', space=sflag, size = 0x4, scoped, tag = 'scoped memory for _device_forward.7']
    %10 = vsyncpa [#allocation3], 0
    // Predicated region
    $region2: #{_device_forward.7} parent=1 // pred_check
      _
    $region3: #{_device_forward.7} parent=1 // pred_check_branch
      %12 = sbr.rel (0) target = $region5
    $region4: #{_device_forward.7} parent=1 // pred_region
      _
    $region5: #{_device_forward.7} parent=1 // pred_fallthru
      _
    // Predicated region
    $region6: #{_device_forward.7} parent=1 // pred_check
      _
    $region7: #{_device_forward.7} parent=1 // pred_check_branch
      %14 = sbr.rel (0) target = $region9
    $region8: #{_device_forward.7} parent=1 // pred_region
      _
    $region9: #{_device_forward.7} parent=1 // pred_fallthru
      _
    // Predicated region
    $region10: #{_device_forward.7} parent=1 // pred_check
      _
    $region11: #{_device_forward.7} parent=1 // pred_check_branch
      %16 = sbr.rel (0) target = $region13
    $region12: #{_device_forward.7} parent=1 // pred_region
      _
    $region13: #{_device_forward.7} parent=1 // pred_fallthru
      _
    // Predicated region
    $region14: #{_device_forward.7} parent=1 // pred_check
      _
    $region15: #{_device_forward.7} parent=1 // pred_check_branch
      %18 = sbr.rel (0) target = $region17
    $region16: #{_device_forward.7} parent=1 // pred_region
      _
    $region17: #{_device_forward.7} parent=1 // pred_fallthru
      _
    // Predicated region
    $region18: #{_device_forward.7} parent=1 // pred_check
      _
    $region19: #{_device_forward.7} parent=1 // pred_check_branch
      %20 = sbr.rel (0) target = $region21
    $region20: #{_device_forward.7} parent=1 // pred_region
      _
    $region21: #{_device_forward.7} parent=1 // pred_fallthru
      _
    %v22 = vld [vmem:[%s0] sm:$0xff]
    %v23 = vld [vmem:[%s0 + $0x8] sm:$0xff]
    %v24 = vld [vmem:[%s0 + $0x10] sm:$0xff]
    %v25 = vld [vmem:[%s0 + $0x18] sm:$0xff]
    %v26 = vld [vmem:[%s0 + $0x20] sm:$0xff]
    %v27 = vpack.c.bf16 %v22, %v22
    %v28 = vpack.c.bf16 %v23, %v23
    %v29 = vpack.c.bf16 %v24, %v24
    %v30 = vpack.c.bf16 %v25, %v25
    %v31 = vpack.c.bf16 %v26, %v26
    %v32 = vld [vmem:[%s1] sm:$0xff]
    %v33 = vld [vmem:[%s1 + $0x8] sm:$0xff]
    %v34 = vld [vmem:[%s1 + $0x10] sm:$0xff]
    %v35 = vld [vmem:[%s1 + $0x18] sm:$0xff]
    %v36 = vld [vmem:[%s1 + $0x20] sm:$0xff]
    %v37 = vld [vmem:[%s1 + $0x28] sm:$0xff]
    %v38 = vld [vmem:[%s1 + $0x30] sm:$0xff]
    %v39 = vld [vmem:[%s1 + $0x38] sm:$0xff]
    %v40 = vld [vmem:[%s1 + $0x40] sm:$0xff]
    %v41 = vld [vmem:[%s1 + $0x48] sm:$0xff]
    %v42 = vld [vmem:[%s1 + $0x50] sm:$0xff]
    %v43 = vld [vmem:[%s1 + $0x58] sm:$0xff]
    %v44 = vld [vmem:[%s1 + $0x60] sm:$0xff]
    %v45 = vld [vmem:[%s1 + $0x68] sm:$0xff]
    %v46 = vld [vmem:[%s1 + $0x70] sm:$0xff]
    %v47 = vld [vmem:[%s1 + $0x78] sm:$0xff]
    %v48 = vld [vmem:[%s1 + $0x80] sm:$0xff]
    %v49 = vld [vmem:[%s1 + $0x88] sm:$0xff]
    %v50 = vld [vmem:[%s1 + $0x90] sm:$0xff]
    %v51 = vld [vmem:[%s1 + $0x98] sm:$0xff]
    %v52 = vld [vmem:[%s1 + $0xa0] sm:$0xff]
    %v53 = vld [vmem:[%s1 + $0xa8] sm:$0xff]
    %v54 = vld [vmem:[%s1 + $0xb0] sm:$0xff]
    %v55 = vld [vmem:[%s1 + $0xb8] sm:$0xff]
    %v56 = vld [vmem:[%s1 + $0xc0] sm:$0xff]
    %v57 = vld [vmem:[%s1 + $0xc8] sm:$0xff]
    %v58 = vld [vmem:[%s1 + $0xd0] sm:$0xff]
    %v59 = vld [vmem:[%s1 + $0xd8] sm:$0xff]
    %v60 = vld [vmem:[%s1 + $0xe0] sm:$0xff]
    %v61 = vld [vmem:[%s1 + $0xe8] sm:$0xff]
    %v62 = vld [vmem:[%s1 + $0xf0] sm:$0xff]
    %v63 = vld [vmem:[%s1 + $0xf8] sm:$0xff]
    %v64 = vld [vmem:[%s1 + $0x100] sm:$0xff]
    %v65 = vld [vmem:[%s1 + $0x108] sm:$0xff]
    %v66 = vld [vmem:[%s1 + $0x110] sm:$0xff]
    %v67 = vld [vmem:[%s1 + $0x118] sm:$0xff]
    %v68 = vld [vmem:[%s1 + $0x120] sm:$0xff]
    %v69 = vld [vmem:[%s1 + $0x128] sm:$0xff]
    %v70 = vld [vmem:[%s1 + $0x130] sm:$0xff]
    %v71 = vld [vmem:[%s1 + $0x138] sm:$0xff]
    %v72 = vld [vmem:[%s1 + $0x140] sm:$0xff]
    %v73 = vld [vmem:[%s1 + $0x148] sm:$0xff]
    %v74 = vld [vmem:[%s1 + $0x150] sm:$0xff]
    %v75 = vld [vmem:[%s1 + $0x158] sm:$0xff]
    %v76 = vld [vmem:[%s1 + $0x160] sm:$0xff]
    %v77 = vld [vmem:[%s1 + $0x168] sm:$0xff]
    %v78 = vld [vmem:[%s1 + $0x170] sm:$0xff]
    %v79 = vld [vmem:[%s1 + $0x178] sm:$0xff]
    %v80 = vld [vmem:[%s1 + $0x180] sm:$0xff]
    %v81 = vld [vmem:[%s1 + $0x188] sm:$0xff]
    %v82 = vld [vmem:[%s1 + $0x190] sm:$0xff]
    %v83 = vld [vmem:[%s1 + $0x198] sm:$0xff]
    %v84 = vld [vmem:[%s1 + $0x1a0] sm:$0xff]
    %v85 = vld [vmem:[%s1 + $0x1a8] sm:$0xff]
    %v86 = vld [vmem:[%s1 + $0x1b0] sm:$0xff]
    %v87 = vld [vmem:[%s1 + $0x1b8] sm:$0xff]
    %v88 = vld [vmem:[%s1 + $0x1c0] sm:$0xff]
    %v89 = vld [vmem:[%s1 + $0x1c8] sm:$0xff]
    %v90 = vld [vmem:[%s1 + $0x1d0] sm:$0xff]
    %v91 = vld [vmem:[%s1 + $0x1d8] sm:$0xff]
    %v92 = vld [vmem:[%s1 + $0x1e0] sm:$0xff]
    %v93 = vld [vmem:[%s1 + $0x1e8] sm:$0xff]
    %v94 = vld [vmem:[%s1 + $0x1f0] sm:$0xff]
    %v95 = vld [vmem:[%s1 + $0x1f8] sm:$0xff]
    %v96 = vld [vmem:[%s1 + $0x200] sm:$0xff]
    %v97 = vld [vmem:[%s1 + $0x208] sm:$0xff]
    %v98 = vld [vmem:[%s1 + $0x210] sm:$0xff]
    %v99 = vld [vmem:[%s1 + $0x218] sm:$0xff]
    %v100 = vld [vmem:[%s1 + $0x220] sm:$0xff]
    %v101 = vld [vmem:[%s1 + $0x228] sm:$0xff]
    %v102 = vld [vmem:[%s1 + $0x230] sm:$0xff]
    %v103 = vld [vmem:[%s1 + $0x238] sm:$0xff]
    %v104 = vld [vmem:[%s1 + $0x240] sm:$0xff]
    %v105 = vld [vmem:[%s1 + $0x248] sm:$0xff]
    %v106 = vld [vmem:[%s1 + $0x250] sm:$0xff]
    %v107 = vld [vmem:[%s1 + $0x258] sm:$0xff]
    %v108 = vld [vmem:[%s1 + $0x260] sm:$0xff]
    %v109 = vld [vmem:[%s1 + $0x268] sm:$0xff]
    %v110 = vld [vmem:[%s1 + $0x270] sm:$0xff]
    %v111 = vld [vmem:[%s1 + $0x278] sm:$0xff]
    %v112 = vld [vmem:[%s1 + $0x280] sm:$0xff]
    %v113 = vld [vmem:[%s1 + $0x288] sm:$0xff]
    %v114 = vld [vmem:[%s1 + $0x290] sm:$0xff]
    %v115 = vld [vmem:[%s1 + $0x298] sm:$0xff]
    %v116 = vld [vmem:[%s1 + $0x2a0] sm:$0xff]
    %v117 = vld [vmem:[%s1 + $0x2a8] sm:$0xff]
    %v118 = vld [vmem:[%s1 + $0x2b0] sm:$0xff]
    %v119 = vld [vmem:[%s1 + $0x2b8] sm:$0xff]
    %v120 = vld [vmem:[%s1 + $0x2c0] sm:$0xff]
    %v121 = vld [vmem:[%s1 + $0x2c8] sm:$0xff]
    %v122 = vld [vmem:[%s1 + $0x2d0] sm:$0xff]
    %v123 = vld [vmem:[%s1 + $0x2d8] sm:$0xff]
    %v124 = vld [vmem:[%s1 + $0x2e0] sm:$0xff]
    %v125 = vld [vmem:[%s1 + $0x2e8] sm:$0xff]
    %v126 = vld [vmem:[%s1 + $0x2f0] sm:$0xff]
    %v127 = vld [vmem:[%s1 + $0x2f8] sm:$0xff]
    %v128 = vld [vmem:[%s1 + $0x300] sm:$0xff]
    %v129 = vld [vmem:[%s1 + $0x308] sm:$0xff]
    %v130 = vld [vmem:[%s1 + $0x310] sm:$0xff]
    %v131 = vld [vmem:[%s1 + $0x318] sm:$0xff]
    %v132 = vld [vmem:[%s1 + $0x320] sm:$0xff]
    %v133 = vld [vmem:[%s1 + $0x328] sm:$0xff]
    %v134 = vld [vmem:[%s1 + $0x330] sm:$0xff]
    %v135 = vld [vmem:[%s1 + $0x338] sm:$0xff]
    %v136 = vld [vmem:[%s1 + $0x340] sm:$0xff]
    %v137 = vld [vmem:[%s1 + $0x348] sm:$0xff]
    %v138 = vld [vmem:[%s1 + $0x350] sm:$0xff]
    %v139 = vld [vmem:[%s1 + $0x358] sm:$0xff]
    %v140 = vld [vmem:[%s1 + $0x360] sm:$0xff]
    %v141 = vld [vmem:[%s1 + $0x368] sm:$0xff]
    %v142 = vld [vmem:[%s1 + $0x370] sm:$0xff]
    %v143 = vld [vmem:[%s1 + $0x378] sm:$0xff]
    %v144 = vld [vmem:[%s1 + $0x380] sm:$0xff]
    %v145 = vld [vmem:[%s1 + $0x388] sm:$0xff]
    %v146 = vld [vmem:[%s1 + $0x390] sm:$0xff]
    %v147 = vld [vmem:[%s1 + $0x398] sm:$0xff]
    %v148 = vld [vmem:[%s1 + $0x3a0] sm:$0xff]
    %v149 = vld [vmem:[%s1 + $0x3a8] sm:$0xff]
    %v150 = vld [vmem:[%s1 + $0x3b0] sm:$0xff]
    %v151 = vld [vmem:[%s1 + $0x3b8] sm:$0xff]
    %v152 = vld [vmem:[%s1 + $0x3c0] sm:$0xff]
    %v153 = vld [vmem:[%s1 + $0x3c8] sm:$0xff]
    %v154 = vld [vmem:[%s1 + $0x3d0] sm:$0xff]
    %v155 = vld [vmem:[%s1 + $0x3d8] sm:$0xff]
    %v156 = vld [vmem:[%s1 + $0x3e0] sm:$0xff]
    %v157 = vld [vmem:[%s1 + $0x3e8] sm:$0xff]
    %v158 = vld [vmem:[%s1 + $0x3f0] sm:$0xff]
    %v159 = vld [vmem:[%s1 + $0x3f8] sm:$0xff]
    %v160 = vld [vmem:[%s1 + $0x400] sm:$0xff]
    %v161 = vld [vmem:[%s1 + $0x408] sm:$0xff]
    %v162 = vld [vmem:[%s1 + $0x410] sm:$0xff]
    %v163 = vld [vmem:[%s1 + $0x418] sm:$0xff]
    %v164 = vld [vmem:[%s1 + $0x420] sm:$0xff]
    %v165 = vld [vmem:[%s1 + $0x428] sm:$0xff]
    %v166 = vld [vmem:[%s1 + $0x430] sm:$0xff]
    %v167 = vld [vmem:[%s1 + $0x438] sm:$0xff]
    %v168 = vld [vmem:[%s1 + $0x440] sm:$0xff]
    %v169 = vld [vmem:[%s1 + $0x448] sm:$0xff]
    %v170 = vld [vmem:[%s1 + $0x450] sm:$0xff]
    %v171 = vld [vmem:[%s1 + $0x458] sm:$0xff]
    %v172 = vld [vmem:[%s1 + $0x460] sm:$0xff]
    %v173 = vld [vmem:[%s1 + $0x468] sm:$0xff]
    %v174 = vld [vmem:[%s1 + $0x470] sm:$0xff]
    %v175 = vld [vmem:[%s1 + $0x478] sm:$0xff]
    %v176 = vld [vmem:[%s1 + $0x480] sm:$0xff]
    %v177 = vld [vmem:[%s1 + $0x488] sm:$0xff]
    %v178 = vld [vmem:[%s1 + $0x490] sm:$0x33]
    %v179 = vld [vmem:[%s1 + $0x498] sm:$0x33]
    %v180 = vld [vmem:[%s2] sm:$0xf]
    %v182 = vlaneseq
    %v183 = vshrl.u32 %v182, 7
    %v184 = vsub.s32 0, %v183
    %v185 = vrot.slane %v180, %v184
    %v186 = vlaneseq
    %v187 = vshrl.u32 %v186, 7
    %v188 = vsub.s32 1, %v187
    %v189 = vrot.slane %v180, %v188
    %v190 = vlaneseq
    %v191 = vshrl.u32 %v190, 7
    %v192 = vsub.s32 2, %v191
    %v193 = vrot.slane %v180, %v192
    %v194 = vlaneseq
    %v195 = vshrl.u32 %v194, 7
    %v196 = vsub.s32 3, %v195
    %v197 = vrot.slane %v180, %v196
    %v350 = vunpack.c.l.b16 %v32
    %v351 = vunpack.c.h.b16 %v32
    %v352 = vunpack.c.l.b16 %v33
    %v353 = vunpack.c.h.b16 %v33
    %v354 = vunpack.c.l.b16 %v34
    %v355 = vunpack.c.h.b16 %v34
    %v356 = vunpack.c.l.b16 %v35
    %v357 = vunpack.c.h.b16 %v35
    %v358 = vunpack.c.l.b16 %v36
    %v359 = vunpack.c.h.b16 %v36
    %v360 = vunpack.c.l.b16 %v37
    %v361 = vunpack.c.h.b16 %v37
    %v362 = vunpack.c.l.b16 %v38
    %v363 = vunpack.c.h.b16 %v38
    %v364 = vunpack.c.l.b16 %v39
    %v365 = vunpack.c.h.b16 %v39
    %v366 = vunpack.c.l.b16 %v40
    %v367 = vunpack.c.h.b16 %v40
    %v368 = vunpack.c.l.b16 %v41
    %v369 = vunpack.c.h.b16 %v41
    %v370 = vunpack.c.l.b16 %v42
    %v371 = vunpack.c.h.b16 %v42
    %v372 = vunpack.c.l.b16 %v43
    %v373 = vunpack.c.h.b16 %v43
    %v374 = vunpack.c.l.b16 %v44
    %v375 = vunpack.c.h.b16 %v44
    %v376 = vunpack.c.l.b16 %v45
    %v377 = vunpack.c.h.b16 %v45
    %v378 = vunpack.c.l.b16 %v46
    %v379 = vunpack.c.h.b16 %v46
    %v380 = vunpack.c.l.b16 %v47
    %v381 = vunpack.c.h.b16 %v47
    %v382 = vunpack.c.l.b16 %v48
    %v383 = vunpack.c.h.b16 %v48
    %v384 = vunpack.c.l.b16 %v49
    %v385 = vunpack.c.h.b16 %v49
    %v386 = vunpack.c.l.b16 %v50
    %v387 = vunpack.c.h.b16 %v50
    %v388 = vunpack.c.l.b16 %v51
    %v389 = vunpack.c.h.b16 %v51
    %v390 = vunpack.c.l.b16 %v52
    %v391 = vunpack.c.h.b16 %v52
    %v392 = vunpack.c.l.b16 %v53
    %v393 = vunpack.c.h.b16 %v53
    %v394 = vunpack.c.l.b16 %v54
    %v395 = vunpack.c.h.b16 %v54
    %v396 = vunpack.c.l.b16 %v55
    %v397 = vunpack.c.h.b16 %v55
    %v398 = vunpack.c.l.b16 %v56
    %v399 = vunpack.c.h.b16 %v56
    %v400 = vunpack.c.l.b16 %v57
    %v401 = vunpack.c.h.b16 %v57
    %v402 = vunpack.c.l.b16 %v58
    %v403 = vunpack.c.h.b16 %v58
    %v404 = vunpack.c.l.b16 %v59
    %v405 = vunpack.c.h.b16 %v59
    %v406 = vunpack.c.l.b16 %v60
    %v407 = vunpack.c.h.b16 %v60
    %v408 = vunpack.c.l.b16 %v61
    %v409 = vunpack.c.h.b16 %v61
    %v410 = vunpack.c.l.b16 %v62
    %v411 = vunpack.c.h.b16 %v62
    %v412 = vunpack.c.l.b16 %v63
    %v413 = vunpack.c.h.b16 %v63
    %v414 = vunpack.c.l.b16 %v64
    %v415 = vunpack.c.h.b16 %v64
    %v416 = vunpack.c.l.b16 %v65
    %v417 = vunpack.c.h.b16 %v65
    %v418 = vunpack.c.l.b16 %v66
    %v419 = vunpack.c.h.b16 %v66
    %v420 = vunpack.c.l.b16 %v67
    %v421 = vunpack.c.h.b16 %v67
    %v422 = vunpack.c.l.b16 %v68
    %v423 = vunpack.c.h.b16 %v68
    %v424 = vunpack.c.l.b16 %v69
    %v425 = vunpack.c.h.b16 %v69
    %v426 = vunpack.c.l.b16 %v70
    %v427 = vunpack.c.h.b16 %v70
    %v428 = vunpack.c.l.b16 %v71
    %v429 = vunpack.c.h.b16 %v71
    %v430 = vunpack.c.l.b16 %v72
    %v431 = vunpack.c.h.b16 %v72
    %v432 = vunpack.c.l.b16 %v73
    %v433 = vunpack.c.h.b16 %v73
    %v434 = vunpack.c.l.b16 %v74
    %v435 = vunpack.c.h.b16 %v74
    %v436 = vunpack.c.l.b16 %v75
    %v437 = vunpack.c.h.b16 %v75
    %v438 = vunpack.c.l.b16 %v76
    %v439 = vunpack.c.h.b16 %v76
    %v440 = vunpack.c.l.b16 %v77
    %v441 = vunpack.c.h.b16 %v77
    %v442 = vunpack.c.l.b16 %v78
    %v443 = vunpack.c.h.b16 %v78
    %v444 = vunpack.c.l.b16 %v79
    %v445 = vunpack.c.h.b16 %v79
    %v446 = vunpack.c.l.b16 %v80
    %v447 = vunpack.c.h.b16 %v80
    %v448 = vunpack.c.l.b16 %v81
    %v449 = vunpack.c.h.b16 %v81
    %v450 = vunpack.c.l.b16 %v82
    %v451 = vunpack.c.h.b16 %v82
    %v452 = vunpack.c.l.b16 %v83
    %v453 = vunpack.c.h.b16 %v83
    %v454 = vunpack.c.l.b16 %v84
    %v455 = vunpack.c.h.b16 %v84
    %v456 = vunpack.c.l.b16 %v85
    %v457 = vunpack.c.h.b16 %v85
    %v458 = vunpack.c.l.b16 %v86
    %v459 = vunpack.c.h.b16 %v86
    %v460 = vunpack.c.l.b16 %v87
    %v461 = vunpack.c.h.b16 %v87
    %v462 = vunpack.c.l.b16 %v88
    %v463 = vunpack.c.h.b16 %v88
    %v464 = vunpack.c.l.b16 %v89
    %v465 = vunpack.c.h.b16 %v89
    %v466 = vunpack.c.l.b16 %v90
    %v467 = vunpack.c.h.b16 %v90
    %v468 = vunpack.c.l.b16 %v91
    %v469 = vunpack.c.h.b16 %v91
    %v470 = vunpack.c.l.b16 %v92
    %v471 = vunpack.c.h.b16 %v92
    %v472 = vunpack.c.l.b16 %v93
    %v473 = vunpack.c.h.b16 %v93
    %v474 = vunpack.c.l.b16 %v94
    %v475 = vunpack.c.h.b16 %v94
    %v476 = vunpack.c.l.b16 %v95
    %v477 = vunpack.c.h.b16 %v95
    %v478 = vunpack.c.l.b16 %v96
    %v479 = vunpack.c.h.b16 %v96
    %v480 = vunpack.c.l.b16 %v97
    %v481 = vunpack.c.h.b16 %v97
    %v482 = vunpack.c.l.b16 %v98
    %v483 = vunpack.c.h.b16 %v98
    %v484 = vunpack.c.l.b16 %v99
    %v485 = vunpack.c.h.b16 %v99
    %v486 = vunpack.c.l.b16 %v100
    %v487 = vunpack.c.h.b16 %v100
    %v488 = vunpack.c.l.b16 %v101
    %v489 = vunpack.c.h.b16 %v101
    %v490 = vunpack.c.l.b16 %v102
    %v491 = vunpack.c.h.b16 %v102
    %v492 = vunpack.c.l.b16 %v103
    %v493 = vunpack.c.h.b16 %v103
    %v494 = vunpack.c.l.b16 %v104
    %v495 = vunpack.c.h.b16 %v104
    %v496 = vunpack.c.l.b16 %v105
    %v497 = vunpack.c.h.b16 %v105
    %v498 = vunpack.c.l.b16 %v106
    %v499 = vunpack.c.h.b16 %v106
    %v500 = vunpack.c.l.b16 %v107
    %v501 = vunpack.c.h.b16 %v107
    %v502 = vunpack.c.l.b16 %v108
    %v503 = vunpack.c.h.b16 %v108
    %v504 = vunpack.c.l.b16 %v109
    %v505 = vunpack.c.h.b16 %v109
    %v506 = vunpack.c.l.b16 %v110
    %v507 = vunpack.c.h.b16 %v110
    %v508 = vunpack.c.l.b16 %v111
    %v509 = vunpack.c.h.b16 %v111
    %v510 = vunpack.c.l.b16 %v112
    %v511 = vunpack.c.h.b16 %v112
    %v512 = vunpack.c.l.b16 %v113
    %v513 = vunpack.c.h.b16 %v113
    %v514 = vunpack.c.l.b16 %v114
    %v515 = vunpack.c.h.b16 %v114
    %v516 = vunpack.c.l.b16 %v115
    %v517 = vunpack.c.h.b16 %v115
    %v518 = vunpack.c.l.b16 %v116
    %v519 = vunpack.c.h.b16 %v116
    %v520 = vunpack.c.l.b16 %v117
    %v521 = vunpack.c.h.b16 %v117
    %v522 = vunpack.c.l.b16 %v118
    %v523 = vunpack.c.h.b16 %v118
    %v524 = vunpack.c.l.b16 %v119
    %v525 = vunpack.c.h.b16 %v119
    %v526 = vunpack.c.l.b16 %v120
    %v527 = vunpack.c.h.b16 %v120
    %v528 = vunpack.c.l.b16 %v121
    %v529 = vunpack.c.h.b16 %v121
    %v530 = vunpack.c.l.b16 %v122
    %v531 = vunpack.c.h.b16 %v122
    %v532 = vunpack.c.l.b16 %v123
    %v533 = vunpack.c.h.b16 %v123
    %v534 = vunpack.c.l.b16 %v124
    %v535 = vunpack.c.h.b16 %v124
    %v536 = vunpack.c.l.b16 %v125
    %v537 = vunpack.c.h.b16 %v125
    %v538 = vunpack.c.l.b16 %v126
    %v539 = vunpack.c.h.b16 %v126
    %v540 = vunpack.c.l.b16 %v127
    %v541 = vunpack.c.h.b16 %v127
    %v542 = vunpack.c.l.b16 %v128
    %v543 = vunpack.c.h.b16 %v128
    %v544 = vunpack.c.l.b16 %v129
    %v545 = vunpack.c.h.b16 %v129
    %v546 = vunpack.c.l.b16 %v130
    %v547 = vunpack.c.h.b16 %v130
    %v548 = vunpack.c.l.b16 %v131
    %v549 = vunpack.c.h.b16 %v131
    %v550 = vunpack.c.l.b16 %v132
    %v551 = vunpack.c.h.b16 %v132
    %v552 = vunpack.c.l.b16 %v133
    %v553 = vunpack.c.h.b16 %v133
    %v554 = vunpack.c.l.b16 %v134
    %v555 = vunpack.c.h.b16 %v134
    %v556 = vunpack.c.l.b16 %v135
    %v557 = vunpack.c.h.b16 %v135
    %v558 = vunpack.c.l.b16 %v136
    %v559 = vunpack.c.h.b16 %v136
    %v560 = vunpack.c.l.b16 %v137
    %v561 = vunpack.c.h.b16 %v137
    %v562 = vunpack.c.l.b16 %v138
    %v563 = vunpack.c.h.b16 %v138
    %v564 = vunpack.c.l.b16 %v139
    %v565 = vunpack.c.h.b16 %v139
    %v566 = vunpack.c.l.b16 %v140
    %v567 = vunpack.c.h.b16 %v140
    %v568 = vunpack.c.l.b16 %v141
    %v569 = vunpack.c.h.b16 %v141
    %v570 = vunpack.c.l.b16 %v142
    %v571 = vunpack.c.h.b16 %v142
    %v572 = vunpack.c.l.b16 %v143
    %v573 = vunpack.c.h.b16 %v143
    %v574 = vunpack.c.l.b16 %v144
    %v575 = vunpack.c.h.b16 %v144
    %v576 = vunpack.c.l.b16 %v145
    %v577 = vunpack.c.h.b16 %v145
    %v578 = vunpack.c.l.b16 %v146
    %v579 = vunpack.c.h.b16 %v146
    %v580 = vunpack.c.l.b16 %v147
    %v581 = vunpack.c.h.b16 %v147
    %v582 = vunpack.c.l.b16 %v148
    %v583 = vunpack.c.h.b16 %v148
    %v584 = vunpack.c.l.b16 %v149
    %v585 = vunpack.c.h.b16 %v149
    %v586 = vunpack.c.l.b16 %v150
    %v587 = vunpack.c.h.b16 %v150
    %v588 = vunpack.c.l.b16 %v151
    %v589 = vunpack.c.h.b16 %v151
    %v590 = vunpack.c.l.b16 %v152
    %v591 = vunpack.c.h.b16 %v152
    %v592 = vunpack.c.l.b16 %v153
    %v593 = vunpack.c.h.b16 %v153
    %v594 = vunpack.c.l.b16 %v154
    %v595 = vunpack.c.h.b16 %v154
    %v596 = vunpack.c.l.b16 %v155
    %v597 = vunpack.c.h.b16 %v155
    %v598 = vunpack.c.l.b16 %v156
    %v599 = vunpack.c.h.b16 %v156
    %v600 = vunpack.c.l.b16 %v157
    %v601 = vunpack.c.h.b16 %v157
    %v602 = vunpack.c.l.b16 %v158
    %v603 = vunpack.c.h.b16 %v158
    %v604 = vunpack.c.l.b16 %v159
    %v605 = vunpack.c.h.b16 %v159
    %v606 = vunpack.c.l.b16 %v160
    %v607 = vunpack.c.h.b16 %v160
    %v608 = vunpack.c.l.b16 %v161
    %v609 = vunpack.c.h.b16 %v161
    %v610 = vunpack.c.l.b16 %v162
    %v611 = vunpack.c.h.b16 %v162
    %v612 = vunpack.c.l.b16 %v163
    %v613 = vunpack.c.h.b16 %v163
    %v614 = vunpack.c.l.b16 %v164
    %v615 = vunpack.c.h.b16 %v164
    %v616 = vunpack.c.l.b16 %v165
    %v617 = vunpack.c.h.b16 %v165
    %v618 = vunpack.c.l.b16 %v166
    %v619 = vunpack.c.h.b16 %v166
    %v620 = vunpack.c.l.b16 %v167
    %v621 = vunpack.c.h.b16 %v167
    %v622 = vunpack.c.l.b16 %v168
    %v623 = vunpack.c.h.b16 %v168
    %v624 = vunpack.c.l.b16 %v169
    %v625 = vunpack.c.h.b16 %v169
    %v626 = vunpack.c.l.b16 %v170
    %v627 = vunpack.c.h.b16 %v170
    %v628 = vunpack.c.l.b16 %v171
    %v629 = vunpack.c.h.b16 %v171
    %v630 = vunpack.c.l.b16 %v172
    %v631 = vunpack.c.h.b16 %v172
    %v632 = vunpack.c.l.b16 %v173
    %v633 = vunpack.c.h.b16 %v173
    %v634 = vunpack.c.l.b16 %v174
    %v635 = vunpack.c.h.b16 %v174
    %v636 = vunpack.c.l.b16 %v175
    %v637 = vunpack.c.h.b16 %v175
    %v638 = vunpack.c.l.b16 %v176
    %v639 = vunpack.c.h.b16 %v176
    %v640 = vunpack.c.l.b16 %v177
    %v641 = vunpack.c.h.b16 %v177
    %v642 = vunpack.c.l.b16 %v178
    %v643 = vunpack.c.h.b16 %v178
    %v644 = vunpack.c.l.b16 %v179
    %v645 = vunpack.c.h.b16 %v179
    %v646 = vpack.c.b16 %v354, %v350
    %v647 = vpack.c.b16 %v355, %v351
    %v648 = vpack.c.b16 %v356, %v352
    %v649 = vpack.c.b16 %v357, %v353
    %v650 = vpack.c.b16 %v362, %v358
    %v651 = vpack.c.b16 %v363, %v359
    %v652 = vpack.c.b16 %v364, %v360
    %v653 = vpack.c.b16 %v365, %v361
    %v654 = vpack.c.b16 %v370, %v366
    %v655 = vpack.c.b16 %v371, %v367
    %v656 = vpack.c.b16 %v372, %v368
    %v657 = vpack.c.b16 %v373, %v369
    %v658 = vpack.c.b16 %v378, %v374
    %v659 = vpack.c.b16 %v379, %v375
    %v660 = vpack.c.b16 %v380, %v376
    %v661 = vpack.c.b16 %v381, %v377
    %v662 = vpack.c.b16 %v386, %v382
    %v663 = vpack.c.b16 %v387, %v383
    %v664 = vpack.c.b16 %v388, %v384
    %v665 = vpack.c.b16 %v389, %v385
    %v666 = vpack.c.b16 %v394, %v390
    %v667 = vpack.c.b16 %v395, %v391
    %v668 = vpack.c.b16 %v396, %v392
    %v669 = vpack.c.b16 %v397, %v393
    %v670 = vpack.c.b16 %v402, %v398
    %v671 = vpack.c.b16 %v403, %v399
    %v672 = vpack.c.b16 %v404, %v400
    %v673 = vpack.c.b16 %v405, %v401
    %v674 = vpack.c.b16 %v410, %v406
    %v675 = vpack.c.b16 %v411, %v407
    %v676 = vpack.c.b16 %v412, %v408
    %v677 = vpack.c.b16 %v413, %v409
    %v678 = vpack.c.b16 %v418, %v414
    %v679 = vpack.c.b16 %v419, %v415
    %v680 = vpack.c.b16 %v420, %v416
    %v681 = vpack.c.b16 %v421, %v417
    %v682 = vpack.c.b16 %v426, %v422
    %v683 = vpack.c.b16 %v427, %v423
    %v684 = vpack.c.b16 %v428, %v424
    %v685 = vpack.c.b16 %v429, %v425
    %v686 = vpack.c.b16 %v434, %v430
    %v687 = vpack.c.b16 %v435, %v431
    %v688 = vpack.c.b16 %v436, %v432
    %v689 = vpack.c.b16 %v437, %v433
    %v690 = vpack.c.b16 %v442, %v438
    %v691 = vpack.c.b16 %v443, %v439
    %v692 = vpack.c.b16 %v444, %v440
    %v693 = vpack.c.b16 %v445, %v441
    %v694 = vpack.c.b16 %v450, %v446
    %v695 = vpack.c.b16 %v451, %v447
    %v696 = vpack.c.b16 %v452, %v448
    %v697 = vpack.c.b16 %v453, %v449
    %v698 = vpack.c.b16 %v458, %v454
    %v699 = vpack.c.b16 %v459, %v455
    %v700 = vpack.c.b16 %v460, %v456
    %v701 = vpack.c.b16 %v461, %v457
    %v702 = vpack.c.b16 %v466, %v462
    %v703 = vpack.c.b16 %v467, %v463
    %v704 = vpack.c.b16 %v468, %v464
    %v705 = vpack.c.b16 %v469, %v465
    %v706 = vpack.c.b16 %v474, %v470
    %v707 = vpack.c.b16 %v475, %v471
    %v708 = vpack.c.b16 %v476, %v472
    %v709 = vpack.c.b16 %v477, %v473
    %v710 = vpack.c.b16 %v482, %v478
    %v711 = vpack.c.b16 %v483, %v479
    %v712 = vpack.c.b16 %v484, %v480
    %v713 = vpack.c.b16 %v485, %v481
    %v714 = vpack.c.b16 %v490, %v486
    %v715 = vpack.c.b16 %v491, %v487
    %v716 = vpack.c.b16 %v492, %v488
    %v717 = vpack.c.b16 %v493, %v489
    %v718 = vpack.c.b16 %v498, %v494
    %v719 = vpack.c.b16 %v499, %v495
    %v720 = vpack.c.b16 %v500, %v496
    %v721 = vpack.c.b16 %v501, %v497
    %v722 = vpack.c.b16 %v506, %v502
    %v723 = vpack.c.b16 %v507, %v503
    %v724 = vpack.c.b16 %v508, %v504
    %v725 = vpack.c.b16 %v509, %v505
    %v726 = vpack.c.b16 %v514, %v510
    %v727 = vpack.c.b16 %v515, %v511
    %v728 = vpack.c.b16 %v516, %v512
    %v729 = vpack.c.b16 %v517, %v513
    %v730 = vpack.c.b16 %v522, %v518
    %v731 = vpack.c.b16 %v523, %v519
    %v732 = vpack.c.b16 %v524, %v520
    %v733 = vpack.c.b16 %v525, %v521
    %v734 = vpack.c.b16 %v530, %v526
    %v735 = vpack.c.b16 %v531, %v527
    %v736 = vpack.c.b16 %v532, %v528
    %v737 = vpack.c.b16 %v533, %v529
    %v738 = vpack.c.b16 %v538, %v534
    %v739 = vpack.c.b16 %v539, %v535
    %v740 = vpack.c.b16 %v540, %v536
    %v741 = vpack.c.b16 %v541, %v537
    %v742 = vpack.c.b16 %v546, %v542
    %v743 = vpack.c.b16 %v547, %v543
    %v744 = vpack.c.b16 %v548, %v544
    %v745 = vpack.c.b16 %v549, %v545
    %v746 = vpack.c.b16 %v554, %v550
    %v747 = vpack.c.b16 %v555, %v551
    %v748 = vpack.c.b16 %v556, %v552
    %v749 = vpack.c.b16 %v557, %v553
    %v750 = vpack.c.b16 %v562, %v558
    %v751 = vpack.c.b16 %v563, %v559
    %v752 = vpack.c.b16 %v564, %v560
    %v753 = vpack.c.b16 %v565, %v561
    %v754 = vpack.c.b16 %v570, %v566
    %v755 = vpack.c.b16 %v571, %v567
    %v756 = vpack.c.b16 %v572, %v568
    %v757 = vpack.c.b16 %v573, %v569
    %v758 = vpack.c.b16 %v578, %v574
    %v759 = vpack.c.b16 %v579, %v575
    %v760 = vpack.c.b16 %v580, %v576
    %v761 = vpack.c.b16 %v581, %v577
    %v762 = vpack.c.b16 %v586, %v582
    %v763 = vpack.c.b16 %v587, %v583
    %v764 = vpack.c.b16 %v588, %v584
    %v765 = vpack.c.b16 %v589, %v585
    %v766 = vpack.c.b16 %v594, %v590
    %v767 = vpack.c.b16 %v595, %v591
    %v768 = vpack.c.b16 %v596, %v592
    %v769 = vpack.c.b16 %v597, %v593
    %v770 = vpack.c.b16 %v602, %v598
    %v771 = vpack.c.b16 %v603, %v599
    %v772 = vpack.c.b16 %v604, %v600
    %v773 = vpack.c.b16 %v605, %v601
    %v774 = vpack.c.b16 %v610, %v606
    %v775 = vpack.c.b16 %v611, %v607
    %v776 = vpack.c.b16 %v612, %v608
    %v777 = vpack.c.b16 %v613, %v609
    %v778 = vpack.c.b16 %v618, %v614
    %v779 = vpack.c.b16 %v619, %v615
    %v780 = vpack.c.b16 %v620, %v616
    %v781 = vpack.c.b16 %v621, %v617
    %v782 = vpack.c.b16 %v626, %v622
    %v783 = vpack.c.b16 %v627, %v623
    %v784 = vpack.c.b16 %v628, %v624
    %v785 = vpack.c.b16 %v629, %v625
    %v786 = vpack.c.b16 %v634, %v630
    %v787 = vpack.c.b16 %v635, %v631
    %v788 = vpack.c.b16 %v636, %v632
    %v789 = vpack.c.b16 %v637, %v633
    %v790 = vpack.c.b16 %v642, %v638
    %v791 = vpack.c.b16 %v643, %v639
    %v792 = vpack.c.b16 %v644, %v640
    %v793 = vpack.c.b16 %v645, %v641
    %vm938 = vcmask 621568
    %v940 = vsel %vm938, %v31, 0
    %vm942 = vcmask 1045504
    %v944 = vsel %vm942, %v790, 0
    %v947 = vsel %vm942, %v791, 0
    %v950 = vsel %vm942, %v792, 0
    %v953 = vsel %vm942, %v793, 0
    %955 = vmatprep.subr.bf16.mxu0 %v647
    %956 = vmatpush1.bf16.msra.mxu0 %v646
    %957 = vmatprep.subr.bf16.mxu0 %v651
    %958 = vmatpush1.bf16.msra.mxu0 %v650
    %959 = vmatprep.subr.bf16.mxu0 %v655
    %960 = vmatpush1.bf16.msra.mxu0 %v654
    %961 = vmatprep.subr.bf16.mxu0 %v659
    %962 = vmatpush1.bf16.msra.mxu0 %v658
    %963 = vmatprep.subr.bf16.mxu0 %v663
    %964 = vmatpush1.bf16.msra.mxu0 %v662
    %965 = vmatprep.subr.bf16.mxu0 %v667
    %966 = vmatpush1.bf16.msra.mxu0 %v666
    %967 = vmatprep.subr.bf16.mxu0 %v671
    %968 = vmatpush1.bf16.msra.mxu0 %v670
    %969 = vmatprep.subr.bf16.mxu0 %v675
    %970 = vmatpush1.bf16.msra.mxu0 %v674
    %971 = vmatprep.subr.bf16.mxu0 %v679
    %972 = vmatpush1.bf16.msra.mxu0 %v678
    %973 = vmatprep.subr.bf16.mxu0 %v683
    %974 = vmatpush1.bf16.msra.mxu0 %v682
    %975 = vmatprep.subr.bf16.mxu0 %v687
    %976 = vmatpush1.bf16.msra.mxu0 %v686
    %977 = vmatprep.subr.bf16.mxu0 %v691
    %978 = vmatpush1.bf16.msra.mxu0 %v690
    %979 = vmatprep.subr.bf16.mxu0 %v695
    %980 = vmatpush1.bf16.msra.mxu0 %v694
    %981 = vmatprep.subr.bf16.mxu0 %v699
    %982 = vmatpush1.bf16.msra.mxu0 %v698
    %983 = vmatprep.subr.bf16.mxu0 %v703
    %984 = vmatpush1.bf16.msra.mxu0 %v702
    %985 = vmatprep.subr.bf16.mxu0 %v707
    %986 = vmatpush1.bf16.msra.mxu0 %v706
    %987 = vmatprep.mubr.bf16.mxu0 %v28
    %988 = vmatmul.mubr.bf16.gmra.mrb[0].mxu0 %v27
    %v989 = vpop.f32.mrb[0].mxu0
    %v990 = vadd.f32 %v185, %v989
    %v991 = vpop.f32.mrb[0].mxu0
    %v992 = vadd.f32 %v189, %v991
    %v993 = vpop.f32.mrb[0].mxu0
    %v994 = vpop.f32.mrb[0].mxu0
    %995 = vdwg.mxu0
    %996 = vmatprep.subr.bf16.mxu0 %v711
    %997 = vmatpush1.bf16.msra.mxu0 %v710
    %998 = vmatprep.subr.bf16.mxu0 %v715
    %999 = vmatpush1.bf16.msra.mxu0 %v714
    %1000 = vmatprep.subr.bf16.mxu0 %v719
    %1001 = vmatpush1.bf16.msra.mxu0 %v718
    %1002 = vmatprep.subr.bf16.mxu0 %v723
    %1003 = vmatpush1.bf16.msra.mxu0 %v722
    %1004 = vmatprep.subr.bf16.mxu0 %v727
    %1005 = vmatpush1.bf16.msra.mxu0 %v726
    %1006 = vmatprep.subr.bf16.mxu0 %v731
    %1007 = vmatpush1.bf16.msra.mxu0 %v730
    %1008 = vmatprep.subr.bf16.mxu0 %v735
    %1009 = vmatpush1.bf16.msra.mxu0 %v734
    %1010 = vmatprep.subr.bf16.mxu0 %v739
    %1011 = vmatpush1.bf16.msra.mxu0 %v738
    %1012 = vmatprep.subr.bf16.mxu0 %v743
    %1013 = vmatpush1.bf16.msra.mxu0 %v742
    %1014 = vmatprep.subr.bf16.mxu0 %v747
    %1015 = vmatpush1.bf16.msra.mxu0 %v746
    %1016 = vmatprep.subr.bf16.mxu0 %v751
    %1017 = vmatpush1.bf16.msra.mxu0 %v750
    %1018 = vmatprep.subr.bf16.mxu0 %v755
    %1019 = vmatpush1.bf16.msra.mxu0 %v754
    %1020 = vmatprep.subr.bf16.mxu0 %v759
    %1021 = vmatpush1.bf16.msra.mxu0 %v758
    %1022 = vmatprep.subr.bf16.mxu0 %v763
    %1023 = vmatpush1.bf16.msra.mxu0 %v762
    %1024 = vmatprep.subr.bf16.mxu0 %v767
    %1025 = vmatpush1.bf16.msra.mxu0 %v766
    %1026 = vmatprep.subr.bf16.mxu0 %v771
    %1027 = vmatpush1.bf16.msra.mxu0 %v770
    %1028 = vmatprep.mubr.bf16.mxu0 %v30
    %1029 = vmatmul.mubr.bf16.gmra.mrb[0].mxu0 %v29
    %v1030 = vpop.f32.mrb[0].mxu0
    %v1031 = vadd.f32 %v990, %v1030
    %v1032 = vpop.f32.mrb[0].mxu0
    %v1033 = vadd.f32 %v992, %v1032
    %v1034 = vpop.f32.mrb[0].mxu0
    %v1035 = vpop.f32.mrb[0].mxu0
    %1036 = vdwg.mxu0
    %1037 = vmatprep.subr.bf16.mxu0 %v775
    %1038 = vmatpush1.bf16.msra.mxu0 %v774
    %1039 = vmatprep.subr.bf16.mxu0 %v779
    %1040 = vmatpush1.bf16.msra.mxu0 %v778
    %1041 = vmatprep.subr.bf16.mxu0 %v783
    %1042 = vmatpush1.bf16.msra.mxu0 %v782
    %1043 = vmatprep.subr.bf16.mxu0 %v787
    %1044 = vmatpush1.bf16.msra.mxu0 %v786
    %1045 = vmatprep.subr.bf16.mxu0 %v947
    %1046 = vmatpush1.bf16.msra.mxu0 %v944
    %1047 = vmatprep.subr.bf16.mxu0 0
    %1048 = vmatpush1.bf16.msra.mxu0 0
    %1049 = vmatprep.subr.bf16.mxu0 0
    %1050 = vmatpush1.bf16.msra.mxu0 0
    %1051 = vmatprep.subr.bf16.mxu0 0
    %1052 = vmatpush1.bf16.msra.mxu0 0
    %1053 = vmatprep.subr.bf16.mxu0 0
    %1054 = vmatpush1.bf16.msra.mxu0 0
    %1055 = vmatprep.subr.bf16.mxu0 0
    %1056 = vmatpush1.bf16.msra.mxu0 0
    %1057 = vmatprep.subr.bf16.mxu0 0
    %1058 = vmatpush1.bf16.msra.mxu0 0
    %1059 = vmatprep.subr.bf16.mxu0 0
    %1060 = vmatpush1.bf16.msra.mxu0 0
    %1061 = vmatprep.subr.bf16.mxu0 0
    %1062 = vmatpush1.bf16.msra.mxu0 0
    %1063 = vmatprep.subr.bf16.mxu0 0
    %1064 = vmatpush1.bf16.msra.mxu0 0
    %1065 = vmatprep.subr.bf16.mxu0 0
    %1066 = vmatpush1.bf16.msra.mxu0 0
    %1067 = vmatprep.subr.bf16.mxu0 0
    %1068 = vmatpush1.bf16.msra.mxu0 0
    %1069 = vmatprep.mubr.bf16.mxu0 0
    %1070 = vmatmul.mubr.bf16.gmra.mrb[0].mxu0 %v940
    %v1071 = vpop.f32.mrb[0].mxu0
    %v1072 = vadd.f32 %v1031, %v1071
    %v1073 = vpop.f32.mrb[0].mxu0
    %v1074 = vadd.f32 %v1033, %v1073
    %v1075 = vpop.f32.mrb[0].mxu0
    %v1076 = vpop.f32.mrb[0].mxu0
    %1077 = vdwg.mxu0
    %1078 = vmatprep.subr.bf16.mxu0 %v649
    %1079 = vmatpush1.bf16.msra.mxu0 %v648
    %1080 = vmatprep.subr.bf16.mxu0 %v653
    %1081 = vmatpush1.bf16.msra.mxu0 %v652
    %1082 = vmatprep.subr.bf16.mxu0 %v657
    %1083 = vmatpush1.bf16.msra.mxu0 %v656
    %1084 = vmatprep.subr.bf16.mxu0 %v661
    %1085 = vmatpush1.bf16.msra.mxu0 %v660
    %1086 = vmatprep.subr.bf16.mxu0 %v665
    %1087 = vmatpush1.bf16.msra.mxu0 %v664
    %1088 = vmatprep.subr.bf16.mxu0 %v669
    %1089 = vmatpush1.bf16.msra.mxu0 %v668
    %1090 = vmatprep.subr.bf16.mxu0 %v673
    %1091 = vmatpush1.bf16.msra.mxu0 %v672
    %1092 = vmatprep.subr.bf16.mxu0 %v677
    %1093 = vmatpush1.bf16.msra.mxu0 %v676
    %1094 = vmatprep.subr.bf16.mxu0 %v681
    %1095 = vmatpush1.bf16.msra.mxu0 %v680
    %1096 = vmatprep.subr.bf16.mxu0 %v685
    %1097 = vmatpush1.bf16.msra.mxu0 %v684
    %1098 = vmatprep.subr.bf16.mxu0 %v689
    %1099 = vmatpush1.bf16.msra.mxu0 %v688
    %1100 = vmatprep.subr.bf16.mxu0 %v693
    %1101 = vmatpush1.bf16.msra.mxu0 %v692
    %1102 = vmatprep.subr.bf16.mxu0 %v697
    %1103 = vmatpush1.bf16.msra.mxu0 %v696
    %1104 = vmatprep.subr.bf16.mxu0 %v701
    %1105 = vmatpush1.bf16.msra.mxu0 %v700
    %1106 = vmatprep.subr.bf16.mxu0 %v705
    %1107 = vmatpush1.bf16.msra.mxu0 %v704
    %1108 = vmatprep.subr.bf16.mxu0 %v709
    %1109 = vmatpush1.bf16.msra.mxu0 %v708
    %1110 = vmatprep.mubr.bf16.mxu0 %v28
    %1111 = vmatmul.mubr.bf16.gmra.mrb[0].mxu0 %v27
    %v1112 = vpop.f32.mrb[0].mxu0
    %v1113 = vadd.f32 %v193, %v1112
    %v1114 = vpop.f32.mrb[0].mxu0
    %v1115 = vadd.f32 %v197, %v1114
    %v1116 = vpop.f32.mrb[0].mxu0
    %v1117 = vpop.f32.mrb[0].mxu0
    %1118 = vdwg.mxu0
    %1119 = vmatprep.subr.bf16.mxu0 %v713
    %1120 = vmatpush1.bf16.msra.mxu0 %v712
    %1121 = vmatprep.subr.bf16.mxu0 %v717
    %1122 = vmatpush1.bf16.msra.mxu0 %v716
    %1123 = vmatprep.subr.bf16.mxu0 %v721
    %1124 = vmatpush1.bf16.msra.mxu0 %v720
    %1125 = vmatprep.subr.bf16.mxu0 %v725
    %1126 = vmatpush1.bf16.msra.mxu0 %v724
    %1127 = vmatprep.subr.bf16.mxu0 %v729
    %1128 = vmatpush1.bf16.msra.mxu0 %v728
    %1129 = vmatprep.subr.bf16.mxu0 %v733
    %1130 = vmatpush1.bf16.msra.mxu0 %v732
    %1131 = vmatprep.subr.bf16.mxu0 %v737
    %1132 = vmatpush1.bf16.msra.mxu0 %v736
    %1133 = vmatprep.subr.bf16.mxu0 %v741
    %1134 = vmatpush1.bf16.msra.mxu0 %v740
    %1135 = vmatprep.subr.bf16.mxu0 %v745
    %1136 = vmatpush1.bf16.msra.mxu0 %v744
    %1137 = vmatprep.subr.bf16.mxu0 %v749
    %1138 = vmatpush1.bf16.msra.mxu0 %v748
    %1139 = vmatprep.subr.bf16.mxu0 %v753
    %1140 = vmatpush1.bf16.msra.mxu0 %v752
    %1141 = vmatprep.subr.bf16.mxu0 %v757
    %1142 = vmatpush1.bf16.msra.mxu0 %v756
    %1143 = vmatprep.subr.bf16.mxu0 %v761
    %1144 = vmatpush1.bf16.msra.mxu0 %v760
    %1145 = vmatprep.subr.bf16.mxu0 %v765
    %1146 = vmatpush1.bf16.msra.mxu0 %v764
    %1147 = vmatprep.subr.bf16.mxu0 %v769
    %1148 = vmatpush1.bf16.msra.mxu0 %v768
    %1149 = vmatprep.subr.bf16.mxu0 %v773
    %1150 = vmatpush1.bf16.msra.mxu0 %v772
    %1151 = vmatprep.mubr.bf16.mxu0 %v30
    %1152 = vmatmul.mubr.bf16.gmra.mrb[0].mxu0 %v29
    %v1153 = vpop.f32.mrb[0].mxu0
    %v1154 = vadd.f32 %v1113, %v1153
    %v1155 = vpop.f32.mrb[0].mxu0
    %v1156 = vadd.f32 %v1115, %v1155
    %v1157 = vpop.f32.mrb[0].mxu0
    %v1158 = vpop.f32.mrb[0].mxu0
    %1159 = vdwg.mxu0
    %1160 = vmatprep.subr.bf16.mxu0 %v777
    %1161 = vmatpush1.bf16.msra.mxu0 %v776
    %1162 = vmatprep.subr.bf16.mxu0 %v781
    %1163 = vmatpush1.bf16.msra.mxu0 %v780
    %1164 = vmatprep.subr.bf16.mxu0 %v785
    %1165 = vmatpush1.bf16.msra.mxu0 %v784
    %1166 = vmatprep.subr.bf16.mxu0 %v789
    %1167 = vmatpush1.bf16.msra.mxu0 %v788
    %1168 = vmatprep.subr.bf16.mxu0 %v953
    %1169 = vmatpush1.bf16.msra.mxu0 %v950
    %1170 = vmatprep.subr.bf16.mxu0 0
    %1171 = vmatpush1.bf16.msra.mxu0 0
    %1172 = vmatprep.subr.bf16.mxu0 0
    %1173 = vmatpush1.bf16.msra.mxu0 0
    %1174 = vmatprep.subr.bf16.mxu0 0
    %1175 = vmatpush1.bf16.msra.mxu0 0
    %1176 = vmatprep.subr.bf16.mxu0 0
    %1177 = vmatpush1.bf16.msra.mxu0 0
    %1178 = vmatprep.subr.bf16.mxu0 0
    %1179 = vmatpush1.bf16.msra.mxu0 0
    %1180 = vmatprep.subr.bf16.mxu0 0
    %1181 = vmatpush1.bf16.msra.mxu0 0
    %1182 = vmatprep.subr.bf16.mxu0 0
    %1183 = vmatpush1.bf16.msra.mxu0 0
    %1184 = vmatprep.subr.bf16.mxu0 0
    %1185 = vmatpush1.bf16.msra.mxu0 0
    %1186 = vmatprep.subr.bf16.mxu0 0
    %1187 = vmatpush1.bf16.msra.mxu0 0
    %1188 = vmatprep.subr.bf16.mxu0 0
    %1189 = vmatpush1.bf16.msra.mxu0 0
    %1190 = vmatprep.subr.bf16.mxu0 0
    %1191 = vmatpush1.bf16.msra.mxu0 0
    %1192 = vmatprep.mubr.bf16.mxu0 0
    %1193 = vmatmul.mubr.bf16.gmra.mrb[0].mxu0 %v940
    %v1194 = vpop.f32.mrb[0].mxu0
    %v1195 = vadd.f32 %v1154, %v1194
    %v1196 = vpop.f32.mrb[0].mxu0
    %v1197 = vadd.f32 %v1156, %v1196
    %v1198 = vpop.f32.mrb[0].mxu0
    %v1199 = vpop.f32.mrb[0].mxu0
    %1200 = vdwg.mxu0
    %v1201 = vld [vmem:[%s3] sm:$0x77]
    %v1202 = vld [vmem:[%s3 + $0x8] sm:$0x77]
    %v1205 = vcombine.high %v1201, %v1201
    %v1206 = vcombine.high %v1202, %v1202
    %1209 = vmatprep.subr.mxu0 %v1074
    %1210 = vmatpush1.xpose.msra.mxu0 %v1072
    %1211 = vmatprep.subr.mxu0 0.0
    %1212 = vmatpush1.xpose.msra.mxu0 0.0
    %1213 = vmatprep.subr.mxu0 0.0
    %1214 = vmatpush1.xpose.msra.mxu0 0.0
    %1215 = vmatprep.subr.mxu0 0.0
    %1216 = vmatpush1.xpose.msra.mxu0 0.0
    %1217 = vmatprep.subr.mxu0 0.0
    %1218 = vmatpush1.xpose.msra.mxu0 0.0
    %1219 = vmatprep.subr.mxu0 0.0
    %1220 = vmatpush1.xpose.msra.mxu0 0.0
    %1221 = vmatprep.subr.mxu0 0.0
    %1222 = vmatpush1.xpose.msra.mxu0 0.0
    %1223 = vmatprep.subr.mxu0 0.0
    %1224 = vmatpush1.xpose.msra.mxu0 0.0
    %1225 = vmatprep.subr.mxu0 0.0
    %1226 = vmatpush1.xpose.msra.mxu0 0.0
    %1227 = vmatprep.subr.mxu0 0.0
    %1228 = vmatpush1.xpose.msra.mxu0 0.0
    %1229 = vmatprep.subr.mxu0 0.0
    %1230 = vmatpush1.xpose.msra.mxu0 0.0
    %1231 = vmatprep.subr.mxu0 0.0
    %1232 = vmatpush1.xpose.msra.mxu0 0.0
    %1233 = vmatprep.subr.mxu0 0.0
    %1234 = vmatpush1.xpose.msra.mxu0 0.0
    %1235 = vmatprep.subr.mxu0 0.0
    %1236 = vmatpush1.xpose.msra.mxu0 0.0
    %1237 = vmatprep.subr.mxu0 0.0
    %1238 = vmatpush1.xpose.msra.mxu0 0.0
    %1239 = vmatprep.subr.mxu0 0.0
    %1240 = vmatpush1.xpose.msra.mxu0 0.0
    %1241 = vmatprep.subr.mxu0 0.0
    %1242 = vmatpush1.xpose.msra.mxu0 0.0
    %1243 = vmatprep.subr.mxu0 0.0
    %1244 = vmatpush1.xpose.msra.mxu0 0.0
    %1245 = vmatprep.subr.mxu0 0.0
    %1246 = vmatpush1.xpose.msra.mxu0 0.0
    %1247 = vmatprep.subr.mxu0 0.0
    %1248 = vmatpush1.xpose.msra.mxu0 0.0
    %1249 = vmatprep.subr.mxu0 0.0
    %1250 = vmatpush1.xpose.msra.mxu0 0.0
    %1251 = vmatprep.subr.mxu0 0.0
    %1252 = vmatpush1.xpose.msra.mxu0 0.0
    %1253 = vmatprep.subr.mxu0 0.0
    %1254 = vmatpush1.xpose.msra.mxu0 0.0
    %1255 = vmatprep.subr.mxu0 0.0
    %1256 = vmatpush1.xpose.msra.mxu0 0.0
    %1257 = vmatprep.subr.mxu0 0.0
    %1258 = vmatpush1.xpose.msra.mxu0 0.0
    %1259 = vmatprep.subr.mxu0 0.0
    %1260 = vmatpush1.xpose.msra.mxu0 0.0
    %1261 = vmatprep.subr.mxu0 0.0
    %1262 = vmatpush1.xpose.msra.mxu0 0.0
    %1263 = vmatprep.subr.mxu0 0.0
    %1264 = vmatpush1.xpose.msra.mxu0 0.0
    %1265 = vmatprep.subr.mxu0 0.0
    %1266 = vmatpush1.xpose.msra.mxu0 0.0
    %1267 = vmatprep.subr.mxu0 0.0
    %1268 = vmatpush1.xpose.msra.mxu0 0.0
    %1269 = vmatprep.subr.mxu0 0.0
    %1270 = vmatpush1.xpose.msra.mxu0 0.0
    %1271 = vmatprep.subr.mxu0 0.0
    %1272 = vmatpush1.xpose.msra.mxu0 0.0
    %1273 = vmatprep.mubr.f32.mxu0 %v1205
    %1274 = vmatmul.mubr.f32.gmra.mrb[0].mxu0 %v1201
    %v1275 = vpop.f32.mrb[0].mxu0
    %v1276 = vadd.f32 0.0, %v1275
    %v1277 = vpop.f32.mrb[0].mxu0
    %1278 = vdwg.mxu0
    %1279 = vmatprep.subr.mxu0 %v1197
    %1280 = vmatpush1.xpose.msra.mxu0 %v1195
    %1281 = vmatprep.subr.mxu0 0.0
    %1282 = vmatpush1.xpose.msra.mxu0 0.0
    %1283 = vmatprep.subr.mxu0 0.0
    %1284 = vmatpush1.xpose.msra.mxu0 0.0
    %1285 = vmatprep.subr.mxu0 0.0
    %1286 = vmatpush1.xpose.msra.mxu0 0.0
    %1287 = vmatprep.subr.mxu0 0.0
    %1288 = vmatpush1.xpose.msra.mxu0 0.0
    %1289 = vmatprep.subr.mxu0 0.0
    %1290 = vmatpush1.xpose.msra.mxu0 0.0
    %1291 = vmatprep.subr.mxu0 0.0
    %1292 = vmatpush1.xpose.msra.mxu0 0.0
    %1293 = vmatprep.subr.mxu0 0.0
    %1294 = vmatpush1.xpose.msra.mxu0 0.0
    %1295 = vmatprep.subr.mxu0 0.0
    %1296 = vmatpush1.xpose.msra.mxu0 0.0
    %1297 = vmatprep.subr.mxu0 0.0
    %1298 = vmatpush1.xpose.msra.mxu0 0.0
    %1299 = vmatprep.subr.mxu0 0.0
    %1300 = vmatpush1.xpose.msra.mxu0 0.0
    %1301 = vmatprep.subr.mxu0 0.0
    %1302 = vmatpush1.xpose.msra.mxu0 0.0
    %1303 = vmatprep.subr.mxu0 0.0
    %1304 = vmatpush1.xpose.msra.mxu0 0.0
    %1305 = vmatprep.subr.mxu0 0.0
    %1306 = vmatpush1.xpose.msra.mxu0 0.0
    %1307 = vmatprep.subr.mxu0 0.0
    %1308 = vmatpush1.xpose.msra.mxu0 0.0
    %1309 = vmatprep.subr.mxu0 0.0
    %1310 = vmatpush1.xpose.msra.mxu0 0.0
    %1311 = vmatprep.subr.mxu0 0.0
    %1312 = vmatpush1.xpose.msra.mxu0 0.0
    %1313 = vmatprep.subr.mxu0 0.0
    %1314 = vmatpush1.xpose.msra.mxu0 0.0
    %1315 = vmatprep.subr.mxu0 0.0
    %1316 = vmatpush1.xpose.msra.mxu0 0.0
    %1317 = vmatprep.subr.mxu0 0.0
    %1318 = vmatpush1.xpose.msra.mxu0 0.0
    %1319 = vmatprep.subr.mxu0 0.0
    %1320 = vmatpush1.xpose.msra.mxu0 0.0
    %1321 = vmatprep.subr.mxu0 0.0
    %1322 = vmatpush1.xpose.msra.mxu0 0.0
    %1323 = vmatprep.subr.mxu0 0.0
    %1324 = vmatpush1.xpose.msra.mxu0 0.0
    %1325 = vmatprep.subr.mxu0 0.0
    %1326 = vmatpush1.xpose.msra.mxu0 0.0
    %1327 = vmatprep.subr.mxu0 0.0
    %1328 = vmatpush1.xpose.msra.mxu0 0.0
    %1329 = vmatprep.subr.mxu0 0.0
    %1330 = vmatpush1.xpose.msra.mxu0 0.0
    %1331 = vmatprep.subr.mxu0 0.0
    %1332 = vmatpush1.xpose.msra.mxu0 0.0
    %1333 = vmatprep.subr.mxu0 0.0
    %1334 = vmatpush1.xpose.msra.mxu0 0.0
    %1335 = vmatprep.subr.mxu0 0.0
    %1336 = vmatpush1.xpose.msra.mxu0 0.0
    %1337 = vmatprep.subr.mxu0 0.0
    %1338 = vmatpush1.xpose.msra.mxu0 0.0
    %1339 = vmatprep.subr.mxu0 0.0
    %1340 = vmatpush1.xpose.msra.mxu0 0.0
    %1341 = vmatprep.subr.mxu0 0.0
    %1342 = vmatpush1.xpose.msra.mxu0 0.0
    %1343 = vmatprep.mubr.f32.mxu0 %v1206
    %1344 = vmatmul.mubr.f32.gmra.mrb[0].mxu0 %v1202
    %v1345 = vpop.f32.mrb[0].mxu0
    %v1346 = vadd.f32 %v1276, %v1345
    %v1347 = vpop.f32.mrb[0].mxu0
    %1348 = vdwg.mxu0
    %v1349 = vmul.f32 %v1201, %v1201
    %v1350 = vmul.f32 %v1202, %v1202
    %v1353 = vcombine.high %v1349, %v1349
    %v1354 = vcombine.high %v1350, %v1350
    %vm1357 = vcmask 1042432
    %v1358 = vsel %vm1357, %v1349, 0.0
    %v1359 = vsel %vm1357, %v1353, 0.0
    %v1360 = vadd.f32 %v1358, %v1359
    %v1361 = vsel %vm1357, %v1350, 0.0
    %v1362 = vadd.f32 %v1360, %v1361
    %v1363 = vsel %vm1357, %v1354, 0.0
    %v1364 = vadd.f32 %v1362, %v1363
    %1365 = vadd.xlane.f32.xlu0 %v1364
    %v1366 = vpop.xlane.xlu0 %1365
    %v1367 = vrsqrt.pop %v1366
    %v1368 = vmul.f32 %v1366, %v1367
    %vm1369 = vcmp.eq.f32.partialorder %v1366, inf
    %v1370 = vsel %vm1369, %v1366, %v1368
    %vm1371 = vcmp.eq.f32.partialorder %v1366, 0.0
    %v1372 = vand.u32 %v1366, 2147483648
    %v1373 = vsel %vm1371, %v1372, %v1370
    %v1374 = vmax.f32 %v1373, 1e-08
    %v1375 = vmul.f32 %v1072, %v1072
    %v1376 = vmul.f32 %v1074, %v1074
    %v1377 = vmul.f32 %v1195, %v1195
    %v1378 = vmul.f32 %v1197, %v1197
    %1379 = vmatprep.subr.mxu0 %v1376
    %1380 = vmatpush1.xpose.msra.mxu0 %v1375
    %1381 = vmatprep.subr.mxu0 0.0
    %1382 = vmatpush1.xpose.msra.mxu0 0.0
    %1383 = vmatprep.subr.mxu0 0.0
    %1384 = vmatpush1.xpose.msra.mxu0 0.0
    %1385 = vmatprep.subr.mxu0 0.0
    %1386 = vmatpush1.xpose.msra.mxu0 0.0
    %1387 = vmatprep.subr.mxu0 0.0
    %1388 = vmatpush1.xpose.msra.mxu0 0.0
    %1389 = vmatprep.subr.mxu0 0.0
    %1390 = vmatpush1.xpose.msra.mxu0 0.0
    %1391 = vmatprep.subr.mxu0 0.0
    %1392 = vmatpush1.xpose.msra.mxu0 0.0
    %1393 = vmatprep.subr.mxu0 0.0
    %1394 = vmatpush1.xpose.msra.mxu0 0.0
    %1395 = vmatprep.subr.mxu0 0.0
    %1396 = vmatpush1.xpose.msra.mxu0 0.0
    %1397 = vmatprep.subr.mxu0 0.0
    %1398 = vmatpush1.xpose.msra.mxu0 0.0
    %1399 = vmatprep.subr.mxu0 0.0
    %1400 = vmatpush1.xpose.msra.mxu0 0.0
    %1401 = vmatprep.subr.mxu0 0.0
    %1402 = vmatpush1.xpose.msra.mxu0 0.0
    %1403 = vmatprep.subr.mxu0 0.0
    %1404 = vmatpush1.xpose.msra.mxu0 0.0
    %1405 = vmatprep.subr.mxu0 0.0
    %1406 = vmatpush1.xpose.msra.mxu0 0.0
    %1407 = vmatprep.subr.mxu0 0.0
    %1408 = vmatpush1.xpose.msra.mxu0 0.0
    %1409 = vmatprep.subr.mxu0 0.0
    %1410 = vmatpush1.xpose.msra.mxu0 0.0
    %1411 = vmatprep.subr.mxu0 0.0
    %1412 = vmatpush1.xpose.msra.mxu0 0.0
    %1413 = vmatprep.subr.mxu0 0.0
    %1414 = vmatpush1.xpose.msra.mxu0 0.0
    %1415 = vmatprep.subr.mxu0 0.0
    %1416 = vmatpush1.xpose.msra.mxu0 0.0
    %1417 = vmatprep.subr.mxu0 0.0
    %1418 = vmatpush1.xpose.msra.mxu0 0.0
    %1419 = vmatprep.subr.mxu0 0.0
    %1420 = vmatpush1.xpose.msra.mxu0 0.0
    %1421 = vmatprep.subr.mxu0 0.0
    %1422 = vmatpush1.xpose.msra.mxu0 0.0
    %1423 = vmatprep.subr.mxu0 0.0
    %1424 = vmatpush1.xpose.msra.mxu0 0.0
    %1425 = vmatprep.subr.mxu0 0.0
    %1426 = vmatpush1.xpose.msra.mxu0 0.0
    %1427 = vmatprep.subr.mxu0 0.0
    %1428 = vmatpush1.xpose.msra.mxu0 0.0
    %1429 = vmatprep.subr.mxu0 0.0
    %1430 = vmatpush1.xpose.msra.mxu0 0.0
    %1431 = vmatprep.subr.mxu0 0.0
    %1432 = vmatpush1.xpose.msra.mxu0 0.0
    %1433 = vmatprep.subr.mxu0 0.0
    %1434 = vmatpush1.xpose.msra.mxu0 0.0
    %1435 = vmatprep.subr.mxu0 0.0
    %1436 = vmatpush1.xpose.msra.mxu0 0.0
    %1437 = vmatprep.subr.mxu0 0.0
    %1438 = vmatpush1.xpose.msra.mxu0 0.0
    %1439 = vmatprep.subr.mxu0 0.0
    %1440 = vmatpush1.xpose.msra.mxu0 0.0
    %1441 = vmatprep.subr.mxu0 0.0
    %1442 = vmatpush1.xpose.msra.mxu0 0.0
    %1443 = vmatprep.mubr.f32.mxu0 1.0
    %1444 = vmatmul.mubr.f32.gmra.mrb[0].mxu0 1.0
    %v1445 = vpop.f32.mrb[0].mxu0
    %v1446 = vadd.f32 0.0, %v1445
    %v1447 = vpop.f32.mrb[0].mxu0
    %1448 = vdwg.mxu0
    %1449 = vmatprep.subr.mxu0 %v1378
    %1450 = vmatpush1.xpose.msra.mxu0 %v1377
    %1451 = vmatprep.subr.mxu0 0.0
    %1452 = vmatpush1.xpose.msra.mxu0 0.0
    %1453 = vmatprep.subr.mxu0 0.0
    %1454 = vmatpush1.xpose.msra.mxu0 0.0
    %1455 = vmatprep.subr.mxu0 0.0
    %1456 = vmatpush1.xpose.msra.mxu0 0.0
    %1457 = vmatprep.subr.mxu0 0.0
    %1458 = vmatpush1.xpose.msra.mxu0 0.0
    %1459 = vmatprep.subr.mxu0 0.0
    %1460 = vmatpush1.xpose.msra.mxu0 0.0
    %1461 = vmatprep.subr.mxu0 0.0
    %1462 = vmatpush1.xpose.msra.mxu0 0.0
    %1463 = vmatprep.subr.mxu0 0.0
    %1464 = vmatpush1.xpose.msra.mxu0 0.0
    %1465 = vmatprep.subr.mxu0 0.0
    %1466 = vmatpush1.xpose.msra.mxu0 0.0
    %1467 = vmatprep.subr.mxu0 0.0
    %1468 = vmatpush1.xpose.msra.mxu0 0.0
    %1469 = vmatprep.subr.mxu0 0.0
    %1470 = vmatpush1.xpose.msra.mxu0 0.0
    %1471 = vmatprep.subr.mxu0 0.0
    %1472 = vmatpush1.xpose.msra.mxu0 0.0
    %1473 = vmatprep.subr.mxu0 0.0
    %1474 = vmatpush1.xpose.msra.mxu0 0.0
    %1475 = vmatprep.subr.mxu0 0.0
    %1476 = vmatpush1.xpose.msra.mxu0 0.0
    %1477 = vmatprep.subr.mxu0 0.0
    %1478 = vmatpush1.xpose.msra.mxu0 0.0
    %1479 = vmatprep.subr.mxu0 0.0
    %1480 = vmatpush1.xpose.msra.mxu0 0.0
    %1481 = vmatprep.subr.mxu0 0.0
    %1482 = vmatpush1.xpose.msra.mxu0 0.0
    %1483 = vmatprep.subr.mxu0 0.0
    %1484 = vmatpush1.xpose.msra.mxu0 0.0
    %1485 = vmatprep.subr.mxu0 0.0
    %1486 = vmatpush1.xpose.msra.mxu0 0.0
    %1487 = vmatprep.subr.mxu0 0.0
    %1488 = vmatpush1.xpose.msra.mxu0 0.0
    %1489 = vmatprep.subr.mxu0 0.0
    %1490 = vmatpush1.xpose.msra.mxu0 0.0
    %1491 = vmatprep.subr.mxu0 0.0
    %1492 = vmatpush1.xpose.msra.mxu0 0.0
    %1493 = vmatprep.subr.mxu0 0.0
    %1494 = vmatpush1.xpose.msra.mxu0 0.0
    %1495 = vmatprep.subr.mxu0 0.0
    %1496 = vmatpush1.xpose.msra.mxu0 0.0
    %1497 = vmatprep.subr.mxu0 0.0
    %1498 = vmatpush1.xpose.msra.mxu0 0.0
    %1499 = vmatprep.subr.mxu0 0.0
    %1500 = vmatpush1.xpose.msra.mxu0 0.0
    %1501 = vmatprep.subr.mxu0 0.0
    %1502 = vmatpush1.xpose.msra.mxu0 0.0
    %1503 = vmatprep.subr.mxu0 0.0
    %1504 = vmatpush1.xpose.msra.mxu0 0.0
    %1505 = vmatprep.subr.mxu0 0.0
    %1506 = vmatpush1.xpose.msra.mxu0 0.0
    %1507 = vmatprep.subr.mxu0 0.0
    %1508 = vmatpush1.xpose.msra.mxu0 0.0
    %1509 = vmatprep.subr.mxu0 0.0
    %1510 = vmatpush1.xpose.msra.mxu0 0.0
    %1511 = vmatprep.subr.mxu0 0.0
    %1512 = vmatpush1.xpose.msra.mxu0 0.0
    %1513 = vmatprep.mubr.f32.mxu0 1.0
    %1514 = vmatmul.mubr.f32.gmra.mrb[0].mxu0 1.0
    %v1515 = vpop.f32.mrb[0].mxu0
    %v1516 = vadd.f32 %v1446, %v1515
    %v1517 = vpop.f32.mrb[0].mxu0
    %1518 = vdwg.mxu0
    %v1519 = vrsqrt.pop %v1516
    %v1520 = vmul.f32 %v1516, %v1519
    %vm1521 = vcmp.eq.f32.partialorder %v1516, inf
    %v1522 = vsel %vm1521, %v1516, %v1520
    %vm1523 = vcmp.eq.f32.partialorder %v1516, 0.0
    %v1524 = vand.u32 %v1516, 2147483648
    %v1525 = vsel %vm1523, %v1524, %v1522
    %v1526 = vmax.f32 %v1525, 1e-08
    %v1527 = vlaneseq
    %v1528 = vshrl.u32 %v1527, 7
    %v1529 = vsub.s32 0, %v1528
    %v1530 = vrot.slane %v1526, %v1529
    %v1531 = vmul.f32 %v1374, %v1530
    %v1532 = vrcp.pop %v1531
    %v1533 = vmul.f32 %v1346, %v1532
    %vm1534 = vcmask 59392
    %v1535 = vsel %vm1534, %v1533, 0.0
    %1536 = vadd.xlane.f32.xlu0 %v1535
    %v1537 = vpop.xlane.xlu0 %1536
    %v1538 = vrcp.pop 8.0
    %v1539 = vmul.f32 %v1537, %v1538
    %v1540 = vld [vmem:[%s4] sm:$0x7]
    %v1541 = vmul.f32 %v1540, %v1539
    %vm1542 = vcmask 2048
    %v1543 = vsel %vm1542, %v1541, 0.0
    %1544 = vadd.xlane.f32.xlu0 %v1543
    %v1545 = vpop.xlane.xlu0 %1544
    %v1546 = vrot.slane %v1545, 4
    %v1547 = vadd.f32 %v1545, %v1546
    %v1548 = vrot.slane %v1547, 2
    %v1549 = vadd.f32 %v1547, %v1548
    %v1550 = vrot.slane %v1549, 1
    %v1551 = vadd.f32 %v1549, %v1550
    %s1552 = vtos %v1551
    %s1553 = scalar_lea.smem [#allocation2], 0
    %1554 = sst [smem:[%s1553]] %s1552
    // Predicated region
    $region22: #{_device_forward.7} parent=1 // pred_check
      _
    $region23: #{_device_forward.7} parent=1 // pred_check_branch
      %1556 = sbr.rel (0) target = $region25
    $region24: #{_device_forward.7} parent=1 // pred_region
      %s1558 = ssub.s32 16, 16
      %1559 = vsyncadd [#allocation3], %s1558
      %1562 = dma.smem_to_hbm [#allocation2], 16, %s5, [#allocation3]
    $region25: #{_device_forward.7} parent=1 // pred_fallthru
      _
    // Predicated region
    $region26: #{_device_forward.7} parent=1 // pred_check
      _
    $region27: #{_device_forward.7} parent=1 // pred_check_branch
      %1564 = sbr.rel (0) target = $region29
    $region28: #{_device_forward.7} parent=1 // pred_region
      %1565 = dma.done [#allocation3], 16
    $region29: #{_device_forward.7} parent=1 // pred_fallthru
      _
    %1566 = sfence
    %1567 = vsyncpa [#allocation3], 1

</llo_original>
